<compile_context>
chip_gen: v5e
topology: v5e:2x2
jax: 0.10.0
libtpu: 0.0.40
codegen_flags: <defaults>
</compile_context>

<pallas_src>
import math

import jax
import jax.numpy as jnp
from jax import lax
from jax.experimental import pallas as pl
from jax.experimental.pallas import tpu as pltpu


# --------------------------------------------------------------------------- #
# Kernel
# --------------------------------------------------------------------------- #
def _make_double_conv_kernel(N, D, H, W, C1, C2, C3, RT, eps=1e-5):
    Dp, Hp = D + 2, H + 2
    R = N * Dp * Hp              # padded-coordinate rows of the stage-2 slab
    NV = N * D * H               # valid output anchor rows
    WC2, WC3 = W * C2, W * C3
    cnt = float(N * D * H * W)   # BatchNorm population per channel
    inv_sqrt2 = 1.0 / math.sqrt(2.0)

    def bn_gelu(acc, p_ref, cout):
        # acc   : (rows, W*cout) conv output on valid rows only (bias not yet added)
        # p_ref : (3, W*cout)    rows = [bias, gamma, beta] per-(w, o) column
        val = acc + p_ref[0:1, :]
        # One-pass stats; fold the W lane groups to per-channel with VPU
        # slice+adds (no MXU weight reloads), broadcast back with a lane concat.
        s1 = jnp.sum(val, axis=0, keepdims=True)               # (1, W*cout)
        s2 = jnp.sum(val * val, axis=0, keepdims=True)
        ss = jnp.concatenate([s1, s2], axis=0)                  # (2, W*cout)
        ch = ss[:, 0:cout]
        for w in range(1, W):
            ch = ch + ss[:, w * cout:(w + 1) * cout]            # (2, cout)
        mean_c = ch[0:1, :] / cnt
        var_c = ch[1:2, :] / cnt - mean_c * mean_c
        inv_c = lax.rsqrt(var_c + eps)
        mi = jnp.concatenate([mean_c, inv_c], axis=0)           # (2, cout)
        mib = jnp.concatenate([mi] * W, axis=1)                 # (2, W*cout)
        scale = p_ref[1:2, :] * mib[1:2, :]
        shift = p_ref[2:3, :] - mib[0:1, :] * scale
        xn = val * scale + shift
        # Exact (erf-based) GELU, PyTorch default.
        return 0.5 * xn * (1.0 + lax.erf(xn * inv_sqrt2))

    def kernel(x1_ref, w1_ref, p1_ref, w2_hbm, p2_ref,
               o_ref, a2_ref, w2_vmem, w2_sem):
        # Prefetch stage-2 banded weights HBM -> VMEM; overlaps stage-1 compute.
        w2_copy = pltpu.make_async_copy(w2_hbm, w2_vmem, w2_sem)
        w2_copy.start()

        # ----- stage 1: Conv3d(C1->C2) + BN + GELU, ONE matmul (K = 9*W*C1) --
        acc1 = jnp.dot(x1_ref[...], w1_ref[...],
                       preferred_element_type=jnp.float32)      # (NV, W*C2)
        y1 = bn_gelu(acc1, p1_ref, C2)

        # ----- hand off: d/h zero-halo padded slab in the flat VMEM scratch --
        y1_4d = y1.reshape(N, D, H, WC2)
        zh = jnp.zeros((N, D, 1, WC2), jnp.float32)
        zd = jnp.zeros((N, 1, Hp, WC2), jnp.float32)
        y1p = jnp.concatenate(
            [zd, jnp.concatenate([zh, y1_4d, zh], axis=2), zd], axis=1)
        a2_ref[0:R, :] = y1p.reshape(R, WC2)
        a2_ref[R:RT, :] = jnp.zeros((RT - R, WC2), jnp.float32)   # spare rows

        # ----- stage 2: Conv3d(C2->C3) + BN + GELU, 9 row-shifted matmuls ----
        w2_copy.wait()
        acc2 = jnp.zeros((R, WC3), jnp.float32)
        for kd in range(3):
            for kh in range(3):
                s = kd * Hp + kh
                acc2 = acc2 + jnp.dot(a2_ref[s:s + R, :],
                                      w2_vmem[kd * 3 + kh],
                                      preferred_element_type=jnp.float32)
        # Keep only the valid anchors (dp < D, hp < H) -> (NV, W*C3).
        val2 = acc2.reshape(N, Dp, Hp, WC3)[:, :D, :H, :].reshape(NV, WC3)
        o_ref[...] = bn_gelu(val2, p2_ref, C3)

    return kernel


# --------------------------------------------------------------------------- #
# Wrapper-side (XLA) parameter preparation
# --------------------------------------------------------------------------- #
def _banded_weight(w_oidhw, W):
    """(Cout, Cin, 3, 3, 3) -> (3, 3, W*Cin, W*Cout).

    kw is folded into the (w_in, c) -> (w_out, o) band; taps that would read
    the always-zero W-halo columns are omitted (no halo lanes anywhere).
    """
    wt = jnp.transpose(w_oidhw, (2, 3, 4, 1, 0))        # (kd, kh, kw, Cin, Cout)
    Cin, Cout = int(wt.shape[3]), int(wt.shape[4])
    wb = jnp.zeros((3, 3, W, Cin, W, Cout), w_oidhw.dtype)
    for kw in range(3):
        for w_out in range(W):
            w_in = w_out + kw - 1
            if 0 <= w_in < W:
                wb = wb.at[:, :, w_in, :, w_out, :].add(wt[:, :, kw])
    return wb.reshape(3, 3, W * Cin, W * Cout)


def _cols(v, W):
    """Per-channel vector (C,) -> per-(w, o) column vector (W*C,)."""
    return jnp.tile(v, W)


@jax.jit
def double_conv_pallas(x_ncdhw, params):
    """DoubleConv forward.  Input/output are NCDHW (PyTorch convention)."""
    (w1, b1, g1, bt1), (w2, b2, g2, bt2) = params
    N, C1, D, H, W = x_ncdhw.shape
    C2, C3 = int(w1.shape[0]), int(w2.shape[0])
    Dp, Hp = D + 2, H + 2
    NV = N * D * H
    R = N * Dp * Hp
    RT = ((R + 2 * Hp + 2) + 7) // 8 * 8    # slab rows incl. spare zero rows

    # NCDHW -> NDHWC; im2col over (kd, kh) only: rows = valid (n, d, h)
    # anchors, lanes = (kd, kh, w, c).  kw is handled by the banded weight,
    # so no w padding is ever materialized.
    x = jnp.transpose(x_ncdhw, (0, 2, 3, 4, 1))
    xp = jnp.pad(x, ((0, 0), (1, 1), (1, 1), (0, 0), (0, 0)))
    cols = [xp[:, kd:kd + D, kh:kh + H, :, :].reshape(N, D, H, W * C1)
            for kd in range(3) for kh in range(3)]
    x1 = jnp.concatenate(cols, axis=-1).reshape(NV, 9 * W * C1)

    # Banded weights (built once per call by XLA; tiny).
    w1b = _banded_weight(w1, W).reshape(9 * W * C1, W * C2)    # (9*W*C1, W*C2)
    w2b = _banded_weight(w2, W).reshape(9, W * C2, W * C3)     # (9, W*C2, W*C3)

    # Packed per-stage affine params: rows = [bias, gamma, beta] per column.
    p1 = jnp.stack([_cols(b1, W), _cols(g1, W), _cols(bt1, W)])
    p2 = jnp.stack([_cols(b2, W), _cols(g2, W), _cols(bt2, W)])

    kernel = _make_double_conv_kernel(N, D, H, W, C1, C2, C3, RT)
    vmem = pl.BlockSpec(memory_space=pltpu.MemorySpace.VMEM)
    out2d = pl.pallas_call(
        kernel,
        out_shape=jax.ShapeDtypeStruct((NV, W * C3), jnp.float32),
        in_specs=[vmem, vmem, vmem,
                  pl.BlockSpec(memory_space=pl.ANY),   # stage-2 weights in HBM
                  vmem],
        out_specs=vmem,
        scratch_shapes=[
            pltpu.VMEM((RT, W * C2), jnp.float32),          # stage-2 input slab
            pltpu.VMEM((9, W * C2, W * C3), jnp.float32),   # stage-2 weights
            pltpu.SemaphoreType.DMA(()),
        ],
    )(x1, w1b, p1, w2b, p2)

    out = out2d.reshape(N, D, H, W, C3)
    return jnp.transpose(out, (0, 4, 1, 2, 3))   # -> NCDHW


# ---------------------------- plain-JAX reference ---------------------------- #
def _ref_stage(x, w, b, gamma, beta, eps=1e-5):
    y = lax.conv_general_dilated(
        x, w, window_strides=(1, 1, 1),
        padding=((1, 1), (1, 1), (1, 1)),
        dimension_numbers=("NCDHW", "OIDHW", "NCDHW"))
    y = y + b[None, :, None, None, None]
    mean = jnp.mean(y, axis=(0, 2, 3, 4), keepdims=True)
    var = jnp.mean((y - mean) ** 2, axis=(0, 2, 3, 4), keepdims=True)
    y = (y - mean) / jnp.sqrt(var + eps)
    y = y * gamma[None, :, None, None, None] + beta[None, :, None, None, None]
    return 0.5 * y * (1.0 + lax.erf(y / math.sqrt(2.0)))


def double_conv_ref(x, params):
    for (w, b, gamma, beta) in params:
        x = _ref_stage(x, w, b, gamma, beta)
    return x


# ------------------------------------ main ----------------------------------- #
if __name__ == "__main__":
    key = jax.random.PRNGKey(0)
    N, Cin, Cout, D, H, W = 2, 4, 8, 8, 8, 8

    k_x, k_w1, k_b1, k_w2, k_b2 = jax.random.split(key, 5)
    x = jax.random.normal(k_x, (N, Cin, D, H, W), jnp.float32)

    # Deterministic parameter init (shapes from the module's __init__).
    w1 = jax.random.normal(k_w1, (Cout, Cin, 3, 3, 3), jnp.float32) * 0.1
    b1 = jax.random.normal(k_b1, (Cout,), jnp.float32) * 0.1
    w2 = jax.random.normal(k_w2, (Cout, Cout, 3, 3, 3), jnp.float32) * 0.1
    b2 = jax.random.normal(k_b2, (Cout,), jnp.float32) * 0.1
    # BatchNorm3d defaults: gamma=1, beta=0 (training-mode batch statistics).
    g1 = jnp.ones((Cout,), jnp.float32)
    bt1 = jnp.zeros((Cout,), jnp.float32)
    g2 = jnp.ones((Cout,), jnp.float32)
    bt2 = jnp.zeros((Cout,), jnp.float32)

    params = [(w1, b1, g1, bt1), (w2, b2, g2, bt2)]

    out = jax.block_until_ready(double_conv_pallas(x, params))
    ref = jax.block_until_ready(double_conv_ref(x, params))

    assert out.shape == (N, Cout, D, H, W), out.shape
    err = float(jnp.max(jnp.abs(out - ref)))
    assert jnp.allclose(out, ref, atol=1e-3, rtol=1e-3), err
    print("KERNEL_OK")
</pallas_src>

<mosaic_0001>
module attributes {stable_mosaic.version = 11 : i64} {
  func.func @kernel(%arg0: memref<128x288xf32, #tpu.memory_space<vmem>>, %arg1: memref<288x64xf32, #tpu.memory_space<vmem>>, %arg2: memref<3x64xf32, #tpu.memory_space<vmem>>, %arg3: memref<9x64x64xf32, #tpu.memory_space<any>>, %arg4: memref<3x64xf32, #tpu.memory_space<vmem>>, %arg5: memref<128x64xf32, #tpu.memory_space<vmem>>, %arg6: memref<224x64xf32, #tpu.memory_space<vmem>>, %arg7: memref<9x64x64xf32, #tpu.memory_space<vmem>>, %arg8: memref<!tpu.dma_semaphore, #tpu.memory_space<semaphore_mem>>) attributes {dimension_semantics = [], scalar_prefetch = 0 : i64, scratch_operands = 3 : i64, tpu.core_type = #tpu.core_type<tc>} {
    tpu.enqueue_dma source(%arg3 : memref<9x64x64xf32, #tpu.memory_space<any>>) target(%arg7 : memref<9x64x64xf32, #tpu.memory_space<vmem>>) target_semaphore(%arg8 : memref<!tpu.dma_semaphore, #tpu.memory_space<semaphore_mem>>)
    %c0 = arith.constant 0 : index
    %c0_0 = arith.constant 0 : index
    %0 = vector.load %arg0[%c0, %c0_0] : memref<128x288xf32, #tpu.memory_space<vmem>>, vector<128x288xf32>
    %c0_1 = arith.constant 0 : index
    %c0_2 = arith.constant 0 : index
    %1 = vector.load %arg1[%c0_1, %c0_2] : memref<288x64xf32, #tpu.memory_space<vmem>>, vector<288x64xf32>
    %cst = arith.constant dense<0.000000e+00> : vector<128x64xf32>
    %2 = tpu.matmul %0, %1, %cst {dimension_numbers = #tpu.dot_dimension_numbers<[1], [0], [0], [1], [0, 0, 1, 1], [], []>} : vector<128x288xf32>, vector<288x64xf32>, vector<128x64xf32> -> vector<128x64xf32>
    %c0_3 = arith.constant 0 : index
    %c0_4 = arith.constant 0 : index
    %3 = vector.load %arg2[%c0_3, %c0_4] : memref<3x64xf32, #tpu.memory_space<vmem>>, vector<1x64xf32>
    %4 = vector.broadcast %3 : vector<1x64xf32> to vector<128x64xf32>
    %5 = arith.addf %2, %4 : vector<128x64xf32>
    %cst_5 = arith.constant dense<0.000000e+00> : vector<64xf32>
    %6 = vector.multi_reduction <add>, %5, %cst_5 [0] : vector<128x64xf32> to vector<64xf32>
    %7 = vector.shape_cast %6 : vector<64xf32> to vector<1x64xf32>
    %8 = arith.mulf %5, %5 : vector<128x64xf32>
    %cst_6 = arith.constant dense<0.000000e+00> : vector<64xf32>
    %9 = vector.multi_reduction <add>, %8, %cst_6 [0] : vector<128x64xf32> to vector<64xf32>
    %10 = vector.shape_cast %9 : vector<64xf32> to vector<1x64xf32>
    %11 = tpu.concatenate %7, %10 in 0 : vector<1x64xf32>, vector<1x64xf32> -> vector<2x64xf32>
    %12 = vector.extract_strided_slice %11 {offsets = [0, 0], sizes = [2, 8], strides = [1, 1]} : vector<2x64xf32> to vector<2x8xf32>
    %13 = vector.extract_strided_slice %11 {offsets = [0, 8], sizes = [2, 8], strides = [1, 1]} : vector<2x64xf32> to vector<2x8xf32>
    %14 = arith.addf %12, %13 : vector<2x8xf32>
    %15 = vector.extract_strided_slice %11 {offsets = [0, 16], sizes = [2, 8], strides = [1, 1]} : vector<2x64xf32> to vector<2x8xf32>
    %16 = arith.addf %14, %15 : vector<2x8xf32>
    %17 = vector.extract_strided_slice %11 {offsets = [0, 24], sizes = [2, 8], strides = [1, 1]} : vector<2x64xf32> to vector<2x8xf32>
    %18 = arith.addf %16, %17 : vector<2x8xf32>
    %19 = vector.extract_strided_slice %11 {offsets = [0, 32], sizes = [2, 8], strides = [1, 1]} : vector<2x64xf32> to vector<2x8xf32>
    %20 = arith.addf %18, %19 : vector<2x8xf32>
    %21 = vector.extract_strided_slice %11 {offsets = [0, 40], sizes = [2, 8], strides = [1, 1]} : vector<2x64xf32> to vector<2x8xf32>
    %22 = arith.addf %20, %21 : vector<2x8xf32>
    %23 = vector.extract_strided_slice %11 {offsets = [0, 48], sizes = [2, 8], strides = [1, 1]} : vector<2x64xf32> to vector<2x8xf32>
    %24 = arith.addf %22, %23 : vector<2x8xf32>
    %25 = vector.extract_strided_slice %11 {offsets = [0, 56], sizes = [2, 8], strides = [1, 1]} : vector<2x64xf32> to vector<2x8xf32>
    %26 = arith.addf %24, %25 : vector<2x8xf32>
    %27 = vector.extract_strided_slice %26 {offsets = [0, 0], sizes = [1, 8], strides = [1, 1]} : vector<2x8xf32> to vector<1x8xf32>
    %cst_7 = arith.constant 1.024000e+03 : f32
    %28 = vector.broadcast %cst_7 : f32 to vector<1x8xf32>
    %29 = arith.divf %27, %28 : vector<1x8xf32>
    %30 = vector.extract_strided_slice %26 {offsets = [1, 0], sizes = [1, 8], strides = [1, 1]} : vector<2x8xf32> to vector<1x8xf32>
    %cst_8 = arith.constant 1.024000e+03 : f32
    %31 = vector.broadcast %cst_8 : f32 to vector<1x8xf32>
    %32 = arith.divf %30, %31 : vector<1x8xf32>
    %33 = arith.mulf %29, %29 : vector<1x8xf32>
    %34 = arith.subf %32, %33 : vector<1x8xf32>
    %cst_9 = arith.constant 9.99999974E-6 : f32
    %35 = vector.broadcast %cst_9 : f32 to vector<1x8xf32>
    %36 = arith.addf %34, %35 : vector<1x8xf32>
    %37 = math.rsqrt %36 : vector<1x8xf32>
    %38 = tpu.concatenate %29, %37 in 0 : vector<1x8xf32>, vector<1x8xf32> -> vector<2x8xf32>
    %39 = tpu.concatenate %38, %38, %38, %38, %38, %38, %38, %38 in 1 : vector<2x8xf32>, vector<2x8xf32>, vector<2x8xf32>, vector<2x8xf32>, vector<2x8xf32>, vector<2x8xf32>, vector<2x8xf32>, vector<2x8xf32> -> vector<2x64xf32>
    %c1 = arith.constant 1 : index
    %c0_10 = arith.constant 0 : index
    %40 = vector.load %arg2[%c1, %c0_10] : memref<3x64xf32, #tpu.memory_space<vmem>>, vector<1x64xf32>
    %41 = vector.extract_strided_slice %39 {offsets = [1, 0], sizes = [1, 64], strides = [1, 1]} : vector<2x64xf32> to vector<1x64xf32>
    %42 = arith.mulf %40, %41 : vector<1x64xf32>
    %c2 = arith.constant 2 : index
    %c0_11 = arith.constant 0 : index
    %43 = vector.load %arg2[%c2, %c0_11] : memref<3x64xf32, #tpu.memory_space<vmem>>, vector<1x64xf32>
    %44 = vector.extract_strided_slice %39 {offsets = [0, 0], sizes = [1, 64], strides = [1, 1]} : vector<2x64xf32> to vector<1x64xf32>
    %45 = arith.mulf %44, %42 : vector<1x64xf32>
    %46 = arith.subf %43, %45 : vector<1x64xf32>
    %47 = vector.broadcast %42 : vector<1x64xf32> to vector<128x64xf32>
    %48 = arith.mulf %5, %47 : vector<128x64xf32>
    %49 = vector.broadcast %46 : vector<1x64xf32> to vector<128x64xf32>
    %50 = arith.addf %48, %49 : vector<128x64xf32>
    %cst_12 = arith.constant 5.000000e-01 : f32
    %51 = vector.broadcast %cst_12 : f32 to vector<128x64xf32>
    %52 = arith.mulf %51, %50 : vector<128x64xf32>
    %cst_13 = arith.constant 0.707106769 : f32
    %53 = vector.broadcast %cst_13 : f32 to vector<128x64xf32>
    %54 = arith.mulf %50, %53 : vector<128x64xf32>
    %55 = math.erf %54 : vector<128x64xf32>
    %cst_14 = arith.constant 1.000000e+00 : f32
    %56 = vector.broadcast %cst_14 : f32 to vector<128x64xf32>
    %57 = arith.addf %56, %55 : vector<128x64xf32>
    %58 = arith.mulf %52, %57 : vector<128x64xf32>
    %59 = vector.shape_cast %58 : vector<128x64xf32> to vector<2x8x8x64xf32>
    %cst_15 = arith.constant 0.000000e+00 : f32
    %60 = vector.broadcast %cst_15 : f32 to vector<2x8x1x64xf32>
    %cst_16 = arith.constant 0.000000e+00 : f32
    %61 = vector.broadcast %cst_16 : f32 to vector<2x1x10x64xf32>
    %62 = tpu.concatenate %60, %59, %60 in 2 : vector<2x8x1x64xf32>, vector<2x8x8x64xf32>, vector<2x8x1x64xf32> -> vector<2x8x10x64xf32>
    %63 = tpu.concatenate %61, %62, %61 in 1 : vector<2x1x10x64xf32>, vector<2x8x10x64xf32>, vector<2x1x10x64xf32> -> vector<2x10x10x64xf32>
    %64 = vector.shape_cast %63 : vector<2x10x10x64xf32> to vector<200x64xf32>
    %c0_17 = arith.constant 0 : index
    %c0_18 = arith.constant 0 : index
    %65 = vector.load %arg6[%c0_17, %c0_18] : memref<224x64xf32, #tpu.memory_space<vmem>>, vector<200x64xf32>
    tpu.vector_store %arg6[%c0_17, %c0_18], %64 {strides = array<i32>} : memref<224x64xf32, #tpu.memory_space<vmem>>, vector<200x64xf32>,
    %cst_19 = arith.constant 0.000000e+00 : f32
    %66 = vector.broadcast %cst_19 : f32 to vector<24x64xf32>
    %c200 = arith.constant 200 : index
    %c0_20 = arith.constant 0 : index
    %67 = vector.load %arg6[%c200, %c0_20] : memref<224x64xf32, #tpu.memory_space<vmem>>, vector<24x64xf32>
    tpu.vector_store %arg6[%c200, %c0_20], %66 {strides = array<i32>} : memref<224x64xf32, #tpu.memory_space<vmem>>, vector<24x64xf32>,
    tpu.wait_dma2 semaphore(%arg8 : memref<!tpu.dma_semaphore, #tpu.memory_space<semaphore_mem>>) src(%arg3 : memref<9x64x64xf32, #tpu.memory_space<any>>) dst(%arg7 : memref<9x64x64xf32, #tpu.memory_space<vmem>>)
    %cst_21 = arith.constant 0.000000e+00 : f32
    %68 = vector.broadcast %cst_21 : f32 to vector<200x64xf32>
    %c0_22 = arith.constant 0 : index
    %c0_23 = arith.constant 0 : index
    %69 = vector.load %arg6[%c0_22, %c0_23] : memref<224x64xf32, #tpu.memory_space<vmem>>, vector<200x64xf32>
    %c0_24 = arith.constant 0 : index
    %c0_25 = arith.constant 0 : index
    %c0_26 = arith.constant 0 : index
    %70 = vector.load %arg7[%c0_24, %c0_25, %c0_26] : memref<9x64x64xf32, #tpu.memory_space<vmem>>, vector<1x64x64xf32>
    %71 = vector.shape_cast %70 : vector<1x64x64xf32> to vector<64x64xf32>
    %cst_27 = arith.constant dense<0.000000e+00> : vector<200x64xf32>
    %72 = tpu.matmul %69, %71, %cst_27 {dimension_numbers = #tpu.dot_dimension_numbers<[1], [0], [0], [1], [0, 0, 1, 1], [], []>} : vector<200x64xf32>, vector<64x64xf32>, vector<200x64xf32> -> vector<200x64xf32>
    %73 = arith.addf %68, %72 : vector<200x64xf32>
    %c1_28 = arith.constant 1 : index
    %c0_29 = arith.constant 0 : index
    %74 = vector.load %arg6[%c1_28, %c0_29] : memref<224x64xf32, #tpu.memory_space<vmem>>, vector<200x64xf32>
    %c1_30 = arith.constant 1 : index
    %c0_31 = arith.constant 0 : index
    %c0_32 = arith.constant 0 : index
    %75 = vector.load %arg7[%c1_30, %c0_31, %c0_32] : memref<9x64x64xf32, #tpu.memory_space<vmem>>, vector<1x64x64xf32>
    %76 = vector.shape_cast %75 : vector<1x64x64xf32> to vector<64x64xf32>
    %cst_33 = arith.constant dense<0.000000e+00> : vector<200x64xf32>
    %77 = tpu.matmul %74, %76, %cst_33 {dimension_numbers = #tpu.dot_dimension_numbers<[1], [0], [0], [1], [0, 0, 1, 1], [], []>} : vector<200x64xf32>, vector<64x64xf32>, vector<200x64xf32> -> vector<200x64xf32>
    %78 = arith.addf %73, %77 : vector<200x64xf32>
    %c2_34 = arith.constant 2 : index
    %c0_35 = arith.constant 0 : index
    %79 = vector.load %arg6[%c2_34, %c0_35] : memref<224x64xf32, #tpu.memory_space<vmem>>, vector<200x64xf32>
    %c2_36 = arith.constant 2 : index
    %c0_37 = arith.constant 0 : index
    %c0_38 = arith.constant 0 : index
    %80 = vector.load %arg7[%c2_36, %c0_37, %c0_38] : memref<9x64x64xf32, #tpu.memory_space<vmem>>, vector<1x64x64xf32>
    %81 = vector.shape_cast %80 : vector<1x64x64xf32> to vector<64x64xf32>
    %cst_39 = arith.constant dense<0.000000e+00> : vector<200x64xf32>
    %82 = tpu.matmul %79, %81, %cst_39 {dimension_numbers = #tpu.dot_dimension_numbers<[1], [0], [0], [1], [0, 0, 1, 1], [], []>} : vector<200x64xf32>, vector<64x64xf32>, vector<200x64xf32> -> vector<200x64xf32>
    %83 = arith.addf %78, %82 : vector<200x64xf32>
    %c10 = arith.constant 10 : index
    %c0_40 = arith.constant 0 : index
    %84 = vector.load %arg6[%c10, %c0_40] : memref<224x64xf32, #tpu.memory_space<vmem>>, vector<200x64xf32>
    %c3 = arith.constant 3 : index
    %c0_41 = arith.constant 0 : index
    %c0_42 = arith.constant 0 : index
    %85 = vector.load %arg7[%c3, %c0_41, %c0_42] : memref<9x64x64xf32, #tpu.memory_space<vmem>>, vector<1x64x64xf32>
    %86 = vector.shape_cast %85 : vector<1x64x64xf32> to vector<64x64xf32>
    %cst_43 = arith.constant dense<0.000000e+00> : vector<200x64xf32>
    %87 = tpu.matmul %84, %86, %cst_43 {dimension_numbers = #tpu.dot_dimension_numbers<[1], [0], [0], [1], [0, 0, 1, 1], [], []>} : vector<200x64xf32>, vector<64x64xf32>, vector<200x64xf32> -> vector<200x64xf32>
    %88 = arith.addf %83, %87 : vector<200x64xf32>
    %c11 = arith.constant 11 : index
    %c0_44 = arith.constant 0 : index
    %89 = vector.load %arg6[%c11, %c0_44] : memref<224x64xf32, #tpu.memory_space<vmem>>, vector<200x64xf32>
    %c4 = arith.constant 4 : index
    %c0_45 = arith.constant 0 : index
    %c0_46 = arith.constant 0 : index
    %90 = vector.load %arg7[%c4, %c0_45, %c0_46] : memref<9x64x64xf32, #tpu.memory_space<vmem>>, vector<1x64x64xf32>
    %91 = vector.shape_cast %90 : vector<1x64x64xf32> to vector<64x64xf32>
    %cst_47 = arith.constant dense<0.000000e+00> : vector<200x64xf32>
    %92 = tpu.matmul %89, %91, %cst_47 {dimension_numbers = #tpu.dot_dimension_numbers<[1], [0], [0], [1], [0, 0, 1, 1], [], []>} : vector<200x64xf32>, vector<64x64xf32>, vector<200x64xf32> -> vector<200x64xf32>
    %93 = arith.addf %88, %92 : vector<200x64xf32>
    %c12 = arith.constant 12 : index
    %c0_48 = arith.constant 0 : index
    %94 = vector.load %arg6[%c12, %c0_48] : memref<224x64xf32, #tpu.memory_space<vmem>>, vector<200x64xf32>
    %c5 = arith.constant 5 : index
    %c0_49 = arith.constant 0 : index
    %c0_50 = arith.constant 0 : index
    %95 = vector.load %arg7[%c5, %c0_49, %c0_50] : memref<9x64x64xf32, #tpu.memory_space<vmem>>, vector<1x64x64xf32>
    %96 = vector.shape_cast %95 : vector<1x64x64xf32> to vector<64x64xf32>
    %cst_51 = arith.constant dense<0.000000e+00> : vector<200x64xf32>
    %97 = tpu.matmul %94, %96, %cst_51 {dimension_numbers = #tpu.dot_dimension_numbers<[1], [0], [0], [1], [0, 0, 1, 1], [], []>} : vector<200x64xf32>, vector<64x64xf32>, vector<200x64xf32> -> vector<200x64xf32>
    %98 = arith.addf %93, %97 : vector<200x64xf32>
    %c20 = arith.constant 20 : index
    %c0_52 = arith.constant 0 : index
    %99 = vector.load %arg6[%c20, %c0_52] : memref<224x64xf32, #tpu.memory_space<vmem>>, vector<200x64xf32>
    %c6 = arith.constant 6 : index
    %c0_53 = arith.constant 0 : index
    %c0_54 = arith.constant 0 : index
    %100 = vector.load %arg7[%c6, %c0_53, %c0_54] : memref<9x64x64xf32, #tpu.memory_space<vmem>>, vector<1x64x64xf32>
    %101 = vector.shape_cast %100 : vector<1x64x64xf32> to vector<64x64xf32>
    %cst_55 = arith.constant dense<0.000000e+00> : vector<200x64xf32>
    %102 = tpu.matmul %99, %101, %cst_55 {dimension_numbers = #tpu.dot_dimension_numbers<[1], [0], [0], [1], [0, 0, 1, 1], [], []>} : vector<200x64xf32>, vector<64x64xf32>, vector<200x64xf32> -> vector<200x64xf32>
    %103 = arith.addf %98, %102 : vector<200x64xf32>
    %c21 = arith.constant 21 : index
    %c0_56 = arith.constant 0 : index
    %104 = vector.load %arg6[%c21, %c0_56] : memref<224x64xf32, #tpu.memory_space<vmem>>, vector<200x64xf32>
    %c7 = arith.constant 7 : index
    %c0_57 = arith.constant 0 : index
    %c0_58 = arith.constant 0 : index
    %105 = vector.load %arg7[%c7, %c0_57, %c0_58] : memref<9x64x64xf32, #tpu.memory_space<vmem>>, vector<1x64x64xf32>
    %106 = vector.shape_cast %105 : vector<1x64x64xf32> to vector<64x64xf32>
    %cst_59 = arith.constant dense<0.000000e+00> : vector<200x64xf32>
    %107 = tpu.matmul %104, %106, %cst_59 {dimension_numbers = #tpu.dot_dimension_numbers<[1], [0], [0], [1], [0, 0, 1, 1], [], []>} : vector<200x64xf32>, vector<64x64xf32>, vector<200x64xf32> -> vector<200x64xf32>
    %108 = arith.addf %103, %107 : vector<200x64xf32>
    %c22 = arith.constant 22 : index
    %c0_60 = arith.constant 0 : index
    %109 = vector.load %arg6[%c22, %c0_60] : memref<224x64xf32, #tpu.memory_space<vmem>>, vector<200x64xf32>
    %c8 = arith.constant 8 : index
    %c0_61 = arith.constant 0 : index
    %c0_62 = arith.constant 0 : index
    %110 = vector.load %arg7[%c8, %c0_61, %c0_62] : memref<9x64x64xf32, #tpu.memory_space<vmem>>, vector<1x64x64xf32>
    %111 = vector.shape_cast %110 : vector<1x64x64xf32> to vector<64x64xf32>
    %cst_63 = arith.constant dense<0.000000e+00> : vector<200x64xf32>
    %112 = tpu.matmul %109, %111, %cst_63 {dimension_numbers = #tpu.dot_dimension_numbers<[1], [0], [0], [1], [0, 0, 1, 1], [], []>} : vector<200x64xf32>, vector<64x64xf32>, vector<200x64xf32> -> vector<200x64xf32>
    %113 = arith.addf %108, %112 : vector<200x64xf32>
    %114 = vector.shape_cast %113 : vector<200x64xf32> to vector<2x10x10x64xf32>
    %115 = vector.extract_strided_slice %114 {offsets = [0, 0, 0, 0], sizes = [2, 8, 8, 64], strides = [1, 1, 1, 1]} : vector<2x10x10x64xf32> to vector<2x8x8x64xf32>
    %116 = vector.shape_cast %115 : vector<2x8x8x64xf32> to vector<128x64xf32>
    %c0_64 = arith.constant 0 : index
    %c0_65 = arith.constant 0 : index
    %117 = vector.load %arg4[%c0_64, %c0_65] : memref<3x64xf32, #tpu.memory_space<vmem>>, vector<1x64xf32>
    %118 = vector.broadcast %117 : vector<1x64xf32> to vector<128x64xf32>
    %119 = arith.addf %116, %118 : vector<128x64xf32>
    %cst_66 = arith.constant dense<0.000000e+00> : vector<64xf32>
    %120 = vector.multi_reduction <add>, %119, %cst_66 [0] : vector<128x64xf32> to vector<64xf32>
    %121 = vector.shape_cast %120 : vector<64xf32> to vector<1x64xf32>
    %122 = arith.mulf %119, %119 : vector<128x64xf32>
    %cst_67 = arith.constant dense<0.000000e+00> : vector<64xf32>
    %123 = vector.multi_reduction <add>, %122, %cst_67 [0] : vector<128x64xf32> to vector<64xf32>
    %124 = vector.shape_cast %123 : vector<64xf32> to vector<1x64xf32>
    %125 = tpu.concatenate %121, %124 in 0 : vector<1x64xf32>, vector<1x64xf32> -> vector<2x64xf32>
    %126 = vector.extract_strided_slice %125 {offsets = [0, 0], sizes = [2, 8], strides = [1, 1]} : vector<2x64xf32> to vector<2x8xf32>
    %127 = vector.extract_strided_slice %125 {offsets = [0, 8], sizes = [2, 8], strides = [1, 1]} : vector<2x64xf32> to vector<2x8xf32>
    %128 = arith.addf %126, %127 : vector<2x8xf32>
    %129 = vector.extract_strided_slice %125 {offsets = [0, 16], sizes = [2, 8], strides = [1, 1]} : vector<2x64xf32> to vector<2x8xf32>
    %130 = arith.addf %128, %129 : vector<2x8xf32>
    %131 = vector.extract_strided_slice %125 {offsets = [0, 24], sizes = [2, 8], strides = [1, 1]} : vector<2x64xf32> to vector<2x8xf32>
    %132 = arith.addf %130, %131 : vector<2x8xf32>
    %133 = vector.extract_strided_slice %125 {offsets = [0, 32], sizes = [2, 8], strides = [1, 1]} : vector<2x64xf32> to vector<2x8xf32>
    %134 = arith.addf %132, %133 : vector<2x8xf32>
    %135 = vector.extract_strided_slice %125 {offsets = [0, 40], sizes = [2, 8], strides = [1, 1]} : vector<2x64xf32> to vector<2x8xf32>
    %136 = arith.addf %134, %135 : vector<2x8xf32>
    %137 = vector.extract_strided_slice %125 {offsets = [0, 48], sizes = [2, 8], strides = [1, 1]} : vector<2x64xf32> to vector<2x8xf32>
    %138 = arith.addf %136, %137 : vector<2x8xf32>
    %139 = vector.extract_strided_slice %125 {offsets = [0, 56], sizes = [2, 8], strides = [1, 1]} : vector<2x64xf32> to vector<2x8xf32>
    %140 = arith.addf %138, %139 : vector<2x8xf32>
    %141 = vector.extract_strided_slice %140 {offsets = [0, 0], sizes = [1, 8], strides = [1, 1]} : vector<2x8xf32> to vector<1x8xf32>
    %cst_68 = arith.constant 1.024000e+03 : f32
    %142 = vector.broadcast %cst_68 : f32 to vector<1x8xf32>
    %143 = arith.divf %141, %142 : vector<1x8xf32>
    %144 = vector.extract_strided_slice %140 {offsets = [1, 0], sizes = [1, 8], strides = [1, 1]} : vector<2x8xf32> to vector<1x8xf32>
    %cst_69 = arith.constant 1.024000e+03 : f32
    %145 = vector.broadcast %cst_69 : f32 to vector<1x8xf32>
    %146 = arith.divf %144, %145 : vector<1x8xf32>
    %147 = arith.mulf %143, %143 : vector<1x8xf32>
    %148 = arith.subf %146, %147 : vector<1x8xf32>
    %cst_70 = arith.constant 9.99999974E-6 : f32
    %149 = vector.broadcast %cst_70 : f32 to vector<1x8xf32>
    %150 = arith.addf %148, %149 : vector<1x8xf32>
    %151 = math.rsqrt %150 : vector<1x8xf32>
    %152 = tpu.concatenate %143, %151 in 0 : vector<1x8xf32>, vector<1x8xf32> -> vector<2x8xf32>
    %153 = tpu.concatenate %152, %152, %152, %152, %152, %152, %152, %152 in 1 : vector<2x8xf32>, vector<2x8xf32>, vector<2x8xf32>, vector<2x8xf32>, vector<2x8xf32>, vector<2x8xf32>, vector<2x8xf32>, vector<2x8xf32> -> vector<2x64xf32>
    %c1_71 = arith.constant 1 : index
    %c0_72 = arith.constant 0 : index
    %154 = vector.load %arg4[%c1_71, %c0_72] : memref<3x64xf32, #tpu.memory_space<vmem>>, vector<1x64xf32>
    %155 = vector.extract_strided_slice %153 {offsets = [1, 0], sizes = [1, 64], strides = [1, 1]} : vector<2x64xf32> to vector<1x64xf32>
    %156 = arith.mulf %154, %155 : vector<1x64xf32>
    %c2_73 = arith.constant 2 : index
    %c0_74 = arith.constant 0 : index
    %157 = vector.load %arg4[%c2_73, %c0_74] : memref<3x64xf32, #tpu.memory_space<vmem>>, vector<1x64xf32>
    %158 = vector.extract_strided_slice %153 {offsets = [0, 0], sizes = [1, 64], strides = [1, 1]} : vector<2x64xf32> to vector<1x64xf32>
    %159 = arith.mulf %158, %156 : vector<1x64xf32>
    %160 = arith.subf %157, %159 : vector<1x64xf32>
    %161 = vector.broadcast %156 : vector<1x64xf32> to vector<128x64xf32>
    %162 = arith.mulf %119, %161 : vector<128x64xf32>
    %163 = vector.broadcast %160 : vector<1x64xf32> to vector<128x64xf32>
    %164 = arith.addf %162, %163 : vector<128x64xf32>
    %cst_75 = arith.constant 5.000000e-01 : f32
    %165 = vector.broadcast %cst_75 : f32 to vector<128x64xf32>
    %166 = arith.mulf %165, %164 : vector<128x64xf32>
    %cst_76 = arith.constant 0.707106769 : f32
    %167 = vector.broadcast %cst_76 : f32 to vector<128x64xf32>
    %168 = arith.mulf %164, %167 : vector<128x64xf32>
    %169 = math.erf %168 : vector<128x64xf32>
    %cst_77 = arith.constant 1.000000e+00 : f32
    %170 = vector.broadcast %cst_77 : f32 to vector<128x64xf32>
    %171 = arith.addf %170, %169 : vector<128x64xf32>
    %172 = arith.mulf %166, %171 : vector<128x64xf32>
    %c0_78 = arith.constant 0 : index
    %c0_79 = arith.constant 0 : index
    %173 = vector.load %arg5[%c0_78, %c0_79] : memref<128x64xf32, #tpu.memory_space<vmem>>, vector<128x64xf32>
    tpu.vector_store %arg5[%c0_78, %c0_79], %172 {strides = array<i32>} : memref<128x64xf32, #tpu.memory_space<vmem>>, vector<128x64xf32>,
    return
  }
}

</mosaic_0001>

<llo_original>
// kernel: tile.33
$region0: #{tile.33}
  #allocation0 [shape = 's32[1]{0}', space=sflag, size = 0x4, scoped, tag = 'scoped memory for tile.33']
  %s0 = inlined_call_operand.vmem [shape: f32[8], index: 0, kind: input, shape index: {}]
  %s1 = inlined_call_operand.vmem [shape: f32[8,8], index: 1, kind: output, shape index: {}]
  // Predicated region
  $region2: #{tile.33} parent=0 // pred_check
    _
  $region3: #{tile.33} parent=0 // pred_check_branch
    %3 = sbr.rel (0) target = $region5
  $region4: #{tile.33} parent=0 // pred_region
    _
  $region5: #{tile.33} parent=0 // pred_fallthru
    _
  %v4 = vld [vmem:[%s0] ss:$0 sm:$0xff]
  %5 = vst [vmem:[%s1] sm:$0xff] %v4

// kernel: tile.42
$region0: #{tile.42}
  %s0 = inlined_call_operand.vmem [shape: f32[8,8], index: 0, kind: input, shape index: {}]
  %s1 = inlined_call_operand.vmem [shape: f32[1,64], index: 1, kind: output, shape index: {}]
  $region1: #{tile.42} parent=0
    #allocation0 [shape = 'u8[4096]{0}', space=vmem, size = 0x1000, scoped, tag = 'scoped mem for output reshape']
    %v2 = vld [vmem:[%s0] sm:$0x1]
    %vm3 = vcmask 64512
    %4 = vst.msk [vmem:[#allocation0] sm:$0x1] %vm3, %v2
    %s5 = scalar_lea.vmem %s0, 7
    %v6 = vld [vmem:[%s5] sm:$0x1]
    %7 = vrot.lane.b32.xlu0 %v6, 56
    %v8 = vpop.permute.xlu0 %7
    %vm9 = vcmask 523712
    %10 = vst.msk [vmem:[#allocation0] sm:$0x1] %vm9, %v8
    %s11 = scalar_lea.vmem %s0, 6
    %v12 = vld [vmem:[%s11] sm:$0x1]
    %13 = vrot.lane.b32.xlu0 %v12, 48
    %v14 = vpop.permute.xlu0 %13
    %vm15 = vcmask 458112
    %16 = vst.msk [vmem:[#allocation0] sm:$0x1] %vm15, %v14
    %s17 = scalar_lea.vmem %s0, 5
    %v18 = vld [vmem:[%s17] sm:$0x1]
    %19 = vrot.lane.b32.xlu0 %v18, 40
    %v20 = vpop.permute.xlu0 %19
    %vm21 = vcmask 392512
    %22 = vst.msk [vmem:[#allocation0] sm:$0x1] %vm21, %v20
    %s23 = scalar_lea.vmem %s0, 4
    %v24 = vld [vmem:[%s23] sm:$0x1]
    %25 = vrot.lane.b32.xlu0 %v24, 32
    %v26 = vpop.permute.xlu0 %25
    %vm27 = vcmask 326912
    %28 = vst.msk [vmem:[#allocation0] sm:$0x1] %vm27, %v26
    %s29 = scalar_lea.vmem %s0, 3
    %v30 = vld [vmem:[%s29] sm:$0x1]
    %31 = vrot.lane.b32.xlu0 %v30, 24
    %v32 = vpop.permute.xlu0 %31
    %vm33 = vcmask 261312
    %34 = vst.msk [vmem:[#allocation0] sm:$0x1] %vm33, %v32
    %s35 = scalar_lea.vmem %s0, 2
    %v36 = vld [vmem:[%s35] sm:$0x1]
    %37 = vrot.lane.b32.xlu0 %v36, 16
    %v38 = vpop.permute.xlu0 %37
    %vm39 = vcmask 195712
    %40 = vst.msk [vmem:[#allocation0] sm:$0x1] %vm39, %v38
    %s41 = scalar_lea.vmem %s0, 1
    %v42 = vld [vmem:[%s41] sm:$0x1]
    %43 = vrot.lane.b32.xlu0 %v42, 8
    %v44 = vpop.permute.xlu0 %43
    %vm45 = vcmask 130112
    %46 = vst.msk [vmem:[#allocation0] sm:$0x1] %vm45, %v44
    %s48 = ssub.s32 2, 1
    %v49 = vld [vmem:[#allocation0] sm:%s48]
    %s51 = ssub.s32 2, 1
    %52 = vst [vmem:[%s1] sm:%s51] %v49

// kernel: double_conv_pallas.1
$region0: #{double_conv_pallas.1}
  #allocation0 [shape = 'u32[]', space=smem, size = 0x4, offset = 0x4, fixed_abs, tag = 'smem constant byte address 0x4 - core index']
  #allocation1 [shape = 'u32[72,128]{1,0:T(1,128)}', space=vmem, size = 0x9000, scoped, tag = 'internal scratch']
  #allocation2 [shape = 'f32[224,64]{1,0:T(8,128)}', space=vmem, size = 0x1c000, scoped, tag = 'scratch operand']
  #allocation3 [shape = 'f32[9,64,64]{2,1,0:T(8,128)}', space=vmem, size = 0x48000, scoped, tag = 'scratch operand']
  #allocation4 [shape = 's32[1]{0}', space=sflag, size = 0x4, scoped, tag = 'scratch operand']
  #allocation5 [shape = 's32[]', space=sflag, size = 0x4, offset = 0, fixed_abs, tag = 'sflag constant byte address 0x0 - dummy sync flag']
  %s0 = inlined_call_operand.vmem [shape: f32[128,288], index: 0, kind: input, shape index: {}]
  %s1 = inlined_call_operand.vmem [shape: f32[288,64], index: 1, kind: input, shape index: {}]
  %s2 = inlined_call_operand.vmem [shape: f32[3,64], index: 2, kind: input, shape index: {}]
  %s3 = inlined_call_operand.vmem [shape: f32[9,64,64], index: 3, kind: input, shape index: {}]
  %s4 = inlined_call_operand.vmem [shape: f32[3,64], index: 4, kind: input, shape index: {}]
  %s5 = inlined_call_operand.vmem [shape: f32[128,64], index: 5, kind: output, shape index: {}]
  %s6 = sld [smem:[#allocation0]]
  $region45: #{double_conv_pallas.1} parent=0
    _
  %s8 = ssub.s32 1, %s6
  %s9 = scalar_select 0, %s8, %s6
  // Predicated region
  $region2: #{double_conv_pallas.1} parent=0 // pred_check
    _
  $region3: #{double_conv_pallas.1} parent=0 // pred_check_branch
    %11 = sbr.rel (0) target = $region5
  $region4: #{double_conv_pallas.1} parent=0 // pred_region
    _
  $region5: #{double_conv_pallas.1} parent=0 // pred_fallthru
    _
  // Predicated region
  $region6: #{double_conv_pallas.1} parent=0 // pred_check
    _
  $region7: #{double_conv_pallas.1} parent=0 // pred_check_branch
    %13 = sbr.rel (0) target = $region9
  $region8: #{double_conv_pallas.1} parent=0 // pred_region
    _
  $region9: #{double_conv_pallas.1} parent=0 // pred_fallthru
    _
  // Predicated region
  $region10: #{double_conv_pallas.1} parent=0 // pred_check
    _
  $region11: #{double_conv_pallas.1} parent=0 // pred_check_branch
    %15 = sbr.rel (0) target = $region13
  $region12: #{double_conv_pallas.1} parent=0 // pred_region
    _
  $region13: #{double_conv_pallas.1} parent=0 // pred_fallthru
    _
  // Predicated region
  $region14: #{double_conv_pallas.1} parent=0 // pred_check
    _
  $region15: #{double_conv_pallas.1} parent=0 // pred_check_branch
    %17 = sbr.rel (0) target = $region17
  $region16: #{double_conv_pallas.1} parent=0 // pred_region
    _
  $region17: #{double_conv_pallas.1} parent=0 // pred_fallthru
    _
  // Predicated region
  $region18: #{double_conv_pallas.1} parent=0 // pred_check
    _
  $region19: #{double_conv_pallas.1} parent=0 // pred_check_branch
    %19 = sbr.rel (0) target = $region21
  $region20: #{double_conv_pallas.1} parent=0 // pred_region
    loop: start=0, step=1, limit=1
    $region22: #{double_conv_pallas.1} parent=20 // loop_pre_header
      _
    $region23: #{double_conv_pallas.1} parent=20 // loop_header
      %s21 = sphi 0, %s25
      %p22 = scmp.ge.s32.totalorder %s21, 1
      %s26 = sphi %s3, %s3
      %s27 = sphi [#allocation3], [#allocation3]
    $region24: #{double_conv_pallas.1} parent=20 // loop_header_branch
      %24 = sbr.rel (%p22) target = $region28
    $region25: #{double_conv_pallas.1} parent=20 // loop_body
      %v28 = vld [vmem:[%s26] sm:$0xff]
      %29 = vst [vmem:[%s27] sm:$0xff] %v28
      %v30 = vld [vmem:[%s26 + $0x8] sm:$0xff]
      %31 = vst [vmem:[%s27 + $0x8] sm:$0xff] %v30
      %v32 = vld [vmem:[%s26 + $0x10] sm:$0xff]
      %33 = vst [vmem:[%s27 + $0x10] sm:$0xff] %v32
      %v34 = vld [vmem:[%s26 + $0x18] sm:$0xff]
      %35 = vst [vmem:[%s27 + $0x18] sm:$0xff] %v34
      %v36 = vld [vmem:[%s26 + $0x20] sm:$0xff]
      %37 = vst [vmem:[%s27 + $0x20] sm:$0xff] %v36
      %v38 = vld [vmem:[%s26 + $0x28] sm:$0xff]
      %39 = vst [vmem:[%s27 + $0x28] sm:$0xff] %v38
      %v40 = vld [vmem:[%s26 + $0x30] sm:$0xff]
      %41 = vst [vmem:[%s27 + $0x30] sm:$0xff] %v40
      %v42 = vld [vmem:[%s26 + $0x38] sm:$0xff]
      %43 = vst [vmem:[%s27 + $0x38] sm:$0xff] %v42
      %v44 = vld [vmem:[%s26 + $0x40] sm:$0xff]
      %45 = vst [vmem:[%s27 + $0x40] sm:$0xff] %v44
      %v46 = vld [vmem:[%s26 + $0x48] sm:$0xff]
      %47 = vst [vmem:[%s27 + $0x48] sm:$0xff] %v46
      %v48 = vld [vmem:[%s26 + $0x50] sm:$0xff]
      %49 = vst [vmem:[%s27 + $0x50] sm:$0xff] %v48
      %v50 = vld [vmem:[%s26 + $0x58] sm:$0xff]
      %51 = vst [vmem:[%s27 + $0x58] sm:$0xff] %v50
      %v52 = vld [vmem:[%s26 + $0x60] sm:$0xff]
      %53 = vst [vmem:[%s27 + $0x60] sm:$0xff] %v52
      %v54 = vld [vmem:[%s26 + $0x68] sm:$0xff]
      %55 = vst [vmem:[%s27 + $0x68] sm:$0xff] %v54
      %v56 = vld [vmem:[%s26 + $0x70] sm:$0xff]
      %57 = vst [vmem:[%s27 + $0x70] sm:$0xff] %v56
      %v58 = vld [vmem:[%s26 + $0x78] sm:$0xff]
      %59 = vst [vmem:[%s27 + $0x78] sm:$0xff] %v58
      %v60 = vld [vmem:[%s26 + $0x80] sm:$0xff]
      %61 = vst [vmem:[%s27 + $0x80] sm:$0xff] %v60
      %v62 = vld [vmem:[%s26 + $0x88] sm:$0xff]
      %63 = vst [vmem:[%s27 + $0x88] sm:$0xff] %v62
      %v64 = vld [vmem:[%s26 + $0x90] sm:$0xff]
      %65 = vst [vmem:[%s27 + $0x90] sm:$0xff] %v64
      %v66 = vld [vmem:[%s26 + $0x98] sm:$0xff]
      %67 = vst [vmem:[%s27 + $0x98] sm:$0xff] %v66
      %v68 = vld [vmem:[%s26 + $0xa0] sm:$0xff]
      %69 = vst [vmem:[%s27 + $0xa0] sm:$0xff] %v68
      %v70 = vld [vmem:[%s26 + $0xa8] sm:$0xff]
      %71 = vst [vmem:[%s27 + $0xa8] sm:$0xff] %v70
      %v72 = vld [vmem:[%s26 + $0xb0] sm:$0xff]
      %73 = vst [vmem:[%s27 + $0xb0] sm:$0xff] %v72
      %v74 = vld [vmem:[%s26 + $0xb8] sm:$0xff]
      %75 = vst [vmem:[%s27 + $0xb8] sm:$0xff] %v74
      %v76 = vld [vmem:[%s26 + $0xc0] sm:$0xff]
      %77 = vst [vmem:[%s27 + $0xc0] sm:$0xff] %v76
      %v78 = vld [vmem:[%s26 + $0xc8] sm:$0xff]
      %79 = vst [vmem:[%s27 + $0xc8] sm:$0xff] %v78
      %v80 = vld [vmem:[%s26 + $0xd0] sm:$0xff]
      %81 = vst [vmem:[%s27 + $0xd0] sm:$0xff] %v80
      %v82 = vld [vmem:[%s26 + $0xd8] sm:$0xff]
      %83 = vst [vmem:[%s27 + $0xd8] sm:$0xff] %v82
      %v84 = vld [vmem:[%s26 + $0xe0] sm:$0xff]
      %85 = vst [vmem:[%s27 + $0xe0] sm:$0xff] %v84
      %v86 = vld [vmem:[%s26 + $0xe8] sm:$0xff]
      %87 = vst [vmem:[%s27 + $0xe8] sm:$0xff] %v86
      %v88 = vld [vmem:[%s26 + $0xf0] sm:$0xff]
      %89 = vst [vmem:[%s27 + $0xf0] sm:$0xff] %v88
      %v90 = vld [vmem:[%s26 + $0xf8] sm:$0xff]
      %91 = vst [vmem:[%s27 + $0xf8] sm:$0xff] %v90
      %v92 = vld [vmem:[%s26 + $0x100] sm:$0xff]
      %93 = vst [vmem:[%s27 + $0x100] sm:$0xff] %v92
      %v94 = vld [vmem:[%s26 + $0x108] sm:$0xff]
      %95 = vst [vmem:[%s27 + $0x108] sm:$0xff] %v94
      %v96 = vld [vmem:[%s26 + $0x110] sm:$0xff]
      %97 = vst [vmem:[%s27 + $0x110] sm:$0xff] %v96
      %v98 = vld [vmem:[%s26 + $0x118] sm:$0xff]
      %99 = vst [vmem:[%s27 + $0x118] sm:$0xff] %v98
      %v100 = vld [vmem:[%s26 + $0x120] sm:$0xff]
      %101 = vst [vmem:[%s27 + $0x120] sm:$0xff] %v100
      %v102 = vld [vmem:[%s26 + $0x128] sm:$0xff]
      %103 = vst [vmem:[%s27 + $0x128] sm:$0xff] %v102
      %v104 = vld [vmem:[%s26 + $0x130] sm:$0xff]
      %105 = vst [vmem:[%s27 + $0x130] sm:$0xff] %v104
      %v106 = vld [vmem:[%s26 + $0x138] sm:$0xff]
      %107 = vst [vmem:[%s27 + $0x138] sm:$0xff] %v106
      %v108 = vld [vmem:[%s26 + $0x140] sm:$0xff]
      %109 = vst [vmem:[%s27 + $0x140] sm:$0xff] %v108
      %v110 = vld [vmem:[%s26 + $0x148] sm:$0xff]
      %111 = vst [vmem:[%s27 + $0x148] sm:$0xff] %v110
      %v112 = vld [vmem:[%s26 + $0x150] sm:$0xff]
      %113 = vst [vmem:[%s27 + $0x150] sm:$0xff] %v112
      %v114 = vld [vmem:[%s26 + $0x158] sm:$0xff]
      %115 = vst [vmem:[%s27 + $0x158] sm:$0xff] %v114
      %v116 = vld [vmem:[%s26 + $0x160] sm:$0xff]
      %117 = vst [vmem:[%s27 + $0x160] sm:$0xff] %v116
      %v118 = vld [vmem:[%s26 + $0x168] sm:$0xff]
      %119 = vst [vmem:[%s27 + $0x168] sm:$0xff] %v118
      %v120 = vld [vmem:[%s26 + $0x170] sm:$0xff]
      %121 = vst [vmem:[%s27 + $0x170] sm:$0xff] %v120
      %v122 = vld [vmem:[%s26 + $0x178] sm:$0xff]
      %123 = vst [vmem:[%s27 + $0x178] sm:$0xff] %v122
      %v124 = vld [vmem:[%s26 + $0x180] sm:$0xff]
      %125 = vst [vmem:[%s27 + $0x180] sm:$0xff] %v124
      %v126 = vld [vmem:[%s26 + $0x188] sm:$0xff]
      %127 = vst [vmem:[%s27 + $0x188] sm:$0xff] %v126
      %v128 = vld [vmem:[%s26 + $0x190] sm:$0xff]
      %129 = vst [vmem:[%s27 + $0x190] sm:$0xff] %v128
      %v130 = vld [vmem:[%s26 + $0x198] sm:$0xff]
      %131 = vst [vmem:[%s27 + $0x198] sm:$0xff] %v130
      %v132 = vld [vmem:[%s26 + $0x1a0] sm:$0xff]
      %133 = vst [vmem:[%s27 + $0x1a0] sm:$0xff] %v132
      %v134 = vld [vmem:[%s26 + $0x1a8] sm:$0xff]
      %135 = vst [vmem:[%s27 + $0x1a8] sm:$0xff] %v134
      %v136 = vld [vmem:[%s26 + $0x1b0] sm:$0xff]
      %137 = vst [vmem:[%s27 + $0x1b0] sm:$0xff] %v136
      %v138 = vld [vmem:[%s26 + $0x1b8] sm:$0xff]
      %139 = vst [vmem:[%s27 + $0x1b8] sm:$0xff] %v138
      %v140 = vld [vmem:[%s26 + $0x1c0] sm:$0xff]
      %141 = vst [vmem:[%s27 + $0x1c0] sm:$0xff] %v140
      %v142 = vld [vmem:[%s26 + $0x1c8] sm:$0xff]
      %143 = vst [vmem:[%s27 + $0x1c8] sm:$0xff] %v142
      %v144 = vld [vmem:[%s26 + $0x1d0] sm:$0xff]
      %145 = vst [vmem:[%s27 + $0x1d0] sm:$0xff] %v144
      %v146 = vld [vmem:[%s26 + $0x1d8] sm:$0xff]
      %147 = vst [vmem:[%s27 + $0x1d8] sm:$0xff] %v146
      %v148 = vld [vmem:[%s26 + $0x1e0] sm:$0xff]
      %149 = vst [vmem:[%s27 + $0x1e0] sm:$0xff] %v148
      %v150 = vld [vmem:[%s26 + $0x1e8] sm:$0xff]
      %151 = vst [vmem:[%s27 + $0x1e8] sm:$0xff] %v150
      %v152 = vld [vmem:[%s26 + $0x1f0] sm:$0xff]
      %153 = vst [vmem:[%s27 + $0x1f0] sm:$0xff] %v152
      %v154 = vld [vmem:[%s26 + $0x1f8] sm:$0xff]
      %155 = vst [vmem:[%s27 + $0x1f8] sm:$0xff] %v154
      %v156 = vld [vmem:[%s26 + $0x200] sm:$0xff]
      %157 = vst [vmem:[%s27 + $0x200] sm:$0xff] %v156
      %v158 = vld [vmem:[%s26 + $0x208] sm:$0xff]
      %159 = vst [vmem:[%s27 + $0x208] sm:$0xff] %v158
      %v160 = vld [vmem:[%s26 + $0x210] sm:$0xff]
      %161 = vst [vmem:[%s27 + $0x210] sm:$0xff] %v160
      %v162 = vld [vmem:[%s26 + $0x218] sm:$0xff]
      %163 = vst [vmem:[%s27 + $0x218] sm:$0xff] %v162
      %v164 = vld [vmem:[%s26 + $0x220] sm:$0xff]
      %165 = vst [vmem:[%s27 + $0x220] sm:$0xff] %v164
      %v166 = vld [vmem:[%s26 + $0x228] sm:$0xff]
      %167 = vst [vmem:[%s27 + $0x228] sm:$0xff] %v166
      %v168 = vld [vmem:[%s26 + $0x230] sm:$0xff]
      %169 = vst [vmem:[%s27 + $0x230] sm:$0xff] %v168
      %v170 = vld [vmem:[%s26 + $0x238] sm:$0xff]
      %171 = vst [vmem:[%s27 + $0x238] sm:$0xff] %v170
    $region26: #{double_conv_pallas.1} parent=20 // loop_footer
      %s25 = sadd.s32 1, %s21
    $region27: #{double_conv_pallas.1} parent=20 // loop_footer_branch
      %20 = sbr.rel target = $region23
    $region28: #{double_conv_pallas.1} parent=20 // loop_exit
      _
  $region21: #{double_conv_pallas.1} parent=0 // pred_fallthru
    _
  // Predicated region
  $region29: #{double_conv_pallas.1} parent=0 // pred_check
    _
  $region30: #{double_conv_pallas.1} parent=0 // pred_check_branch
    %173 = sbr.rel target = $region32
  $region31: #{double_conv_pallas.1} parent=0 // pred_region
    _
  $region32: #{double_conv_pallas.1} parent=0 // pred_fallthru
    _
  // Predicated region
  $region33: #{double_conv_pallas.1} parent=0 // pred_check
    _
  $region34: #{double_conv_pallas.1} parent=0 // pred_check_branch
    %176 = sbr.rel (0) target = $region36
  $region35: #{double_conv_pallas.1} parent=0 // pred_region
    %177 = vsyncadd [#allocation4], 9216
  $region36: #{double_conv_pallas.1} parent=0 // pred_fallthru
    _
  %v178 = vld [vmem:[%s0] sm:$0xff]
  %v179 = vld [vmem:[%s0 + $0x8] sm:$0xff]
  %v180 = vld [vmem:[%s0 + $0x10] sm:$0xff]
  %v181 = vld [vmem:[%s0 + $0x18] sm:$0xff]
  %v182 = vld [vmem:[%s0 + $0x20] sm:$0xff]
  %v183 = vld [vmem:[%s0 + $0x28] sm:$0xff]
  %v184 = vld [vmem:[%s0 + $0x30] sm:$0xff]
  %v185 = vld [vmem:[%s0 + $0x38] sm:$0xff]
  %v186 = vld [vmem:[%s0 + $0x40] sm:$0xff]
  %v187 = vld [vmem:[%s0 + $0x48] sm:$0xff]
  %v188 = vld [vmem:[%s0 + $0x50] sm:$0xff]
  %v189 = vld [vmem:[%s0 + $0x58] sm:$0xff]
  %v190 = vld [vmem:[%s0 + $0x60] sm:$0xff]
  %v191 = vld [vmem:[%s0 + $0x68] sm:$0xff]
  %v192 = vld [vmem:[%s0 + $0x70] sm:$0xff]
  %v193 = vld [vmem:[%s0 + $0x78] sm:$0xff]
  %v194 = vld [vmem:[%s0 + $0x80] sm:$0xff]
  %v195 = vld [vmem:[%s0 + $0x88] sm:$0xff]
  %v196 = vld [vmem:[%s0 + $0x90] sm:$0xff]
  %v197 = vld [vmem:[%s0 + $0x98] sm:$0xff]
  %v198 = vld [vmem:[%s0 + $0xa0] sm:$0xff]
  %v199 = vld [vmem:[%s0 + $0xa8] sm:$0xff]
  %v200 = vld [vmem:[%s0 + $0xb0] sm:$0xff]
  %v201 = vld [vmem:[%s0 + $0xb8] sm:$0xff]
  %v202 = vld [vmem:[%s0 + $0xc0] sm:$0xff]
  %v203 = vld [vmem:[%s0 + $0xc8] sm:$0xff]
  %v204 = vld [vmem:[%s0 + $0xd0] sm:$0xff]
  %v205 = vld [vmem:[%s0 + $0xd8] sm:$0xff]
  %v206 = vld [vmem:[%s0 + $0xe0] sm:$0xff]
  %v207 = vld [vmem:[%s0 + $0xe8] sm:$0xff]
  %v208 = vld [vmem:[%s0 + $0xf0] sm:$0xff]
  %v209 = vld [vmem:[%s0 + $0xf8] sm:$0xff]
  %v210 = vld [vmem:[%s0 + $0x100] sm:$0xff]
  %v211 = vld [vmem:[%s0 + $0x108] sm:$0xff]
  %v212 = vld [vmem:[%s0 + $0x110] sm:$0xff]
  %v213 = vld [vmem:[%s0 + $0x118] sm:$0xff]
  %v214 = vld [vmem:[%s0 + $0x120] sm:$0xff]
  %v215 = vld [vmem:[%s0 + $0x128] sm:$0xff]
  %v216 = vld [vmem:[%s0 + $0x130] sm:$0xff]
  %v217 = vld [vmem:[%s0 + $0x138] sm:$0xff]
  %v218 = vld [vmem:[%s0 + $0x140] sm:$0xff]
  %v219 = vld [vmem:[%s0 + $0x148] sm:$0xff]
  %v220 = vld [vmem:[%s0 + $0x150] sm:$0xff]
  %v221 = vld [vmem:[%s0 + $0x158] sm:$0xff]
  %v222 = vld [vmem:[%s0 + $0x160] sm:$0xff]
  %v223 = vld [vmem:[%s0 + $0x168] sm:$0xff]
  %v224 = vld [vmem:[%s0 + $0x170] sm:$0xff]
  %v225 = vld [vmem:[%s0 + $0x178] sm:$0xff]
  %v226 = vld [vmem:[%s1] sm:$0xff]
  %v227 = vld [vmem:[%s1 + $0x8] sm:$0xff]
  %v228 = vld [vmem:[%s1 + $0x10] sm:$0xff]
  %v229 = vld [vmem:[%s1 + $0x18] sm:$0xff]
  %v230 = vld [vmem:[%s1 + $0x20] sm:$0xff]
  %v231 = vld [vmem:[%s1 + $0x28] sm:$0xff]
  %v232 = vld [vmem:[%s1 + $0x30] sm:$0xff]
  %v233 = vld [vmem:[%s1 + $0x38] sm:$0xff]
  %v234 = vld [vmem:[%s1 + $0x40] sm:$0xff]
  %v235 = vld [vmem:[%s1 + $0x48] sm:$0xff]
  %v236 = vld [vmem:[%s1 + $0x50] sm:$0xff]
  %v237 = vld [vmem:[%s1 + $0x58] sm:$0xff]
  %v238 = vld [vmem:[%s1 + $0x60] sm:$0xff]
  %v239 = vld [vmem:[%s1 + $0x68] sm:$0xff]
  %v240 = vld [vmem:[%s1 + $0x70] sm:$0xff]
  %v241 = vld [vmem:[%s1 + $0x78] sm:$0xff]
  %v242 = vld [vmem:[%s1 + $0x80] sm:$0xff]
  %v243 = vld [vmem:[%s1 + $0x88] sm:$0xff]
  %v244 = vld [vmem:[%s1 + $0x90] sm:$0xff]
  %v245 = vld [vmem:[%s1 + $0x98] sm:$0xff]
  %v246 = vld [vmem:[%s1 + $0xa0] sm:$0xff]
  %v247 = vld [vmem:[%s1 + $0xa8] sm:$0xff]
  %v248 = vld [vmem:[%s1 + $0xb0] sm:$0xff]
  %v249 = vld [vmem:[%s1 + $0xb8] sm:$0xff]
  %v250 = vld [vmem:[%s1 + $0xc0] sm:$0xff]
  %v251 = vld [vmem:[%s1 + $0xc8] sm:$0xff]
  %v252 = vld [vmem:[%s1 + $0xd0] sm:$0xff]
  %v253 = vld [vmem:[%s1 + $0xd8] sm:$0xff]
  %v254 = vld [vmem:[%s1 + $0xe0] sm:$0xff]
  %v255 = vld [vmem:[%s1 + $0xe8] sm:$0xff]
  %v256 = vld [vmem:[%s1 + $0xf0] sm:$0xff]
  %v257 = vld [vmem:[%s1 + $0xf8] sm:$0xff]
  %v258 = vld [vmem:[%s1 + $0x100] sm:$0xff]
  %v259 = vld [vmem:[%s1 + $0x108] sm:$0xff]
  %v260 = vld [vmem:[%s1 + $0x110] sm:$0xff]
  %v261 = vld [vmem:[%s1 + $0x118] sm:$0xff]
  %v262 = vld [vmem:[%s2] sm:$0x1]
  %v263 = vperm.slane %v262, 0
  %vm264 = vcmask 261120
  %v266 = vsel %vm264, %v180, 0
  %v269 = vsel %vm264, %v183, 0
  %v272 = vsel %vm264, %v186, 0
  %v275 = vsel %vm264, %v189, 0
  %v278 = vsel %vm264, %v192, 0
  %v281 = vsel %vm264, %v195, 0
  %v284 = vsel %vm264, %v198, 0
  %v287 = vsel %vm264, %v201, 0
  %v290 = vsel %vm264, %v204, 0
  %v293 = vsel %vm264, %v207, 0
  %v296 = vsel %vm264, %v210, 0
  %v299 = vsel %vm264, %v213, 0
  %v302 = vsel %vm264, %v216, 0
  %v305 = vsel %vm264, %v219, 0
  %v308 = vsel %vm264, %v222, 0
  %v311 = vsel %vm264, %v225, 0
  %313 = vmatpush.msra.mxu0 %v241
  %314 = vmatpush.msra.mxu0 %v240
  %315 = vmatpush.msra.mxu0 %v239
  %316 = vmatpush.msra.mxu0 %v238
  %317 = vmatpush.msra.mxu0 %v237
  %318 = vmatpush.msra.mxu0 %v236
  %319 = vmatpush.msra.mxu0 %v235
  %320 = vmatpush.msra.mxu0 %v234
  %321 = vmatpush.msra.mxu0 %v233
  %322 = vmatpush.msra.mxu0 %v232
  %323 = vmatpush.msra.mxu0 %v231
  %324 = vmatpush.msra.mxu0 %v230
  %325 = vmatpush.msra.mxu0 %v229
  %326 = vmatpush.msra.mxu0 %v228
  %327 = vmatpush.msra.mxu0 %v227
  %328 = vmatpush.msra.mxu0 %v226
  %329 = vmatmul.f32.gmra.mxu0 %v178
  %v330 = vpop.f32.mrf.mxu0
  %v331 = vadd.f32 %v263, %v330
  %332 = vmatmul.f32.gmra.mxu0 %v181
  %v333 = vpop.f32.mrf.mxu0
  %v334 = vadd.f32 %v263, %v333
  %335 = vmatmul.f32.gmra.mxu0 %v184
  %v336 = vpop.f32.mrf.mxu0
  %v337 = vadd.f32 %v263, %v336
  %338 = vmatmul.f32.gmra.mxu0 %v187
  %v339 = vpop.f32.mrf.mxu0
  %v340 = vadd.f32 %v263, %v339
  %341 = vmatmul.f32.gmra.mxu0 %v190
  %v342 = vpop.f32.mrf.mxu0
  %v343 = vadd.f32 %v263, %v342
  %344 = vmatmul.f32.gmra.mxu0 %v193
  %v345 = vpop.f32.mrf.mxu0
  %v346 = vadd.f32 %v263, %v345
  %347 = vmatmul.f32.gmra.mxu0 %v196
  %v348 = vpop.f32.mrf.mxu0
  %v349 = vadd.f32 %v263, %v348
  %350 = vmatmul.f32.gmra.mxu0 %v199
  %v351 = vpop.f32.mrf.mxu0
  %v352 = vadd.f32 %v263, %v351
  %353 = vmatmul.f32.gmra.mxu0 %v202
  %v354 = vpop.f32.mrf.mxu0
  %v355 = vadd.f32 %v263, %v354
  %356 = vmatmul.f32.gmra.mxu0 %v205
  %v357 = vpop.f32.mrf.mxu0
  %v358 = vadd.f32 %v263, %v357
  %359 = vmatmul.f32.gmra.mxu0 %v208
  %v360 = vpop.f32.mrf.mxu0
  %v361 = vadd.f32 %v263, %v360
  %362 = vmatmul.f32.gmra.mxu0 %v211
  %v363 = vpop.f32.mrf.mxu0
  %v364 = vadd.f32 %v263, %v363
  %365 = vmatmul.f32.gmra.mxu0 %v214
  %v366 = vpop.f32.mrf.mxu0
  %v367 = vadd.f32 %v263, %v366
  %368 = vmatmul.f32.gmra.mxu0 %v217
  %v369 = vpop.f32.mrf.mxu0
  %v370 = vadd.f32 %v263, %v369
  %371 = vmatmul.f32.gmra.mxu0 %v220
  %v372 = vpop.f32.mrf.mxu0
  %v373 = vadd.f32 %v263, %v372
  %374 = vmatmul.f32.gmra.mxu0 %v223
  %v375 = vpop.f32.mrf.mxu0
  %v376 = vadd.f32 %v263, %v375
  %377 = vdwg.mxu0
  %378 = vmatpush.msra.mxu0 %v257
  %379 = vmatpush.msra.mxu0 %v256
  %380 = vmatpush.msra.mxu0 %v255
  %381 = vmatpush.msra.mxu0 %v254
  %382 = vmatpush.msra.mxu0 %v253
  %383 = vmatpush.msra.mxu0 %v252
  %384 = vmatpush.msra.mxu0 %v251
  %385 = vmatpush.msra.mxu0 %v250
  %386 = vmatpush.msra.mxu0 %v249
  %387 = vmatpush.msra.mxu0 %v248
  %388 = vmatpush.msra.mxu0 %v247
  %389 = vmatpush.msra.mxu0 %v246
  %390 = vmatpush.msra.mxu0 %v245
  %391 = vmatpush.msra.mxu0 %v244
  %392 = vmatpush.msra.mxu0 %v243
  %393 = vmatpush.msra.mxu0 %v242
  %394 = vmatmul.f32.gmra.mxu0 %v179
  %v395 = vpop.f32.mrf.mxu0
  %v396 = vadd.f32 %v331, %v395
  %397 = vmatmul.f32.gmra.mxu0 %v182
  %v398 = vpop.f32.mrf.mxu0
  %v399 = vadd.f32 %v334, %v398
  %400 = vmatmul.f32.gmra.mxu0 %v185
  %v401 = vpop.f32.mrf.mxu0
  %v402 = vadd.f32 %v337, %v401
  %403 = vmatmul.f32.gmra.mxu0 %v188
  %v404 = vpop.f32.mrf.mxu0
  %v405 = vadd.f32 %v340, %v404
  %406 = vmatmul.f32.gmra.mxu0 %v191
  %v407 = vpop.f32.mrf.mxu0
  %v408 = vadd.f32 %v343, %v407
  %409 = vmatmul.f32.gmra.mxu0 %v194
  %v410 = vpop.f32.mrf.mxu0
  %v411 = vadd.f32 %v346, %v410
  %412 = vmatmul.f32.gmra.mxu0 %v197
  %v413 = vpop.f32.mrf.mxu0
  %v414 = vadd.f32 %v349, %v413
  %415 = vmatmul.f32.gmra.mxu0 %v200
  %v416 = vpop.f32.mrf.mxu0
  %v417 = vadd.f32 %v352, %v416
  %418 = vmatmul.f32.gmra.mxu0 %v203
  %v419 = vpop.f32.mrf.mxu0
  %v420 = vadd.f32 %v355, %v419
  %421 = vmatmul.f32.gmra.mxu0 %v206
  %v422 = vpop.f32.mrf.mxu0
  %v423 = vadd.f32 %v358, %v422
  %424 = vmatmul.f32.gmra.mxu0 %v209
  %v425 = vpop.f32.mrf.mxu0
  %v426 = vadd.f32 %v361, %v425
  %427 = vmatmul.f32.gmra.mxu0 %v212
  %v428 = vpop.f32.mrf.mxu0
  %v429 = vadd.f32 %v364, %v428
  %430 = vmatmul.f32.gmra.mxu0 %v215
  %v431 = vpop.f32.mrf.mxu0
  %v432 = vadd.f32 %v367, %v431
  %433 = vmatmul.f32.gmra.mxu0 %v218
  %v434 = vpop.f32.mrf.mxu0
  %v435 = vadd.f32 %v370, %v434
  %436 = vmatmul.f32.gmra.mxu0 %v221
  %v437 = vpop.f32.mrf.mxu0
  %v438 = vadd.f32 %v373, %v437
  %439 = vmatmul.f32.gmra.mxu0 %v224
  %v440 = vpop.f32.mrf.mxu0
  %v441 = vadd.f32 %v376, %v440
  %442 = vdwg.mxu0
  %443 = vmatpush.msra.mxu0 0.0
  %444 = vmatpush.msra.mxu0 0.0
  %445 = vmatpush.msra.mxu0 0.0
  %446 = vmatpush.msra.mxu0 0.0
  %447 = vmatpush.msra.mxu0 0.0
  %448 = vmatpush.msra.mxu0 0.0
  %449 = vmatpush.msra.mxu0 0.0
  %450 = vmatpush.msra.mxu0 0.0
  %451 = vmatpush.msra.mxu0 0.0
  %452 = vmatpush.msra.mxu0 0.0
  %453 = vmatpush.msra.mxu0 0.0
  %454 = vmatpush.msra.mxu0 0.0
  %455 = vmatpush.msra.mxu0 %v261
  %456 = vmatpush.msra.mxu0 %v260
  %457 = vmatpush.msra.mxu0 %v259
  %458 = vmatpush.msra.mxu0 %v258
  %459 = vmatmul.f32.gmra.mxu0 %v266
  %v460 = vpop.f32.mrf.mxu0
  %v461 = vadd.f32 %v396, %v460
  %462 = vmatmul.f32.gmra.mxu0 %v269
  %v463 = vpop.f32.mrf.mxu0
  %v464 = vadd.f32 %v399, %v463
  %465 = vmatmul.f32.gmra.mxu0 %v272
  %v466 = vpop.f32.mrf.mxu0
  %v467 = vadd.f32 %v402, %v466
  %468 = vmatmul.f32.gmra.mxu0 %v275
  %v469 = vpop.f32.mrf.mxu0
  %v470 = vadd.f32 %v405, %v469
  %471 = vmatmul.f32.gmra.mxu0 %v278
  %v472 = vpop.f32.mrf.mxu0
  %v473 = vadd.f32 %v408, %v472
  %474 = vmatmul.f32.gmra.mxu0 %v281
  %v475 = vpop.f32.mrf.mxu0
  %v476 = vadd.f32 %v411, %v475
  %477 = vmatmul.f32.gmra.mxu0 %v284
  %v478 = vpop.f32.mrf.mxu0
  %v479 = vadd.f32 %v414, %v478
  %480 = vmatmul.f32.gmra.mxu0 %v287
  %v481 = vpop.f32.mrf.mxu0
  %v482 = vadd.f32 %v417, %v481
  %483 = vmatmul.f32.gmra.mxu0 %v290
  %v484 = vpop.f32.mrf.mxu0
  %v485 = vadd.f32 %v420, %v484
  %486 = vmatmul.f32.gmra.mxu0 %v293
  %v487 = vpop.f32.mrf.mxu0
  %v488 = vadd.f32 %v423, %v487
  %489 = vmatmul.f32.gmra.mxu0 %v296
  %v490 = vpop.f32.mrf.mxu0
  %v491 = vadd.f32 %v426, %v490
  %492 = vmatmul.f32.gmra.mxu0 %v299
  %v493 = vpop.f32.mrf.mxu0
  %v494 = vadd.f32 %v429, %v493
  %495 = vmatmul.f32.gmra.mxu0 %v302
  %v496 = vpop.f32.mrf.mxu0
  %v497 = vadd.f32 %v432, %v496
  %498 = vmatmul.f32.gmra.mxu0 %v305
  %v499 = vpop.f32.mrf.mxu0
  %v500 = vadd.f32 %v435, %v499
  %501 = vmatmul.f32.gmra.mxu0 %v308
  %v502 = vpop.f32.mrf.mxu0
  %v503 = vadd.f32 %v438, %v502
  %504 = vmatmul.f32.gmra.mxu0 %v311
  %v505 = vpop.f32.mrf.mxu0
  %v506 = vadd.f32 %v441, %v505
  %507 = vdwg.mxu0
  %vm508 = vcmask 523264
  %v509 = vsel %vm508, %v461, 0.0
  %v510 = vsel %vm508, %v464, 0.0
  %v511 = vadd.f32 %v509, %v510
  %v512 = vsel %vm508, %v467, 0.0
  %v513 = vadd.f32 %v511, %v512
  %v514 = vsel %vm508, %v470, 0.0
  %v515 = vadd.f32 %v513, %v514
  %v516 = vsel %vm508, %v473, 0.0
  %v517 = vadd.f32 %v515, %v516
  %v518 = vsel %vm508, %v476, 0.0
  %v519 = vadd.f32 %v517, %v518
  %v520 = vsel %vm508, %v479, 0.0
  %v521 = vadd.f32 %v519, %v520
  %v522 = vsel %vm508, %v482, 0.0
  %v523 = vadd.f32 %v521, %v522
  %v524 = vsel %vm508, %v485, 0.0
  %v525 = vadd.f32 %v523, %v524
  %v526 = vsel %vm508, %v488, 0.0
  %v527 = vadd.f32 %v525, %v526
  %v528 = vsel %vm508, %v491, 0.0
  %v529 = vadd.f32 %v527, %v528
  %v530 = vsel %vm508, %v494, 0.0
  %v531 = vadd.f32 %v529, %v530
  %v532 = vsel %vm508, %v497, 0.0
  %v533 = vadd.f32 %v531, %v532
  %v534 = vsel %vm508, %v500, 0.0
  %v535 = vadd.f32 %v533, %v534
  %v536 = vsel %vm508, %v503, 0.0
  %v537 = vadd.f32 %v535, %v536
  %v538 = vsel %vm508, %v506, 0.0
  %v539 = vadd.f32 %v537, %v538
  %v540 = vrot.slane %v539, 4
  %v541 = vadd.f32 %v539, %v540
  %v542 = vrot.slane %v541, 2
  %v543 = vadd.f32 %v541, %v542
  %v544 = vrot.slane %v543, 1
  %v545 = vadd.f32 %v543, %v544
  %v546 = vmul.f32 %v461, %v461
  %v547 = vmul.f32 %v464, %v464
  %v548 = vmul.f32 %v467, %v467
  %v549 = vmul.f32 %v470, %v470
  %v550 = vmul.f32 %v473, %v473
  %v551 = vmul.f32 %v476, %v476
  %v552 = vmul.f32 %v479, %v479
  %v553 = vmul.f32 %v482, %v482
  %v554 = vmul.f32 %v485, %v485
  %v555 = vmul.f32 %v488, %v488
  %v556 = vmul.f32 %v491, %v491
  %v557 = vmul.f32 %v494, %v494
  %v558 = vmul.f32 %v497, %v497
  %v559 = vmul.f32 %v500, %v500
  %v560 = vmul.f32 %v503, %v503
  %v561 = vmul.f32 %v506, %v506
  %v562 = vsel %vm508, %v546, 0.0
  %v563 = vsel %vm508, %v547, 0.0
  %v564 = vadd.f32 %v562, %v563
  %v565 = vsel %vm508, %v548, 0.0
  %v566 = vadd.f32 %v564, %v565
  %v567 = vsel %vm508, %v549, 0.0
  %v568 = vadd.f32 %v566, %v567
  %v569 = vsel %vm508, %v550, 0.0
  %v570 = vadd.f32 %v568, %v569
  %v571 = vsel %vm508, %v551, 0.0
  %v572 = vadd.f32 %v570, %v571
  %v573 = vsel %vm508, %v552, 0.0
  %v574 = vadd.f32 %v572, %v573
  %v575 = vsel %vm508, %v553, 0.0
  %v576 = vadd.f32 %v574, %v575
  %v577 = vsel %vm508, %v554, 0.0
  %v578 = vadd.f32 %v576, %v577
  %v579 = vsel %vm508, %v555, 0.0
  %v580 = vadd.f32 %v578, %v579
  %v581 = vsel %vm508, %v556, 0.0
  %v582 = vadd.f32 %v580, %v581
  %v583 = vsel %vm508, %v557, 0.0
  %v584 = vadd.f32 %v582, %v583
  %v585 = vsel %vm508, %v558, 0.0
  %v586 = vadd.f32 %v584, %v585
  %v587 = vsel %vm508, %v559, 0.0
  %v588 = vadd.f32 %v586, %v587
  %v589 = vsel %vm508, %v560, 0.0
  %v590 = vadd.f32 %v588, %v589
  %v591 = vsel %vm508, %v561, 0.0
  %v592 = vadd.f32 %v590, %v591
  %v593 = vrot.slane %v592, 4
  %v594 = vadd.f32 %v592, %v593
  %v595 = vrot.slane %v594, 2
  %v596 = vadd.f32 %v594, %v595
  %v597 = vrot.slane %v596, 1
  %v598 = vadd.f32 %v596, %v597
  %vm599 = vcmask 1040384
  %v600 = vsel %vm599, %v545, %v598
  %602 = vrot.lane.b32.xlu0 %v600, 120
  %v603 = vpop.permute.xlu0 %602
  %v605 = vadd.f32 %v600, %v603
  %606 = vrot.lane.b32.xlu0 %v600, 112
  %v607 = vpop.permute.xlu0 %606
  %v609 = vadd.f32 %v605, %v607
  %610 = vrot.lane.b32.xlu0 %v600, 104
  %v611 = vpop.permute.xlu0 %610
  %v613 = vadd.f32 %v609, %v611
  %614 = vrot.lane.b32.xlu0 %v600, 96
  %v615 = vpop.permute.xlu0 %614
  %v617 = vadd.f32 %v613, %v615
  %618 = vrot.lane.b32.xlu0 %v600, 88
  %v619 = vpop.permute.xlu0 %618
  %v621 = vadd.f32 %v617, %v619
  %622 = vrot.lane.b32.xlu0 %v600, 80
  %v623 = vpop.permute.xlu0 %622
  %v625 = vadd.f32 %v621, %v623
  %626 = vrot.lane.b32.xlu0 %v600, 72
  %v627 = vpop.permute.xlu0 %626
  %v629 = vadd.f32 %v625, %v627
  %v630 = vrcp.pop 1024.0
  %v631 = vmul.f32 1024.0, %v630
  %v632 = vsub.f32 1.0, %v631
  %v633 = vmul.f32 %v630, %v632
  %v634 = vadd.f32 %v630, %v633
  %vm635 = vweird.f32 %v630
  %v636 = vsel %vm635, %v630, %v634
  %v637 = vmul.f32 %v629, %v636
  %v638 = vmul.f32 %v637, %v637
  %v640 = vrot.slane %v638, 7
  %v642 = vsub.f32 %v637, %v640
  %v643 = vadd.f32 %v642, 1e-05
  %v644 = vrsqrt.pop %v643
  %v645 = vmul.f32 %v644, %v643
  %v646 = vmul.f32 %v645, %v644
  %v647 = vmul.f32 0.5, %v646
  %v648 = vsub.f32 1.5, %v647
  %v649 = vmul.f32 %v644, %v648
  %vm650 = vweird.f32 %v643
  %vm651 = vweird.f32 %v644
  %vm652 = vmor %vm650, %vm651
  %v653 = vsel %vm652, %v644, %v649
  %v654 = vsel %vm599, %v637, %v653
  %656 = vrot.lane.b32.xlu0 %v654, 8
  %v657 = vpop.permute.xlu0 %656
  %659 = vrot.lane.b32.xlu0 %v654, 16
  %v660 = vpop.permute.xlu0 %659
  %662 = vrot.lane.b32.xlu0 %v654, 24
  %v663 = vpop.permute.xlu0 %662
  %665 = vrot.lane.b32.xlu0 %v654, 32
  %v666 = vpop.permute.xlu0 %665
  %668 = vrot.lane.b32.xlu0 %v654, 40
  %v669 = vpop.permute.xlu0 %668
  %671 = vrot.lane.b32.xlu0 %v654, 48
  %v672 = vpop.permute.xlu0 %671
  %674 = vrot.lane.b32.xlu0 %v654, 56
  %v675 = vpop.permute.xlu0 %674
  %vm677 = vcmask 64512
  %v678 = vsel %vm677, %v654, %v657
  %vm679 = vcmask 130048
  %v680 = vsel %vm679, %v678, %v660
  %vm681 = vcmask 195584
  %v682 = vsel %vm681, %v680, %v663
  %v683 = vsel %vm264, %v682, %v666
  %vm684 = vcmask 326656
  %v685 = vsel %vm684, %v683, %v669
  %vm686 = vcmask 392192
  %v687 = vsel %vm686, %v685, %v672
  %vm688 = vcmask 457728
  %v689 = vsel %vm688, %v687, %v675
  %v690 = vld [vmem:[%s2 + $0x1] sm:$0x1]
  %v692 = vrot.slane %v689, 1
  %v694 = vmul.f32 %v690, %v692
  %v695 = vld [vmem:[%s2 + $0x2] sm:$0x1]
  %v696 = vmul.f32 %v689, %v694
  %v697 = vsub.f32 %v695, %v696
  %v698 = vperm.slane %v694, 0
  %v699 = vmul.f32 %v461, %v698
  %v700 = vmul.f32 %v464, %v698
  %v701 = vmul.f32 %v467, %v698
  %v702 = vmul.f32 %v470, %v698
  %v703 = vmul.f32 %v473, %v698
  %v704 = vmul.f32 %v476, %v698
  %v705 = vmul.f32 %v479, %v698
  %v706 = vmul.f32 %v482, %v698
  %v707 = vmul.f32 %v485, %v698
  %v708 = vmul.f32 %v488, %v698
  %v709 = vmul.f32 %v491, %v698
  %v710 = vmul.f32 %v494, %v698
  %v711 = vmul.f32 %v497, %v698
  %v712 = vmul.f32 %v500, %v698
  %v713 = vmul.f32 %v503, %v698
  %v714 = vmul.f32 %v506, %v698
  %v715 = vperm.slane %v697, 0
  %v716 = vadd.f32 %v699, %v715
  %v717 = vadd.f32 %v700, %v715
  %v718 = vadd.f32 %v701, %v715
  %v719 = vadd.f32 %v702, %v715
  %v720 = vadd.f32 %v703, %v715
  %v721 = vadd.f32 %v704, %v715
  %v722 = vadd.f32 %v705, %v715
  %v723 = vadd.f32 %v706, %v715
  %v724 = vadd.f32 %v707, %v715
  %v725 = vadd.f32 %v708, %v715
  %v726 = vadd.f32 %v709, %v715
  %v727 = vadd.f32 %v710, %v715
  %v728 = vadd.f32 %v711, %v715
  %v729 = vadd.f32 %v712, %v715
  %v730 = vadd.f32 %v713, %v715
  %v731 = vadd.f32 %v714, %v715
  %v732 = vmul.f32 %v716, 0.5
  %v733 = vmul.f32 %v717, 0.5
  %v734 = vmul.f32 %v718, 0.5
  %v735 = vmul.f32 %v719, 0.5
  %v736 = vmul.f32 %v720, 0.5
  %v737 = vmul.f32 %v721, 0.5
  %v738 = vmul.f32 %v722, 0.5
  %v739 = vmul.f32 %v723, 0.5
  %v740 = vmul.f32 %v724, 0.5
  %v741 = vmul.f32 %v725, 0.5
  %v742 = vmul.f32 %v726, 0.5
  %v743 = vmul.f32 %v727, 0.5
  %v744 = vmul.f32 %v728, 0.5
  %v745 = vmul.f32 %v729, 0.5
  %v746 = vmul.f32 %v730, 0.5
  %v747 = vmul.f32 %v731, 0.5
  %v748 = vmul.f32 %v716, 0.70710677
  %v749 = vmul.f32 %v717, 0.70710677
  %v750 = vmul.f32 %v718, 0.70710677
  %v751 = vmul.f32 %v719, 0.70710677
  %v752 = vmul.f32 %v720, 0.70710677
  %v753 = vmul.f32 %v721, 0.70710677
  %v754 = vmul.f32 %v722, 0.70710677
  %v755 = vmul.f32 %v723, 0.70710677
  %v756 = vmul.f32 %v724, 0.70710677
  %v757 = vmul.f32 %v725, 0.70710677
  %v758 = vmul.f32 %v726, 0.70710677
  %v759 = vmul.f32 %v727, 0.70710677
  %v760 = vmul.f32 %v728, 0.70710677
  %v761 = vmul.f32 %v729, 0.70710677
  %v762 = vmul.f32 %v730, 0.70710677
  %v763 = vmul.f32 %v731, 0.70710677
  %v764 = vmul.f32 %v748, %v748
  %v765 = vmin.f32 16.0, %v764
  %v766 = vmul.f32 %v765, 2.1237322e-06
  %v767 = vadd.f32 %v766, 0.00028619796
  %v768 = vmul.f32 %v765, %v767
  %v769 = vadd.f32 %v768, 0.0036580483
  %v770 = vmul.f32 %v765, %v769
  %v771 = vadd.f32 %v770, 0.05243302
  %v772 = vmul.f32 %v765, %v771
  %v773 = vadd.f32 %v772, 0.18741608
  %v774 = vmul.f32 %v765, %v773
  %v775 = vadd.f32 %v774, 1.1283791
  %v776 = vmul.f32 %v748, %v775
  %v777 = vmul.f32 %v765, 3.8918573e-05
  %v778 = vadd.f32 %v777, 0.001143296
  %v779 = vmul.f32 %v765, %v778
  %v780 = vadd.f32 %v779, 0.014752088
  %v781 = vmul.f32 %v765, %v780
  %v782 = vadd.f32 %v781, 0.112945676
  %v783 = vmul.f32 %v765, %v782
  %v784 = vadd.f32 %v783, 0.4994258
  %v785 = vmul.f32 %v765, %v784
  %v786 = vadd.f32 %v785, 1.0
  %v787 = vrcp.pop %v786
  %v788 = vmul.f32 %v786, %v787
  %v789 = vsub.f32 1.0, %v788
  %v790 = vmul.f32 %v787, %v789
  %v791 = vadd.f32 %v787, %v790
  %vm792 = vweird.f32 %v786
  %vm793 = vweird.f32 %v787
  %vm794 = vmor %vm792, %vm793
  %v795 = vsel %vm794, %v787, %v791
  %v796 = vand.u32 2147483647, %v786
  %vm797 = vcmp.eq.f32.partialorder %v796, 8.507059e+37
  %v798 = vand.u32 %v786, 2147483648
  %v799 = vor.u32 1.1754944e-38, %v798
  %v800 = vsel %vm797, %v799, %v795
  %v801 = vmul.f32 %v776, %v800
  %v802 = vmin.f32 %v801, 1.0
  %v803 = vmax.f32 %v802, -1.0
  %v804 = vmul.f32 %v749, %v749
  %v805 = vmin.f32 16.0, %v804
  %v806 = vmul.f32 %v805, 2.1237322e-06
  %v807 = vadd.f32 %v806, 0.00028619796
  %v808 = vmul.f32 %v805, %v807
  %v809 = vadd.f32 %v808, 0.0036580483
  %v810 = vmul.f32 %v805, %v809
  %v811 = vadd.f32 %v810, 0.05243302
  %v812 = vmul.f32 %v805, %v811
  %v813 = vadd.f32 %v812, 0.18741608
  %v814 = vmul.f32 %v805, %v813
  %v815 = vadd.f32 %v814, 1.1283791
  %v816 = vmul.f32 %v749, %v815
  %v817 = vmul.f32 %v805, 3.8918573e-05
  %v818 = vadd.f32 %v817, 0.001143296
  %v819 = vmul.f32 %v805, %v818
  %v820 = vadd.f32 %v819, 0.014752088
  %v821 = vmul.f32 %v805, %v820
  %v822 = vadd.f32 %v821, 0.112945676
  %v823 = vmul.f32 %v805, %v822
  %v824 = vadd.f32 %v823, 0.4994258
  %v825 = vmul.f32 %v805, %v824
  %v826 = vadd.f32 %v825, 1.0
  %v827 = vrcp.pop %v826
  %v828 = vmul.f32 %v826, %v827
  %v829 = vsub.f32 1.0, %v828
  %v830 = vmul.f32 %v827, %v829
  %v831 = vadd.f32 %v827, %v830
  %vm832 = vweird.f32 %v826
  %vm833 = vweird.f32 %v827
  %vm834 = vmor %vm832, %vm833
  %v835 = vsel %vm834, %v827, %v831
  %v836 = vand.u32 2147483647, %v826
  %vm837 = vcmp.eq.f32.partialorder %v836, 8.507059e+37
  %v838 = vand.u32 %v826, 2147483648
  %v839 = vor.u32 1.1754944e-38, %v838
  %v840 = vsel %vm837, %v839, %v835
  %v841 = vmul.f32 %v816, %v840
  %v842 = vmin.f32 %v841, 1.0
  %v843 = vmax.f32 %v842, -1.0
  %v844 = vmul.f32 %v750, %v750
  %v845 = vmin.f32 16.0, %v844
  %v846 = vmul.f32 %v845, 2.1237322e-06
  %v847 = vadd.f32 %v846, 0.00028619796
  %v848 = vmul.f32 %v845, %v847
  %v849 = vadd.f32 %v848, 0.0036580483
  %v850 = vmul.f32 %v845, %v849
  %v851 = vadd.f32 %v850, 0.05243302
  %v852 = vmul.f32 %v845, %v851
  %v853 = vadd.f32 %v852, 0.18741608
  %v854 = vmul.f32 %v845, %v853
  %v855 = vadd.f32 %v854, 1.1283791
  %v856 = vmul.f32 %v750, %v855
  %v857 = vmul.f32 %v845, 3.8918573e-05
  %v858 = vadd.f32 %v857, 0.001143296
  %v859 = vmul.f32 %v845, %v858
  %v860 = vadd.f32 %v859, 0.014752088
  %v861 = vmul.f32 %v845, %v860
  %v862 = vadd.f32 %v861, 0.112945676
  %v863 = vmul.f32 %v845, %v862
  %v864 = vadd.f32 %v863, 0.4994258
  %v865 = vmul.f32 %v845, %v864
  %v866 = vadd.f32 %v865, 1.0
  %v867 = vrcp.pop %v866
  %v868 = vmul.f32 %v866, %v867
  %v869 = vsub.f32 1.0, %v868
  %v870 = vmul.f32 %v867, %v869
  %v871 = vadd.f32 %v867, %v870
  %vm872 = vweird.f32 %v866
  %vm873 = vweird.f32 %v867
  %vm874 = vmor %vm872, %vm873
  %v875 = vsel %vm874, %v867, %v871
  %v876 = vand.u32 2147483647, %v866
  %vm877 = vcmp.eq.f32.partialorder %v876, 8.507059e+37
  %v878 = vand.u32 %v866, 2147483648
  %v879 = vor.u32 1.1754944e-38, %v878
  %v880 = vsel %vm877, %v879, %v875
  %v881 = vmul.f32 %v856, %v880
  %v882 = vmin.f32 %v881, 1.0
  %v883 = vmax.f32 %v882, -1.0
  %v884 = vmul.f32 %v751, %v751
  %v885 = vmin.f32 16.0, %v884
  %v886 = vmul.f32 %v885, 2.1237322e-06
  %v887 = vadd.f32 %v886, 0.00028619796
  %v888 = vmul.f32 %v885, %v887
  %v889 = vadd.f32 %v888, 0.0036580483
  %v890 = vmul.f32 %v885, %v889
  %v891 = vadd.f32 %v890, 0.05243302
  %v892 = vmul.f32 %v885, %v891
  %v893 = vadd.f32 %v892, 0.18741608
  %v894 = vmul.f32 %v885, %v893
  %v895 = vadd.f32 %v894, 1.1283791
  %v896 = vmul.f32 %v751, %v895
  %v897 = vmul.f32 %v885, 3.8918573e-05
  %v898 = vadd.f32 %v897, 0.001143296
  %v899 = vmul.f32 %v885, %v898
  %v900 = vadd.f32 %v899, 0.014752088
  %v901 = vmul.f32 %v885, %v900
  %v902 = vadd.f32 %v901, 0.112945676
  %v903 = vmul.f32 %v885, %v902
  %v904 = vadd.f32 %v903, 0.4994258
  %v905 = vmul.f32 %v885, %v904
  %v906 = vadd.f32 %v905, 1.0
  %v907 = vrcp.pop %v906
  %v908 = vmul.f32 %v906, %v907
  %v909 = vsub.f32 1.0, %v908
  %v910 = vmul.f32 %v907, %v909
  %v911 = vadd.f32 %v907, %v910
  %vm912 = vweird.f32 %v906
  %vm913 = vweird.f32 %v907
  %vm914 = vmor %vm912, %vm913
  %v915 = vsel %vm914, %v907, %v911
  %v916 = vand.u32 2147483647, %v906
  %vm917 = vcmp.eq.f32.partialorder %v916, 8.507059e+37
  %v918 = vand.u32 %v906, 2147483648
  %v919 = vor.u32 1.1754944e-38, %v918
  %v920 = vsel %vm917, %v919, %v915
  %v921 = vmul.f32 %v896, %v920
  %v922 = vmin.f32 %v921, 1.0
  %v923 = vmax.f32 %v922, -1.0
  %v924 = vmul.f32 %v752, %v752
  %v925 = vmin.f32 16.0, %v924
  %v926 = vmul.f32 %v925, 2.1237322e-06
  %v927 = vadd.f32 %v926, 0.00028619796
  %v928 = vmul.f32 %v925, %v927
  %v929 = vadd.f32 %v928, 0.0036580483
  %v930 = vmul.f32 %v925, %v929
  %v931 = vadd.f32 %v930, 0.05243302
  %v932 = vmul.f32 %v925, %v931
  %v933 = vadd.f32 %v932, 0.18741608
  %v934 = vmul.f32 %v925, %v933
  %v935 = vadd.f32 %v934, 1.1283791
  %v936 = vmul.f32 %v752, %v935
  %v937 = vmul.f32 %v925, 3.8918573e-05
  %v938 = vadd.f32 %v937, 0.001143296
  %v939 = vmul.f32 %v925, %v938
  %v940 = vadd.f32 %v939, 0.014752088
  %v941 = vmul.f32 %v925, %v940
  %v942 = vadd.f32 %v941, 0.112945676
  %v943 = vmul.f32 %v925, %v942
  %v944 = vadd.f32 %v943, 0.4994258
  %v945 = vmul.f32 %v925, %v944
  %v946 = vadd.f32 %v945, 1.0
  %v947 = vrcp.pop %v946
  %v948 = vmul.f32 %v946, %v947
  %v949 = vsub.f32 1.0, %v948
  %v950 = vmul.f32 %v947, %v949
  %v951 = vadd.f32 %v947, %v950
  %vm952 = vweird.f32 %v946
  %vm953 = vweird.f32 %v947
  %vm954 = vmor %vm952, %vm953
  %v955 = vsel %vm954, %v947, %v951
  %v956 = vand.u32 2147483647, %v946
  %vm957 = vcmp.eq.f32.partialorder %v956, 8.507059e+37
  %v958 = vand.u32 %v946, 2147483648
  %v959 = vor.u32 1.1754944e-38, %v958
  %v960 = vsel %vm957, %v959, %v955
  %v961 = vmul.f32 %v936, %v960
  %v962 = vmin.f32 %v961, 1.0
  %v963 = vmax.f32 %v962, -1.0
  %v964 = vmul.f32 %v753, %v753
  %v965 = vmin.f32 16.0, %v964
  %v966 = vmul.f32 %v965, 2.1237322e-06
  %v967 = vadd.f32 %v966, 0.00028619796
  %v968 = vmul.f32 %v965, %v967
  %v969 = vadd.f32 %v968, 0.0036580483
  %v970 = vmul.f32 %v965, %v969
  %v971 = vadd.f32 %v970, 0.05243302
  %v972 = vmul.f32 %v965, %v971
  %v973 = vadd.f32 %v972, 0.18741608
  %v974 = vmul.f32 %v965, %v973
  %v975 = vadd.f32 %v974, 1.1283791
  %v976 = vmul.f32 %v753, %v975
  %v977 = vmul.f32 %v965, 3.8918573e-05
  %v978 = vadd.f32 %v977, 0.001143296
  %v979 = vmul.f32 %v965, %v978
  %v980 = vadd.f32 %v979, 0.014752088
  %v981 = vmul.f32 %v965, %v980
  %v982 = vadd.f32 %v981, 0.112945676
  %v983 = vmul.f32 %v965, %v982
  %v984 = vadd.f32 %v983, 0.4994258
  %v985 = vmul.f32 %v965, %v984
  %v986 = vadd.f32 %v985, 1.0
  %v987 = vrcp.pop %v986
  %v988 = vmul.f32 %v986, %v987
  %v989 = vsub.f32 1.0, %v988
  %v990 = vmul.f32 %v987, %v989
  %v991 = vadd.f32 %v987, %v990
  %vm992 = vweird.f32 %v986
  %vm993 = vweird.f32 %v987
  %vm994 = vmor %vm992, %vm993
  %v995 = vsel %vm994, %v987, %v991
  %v996 = vand.u32 2147483647, %v986
  %vm997 = vcmp.eq.f32.partialorder %v996, 8.507059e+37
  %v998 = vand.u32 %v986, 2147483648
  %v999 = vor.u32 1.1754944e-38, %v998
  %v1000 = vsel %vm997, %v999, %v995
  %v1001 = vmul.f32 %v976, %v1000
  %v1002 = vmin.f32 %v1001, 1.0
  %v1003 = vmax.f32 %v1002, -1.0
  %v1004 = vmul.f32 %v754, %v754
  %v1005 = vmin.f32 16.0, %v1004
  %v1006 = vmul.f32 %v1005, 2.1237322e-06
  %v1007 = vadd.f32 %v1006, 0.00028619796
  %v1008 = vmul.f32 %v1005, %v1007
  %v1009 = vadd.f32 %v1008, 0.0036580483
  %v1010 = vmul.f32 %v1005, %v1009
  %v1011 = vadd.f32 %v1010, 0.05243302
  %v1012 = vmul.f32 %v1005, %v1011
  %v1013 = vadd.f32 %v1012, 0.18741608
  %v1014 = vmul.f32 %v1005, %v1013
  %v1015 = vadd.f32 %v1014, 1.1283791
  %v1016 = vmul.f32 %v754, %v1015
  %v1017 = vmul.f32 %v1005, 3.8918573e-05
  %v1018 = vadd.f32 %v1017, 0.001143296
  %v1019 = vmul.f32 %v1005, %v1018
  %v1020 = vadd.f32 %v1019, 0.014752088
  %v1021 = vmul.f32 %v1005, %v1020
  %v1022 = vadd.f32 %v1021, 0.112945676
  %v1023 = vmul.f32 %v1005, %v1022
  %v1024 = vadd.f32 %v1023, 0.4994258
  %v1025 = vmul.f32 %v1005, %v1024
  %v1026 = vadd.f32 %v1025, 1.0
  %v1027 = vrcp.pop %v1026
  %v1028 = vmul.f32 %v1026, %v1027
  %v1029 = vsub.f32 1.0, %v1028
  %v1030 = vmul.f32 %v1027, %v1029
  %v1031 = vadd.f32 %v1027, %v1030
  %vm1032 = vweird.f32 %v1026
  %vm1033 = vweird.f32 %v1027
  %vm1034 = vmor %vm1032, %vm1033
  %v1035 = vsel %vm1034, %v1027, %v1031
  %v1036 = vand.u32 2147483647, %v1026
  %vm1037 = vcmp.eq.f32.partialorder %v1036, 8.507059e+37
  %v1038 = vand.u32 %v1026, 2147483648
  %v1039 = vor.u32 1.1754944e-38, %v1038
  %v1040 = vsel %vm1037, %v1039, %v1035
  %v1041 = vmul.f32 %v1016, %v1040
  %v1042 = vmin.f32 %v1041, 1.0
  %v1043 = vmax.f32 %v1042, -1.0
  %v1044 = vmul.f32 %v755, %v755
  %v1045 = vmin.f32 16.0, %v1044
  %v1046 = vmul.f32 %v1045, 2.1237322e-06
  %v1047 = vadd.f32 %v1046, 0.00028619796
  %v1048 = vmul.f32 %v1045, %v1047
  %v1049 = vadd.f32 %v1048, 0.0036580483
  %v1050 = vmul.f32 %v1045, %v1049
  %v1051 = vadd.f32 %v1050, 0.05243302
  %v1052 = vmul.f32 %v1045, %v1051
  %v1053 = vadd.f32 %v1052, 0.18741608
  %v1054 = vmul.f32 %v1045, %v1053
  %v1055 = vadd.f32 %v1054, 1.1283791
  %v1056 = vmul.f32 %v755, %v1055
  %v1057 = vmul.f32 %v1045, 3.8918573e-05
  %v1058 = vadd.f32 %v1057, 0.001143296
  %v1059 = vmul.f32 %v1045, %v1058
  %v1060 = vadd.f32 %v1059, 0.014752088
  %v1061 = vmul.f32 %v1045, %v1060
  %v1062 = vadd.f32 %v1061, 0.112945676
  %v1063 = vmul.f32 %v1045, %v1062
  %v1064 = vadd.f32 %v1063, 0.4994258
  %v1065 = vmul.f32 %v1045, %v1064
  %v1066 = vadd.f32 %v1065, 1.0
  %v1067 = vrcp.pop %v1066
  %v1068 = vmul.f32 %v1066, %v1067
  %v1069 = vsub.f32 1.0, %v1068
  %v1070 = vmul.f32 %v1067, %v1069
  %v1071 = vadd.f32 %v1067, %v1070
  %vm1072 = vweird.f32 %v1066
  %vm1073 = vweird.f32 %v1067
  %vm1074 = vmor %vm1072, %vm1073
  %v1075 = vsel %vm1074, %v1067, %v1071
  %v1076 = vand.u32 2147483647, %v1066
  %vm1077 = vcmp.eq.f32.partialorder %v1076, 8.507059e+37
  %v1078 = vand.u32 %v1066, 2147483648
  %v1079 = vor.u32 1.1754944e-38, %v1078
  %v1080 = vsel %vm1077, %v1079, %v1075
  %v1081 = vmul.f32 %v1056, %v1080
  %v1082 = vmin.f32 %v1081, 1.0
  %v1083 = vmax.f32 %v1082, -1.0
  %v1084 = vmul.f32 %v756, %v756
  %v1085 = vmin.f32 16.0, %v1084
  %v1086 = vmul.f32 %v1085, 2.1237322e-06
  %v1087 = vadd.f32 %v1086, 0.00028619796
  %v1088 = vmul.f32 %v1085, %v1087
  %v1089 = vadd.f32 %v1088, 0.0036580483
  %v1090 = vmul.f32 %v1085, %v1089
  %v1091 = vadd.f32 %v1090, 0.05243302
  %v1092 = vmul.f32 %v1085, %v1091
  %v1093 = vadd.f32 %v1092, 0.18741608
  %v1094 = vmul.f32 %v1085, %v1093
  %v1095 = vadd.f32 %v1094, 1.1283791
  %v1096 = vmul.f32 %v756, %v1095
  %v1097 = vmul.f32 %v1085, 3.8918573e-05
  %v1098 = vadd.f32 %v1097, 0.001143296
  %v1099 = vmul.f32 %v1085, %v1098
  %v1100 = vadd.f32 %v1099, 0.014752088
  %v1101 = vmul.f32 %v1085, %v1100
  %v1102 = vadd.f32 %v1101, 0.112945676
  %v1103 = vmul.f32 %v1085, %v1102
  %v1104 = vadd.f32 %v1103, 0.4994258
  %v1105 = vmul.f32 %v1085, %v1104
  %v1106 = vadd.f32 %v1105, 1.0
  %v1107 = vrcp.pop %v1106
  %v1108 = vmul.f32 %v1106, %v1107
  %v1109 = vsub.f32 1.0, %v1108
  %v1110 = vmul.f32 %v1107, %v1109
  %v1111 = vadd.f32 %v1107, %v1110
  %vm1112 = vweird.f32 %v1106
  %vm1113 = vweird.f32 %v1107
  %vm1114 = vmor %vm1112, %vm1113
  %v1115 = vsel %vm1114, %v1107, %v1111
  %v1116 = vand.u32 2147483647, %v1106
  %vm1117 = vcmp.eq.f32.partialorder %v1116, 8.507059e+37
  %v1118 = vand.u32 %v1106, 2147483648
  %v1119 = vor.u32 1.1754944e-38, %v1118
  %v1120 = vsel %vm1117, %v1119, %v1115
  %v1121 = vmul.f32 %v1096, %v1120
  %v1122 = vmin.f32 %v1121, 1.0
  %v1123 = vmax.f32 %v1122, -1.0
  %v1124 = vmul.f32 %v757, %v757
  %v1125 = vmin.f32 16.0, %v1124
  %v1126 = vmul.f32 %v1125, 2.1237322e-06
  %v1127 = vadd.f32 %v1126, 0.00028619796
  %v1128 = vmul.f32 %v1125, %v1127
  %v1129 = vadd.f32 %v1128, 0.0036580483
  %v1130 = vmul.f32 %v1125, %v1129
  %v1131 = vadd.f32 %v1130, 0.05243302
  %v1132 = vmul.f32 %v1125, %v1131
  %v1133 = vadd.f32 %v1132, 0.18741608
  %v1134 = vmul.f32 %v1125, %v1133
  %v1135 = vadd.f32 %v1134, 1.1283791
  %v1136 = vmul.f32 %v757, %v1135
  %v1137 = vmul.f32 %v1125, 3.8918573e-05
  %v1138 = vadd.f32 %v1137, 0.001143296
  %v1139 = vmul.f32 %v1125, %v1138
  %v1140 = vadd.f32 %v1139, 0.014752088
  %v1141 = vmul.f32 %v1125, %v1140
  %v1142 = vadd.f32 %v1141, 0.112945676
  %v1143 = vmul.f32 %v1125, %v1142
  %v1144 = vadd.f32 %v1143, 0.4994258
  %v1145 = vmul.f32 %v1125, %v1144
  %v1146 = vadd.f32 %v1145, 1.0
  %v1147 = vrcp.pop %v1146
  %v1148 = vmul.f32 %v1146, %v1147
  %v1149 = vsub.f32 1.0, %v1148
  %v1150 = vmul.f32 %v1147, %v1149
  %v1151 = vadd.f32 %v1147, %v1150
  %vm1152 = vweird.f32 %v1146
  %vm1153 = vweird.f32 %v1147
  %vm1154 = vmor %vm1152, %vm1153
  %v1155 = vsel %vm1154, %v1147, %v1151
  %v1156 = vand.u32 2147483647, %v1146
  %vm1157 = vcmp.eq.f32.partialorder %v1156, 8.507059e+37
  %v1158 = vand.u32 %v1146, 2147483648
  %v1159 = vor.u32 1.1754944e-38, %v1158
  %v1160 = vsel %vm1157, %v1159, %v1155
  %v1161 = vmul.f32 %v1136, %v1160
  %v1162 = vmin.f32 %v1161, 1.0
  %v1163 = vmax.f32 %v1162, -1.0
  %v1164 = vmul.f32 %v758, %v758
  %v1165 = vmin.f32 16.0, %v1164
  %v1166 = vmul.f32 %v1165, 2.1237322e-06
  %v1167 = vadd.f32 %v1166, 0.00028619796
  %v1168 = vmul.f32 %v1165, %v1167
  %v1169 = vadd.f32 %v1168, 0.0036580483
  %v1170 = vmul.f32 %v1165, %v1169
  %v1171 = vadd.f32 %v1170, 0.05243302
  %v1172 = vmul.f32 %v1165, %v1171
  %v1173 = vadd.f32 %v1172, 0.18741608
  %v1174 = vmul.f32 %v1165, %v1173
  %v1175 = vadd.f32 %v1174, 1.1283791
  %v1176 = vmul.f32 %v758, %v1175
  %v1177 = vmul.f32 %v1165, 3.8918573e-05
  %v1178 = vadd.f32 %v1177, 0.001143296
  %v1179 = vmul.f32 %v1165, %v1178
  %v1180 = vadd.f32 %v1179, 0.014752088
  %v1181 = vmul.f32 %v1165, %v1180
  %v1182 = vadd.f32 %v1181, 0.112945676
  %v1183 = vmul.f32 %v1165, %v1182
  %v1184 = vadd.f32 %v1183, 0.4994258
  %v1185 = vmul.f32 %v1165, %v1184
  %v1186 = vadd.f32 %v1185, 1.0
  %v1187 = vrcp.pop %v1186
  %v1188 = vmul.f32 %v1186, %v1187
  %v1189 = vsub.f32 1.0, %v1188
  %v1190 = vmul.f32 %v1187, %v1189
  %v1191 = vadd.f32 %v1187, %v1190
  %vm1192 = vweird.f32 %v1186
  %vm1193 = vweird.f32 %v1187
  %vm1194 = vmor %vm1192, %vm1193
  %v1195 = vsel %vm1194, %v1187, %v1191
  %v1196 = vand.u32 2147483647, %v1186
  %vm1197 = vcmp.eq.f32.partialorder %v1196, 8.507059e+37
  %v1198 = vand.u32 %v1186, 2147483648
  %v1199 = vor.u32 1.1754944e-38, %v1198
  %v1200 = vsel %vm1197, %v1199, %v1195
  %v1201 = vmul.f32 %v1176, %v1200
  %v1202 = vmin.f32 %v1201, 1.0
  %v1203 = vmax.f32 %v1202, -1.0
  %v1204 = vmul.f32 %v759, %v759
  %v1205 = vmin.f32 16.0, %v1204
  %v1206 = vmul.f32 %v1205, 2.1237322e-06
  %v1207 = vadd.f32 %v1206, 0.00028619796
  %v1208 = vmul.f32 %v1205, %v1207
  %v1209 = vadd.f32 %v1208, 0.0036580483
  %v1210 = vmul.f32 %v1205, %v1209
  %v1211 = vadd.f32 %v1210, 0.05243302
  %v1212 = vmul.f32 %v1205, %v1211
  %v1213 = vadd.f32 %v1212, 0.18741608
  %v1214 = vmul.f32 %v1205, %v1213
  %v1215 = vadd.f32 %v1214, 1.1283791
  %v1216 = vmul.f32 %v759, %v1215
  %v1217 = vmul.f32 %v1205, 3.8918573e-05
  %v1218 = vadd.f32 %v1217, 0.001143296
  %v1219 = vmul.f32 %v1205, %v1218
  %v1220 = vadd.f32 %v1219, 0.014752088
  %v1221 = vmul.f32 %v1205, %v1220
  %v1222 = vadd.f32 %v1221, 0.112945676
  %v1223 = vmul.f32 %v1205, %v1222
  %v1224 = vadd.f32 %v1223, 0.4994258
  %v1225 = vmul.f32 %v1205, %v1224
  %v1226 = vadd.f32 %v1225, 1.0
  %v1227 = vrcp.pop %v1226
  %v1228 = vmul.f32 %v1226, %v1227
  %v1229 = vsub.f32 1.0, %v1228
  %v1230 = vmul.f32 %v1227, %v1229
  %v1231 = vadd.f32 %v1227, %v1230
  %vm1232 = vweird.f32 %v1226
  %vm1233 = vweird.f32 %v1227
  %vm1234 = vmor %vm1232, %vm1233
  %v1235 = vsel %vm1234, %v1227, %v1231
  %v1236 = vand.u32 2147483647, %v1226
  %vm1237 = vcmp.eq.f32.partialorder %v1236, 8.507059e+37
  %v1238 = vand.u32 %v1226, 2147483648
  %v1239 = vor.u32 1.1754944e-38, %v1238
  %v1240 = vsel %vm1237, %v1239, %v1235
  %v1241 = vmul.f32 %v1216, %v1240
  %v1242 = vmin.f32 %v1241, 1.0
  %v1243 = vmax.f32 %v1242, -1.0
  %v1244 = vmul.f32 %v760, %v760
  %v1245 = vmin.f32 16.0, %v1244
  %v1246 = vmul.f32 %v1245, 2.1237322e-06
  %v1247 = vadd.f32 %v1246, 0.00028619796
  %v1248 = vmul.f32 %v1245, %v1247
  %v1249 = vadd.f32 %v1248, 0.0036580483
  %v1250 = vmul.f32 %v1245, %v1249
  %v1251 = vadd.f32 %v1250, 0.05243302
  %v1252 = vmul.f32 %v1245, %v1251
  %v1253 = vadd.f32 %v1252, 0.18741608
  %v1254 = vmul.f32 %v1245, %v1253
  %v1255 = vadd.f32 %v1254, 1.1283791
  %v1256 = vmul.f32 %v760, %v1255
  %v1257 = vmul.f32 %v1245, 3.8918573e-05
  %v1258 = vadd.f32 %v1257, 0.001143296
  %v1259 = vmul.f32 %v1245, %v1258
  %v1260 = vadd.f32 %v1259, 0.014752088
  %v1261 = vmul.f32 %v1245, %v1260
  %v1262 = vadd.f32 %v1261, 0.112945676
  %v1263 = vmul.f32 %v1245, %v1262
  %v1264 = vadd.f32 %v1263, 0.4994258
  %v1265 = vmul.f32 %v1245, %v1264
  %v1266 = vadd.f32 %v1265, 1.0
  %v1267 = vrcp.pop %v1266
  %v1268 = vmul.f32 %v1266, %v1267
  %v1269 = vsub.f32 1.0, %v1268
  %v1270 = vmul.f32 %v1267, %v1269
  %v1271 = vadd.f32 %v1267, %v1270
  %vm1272 = vweird.f32 %v1266
  %vm1273 = vweird.f32 %v1267
  %vm1274 = vmor %vm1272, %vm1273
  %v1275 = vsel %vm1274, %v1267, %v1271
  %v1276 = vand.u32 2147483647, %v1266
  %vm1277 = vcmp.eq.f32.partialorder %v1276, 8.507059e+37
  %v1278 = vand.u32 %v1266, 2147483648
  %v1279 = vor.u32 1.1754944e-38, %v1278
  %v1280 = vsel %vm1277, %v1279, %v1275
  %v1281 = vmul.f32 %v1256, %v1280
  %v1282 = vmin.f32 %v1281, 1.0
  %v1283 = vmax.f32 %v1282, -1.0
  %v1284 = vmul.f32 %v761, %v761
  %v1285 = vmin.f32 16.0, %v1284
  %v1286 = vmul.f32 %v1285, 2.1237322e-06
  %v1287 = vadd.f32 %v1286, 0.00028619796
  %v1288 = vmul.f32 %v1285, %v1287
  %v1289 = vadd.f32 %v1288, 0.0036580483
  %v1290 = vmul.f32 %v1285, %v1289
  %v1291 = vadd.f32 %v1290, 0.05243302
  %v1292 = vmul.f32 %v1285, %v1291
  %v1293 = vadd.f32 %v1292, 0.18741608
  %v1294 = vmul.f32 %v1285, %v1293
  %v1295 = vadd.f32 %v1294, 1.1283791
  %v1296 = vmul.f32 %v761, %v1295
  %v1297 = vmul.f32 %v1285, 3.8918573e-05
  %v1298 = vadd.f32 %v1297, 0.001143296
  %v1299 = vmul.f32 %v1285, %v1298
  %v1300 = vadd.f32 %v1299, 0.014752088
  %v1301 = vmul.f32 %v1285, %v1300
  %v1302 = vadd.f32 %v1301, 0.112945676
  %v1303 = vmul.f32 %v1285, %v1302
  %v1304 = vadd.f32 %v1303, 0.4994258
  %v1305 = vmul.f32 %v1285, %v1304
  %v1306 = vadd.f32 %v1305, 1.0
  %v1307 = vrcp.pop %v1306
  %v1308 = vmul.f32 %v1306, %v1307
  %v1309 = vsub.f32 1.0, %v1308
  %v1310 = vmul.f32 %v1307, %v1309
  %v1311 = vadd.f32 %v1307, %v1310
  %vm1312 = vweird.f32 %v1306
  %vm1313 = vweird.f32 %v1307
  %vm1314 = vmor %vm1312, %vm1313
  %v1315 = vsel %vm1314, %v1307, %v1311
  %v1316 = vand.u32 2147483647, %v1306
  %vm1317 = vcmp.eq.f32.partialorder %v1316, 8.507059e+37
  %v1318 = vand.u32 %v1306, 2147483648
  %v1319 = vor.u32 1.1754944e-38, %v1318
  %v1320 = vsel %vm1317, %v1319, %v1315
  %v1321 = vmul.f32 %v1296, %v1320
  %v1322 = vmin.f32 %v1321, 1.0
  %v1323 = vmax.f32 %v1322, -1.0
  %v1324 = vmul.f32 %v762, %v762
  %v1325 = vmin.f32 16.0, %v1324
  %v1326 = vmul.f32 %v1325, 2.1237322e-06
  %v1327 = vadd.f32 %v1326, 0.00028619796
  %v1328 = vmul.f32 %v1325, %v1327
  %v1329 = vadd.f32 %v1328, 0.0036580483
  %v1330 = vmul.f32 %v1325, %v1329
  %v1331 = vadd.f32 %v1330, 0.05243302
  %v1332 = vmul.f32 %v1325, %v1331
  %v1333 = vadd.f32 %v1332, 0.18741608
  %v1334 = vmul.f32 %v1325, %v1333
  %v1335 = vadd.f32 %v1334, 1.1283791
  %v1336 = vmul.f32 %v762, %v1335
  %v1337 = vmul.f32 %v1325, 3.8918573e-05
  %v1338 = vadd.f32 %v1337, 0.001143296
  %v1339 = vmul.f32 %v1325, %v1338
  %v1340 = vadd.f32 %v1339, 0.014752088
  %v1341 = vmul.f32 %v1325, %v1340
  %v1342 = vadd.f32 %v1341, 0.112945676
  %v1343 = vmul.f32 %v1325, %v1342
  %v1344 = vadd.f32 %v1343, 0.4994258
  %v1345 = vmul.f32 %v1325, %v1344
  %v1346 = vadd.f32 %v1345, 1.0
  %v1347 = vrcp.pop %v1346
  %v1348 = vmul.f32 %v1346, %v1347
  %v1349 = vsub.f32 1.0, %v1348
  %v1350 = vmul.f32 %v1347, %v1349
  %v1351 = vadd.f32 %v1347, %v1350
  %vm1352 = vweird.f32 %v1346
  %vm1353 = vweird.f32 %v1347
  %vm1354 = vmor %vm1352, %vm1353
  %v1355 = vsel %vm1354, %v1347, %v1351
  %v1356 = vand.u32 2147483647, %v1346
  %vm1357 = vcmp.eq.f32.partialorder %v1356, 8.507059e+37
  %v1358 = vand.u32 %v1346, 2147483648
  %v1359 = vor.u32 1.1754944e-38, %v1358
  %v1360 = vsel %vm1357, %v1359, %v1355
  %v1361 = vmul.f32 %v1336, %v1360
  %v1362 = vmin.f32 %v1361, 1.0
  %v1363 = vmax.f32 %v1362, -1.0
  %v1364 = vmul.f32 %v763, %v763
  %v1365 = vmin.f32 16.0, %v1364
  %v1366 = vmul.f32 %v1365, 2.1237322e-06
  %v1367 = vadd.f32 %v1366, 0.00028619796
  %v1368 = vmul.f32 %v1365, %v1367
  %v1369 = vadd.f32 %v1368, 0.0036580483
  %v1370 = vmul.f32 %v1365, %v1369
  %v1371 = vadd.f32 %v1370, 0.05243302
  %v1372 = vmul.f32 %v1365, %v1371
  %v1373 = vadd.f32 %v1372, 0.18741608
  %v1374 = vmul.f32 %v1365, %v1373
  %v1375 = vadd.f32 %v1374, 1.1283791
  %v1376 = vmul.f32 %v763, %v1375
  %v1377 = vmul.f32 %v1365, 3.8918573e-05
  %v1378 = vadd.f32 %v1377, 0.001143296
  %v1379 = vmul.f32 %v1365, %v1378
  %v1380 = vadd.f32 %v1379, 0.014752088
  %v1381 = vmul.f32 %v1365, %v1380
  %v1382 = vadd.f32 %v1381, 0.112945676
  %v1383 = vmul.f32 %v1365, %v1382
  %v1384 = vadd.f32 %v1383, 0.4994258
  %v1385 = vmul.f32 %v1365, %v1384
  %v1386 = vadd.f32 %v1385, 1.0
  %v1387 = vrcp.pop %v1386
  %v1388 = vmul.f32 %v1386, %v1387
  %v1389 = vsub.f32 1.0, %v1388
  %v1390 = vmul.f32 %v1387, %v1389
  %v1391 = vadd.f32 %v1387, %v1390
  %vm1392 = vweird.f32 %v1386
  %vm1393 = vweird.f32 %v1387
  %vm1394 = vmor %vm1392, %vm1393
  %v1395 = vsel %vm1394, %v1387, %v1391
  %v1396 = vand.u32 2147483647, %v1386
  %vm1397 = vcmp.eq.f32.partialorder %v1396, 8.507059e+37
  %v1398 = vand.u32 %v1386, 2147483648
  %v1399 = vor.u32 1.1754944e-38, %v1398
  %v1400 = vsel %vm1397, %v1399, %v1395
  %v1401 = vmul.f32 %v1376, %v1400
  %v1402 = vmin.f32 %v1401, 1.0
  %v1403 = vmax.f32 %v1402, -1.0
  %v1404 = vadd.f32 %v803, 1.0
  %v1405 = vadd.f32 %v843, 1.0
  %v1406 = vadd.f32 %v883, 1.0
  %v1407 = vadd.f32 %v923, 1.0
  %v1408 = vadd.f32 %v963, 1.0
  %v1409 = vadd.f32 %v1003, 1.0
  %v1410 = vadd.f32 %v1043, 1.0
  %v1411 = vadd.f32 %v1083, 1.0
  %v1412 = vadd.f32 %v1123, 1.0
  %v1413 = vadd.f32 %v1163, 1.0
  %v1414 = vadd.f32 %v1203, 1.0
  %v1415 = vadd.f32 %v1243, 1.0
  %v1416 = vadd.f32 %v1283, 1.0
  %v1417 = vadd.f32 %v1323, 1.0
  %v1418 = vadd.f32 %v1363, 1.0
  %v1419 = vadd.f32 %v1403, 1.0
  %v1420 = vmul.f32 %v732, %v1404
  %v1421 = vmul.f32 %v733, %v1405
  %v1422 = vmul.f32 %v734, %v1406
  %v1423 = vmul.f32 %v735, %v1407
  %v1424 = vmul.f32 %v736, %v1408
  %v1425 = vmul.f32 %v737, %v1409
  %v1426 = vmul.f32 %v738, %v1410
  %v1427 = vmul.f32 %v739, %v1411
  %v1428 = vmul.f32 %v740, %v1412
  %v1429 = vmul.f32 %v741, %v1413
  %v1430 = vmul.f32 %v742, %v1414
  %v1431 = vmul.f32 %v743, %v1415
  %v1432 = vmul.f32 %v744, %v1416
  %v1433 = vmul.f32 %v745, %v1417
  %v1434 = vmul.f32 %v746, %v1418
  %v1435 = vmul.f32 %v747, %v1419
  %v1452 = vrot.slane %v1420, 7
  %v1453 = vrot.slane %v1421, 7
  %v1454 = vrot.slane %v1422, 7
  %v1455 = vrot.slane %v1423, 7
  %v1456 = vrot.slane %v1424, 7
  %v1457 = vrot.slane %v1425, 7
  %v1458 = vrot.slane %v1426, 7
  %v1459 = vrot.slane %v1427, 7
  %v1460 = vrot.slane %v1428, 7
  %v1461 = vrot.slane %v1429, 7
  %v1462 = vrot.slane %v1430, 7
  %v1463 = vrot.slane %v1431, 7
  %v1464 = vrot.slane %v1432, 7
  %v1465 = vrot.slane %v1433, 7
  %v1466 = vrot.slane %v1434, 7
  %v1467 = vrot.slane %v1435, 7
  %v1484 = vsel %vm599, 0.0, %v1452
  %v1485 = vsel %vm599, 0.0, %v1453
  %v1486 = vsel %vm599, 0.0, %v1454
  %v1487 = vsel %vm599, 0.0, %v1455
  %v1488 = vsel %vm599, 0.0, %v1456
  %v1489 = vsel %vm599, 0.0, %v1457
  %v1490 = vsel %vm599, 0.0, %v1458
  %v1491 = vsel %vm599, 0.0, %v1459
  %v1492 = vsel %vm599, 0.0, %v1460
  %v1493 = vsel %vm599, 0.0, %v1461
  %v1494 = vsel %vm599, 0.0, %v1462
  %v1495 = vsel %vm599, 0.0, %v1463
  %v1496 = vsel %vm599, 0.0, %v1464
  %v1497 = vsel %vm599, 0.0, %v1465
  %v1498 = vsel %vm599, 0.0, %v1466
  %v1499 = vsel %vm599, 0.0, %v1467
  %v1500 = vsel %vm599, %v1452, 0.0
  %v1501 = vsel %vm599, %v1453, 0.0
  %v1502 = vsel %vm599, %v1454, 0.0
  %v1503 = vsel %vm599, %v1455, 0.0
  %v1504 = vsel %vm599, %v1456, 0.0
  %v1505 = vsel %vm599, %v1457, 0.0
  %v1506 = vsel %vm599, %v1458, 0.0
  %v1507 = vsel %vm599, %v1459, 0.0
  %v1508 = vsel %vm599, %v1460, 0.0
  %v1509 = vsel %vm599, %v1461, 0.0
  %v1510 = vsel %vm599, %v1462, 0.0
  %v1511 = vsel %vm599, %v1463, 0.0
  %v1512 = vsel %vm599, %v1464, 0.0
  %v1513 = vsel %vm599, %v1465, 0.0
  %v1514 = vsel %vm599, %v1466, 0.0
  %v1515 = vsel %vm599, %v1467, 0.0
  %v1549 = vrot.slane 0.0, 2
  %v1550 = vrot.slane 0.0, 4
  %v1551 = vrot.slane 0.0, 6
  %v1552 = vrot.slane %v1484, 2
  %v1553 = vrot.slane %v1484, 4
  %v1554 = vrot.slane %v1484, 6
  %v1555 = vrot.slane %v1485, 2
  %v1556 = vrot.slane %v1485, 4
  %v1557 = vrot.slane %v1485, 6
  %v1558 = vrot.slane %v1486, 2
  %v1559 = vrot.slane %v1486, 4
  %v1560 = vrot.slane %v1486, 6
  %v1561 = vrot.slane %v1487, 2
  %v1562 = vrot.slane %v1487, 4
  %v1563 = vrot.slane %v1487, 6
  %v1564 = vrot.slane %v1488, 2
  %v1565 = vrot.slane %v1488, 4
  %v1566 = vrot.slane %v1488, 6
  %v1567 = vrot.slane %v1489, 2
  %v1568 = vrot.slane %v1489, 4
  %v1569 = vrot.slane %v1489, 6
  %v1570 = vrot.slane %v1490, 2
  %v1571 = vrot.slane %v1490, 4
  %v1572 = vrot.slane %v1490, 6
  %v1573 = vrot.slane %v1491, 2
  %v1574 = vrot.slane %v1491, 4
  %v1575 = vrot.slane %v1491, 6
  %v1576 = vrot.slane %v1492, 2
  %v1577 = vrot.slane %v1492, 4
  %v1578 = vrot.slane %v1492, 6
  %v1579 = vrot.slane %v1493, 2
  %v1580 = vrot.slane %v1493, 4
  %v1581 = vrot.slane %v1493, 6
  %v1582 = vrot.slane %v1494, 2
  %v1583 = vrot.slane %v1494, 4
  %v1584 = vrot.slane %v1494, 6
  %v1585 = vrot.slane %v1495, 2
  %v1586 = vrot.slane %v1495, 4
  %v1587 = vrot.slane %v1495, 6
  %v1588 = vrot.slane %v1496, 2
  %v1589 = vrot.slane %v1496, 4
  %v1590 = vrot.slane %v1496, 6
  %v1591 = vrot.slane %v1497, 2
  %v1592 = vrot.slane %v1497, 4
  %v1593 = vrot.slane %v1497, 6
  %v1594 = vrot.slane %v1498, 2
  %v1595 = vrot.slane %v1498, 4
  %v1596 = vrot.slane %v1498, 6
  %v1597 = vrot.slane %v1499, 2
  %v1598 = vrot.slane %v1499, 4
  %v1599 = vrot.slane %v1499, 6
  %1600 = vst [vmem:[#allocation1] ss:$4 sm:$0xff] 0.0
  %s1601 = scalar_lea.vmem [#allocation1], 1
  %1602 = vst [vmem:[%s1601] ss:$4 sm:$0xff] %v1549
  %s1603 = scalar_lea.vmem [#allocation1], 2
  %1604 = vst [vmem:[%s1603] ss:$4 sm:$0xff] %v1550
  %s1605 = scalar_lea.vmem [#allocation1], 3
  %1606 = vst [vmem:[%s1605] ss:$4 sm:$0xff] %v1551
  %s1607 = scalar_lea.vmem [#allocation1], 32
  %1608 = vst [vmem:[%s1607] ss:$4 sm:$0xff] 0.0
  %s1609 = scalar_lea.vmem [#allocation1], 33
  %1610 = vst [vmem:[%s1609] ss:$4 sm:$0xff] %v1484
  %s1611 = scalar_lea.vmem [#allocation1], 34
  %1612 = vst [vmem:[%s1611] ss:$4 sm:$0xff] %v1552
  %s1613 = scalar_lea.vmem [#allocation1], 35
  %1614 = vst [vmem:[%s1613] ss:$4 sm:$0xff] %v1553
  %v1615 = vld.sshfl [vmem:[#allocation1] sm:$0xff pattern:$0x73625140]
  %v1616 = vld.sshfl [vmem:[#allocation1 + $0x20] sm:$0xff pattern:$0x73625140]
  %1617 = vst [vmem:[#allocation1] ss:$4 sm:$0xff] %v1554
  %1618 = vst [vmem:[%s1601] ss:$4 sm:$0xff] %v1500
  %1619 = vst [vmem:[%s1603] ss:$4 sm:$0xff] %v1485
  %1620 = vst [vmem:[%s1605] ss:$4 sm:$0xff] %v1555
  %1621 = vst [vmem:[%s1607] ss:$4 sm:$0xff] %v1556
  %1622 = vst [vmem:[%s1609] ss:$4 sm:$0xff] %v1557
  %1623 = vst [vmem:[%s1611] ss:$4 sm:$0xff] %v1501
  %1624 = vst [vmem:[%s1613] ss:$4 sm:$0xff] %v1486
  %v1625 = vld.sshfl [vmem:[#allocation1] sm:$0xff pattern:$0x73625140]
  %v1626 = vld.sshfl [vmem:[#allocation1 + $0x20] sm:$0xff pattern:$0x73625140]
  %1627 = vst [vmem:[#allocation1] ss:$4 sm:$0xff] %v1558
  %1628 = vst [vmem:[%s1601] ss:$4 sm:$0xff] %v1559
  %1629 = vst [vmem:[%s1603] ss:$4 sm:$0xff] %v1560
  %1630 = vst [vmem:[%s1605] ss:$4 sm:$0xff] %v1502
  %1631 = vst [vmem:[%s1607] ss:$4 sm:$0xff] %v1487
  %1632 = vst [vmem:[%s1609] ss:$4 sm:$0xff] %v1561
  %1633 = vst [vmem:[%s1611] ss:$4 sm:$0xff] %v1562
  %1634 = vst [vmem:[%s1613] ss:$4 sm:$0xff] %v1563
  %v1635 = vld.sshfl [vmem:[#allocation1] sm:$0xff pattern:$0x73625140]
  %v1636 = vld.sshfl [vmem:[#allocation1 + $0x20] sm:$0xff pattern:$0x73625140]
  %1637 = vst [vmem:[#allocation1] ss:$4 sm:$0xff] %v1503
  %1638 = vst [vmem:[%s1601] ss:$4 sm:$0xff] %v1488
  %1639 = vst [vmem:[%s1603] ss:$4 sm:$0xff] %v1564
  %1640 = vst [vmem:[%s1605] ss:$4 sm:$0xff] %v1565
  %1641 = vst [vmem:[%s1607] ss:$4 sm:$0xff] %v1566
  %1642 = vst [vmem:[%s1609] ss:$4 sm:$0xff] %v1504
  %1643 = vst [vmem:[%s1611] ss:$4 sm:$0xff] %v1489
  %1644 = vst [vmem:[%s1613] ss:$4 sm:$0xff] %v1567
  %v1645 = vld.sshfl [vmem:[#allocation1] sm:$0xff pattern:$0x73625140]
  %v1646 = vld.sshfl [vmem:[#allocation1 + $0x20] sm:$0xff pattern:$0x73625140]
  %1647 = vst [vmem:[#allocation1] ss:$4 sm:$0xff] %v1568
  %1648 = vst [vmem:[%s1601] ss:$4 sm:$0xff] %v1569
  %1649 = vst [vmem:[%s1603] ss:$4 sm:$0xff] %v1505
  %1650 = vst [vmem:[%s1605] ss:$4 sm:$0xff] %v1490
  %1651 = vst [vmem:[%s1607] ss:$4 sm:$0xff] %v1570
  %1652 = vst [vmem:[%s1609] ss:$4 sm:$0xff] %v1571
  %1653 = vst [vmem:[%s1611] ss:$4 sm:$0xff] %v1572
  %1654 = vst [vmem:[%s1613] ss:$4 sm:$0xff] %v1506
  %v1655 = vld.sshfl [vmem:[#allocation1] sm:$0xff pattern:$0x73625140]
  %v1656 = vld.sshfl [vmem:[#allocation1 + $0x20] sm:$0xff pattern:$0x73625140]
  %1657 = vst [vmem:[#allocation1] ss:$4 sm:$0xff] %v1491
  %1658 = vst [vmem:[%s1601] ss:$4 sm:$0xff] %v1573
  %1659 = vst [vmem:[%s1603] ss:$4 sm:$0xff] %v1574
  %1660 = vst [vmem:[%s1605] ss:$4 sm:$0xff] %v1575
  %1661 = vst [vmem:[%s1607] ss:$4 sm:$0xff] %v1507
  %1662 = vst [vmem:[%s1609] ss:$4 sm:$0xff] 0.0
  %1663 = vst [vmem:[%s1611] ss:$4 sm:$0xff] %v1549
  %1664 = vst [vmem:[%s1613] ss:$4 sm:$0xff] %v1550
  %v1665 = vld.sshfl [vmem:[#allocation1] sm:$0xff pattern:$0x73625140]
  %v1666 = vld.sshfl [vmem:[#allocation1 + $0x20] sm:$0xff pattern:$0x73625140]
  %1667 = vst [vmem:[#allocation1] ss:$4 sm:$0xff] %v1551
  %1668 = vst [vmem:[%s1601] ss:$4 sm:$0xff] 0.0
  %1669 = vst [vmem:[%s1603] ss:$4 sm:$0xff] 0.0
  %1670 = vst [vmem:[%s1605] ss:$4 sm:$0xff] %v1549
  %1671 = vst [vmem:[%s1607] ss:$4 sm:$0xff] %v1550
  %1672 = vst [vmem:[%s1609] ss:$4 sm:$0xff] %v1551
  %1673 = vst [vmem:[%s1611] ss:$4 sm:$0xff] 0.0
  %1674 = vst [vmem:[%s1613] ss:$4 sm:$0xff] %v1492
  %v1675 = vld.sshfl [vmem:[#allocation1] sm:$0xff pattern:$0x73625140]
  %v1676 = vld.sshfl [vmem:[#allocation1 + $0x20] sm:$0xff pattern:$0x73625140]
  %1677 = vst [vmem:[#allocation1] ss:$4 sm:$0xff] %v1576
  %1678 = vst [vmem:[%s1601] ss:$4 sm:$0xff] %v1577
  %1679 = vst [vmem:[%s1603] ss:$4 sm:$0xff] %v1578
  %1680 = vst [vmem:[%s1605] ss:$4 sm:$0xff] %v1508
  %1681 = vst [vmem:[%s1607] ss:$4 sm:$0xff] %v1493
  %1682 = vst [vmem:[%s1609] ss:$4 sm:$0xff] %v1579
  %1683 = vst [vmem:[%s1611] ss:$4 sm:$0xff] %v1580
  %1684 = vst [vmem:[%s1613] ss:$4 sm:$0xff] %v1581
  %v1685 = vld.sshfl [vmem:[#allocation1] sm:$0xff pattern:$0x73625140]
  %v1686 = vld.sshfl [vmem:[#allocation1 + $0x20] sm:$0xff pattern:$0x73625140]
  %1687 = vst [vmem:[#allocation1] ss:$4 sm:$0xff] %v1509
  %1688 = vst [vmem:[%s1601] ss:$4 sm:$0xff] %v1494
  %1689 = vst [vmem:[%s1603] ss:$4 sm:$0xff] %v1582
  %1690 = vst [vmem:[%s1605] ss:$4 sm:$0xff] %v1583
  %1691 = vst [vmem:[%s1607] ss:$4 sm:$0xff] %v1584
  %1692 = vst [vmem:[%s1609] ss:$4 sm:$0xff] %v1510
  %1693 = vst [vmem:[%s1611] ss:$4 sm:$0xff] %v1495
  %1694 = vst [vmem:[%s1613] ss:$4 sm:$0xff] %v1585
  %v1695 = vld.sshfl [vmem:[#allocation1] sm:$0xff pattern:$0x73625140]
  %v1696 = vld.sshfl [vmem:[#allocation1 + $0x20] sm:$0xff pattern:$0x73625140]
  %1697 = vst [vmem:[#allocation1] ss:$4 sm:$0xff] %v1586
  %1698 = vst [vmem:[%s1601] ss:$4 sm:$0xff] %v1587
  %1699 = vst [vmem:[%s1603] ss:$4 sm:$0xff] %v1511
  %1700 = vst [vmem:[%s1605] ss:$4 sm:$0xff] %v1496
  %1701 = vst [vmem:[%s1607] ss:$4 sm:$0xff] %v1588
  %1702 = vst [vmem:[%s1609] ss:$4 sm:$0xff] %v1589
  %1703 = vst [vmem:[%s1611] ss:$4 sm:$0xff] %v1590
  %1704 = vst [vmem:[%s1613] ss:$4 sm:$0xff] %v1512
  %v1705 = vld.sshfl [vmem:[#allocation1] sm:$0xff pattern:$0x73625140]
  %v1706 = vld.sshfl [vmem:[#allocation1 + $0x20] sm:$0xff pattern:$0x73625140]
  %1707 = vst [vmem:[#allocation1] ss:$4 sm:$0xff] %v1497
  %1708 = vst [vmem:[%s1601] ss:$4 sm:$0xff] %v1591
  %1709 = vst [vmem:[%s1603] ss:$4 sm:$0xff] %v1592
  %1710 = vst [vmem:[%s1605] ss:$4 sm:$0xff] %v1593
  %1711 = vst [vmem:[%s1607] ss:$4 sm:$0xff] %v1513
  %1712 = vst [vmem:[%s1609] ss:$4 sm:$0xff] %v1498
  %1713 = vst [vmem:[%s1611] ss:$4 sm:$0xff] %v1594
  %1714 = vst [vmem:[%s1613] ss:$4 sm:$0xff] %v1595
  %v1715 = vld.sshfl [vmem:[#allocation1] sm:$0xff pattern:$0x73625140]
  %v1716 = vld.sshfl [vmem:[#allocation1 + $0x20] sm:$0xff pattern:$0x73625140]
  %1717 = vst [vmem:[#allocation1] ss:$4 sm:$0xff] %v1596
  %1718 = vst [vmem:[%s1601] ss:$4 sm:$0xff] %v1514
  %1719 = vst [vmem:[%s1603] ss:$4 sm:$0xff] %v1499
  %1720 = vst [vmem:[%s1605] ss:$4 sm:$0xff] %v1597
  %1721 = vst [vmem:[%s1607] ss:$4 sm:$0xff] %v1598
  %1722 = vst [vmem:[%s1609] ss:$4 sm:$0xff] %v1599
  %1723 = vst [vmem:[%s1611] ss:$4 sm:$0xff] %v1515
  %1724 = vst [vmem:[%s1613] ss:$4 sm:$0xff] 0.0
  %v1725 = vld.sshfl [vmem:[#allocation1] sm:$0xff pattern:$0x73625140]
  %v1726 = vld.sshfl [vmem:[#allocation1 + $0x20] sm:$0xff pattern:$0x73625140]
  %1727 = vst [vmem:[#allocation1] ss:$4 sm:$0xff] %v1549
  %1728 = vst [vmem:[%s1601] ss:$4 sm:$0xff] %v1550
  %1729 = vst [vmem:[%s1603] ss:$4 sm:$0xff] %v1551
  %1730 = vst [vmem:[%s1605] ss:$4 sm:$0xff] 0.0
  %v1731 = vld.sshfl [vmem:[#allocation1] sm:$0xff pattern:$0x73625140]
  %1757 = vst.msk [vmem:[#allocation2] sm:$0xff] %vm508, %v1615
  %1758 = vst.msk [vmem:[#allocation2 + $0x8] sm:$0xff] %vm508, %v1616
  %1759 = vst.msk [vmem:[#allocation2 + $0x10] sm:$0xff] %vm508, %v1625
  %1760 = vst.msk [vmem:[#allocation2 + $0x18] sm:$0xff] %vm508, %v1626
  %1761 = vst.msk [vmem:[#allocation2 + $0x20] sm:$0xff] %vm508, %v1635
  %1762 = vst.msk [vmem:[#allocation2 + $0x28] sm:$0xff] %vm508, %v1636
  %1763 = vst.msk [vmem:[#allocation2 + $0x30] sm:$0xff] %vm508, %v1645
  %1764 = vst.msk [vmem:[#allocation2 + $0x38] sm:$0xff] %vm508, %v1646
  %1765 = vst.msk [vmem:[#allocation2 + $0x40] sm:$0xff] %vm508, %v1655
  %1766 = vst.msk [vmem:[#allocation2 + $0x48] sm:$0xff] %vm508, %v1656
  %1767 = vst.msk [vmem:[#allocation2 + $0x50] sm:$0xff] %vm508, %v1665
  %1768 = vst.msk [vmem:[#allocation2 + $0x58] sm:$0xff] %vm508, %v1666
  %1769 = vst.msk [vmem:[#allocation2 + $0x60] sm:$0xff] %vm508, %v1675
  %1770 = vst.msk [vmem:[#allocation2 + $0x68] sm:$0xff] %vm508, %v1676
  %1771 = vst.msk [vmem:[#allocation2 + $0x70] sm:$0xff] %vm508, %v1685
  %1772 = vst.msk [vmem:[#allocation2 + $0x78] sm:$0xff] %vm508, %v1686
  %1773 = vst.msk [vmem:[#allocation2 + $0x80] sm:$0xff] %vm508, %v1695
  %1774 = vst.msk [vmem:[#allocation2 + $0x88] sm:$0xff] %vm508, %v1696
  %1775 = vst.msk [vmem:[#allocation2 + $0x90] sm:$0xff] %vm508, %v1705
  %1776 = vst.msk [vmem:[#allocation2 + $0x98] sm:$0xff] %vm508, %v1706
  %1777 = vst.msk [vmem:[#allocation2 + $0xa0] sm:$0xff] %vm508, %v1715
  %1778 = vst.msk [vmem:[#allocation2 + $0xa8] sm:$0xff] %vm508, %v1716
  %1779 = vst.msk [vmem:[#allocation2 + $0xb0] sm:$0xff] %vm508, %v1725
  %1780 = vst.msk [vmem:[#allocation2 + $0xb8] sm:$0xff] %vm508, %v1726
  %1781 = vst.msk [vmem:[#allocation2 + $0xc0] sm:$0xff] %vm508, %v1731
  %1782 = vst.msk [vmem:[#allocation2 + $0xc8] sm:$0xff] %vm508, 0.0
  %1783 = vst.msk [vmem:[#allocation2 + $0xd0] sm:$0xff] %vm508, 0.0
  %1784 = vst.msk [vmem:[#allocation2 + $0xd8] sm:$0xff] %vm508, 0.0
  %s1785 = smul.u32 9, 64
  %s1786 = smul.u32 %s1785, 1
  %s1787 = sshll.u32 %s1786, 4
  %1788 = dma.done [#allocation4], %s1787
  %v1789 = vld [vmem:[#allocation2] sm:$0xff]
  %v1790 = vld [vmem:[#allocation2 + $0x8] sm:$0xff]
  %v1791 = vld [vmem:[#allocation2 + $0x10] sm:$0xff]
  %v1792 = vld [vmem:[#allocation2 + $0x18] sm:$0xff]
  %v1793 = vld [vmem:[#allocation2 + $0x20] sm:$0xff]
  %v1794 = vld [vmem:[#allocation2 + $0x28] sm:$0xff]
  %v1795 = vld [vmem:[#allocation2 + $0x30] sm:$0xff]
  %v1796 = vld [vmem:[#allocation2 + $0x38] sm:$0xff]
  %v1797 = vld [vmem:[#allocation2 + $0x40] sm:$0xff]
  %v1798 = vld [vmem:[#allocation2 + $0x48] sm:$0xff]
  %v1799 = vld [vmem:[#allocation2 + $0x50] sm:$0xff]
  %v1800 = vld [vmem:[#allocation2 + $0x58] sm:$0xff]
  %v1801 = vld [vmem:[#allocation2 + $0x60] sm:$0xff]
  %v1802 = vld [vmem:[#allocation2 + $0x68] sm:$0xff]
  %v1803 = vld [vmem:[#allocation2 + $0x70] sm:$0xff]
  %v1804 = vld [vmem:[#allocation2 + $0x78] sm:$0xff]
  %v1805 = vld [vmem:[#allocation2 + $0x80] sm:$0xff]
  %v1806 = vld [vmem:[#allocation2 + $0x88] sm:$0xff]
  %v1807 = vld [vmem:[#allocation2 + $0x90] sm:$0xff]
  %v1808 = vld [vmem:[#allocation2 + $0x98] sm:$0xff]
  %v1809 = vld [vmem:[#allocation2 + $0xa0] sm:$0xff]
  %v1810 = vld [vmem:[#allocation2 + $0xa8] sm:$0xff]
  %v1811 = vld [vmem:[#allocation2 + $0xb0] sm:$0xff]
  %v1812 = vld [vmem:[#allocation2 + $0xb8] sm:$0xff]
  %v1813 = vld [vmem:[#allocation2 + $0xc0] sm:$0xff]
  %v1814 = vld [vmem:[#allocation3] sm:$0xff]
  %v1815 = vld [vmem:[#allocation3 + $0x8] sm:$0xff]
  %v1816 = vld [vmem:[#allocation3 + $0x10] sm:$0xff]
  %v1817 = vld [vmem:[#allocation3 + $0x18] sm:$0xff]
  %v1818 = vld [vmem:[#allocation3 + $0x20] sm:$0xff]
  %v1819 = vld [vmem:[#allocation3 + $0x28] sm:$0xff]
  %v1820 = vld [vmem:[#allocation3 + $0x30] sm:$0xff]
  %v1821 = vld [vmem:[#allocation3 + $0x38] sm:$0xff]
  %v1822 = vld [vmem:[#allocation2 + $0x1] sm:$0xff]
  %v1823 = vld [vmem:[#allocation2 + $0x9] sm:$0xff]
  %v1824 = vld [vmem:[#allocation2 + $0x11] sm:$0xff]
  %v1825 = vld [vmem:[#allocation2 + $0x19] sm:$0xff]
  %v1826 = vld [vmem:[#allocation2 + $0x21] sm:$0xff]
  %v1827 = vld [vmem:[#allocation2 + $0x29] sm:$0xff]
  %v1828 = vld [vmem:[#allocation2 + $0x31] sm:$0xff]
  %v1829 = vld [vmem:[#allocation2 + $0x39] sm:$0xff]
  %v1830 = vld [vmem:[#allocation2 + $0x41] sm:$0xff]
  %v1831 = vld [vmem:[#allocation2 + $0x49] sm:$0xff]
  %v1832 = vld [vmem:[#allocation2 + $0x51] sm:$0xff]
  %v1833 = vld [vmem:[#allocation2 + $0x59] sm:$0xff]
  %v1834 = vld [vmem:[#allocation2 + $0x61] sm:$0xff]
  %v1835 = vld [vmem:[#allocation2 + $0x69] sm:$0xff]
  %v1836 = vld [vmem:[#allocation2 + $0x71] sm:$0xff]
  %v1837 = vld [vmem:[#allocation2 + $0x79] sm:$0xff]
  %v1838 = vld [vmem:[#allocation2 + $0x81] sm:$0xff]
  %v1839 = vld [vmem:[#allocation2 + $0x89] sm:$0xff]
  %v1840 = vld [vmem:[#allocation2 + $0x91] sm:$0xff]
  %v1841 = vld [vmem:[#allocation2 + $0x99] sm:$0xff]
  %v1842 = vld [vmem:[#allocation2 + $0xa1] sm:$0xff]
  %v1843 = vld [vmem:[#allocation2 + $0xa9] sm:$0xff]
  %v1844 = vld [vmem:[#allocation2 + $0xb1] sm:$0xff]
  %v1845 = vld [vmem:[#allocation2 + $0xb9] sm:$0xff]
  %v1846 = vld [vmem:[#allocation2 + $0xc1] sm:$0xff]
  %s1847 = scalar_lea.vmem [#allocation3], 64
  %v1848 = vld [vmem:[%s1847] sm:$0xff]
  %v1849 = vld [vmem:[%s1847 + $0x8] sm:$0xff]
  %v1850 = vld [vmem:[%s1847 + $0x10] sm:$0xff]
  %v1851 = vld [vmem:[%s1847 + $0x18] sm:$0xff]
  %v1852 = vld [vmem:[%s1847 + $0x20] sm:$0xff]
  %v1853 = vld [vmem:[%s1847 + $0x28] sm:$0xff]
  %v1854 = vld [vmem:[%s1847 + $0x30] sm:$0xff]
  %v1855 = vld [vmem:[%s1847 + $0x38] sm:$0xff]
  %v1857 = vsel %vm508, %v1822, 0
  %v1860 = vsel %vm508, %v1823, 0
  %v1863 = vsel %vm508, %v1824, 0
  %v1866 = vsel %vm508, %v1825, 0
  %v1869 = vsel %vm508, %v1826, 0
  %v1872 = vsel %vm508, %v1827, 0
  %v1875 = vsel %vm508, %v1828, 0
  %v1878 = vsel %vm508, %v1829, 0
  %v1881 = vsel %vm508, %v1830, 0
  %v1884 = vsel %vm508, %v1831, 0
  %v1887 = vsel %vm508, %v1832, 0
  %v1890 = vsel %vm508, %v1833, 0
  %v1893 = vsel %vm508, %v1834, 0
  %v1896 = vsel %vm508, %v1835, 0
  %v1899 = vsel %vm508, %v1836, 0
  %v1902 = vsel %vm508, %v1837, 0
  %v1905 = vsel %vm508, %v1838, 0
  %v1908 = vsel %vm508, %v1839, 0
  %v1911 = vsel %vm508, %v1840, 0
  %v1914 = vsel %vm508, %v1841, 0
  %v1917 = vsel %vm508, %v1842, 0
  %v1920 = vsel %vm508, %v1843, 0
  %v1923 = vsel %vm508, %v1844, 0
  %v1926 = vsel %vm508, %v1845, 0
  %v1929 = vsel %vm508, %v1846, 0
  %1931 = vmatpush.msra.mxu0 0.0
  %1932 = vmatpush.msra.mxu0 0.0
  %1933 = vmatpush.msra.mxu0 0.0
  %1934 = vmatpush.msra.mxu0 0.0
  %1935 = vmatpush.msra.mxu0 0.0
  %1936 = vmatpush.msra.mxu0 0.0
  %1937 = vmatpush.msra.mxu0 0.0
  %1938 = vmatpush.msra.mxu0 0.0
  %1939 = vmatpush.msra.mxu0 %v1855
  %1940 = vmatpush.msra.mxu0 %v1854
  %1941 = vmatpush.msra.mxu0 %v1853
  %1942 = vmatpush.msra.mxu0 %v1852
  %1943 = vmatpush.msra.mxu0 %v1851
  %1944 = vmatpush.msra.mxu0 %v1850
  %1945 = vmatpush.msra.mxu0 %v1849
  %1946 = vmatpush.msra.mxu0 %v1848
  %1947 = vmatmul.f32.gmra.mxu0 %v1857
  %v1948 = vpop.f32.mrf.mxu0
  %v1949 = vadd.f32 0.0, %v1948
  %1950 = vmatmul.f32.gmra.mxu0 %v1860
  %v1951 = vpop.f32.mrf.mxu0
  %v1952 = vadd.f32 0.0, %v1951
  %1953 = vmatmul.f32.gmra.mxu0 %v1863
  %v1954 = vpop.f32.mrf.mxu0
  %v1955 = vadd.f32 0.0, %v1954
  %1956 = vmatmul.f32.gmra.mxu0 %v1866
  %v1957 = vpop.f32.mrf.mxu0
  %v1958 = vadd.f32 0.0, %v1957
  %1959 = vmatmul.f32.gmra.mxu0 %v1869
  %v1960 = vpop.f32.mrf.mxu0
  %v1961 = vadd.f32 0.0, %v1960
  %1962 = vmatmul.f32.gmra.mxu0 %v1872
  %v1963 = vpop.f32.mrf.mxu0
  %v1964 = vadd.f32 0.0, %v1963
  %1965 = vmatmul.f32.gmra.mxu0 %v1875
  %v1966 = vpop.f32.mrf.mxu0
  %v1967 = vadd.f32 0.0, %v1966
  %1968 = vmatmul.f32.gmra.mxu0 %v1878
  %v1969 = vpop.f32.mrf.mxu0
  %v1970 = vadd.f32 0.0, %v1969
  %1971 = vmatmul.f32.gmra.mxu0 %v1881
  %v1972 = vpop.f32.mrf.mxu0
  %v1973 = vadd.f32 0.0, %v1972
  %1974 = vmatmul.f32.gmra.mxu0 %v1884
  %v1975 = vpop.f32.mrf.mxu0
  %v1976 = vadd.f32 0.0, %v1975
  %1977 = vmatmul.f32.gmra.mxu0 %v1887
  %v1978 = vpop.f32.mrf.mxu0
  %1979 = vmatmul.f32.gmra.mxu0 %v1890
  %v1980 = vpop.f32.mrf.mxu0
  %1981 = vmatmul.f32.gmra.mxu0 %v1893
  %v1982 = vpop.f32.mrf.mxu0
  %v1983 = vadd.f32 0.0, %v1982
  %1984 = vmatmul.f32.gmra.mxu0 %v1896
  %v1985 = vpop.f32.mrf.mxu0
  %v1986 = vadd.f32 0.0, %v1985
  %1987 = vmatmul.f32.gmra.mxu0 %v1899
  %v1988 = vpop.f32.mrf.mxu0
  %v1989 = vadd.f32 0.0, %v1988
  %1990 = vmatmul.f32.gmra.mxu0 %v1902
  %v1991 = vpop.f32.mrf.mxu0
  %v1992 = vadd.f32 0.0, %v1991
  %1993 = vmatmul.f32.gmra.mxu0 %v1905
  %v1994 = vpop.f32.mrf.mxu0
  %v1995 = vadd.f32 0.0, %v1994
  %1996 = vmatmul.f32.gmra.mxu0 %v1908
  %v1997 = vpop.f32.mrf.mxu0
  %v1998 = vadd.f32 0.0, %v1997
  %1999 = vmatmul.f32.gmra.mxu0 %v1911
  %v2000 = vpop.f32.mrf.mxu0
  %v2001 = vadd.f32 0.0, %v2000
  %2002 = vmatmul.f32.gmra.mxu0 %v1914
  %v2003 = vpop.f32.mrf.mxu0
  %v2004 = vadd.f32 0.0, %v2003
  %2005 = vmatmul.f32.gmra.mxu0 %v1917
  %v2006 = vpop.f32.mrf.mxu0
  %v2007 = vadd.f32 0.0, %v2006
  %2008 = vmatmul.f32.gmra.mxu0 %v1920
  %v2009 = vpop.f32.mrf.mxu0
  %v2010 = vadd.f32 0.0, %v2009
  %2011 = vmatmul.f32.gmra.mxu0 %v1923
  %v2012 = vpop.f32.mrf.mxu0
  %v2013 = vadd.f32 0.0, %v2012
  %2014 = vmatmul.f32.gmra.mxu0 %v1926
  %v2015 = vpop.f32.mrf.mxu0
  %2016 = vmatmul.f32.gmra.mxu0 %v1929
  %v2017 = vpop.f32.mrf.mxu0
  %2018 = vdwg.mxu0
  %v2020 = vsel %vm508, %v1789, 0
  %v2023 = vsel %vm508, %v1790, 0
  %v2026 = vsel %vm508, %v1791, 0
  %v2029 = vsel %vm508, %v1792, 0
  %v2032 = vsel %vm508, %v1793, 0
  %v2035 = vsel %vm508, %v1794, 0
  %v2038 = vsel %vm508, %v1795, 0
  %v2041 = vsel %vm508, %v1796, 0
  %v2044 = vsel %vm508, %v1797, 0
  %v2047 = vsel %vm508, %v1798, 0
  %v2050 = vsel %vm508, %v1799, 0
  %v2053 = vsel %vm508, %v1800, 0
  %v2056 = vsel %vm508, %v1801, 0
  %v2059 = vsel %vm508, %v1802, 0
  %v2062 = vsel %vm508, %v1803, 0
  %v2065 = vsel %vm508, %v1804, 0
  %v2068 = vsel %vm508, %v1805, 0
  %v2071 = vsel %vm508, %v1806, 0
  %v2074 = vsel %vm508, %v1807, 0
  %v2077 = vsel %vm508, %v1808, 0
  %v2080 = vsel %vm508, %v1809, 0
  %v2083 = vsel %vm508, %v1810, 0
  %v2086 = vsel %vm508, %v1811, 0
  %v2089 = vsel %vm508, %v1812, 0
  %v2092 = vsel %vm508, %v1813, 0
  %2094 = vmatpush.msra.mxu0 0.0
  %2095 = vmatpush.msra.mxu0 0.0
  %2096 = vmatpush.msra.mxu0 0.0
  %2097 = vmatpush.msra.mxu0 0.0
  %2098 = vmatpush.msra.mxu0 0.0
  %2099 = vmatpush.msra.mxu0 0.0
  %2100 = vmatpush.msra.mxu0 0.0
  %2101 = vmatpush.msra.mxu0 0.0
  %2102 = vmatpush.msra.mxu0 %v1821
  %2103 = vmatpush.msra.mxu0 %v1820
  %2104 = vmatpush.msra.mxu0 %v1819
  %2105 = vmatpush.msra.mxu0 %v1818
  %2106 = vmatpush.msra.mxu0 %v1817
  %2107 = vmatpush.msra.mxu0 %v1816
  %2108 = vmatpush.msra.mxu0 %v1815
  %2109 = vmatpush.msra.mxu0 %v1814
  %2110 = vmatmul.f32.gmra.mxu0 %v2020
  %v2111 = vpop.f32.mrf.mxu0
  %v2112 = vadd.f32 %v1949, %v2111
  %2113 = vmatmul.f32.gmra.mxu0 %v2023
  %v2114 = vpop.f32.mrf.mxu0
  %v2115 = vadd.f32 %v1952, %v2114
  %2116 = vmatmul.f32.gmra.mxu0 %v2026
  %v2117 = vpop.f32.mrf.mxu0
  %v2118 = vadd.f32 %v1955, %v2117
  %2119 = vmatmul.f32.gmra.mxu0 %v2029
  %v2120 = vpop.f32.mrf.mxu0
  %v2121 = vadd.f32 %v1958, %v2120
  %2122 = vmatmul.f32.gmra.mxu0 %v2032
  %v2123 = vpop.f32.mrf.mxu0
  %v2124 = vadd.f32 %v1961, %v2123
  %2125 = vmatmul.f32.gmra.mxu0 %v2035
  %v2126 = vpop.f32.mrf.mxu0
  %v2127 = vadd.f32 %v1964, %v2126
  %2128 = vmatmul.f32.gmra.mxu0 %v2038
  %v2129 = vpop.f32.mrf.mxu0
  %v2130 = vadd.f32 %v1967, %v2129
  %2131 = vmatmul.f32.gmra.mxu0 %v2041
  %v2132 = vpop.f32.mrf.mxu0
  %v2133 = vadd.f32 %v1970, %v2132
  %2134 = vmatmul.f32.gmra.mxu0 %v2044
  %v2135 = vpop.f32.mrf.mxu0
  %v2136 = vadd.f32 %v1973, %v2135
  %2137 = vmatmul.f32.gmra.mxu0 %v2047
  %v2138 = vpop.f32.mrf.mxu0
  %v2139 = vadd.f32 %v1976, %v2138
  %2140 = vmatmul.f32.gmra.mxu0 %v2050
  %v2141 = vpop.f32.mrf.mxu0
  %2142 = vmatmul.f32.gmra.mxu0 %v2053
  %v2143 = vpop.f32.mrf.mxu0
  %2144 = vmatmul.f32.gmra.mxu0 %v2056
  %v2145 = vpop.f32.mrf.mxu0
  %v2146 = vadd.f32 %v1983, %v2145
  %2147 = vmatmul.f32.gmra.mxu0 %v2059
  %v2148 = vpop.f32.mrf.mxu0
  %v2149 = vadd.f32 %v1986, %v2148
  %2150 = vmatmul.f32.gmra.mxu0 %v2062
  %v2151 = vpop.f32.mrf.mxu0
  %v2152 = vadd.f32 %v1989, %v2151
  %2153 = vmatmul.f32.gmra.mxu0 %v2065
  %v2154 = vpop.f32.mrf.mxu0
  %v2155 = vadd.f32 %v1992, %v2154
  %2156 = vmatmul.f32.gmra.mxu0 %v2068
  %v2157 = vpop.f32.mrf.mxu0
  %v2158 = vadd.f32 %v1995, %v2157
  %2159 = vmatmul.f32.gmra.mxu0 %v2071
  %v2160 = vpop.f32.mrf.mxu0
  %v2161 = vadd.f32 %v1998, %v2160
  %2162 = vmatmul.f32.gmra.mxu0 %v2074
  %v2163 = vpop.f32.mrf.mxu0
  %v2164 = vadd.f32 %v2001, %v2163
  %2165 = vmatmul.f32.gmra.mxu0 %v2077
  %v2166 = vpop.f32.mrf.mxu0
  %v2167 = vadd.f32 %v2004, %v2166
  %2168 = vmatmul.f32.gmra.mxu0 %v2080
  %v2169 = vpop.f32.mrf.mxu0
  %v2170 = vadd.f32 %v2007, %v2169
  %2171 = vmatmul.f32.gmra.mxu0 %v2083
  %v2172 = vpop.f32.mrf.mxu0
  %v2173 = vadd.f32 %v2010, %v2172
  %2174 = vmatmul.f32.gmra.mxu0 %v2086
  %v2175 = vpop.f32.mrf.mxu0
  %v2176 = vadd.f32 %v2013, %v2175
  %2177 = vmatmul.f32.gmra.mxu0 %v2089
  %v2178 = vpop.f32.mrf.mxu0
  %2179 = vmatmul.f32.gmra.mxu0 %v2092
  %v2180 = vpop.f32.mrf.mxu0
  %2181 = vdwg.mxu0
  %v2182 = vld [vmem:[#allocation2 + $0x2] sm:$0xff]
  %v2183 = vld [vmem:[#allocation2 + $0xa] sm:$0xff]
  %v2184 = vld [vmem:[#allocation2 + $0x12] sm:$0xff]
  %v2185 = vld [vmem:[#allocation2 + $0x1a] sm:$0xff]
  %v2186 = vld [vmem:[#allocation2 + $0x22] sm:$0xff]
  %v2187 = vld [vmem:[#allocation2 + $0x2a] sm:$0xff]
  %v2188 = vld [vmem:[#allocation2 + $0x32] sm:$0xff]
  %v2189 = vld [vmem:[#allocation2 + $0x3a] sm:$0xff]
  %v2190 = vld [vmem:[#allocation2 + $0x42] sm:$0xff]
  %v2191 = vld [vmem:[#allocation2 + $0x4a] sm:$0xff]
  %v2192 = vld [vmem:[#allocation2 + $0x52] sm:$0xff]
  %v2193 = vld [vmem:[#allocation2 + $0x5a] sm:$0xff]
  %v2194 = vld [vmem:[#allocation2 + $0x62] sm:$0xff]
  %v2195 = vld [vmem:[#allocation2 + $0x6a] sm:$0xff]
  %v2196 = vld [vmem:[#allocation2 + $0x72] sm:$0xff]
  %v2197 = vld [vmem:[#allocation2 + $0x7a] sm:$0xff]
  %v2198 = vld [vmem:[#allocation2 + $0x82] sm:$0xff]
  %v2199 = vld [vmem:[#allocation2 + $0x8a] sm:$0xff]
  %v2200 = vld [vmem:[#allocation2 + $0x92] sm:$0xff]
  %v2201 = vld [vmem:[#allocation2 + $0x9a] sm:$0xff]
  %v2202 = vld [vmem:[#allocation2 + $0xa2] sm:$0xff]
  %v2203 = vld [vmem:[#allocation2 + $0xaa] sm:$0xff]
  %v2204 = vld [vmem:[#allocation2 + $0xb2] sm:$0xff]
  %v2205 = vld [vmem:[#allocation2 + $0xba] sm:$0xff]
  %v2206 = vld [vmem:[#allocation2 + $0xc2] sm:$0xff]
  %s2207 = scalar_lea.vmem [#allocation3], 128
  %v2208 = vld [vmem:[%s2207] sm:$0xff]
  %v2209 = vld [vmem:[%s2207 + $0x8] sm:$0xff]
  %v2210 = vld [vmem:[%s2207 + $0x10] sm:$0xff]
  %v2211 = vld [vmem:[%s2207 + $0x18] sm:$0xff]
  %v2212 = vld [vmem:[%s2207 + $0x20] sm:$0xff]
  %v2213 = vld [vmem:[%s2207 + $0x28] sm:$0xff]
  %v2214 = vld [vmem:[%s2207 + $0x30] sm:$0xff]
  %v2215 = vld [vmem:[%s2207 + $0x38] sm:$0xff]
  %v2217 = vsel %vm508, %v2182, 0
  %v2220 = vsel %vm508, %v2183, 0
  %v2223 = vsel %vm508, %v2184, 0
  %v2226 = vsel %vm508, %v2185, 0
  %v2229 = vsel %vm508, %v2186, 0
  %v2232 = vsel %vm508, %v2187, 0
  %v2235 = vsel %vm508, %v2188, 0
  %v2238 = vsel %vm508, %v2189, 0
  %v2241 = vsel %vm508, %v2190, 0
  %v2244 = vsel %vm508, %v2191, 0
  %v2247 = vsel %vm508, %v2192, 0
  %v2250 = vsel %vm508, %v2193, 0
  %v2253 = vsel %vm508, %v2194, 0
  %v2256 = vsel %vm508, %v2195, 0
  %v2259 = vsel %vm508, %v2196, 0
  %v2262 = vsel %vm508, %v2197, 0
  %v2265 = vsel %vm508, %v2198, 0
  %v2268 = vsel %vm508, %v2199, 0
  %v2271 = vsel %vm508, %v2200, 0
  %v2274 = vsel %vm508, %v2201, 0
  %v2277 = vsel %vm508, %v2202, 0
  %v2280 = vsel %vm508, %v2203, 0
  %v2283 = vsel %vm508, %v2204, 0
  %v2286 = vsel %vm508, %v2205, 0
  %v2289 = vsel %vm508, %v2206, 0
  %2291 = vmatpush.msra.mxu0 0.0
  %2292 = vmatpush.msra.mxu0 0.0
  %2293 = vmatpush.msra.mxu0 0.0
  %2294 = vmatpush.msra.mxu0 0.0
  %2295 = vmatpush.msra.mxu0 0.0
  %2296 = vmatpush.msra.mxu0 0.0
  %2297 = vmatpush.msra.mxu0 0.0
  %2298 = vmatpush.msra.mxu0 0.0
  %2299 = vmatpush.msra.mxu0 %v2215
  %2300 = vmatpush.msra.mxu0 %v2214
  %2301 = vmatpush.msra.mxu0 %v2213
  %2302 = vmatpush.msra.mxu0 %v2212
  %2303 = vmatpush.msra.mxu0 %v2211
  %2304 = vmatpush.msra.mxu0 %v2210
  %2305 = vmatpush.msra.mxu0 %v2209
  %2306 = vmatpush.msra.mxu0 %v2208
  %2307 = vmatmul.f32.gmra.mxu0 %v2217
  %v2308 = vpop.f32.mrf.mxu0
  %v2309 = vadd.f32 0.0, %v2308
  %2310 = vmatmul.f32.gmra.mxu0 %v2220
  %v2311 = vpop.f32.mrf.mxu0
  %v2312 = vadd.f32 0.0, %v2311
  %2313 = vmatmul.f32.gmra.mxu0 %v2223
  %v2314 = vpop.f32.mrf.mxu0
  %v2315 = vadd.f32 0.0, %v2314
  %2316 = vmatmul.f32.gmra.mxu0 %v2226
  %v2317 = vpop.f32.mrf.mxu0
  %v2318 = vadd.f32 0.0, %v2317
  %2319 = vmatmul.f32.gmra.mxu0 %v2229
  %v2320 = vpop.f32.mrf.mxu0
  %v2321 = vadd.f32 0.0, %v2320
  %2322 = vmatmul.f32.gmra.mxu0 %v2232
  %v2323 = vpop.f32.mrf.mxu0
  %v2324 = vadd.f32 0.0, %v2323
  %2325 = vmatmul.f32.gmra.mxu0 %v2235
  %v2326 = vpop.f32.mrf.mxu0
  %v2327 = vadd.f32 0.0, %v2326
  %2328 = vmatmul.f32.gmra.mxu0 %v2238
  %v2329 = vpop.f32.mrf.mxu0
  %v2330 = vadd.f32 0.0, %v2329
  %2331 = vmatmul.f32.gmra.mxu0 %v2241
  %v2332 = vpop.f32.mrf.mxu0
  %v2333 = vadd.f32 0.0, %v2332
  %2334 = vmatmul.f32.gmra.mxu0 %v2244
  %v2335 = vpop.f32.mrf.mxu0
  %v2336 = vadd.f32 0.0, %v2335
  %2337 = vmatmul.f32.gmra.mxu0 %v2247
  %v2338 = vpop.f32.mrf.mxu0
  %2339 = vmatmul.f32.gmra.mxu0 %v2250
  %v2340 = vpop.f32.mrf.mxu0
  %2341 = vmatmul.f32.gmra.mxu0 %v2253
  %v2342 = vpop.f32.mrf.mxu0
  %v2343 = vadd.f32 0.0, %v2342
  %2344 = vmatmul.f32.gmra.mxu0 %v2256
  %v2345 = vpop.f32.mrf.mxu0
  %v2346 = vadd.f32 0.0, %v2345
  %2347 = vmatmul.f32.gmra.mxu0 %v2259
  %v2348 = vpop.f32.mrf.mxu0
  %v2349 = vadd.f32 0.0, %v2348
  %2350 = vmatmul.f32.gmra.mxu0 %v2262
  %v2351 = vpop.f32.mrf.mxu0
  %v2352 = vadd.f32 0.0, %v2351
  %2353 = vmatmul.f32.gmra.mxu0 %v2265
  %v2354 = vpop.f32.mrf.mxu0
  %v2355 = vadd.f32 0.0, %v2354
  %2356 = vmatmul.f32.gmra.mxu0 %v2268
  %v2357 = vpop.f32.mrf.mxu0
  %v2358 = vadd.f32 0.0, %v2357
  %2359 = vmatmul.f32.gmra.mxu0 %v2271
  %v2360 = vpop.f32.mrf.mxu0
  %v2361 = vadd.f32 0.0, %v2360
  %2362 = vmatmul.f32.gmra.mxu0 %v2274
  %v2363 = vpop.f32.mrf.mxu0
  %v2364 = vadd.f32 0.0, %v2363
  %2365 = vmatmul.f32.gmra.mxu0 %v2277
  %v2366 = vpop.f32.mrf.mxu0
  %v2367 = vadd.f32 0.0, %v2366
  %2368 = vmatmul.f32.gmra.mxu0 %v2280
  %v2369 = vpop.f32.mrf.mxu0
  %v2370 = vadd.f32 0.0, %v2369
  %2371 = vmatmul.f32.gmra.mxu0 %v2283
  %v2372 = vpop.f32.mrf.mxu0
  %v2373 = vadd.f32 0.0, %v2372
  %2374 = vmatmul.f32.gmra.mxu0 %v2286
  %v2375 = vpop.f32.mrf.mxu0
  %2376 = vmatmul.f32.gmra.mxu0 %v2289
  %v2377 = vpop.f32.mrf.mxu0
  %2378 = vdwg.mxu0
  %v2379 = vadd.f32 %v2112, %v2309
  %v2380 = vadd.f32 %v2115, %v2312
  %v2381 = vadd.f32 %v2118, %v2315
  %v2382 = vadd.f32 %v2121, %v2318
  %v2383 = vadd.f32 %v2124, %v2321
  %v2384 = vadd.f32 %v2127, %v2324
  %v2385 = vadd.f32 %v2130, %v2327
  %v2386 = vadd.f32 %v2133, %v2330
  %v2387 = vadd.f32 %v2136, %v2333
  %v2388 = vadd.f32 %v2139, %v2336
  %v2389 = vadd.f32 %v2146, %v2343
  %v2390 = vadd.f32 %v2149, %v2346
  %v2391 = vadd.f32 %v2152, %v2349
  %v2392 = vadd.f32 %v2155, %v2352
  %v2393 = vadd.f32 %v2158, %v2355
  %v2394 = vadd.f32 %v2161, %v2358
  %v2395 = vadd.f32 %v2164, %v2361
  %v2396 = vadd.f32 %v2167, %v2364
  %v2397 = vadd.f32 %v2170, %v2367
  %v2398 = vadd.f32 %v2173, %v2370
  %v2399 = vadd.f32 %v2176, %v2373
  %v2400 = vld [vmem:[#allocation2 + $0xa] sm:$0xff]
  %v2401 = vld [vmem:[#allocation2 + $0x12] sm:$0xff]
  %v2402 = vld [vmem:[#allocation2 + $0x1a] sm:$0xff]
  %v2403 = vld [vmem:[#allocation2 + $0x22] sm:$0xff]
  %v2404 = vld [vmem:[#allocation2 + $0x2a] sm:$0xff]
  %v2405 = vld [vmem:[#allocation2 + $0x32] sm:$0xff]
  %v2406 = vld [vmem:[#allocation2 + $0x3a] sm:$0xff]
  %v2407 = vld [vmem:[#allocation2 + $0x42] sm:$0xff]
  %v2408 = vld [vmem:[#allocation2 + $0x4a] sm:$0xff]
  %v2409 = vld [vmem:[#allocation2 + $0x52] sm:$0xff]
  %v2410 = vld [vmem:[#allocation2 + $0x5a] sm:$0xff]
  %v2411 = vld [vmem:[#allocation2 + $0x62] sm:$0xff]
  %v2412 = vld [vmem:[#allocation2 + $0x6a] sm:$0xff]
  %v2413 = vld [vmem:[#allocation2 + $0x72] sm:$0xff]
  %v2414 = vld [vmem:[#allocation2 + $0x7a] sm:$0xff]
  %v2415 = vld [vmem:[#allocation2 + $0x82] sm:$0xff]
  %v2416 = vld [vmem:[#allocation2 + $0x8a] sm:$0xff]
  %v2417 = vld [vmem:[#allocation2 + $0x92] sm:$0xff]
  %v2418 = vld [vmem:[#allocation2 + $0x9a] sm:$0xff]
  %v2419 = vld [vmem:[#allocation2 + $0xa2] sm:$0xff]
  %v2420 = vld [vmem:[#allocation2 + $0xaa] sm:$0xff]
  %v2421 = vld [vmem:[#allocation2 + $0xb2] sm:$0xff]
  %v2422 = vld [vmem:[#allocation2 + $0xba] sm:$0xff]
  %v2423 = vld [vmem:[#allocation2 + $0xc2] sm:$0xff]
  %v2424 = vld [vmem:[#allocation2 + $0xca] sm:$0xff]
  %s2425 = scalar_lea.vmem [#allocation3], 192
  %v2426 = vld [vmem:[%s2425] sm:$0xff]
  %v2427 = vld [vmem:[%s2425 + $0x8] sm:$0xff]
  %v2428 = vld [vmem:[%s2425 + $0x10] sm:$0xff]
  %v2429 = vld [vmem:[%s2425 + $0x18] sm:$0xff]
  %v2430 = vld [vmem:[%s2425 + $0x20] sm:$0xff]
  %v2431 = vld [vmem:[%s2425 + $0x28] sm:$0xff]
  %v2432 = vld [vmem:[%s2425 + $0x30] sm:$0xff]
  %v2433 = vld [vmem:[%s2425 + $0x38] sm:$0xff]
  %v2435 = vsel %vm508, %v2400, 0
  %v2438 = vsel %vm508, %v2401, 0
  %v2441 = vsel %vm508, %v2402, 0
  %v2444 = vsel %vm508, %v2403, 0
  %v2447 = vsel %vm508, %v2404, 0
  %v2450 = vsel %vm508, %v2405, 0
  %v2453 = vsel %vm508, %v2406, 0
  %v2456 = vsel %vm508, %v2407, 0
  %v2459 = vsel %vm508, %v2408, 0
  %v2462 = vsel %vm508, %v2409, 0
  %v2465 = vsel %vm508, %v2410, 0
  %v2468 = vsel %vm508, %v2411, 0
  %v2471 = vsel %vm508, %v2412, 0
  %v2474 = vsel %vm508, %v2413, 0
  %v2477 = vsel %vm508, %v2414, 0
  %v2480 = vsel %vm508, %v2415, 0
  %v2483 = vsel %vm508, %v2416, 0
  %v2486 = vsel %vm508, %v2417, 0
  %v2489 = vsel %vm508, %v2418, 0
  %v2492 = vsel %vm508, %v2419, 0
  %v2495 = vsel %vm508, %v2420, 0
  %v2498 = vsel %vm508, %v2421, 0
  %v2501 = vsel %vm508, %v2422, 0
  %v2504 = vsel %vm508, %v2423, 0
  %v2507 = vsel %vm508, %v2424, 0
  %2509 = vmatpush.msra.mxu0 0.0
  %2510 = vmatpush.msra.mxu0 0.0
  %2511 = vmatpush.msra.mxu0 0.0
  %2512 = vmatpush.msra.mxu0 0.0
  %2513 = vmatpush.msra.mxu0 0.0
  %2514 = vmatpush.msra.mxu0 0.0
  %2515 = vmatpush.msra.mxu0 0.0
  %2516 = vmatpush.msra.mxu0 0.0
  %2517 = vmatpush.msra.mxu0 %v2433
  %2518 = vmatpush.msra.mxu0 %v2432
  %2519 = vmatpush.msra.mxu0 %v2431
  %2520 = vmatpush.msra.mxu0 %v2430
  %2521 = vmatpush.msra.mxu0 %v2429
  %2522 = vmatpush.msra.mxu0 %v2428
  %2523 = vmatpush.msra.mxu0 %v2427
  %2524 = vmatpush.msra.mxu0 %v2426
  %2525 = vmatmul.f32.gmra.mxu0 %v2435
  %v2526 = vpop.f32.mrf.mxu0
  %v2527 = vadd.f32 0.0, %v2526
  %2528 = vmatmul.f32.gmra.mxu0 %v2438
  %v2529 = vpop.f32.mrf.mxu0
  %v2530 = vadd.f32 0.0, %v2529
  %2531 = vmatmul.f32.gmra.mxu0 %v2441
  %v2532 = vpop.f32.mrf.mxu0
  %v2533 = vadd.f32 0.0, %v2532
  %2534 = vmatmul.f32.gmra.mxu0 %v2444
  %v2535 = vpop.f32.mrf.mxu0
  %v2536 = vadd.f32 0.0, %v2535
  %2537 = vmatmul.f32.gmra.mxu0 %v2447
  %v2538 = vpop.f32.mrf.mxu0
  %v2539 = vadd.f32 0.0, %v2538
  %2540 = vmatmul.f32.gmra.mxu0 %v2450
  %v2541 = vpop.f32.mrf.mxu0
  %v2542 = vadd.f32 0.0, %v2541
  %2543 = vmatmul.f32.gmra.mxu0 %v2453
  %v2544 = vpop.f32.mrf.mxu0
  %v2545 = vadd.f32 0.0, %v2544
  %2546 = vmatmul.f32.gmra.mxu0 %v2456
  %v2547 = vpop.f32.mrf.mxu0
  %v2548 = vadd.f32 0.0, %v2547
  %2549 = vmatmul.f32.gmra.mxu0 %v2459
  %v2550 = vpop.f32.mrf.mxu0
  %v2551 = vadd.f32 0.0, %v2550
  %2552 = vmatmul.f32.gmra.mxu0 %v2462
  %v2553 = vpop.f32.mrf.mxu0
  %v2554 = vadd.f32 0.0, %v2553
  %2555 = vmatmul.f32.gmra.mxu0 %v2465
  %v2556 = vpop.f32.mrf.mxu0
  %2557 = vmatmul.f32.gmra.mxu0 %v2468
  %v2558 = vpop.f32.mrf.mxu0
  %2559 = vmatmul.f32.gmra.mxu0 %v2471
  %v2560 = vpop.f32.mrf.mxu0
  %v2561 = vadd.f32 0.0, %v2560
  %2562 = vmatmul.f32.gmra.mxu0 %v2474
  %v2563 = vpop.f32.mrf.mxu0
  %v2564 = vadd.f32 0.0, %v2563
  %2565 = vmatmul.f32.gmra.mxu0 %v2477
  %v2566 = vpop.f32.mrf.mxu0
  %v2567 = vadd.f32 0.0, %v2566
  %2568 = vmatmul.f32.gmra.mxu0 %v2480
  %v2569 = vpop.f32.mrf.mxu0
  %v2570 = vadd.f32 0.0, %v2569
  %2571 = vmatmul.f32.gmra.mxu0 %v2483
  %v2572 = vpop.f32.mrf.mxu0
  %v2573 = vadd.f32 0.0, %v2572
  %2574 = vmatmul.f32.gmra.mxu0 %v2486
  %v2575 = vpop.f32.mrf.mxu0
  %v2576 = vadd.f32 0.0, %v2575
  %2577 = vmatmul.f32.gmra.mxu0 %v2489
  %v2578 = vpop.f32.mrf.mxu0
  %v2579 = vadd.f32 0.0, %v2578
  %2580 = vmatmul.f32.gmra.mxu0 %v2492
  %v2581 = vpop.f32.mrf.mxu0
  %v2582 = vadd.f32 0.0, %v2581
  %2583 = vmatmul.f32.gmra.mxu0 %v2495
  %v2584 = vpop.f32.mrf.mxu0
  %v2585 = vadd.f32 0.0, %v2584
  %2586 = vmatmul.f32.gmra.mxu0 %v2498
  %v2587 = vpop.f32.mrf.mxu0
  %v2588 = vadd.f32 0.0, %v2587
  %2589 = vmatmul.f32.gmra.mxu0 %v2501
  %v2590 = vpop.f32.mrf.mxu0
  %v2591 = vadd.f32 0.0, %v2590
  %2592 = vmatmul.f32.gmra.mxu0 %v2504
  %v2593 = vpop.f32.mrf.mxu0
  %2594 = vmatmul.f32.gmra.mxu0 %v2507
  %v2595 = vpop.f32.mrf.mxu0
  %2596 = vdwg.mxu0
  %v2597 = vadd.f32 %v2379, %v2527
  %v2598 = vadd.f32 %v2380, %v2530
  %v2599 = vadd.f32 %v2381, %v2533
  %v2600 = vadd.f32 %v2382, %v2536
  %v2601 = vadd.f32 %v2383, %v2539
  %v2602 = vadd.f32 %v2384, %v2542
  %v2603 = vadd.f32 %v2385, %v2545
  %v2604 = vadd.f32 %v2386, %v2548
  %v2605 = vadd.f32 %v2387, %v2551
  %v2606 = vadd.f32 %v2388, %v2554
  %v2607 = vadd.f32 %v2389, %v2561
  %v2608 = vadd.f32 %v2390, %v2564
  %v2609 = vadd.f32 %v2391, %v2567
  %v2610 = vadd.f32 %v2392, %v2570
  %v2611 = vadd.f32 %v2393, %v2573
  %v2612 = vadd.f32 %v2394, %v2576
  %v2613 = vadd.f32 %v2395, %v2579
  %v2614 = vadd.f32 %v2396, %v2582
  %v2615 = vadd.f32 %v2397, %v2585
  %v2616 = vadd.f32 %v2398, %v2588
  %v2617 = vadd.f32 %v2399, %v2591
  %v2618 = vld [vmem:[#allocation2 + $0xb] sm:$0xff]
  %v2619 = vld [vmem:[#allocation2 + $0x13] sm:$0xff]
  %v2620 = vld [vmem:[#allocation2 + $0x1b] sm:$0xff]
  %v2621 = vld [vmem:[#allocation2 + $0x23] sm:$0xff]
  %v2622 = vld [vmem:[#allocation2 + $0x2b] sm:$0xff]
  %v2623 = vld [vmem:[#allocation2 + $0x33] sm:$0xff]
  %v2624 = vld [vmem:[#allocation2 + $0x3b] sm:$0xff]
  %v2625 = vld [vmem:[#allocation2 + $0x43] sm:$0xff]
  %v2626 = vld [vmem:[#allocation2 + $0x4b] sm:$0xff]
  %v2627 = vld [vmem:[#allocation2 + $0x53] sm:$0xff]
  %v2628 = vld [vmem:[#allocation2 + $0x5b] sm:$0xff]
  %v2629 = vld [vmem:[#allocation2 + $0x63] sm:$0xff]
  %v2630 = vld [vmem:[#allocation2 + $0x6b] sm:$0xff]
  %v2631 = vld [vmem:[#allocation2 + $0x73] sm:$0xff]
  %v2632 = vld [vmem:[#allocation2 + $0x7b] sm:$0xff]
  %v2633 = vld [vmem:[#allocation2 + $0x83] sm:$0xff]
  %v2634 = vld [vmem:[#allocation2 + $0x8b] sm:$0xff]
  %v2635 = vld [vmem:[#allocation2 + $0x93] sm:$0xff]
  %v2636 = vld [vmem:[#allocation2 + $0x9b] sm:$0xff]
  %v2637 = vld [vmem:[#allocation2 + $0xa3] sm:$0xff]
  %v2638 = vld [vmem:[#allocation2 + $0xab] sm:$0xff]
  %v2639 = vld [vmem:[#allocation2 + $0xb3] sm:$0xff]
  %v2640 = vld [vmem:[#allocation2 + $0xbb] sm:$0xff]
  %v2641 = vld [vmem:[#allocation2 + $0xc3] sm:$0xff]
  %v2642 = vld [vmem:[#allocation2 + $0xcb] sm:$0xff]
  %s2643 = scalar_lea.vmem [#allocation3], 256
  %v2644 = vld [vmem:[%s2643] sm:$0xff]
  %v2645 = vld [vmem:[%s2643 + $0x8] sm:$0xff]
  %v2646 = vld [vmem:[%s2643 + $0x10] sm:$0xff]
  %v2647 = vld [vmem:[%s2643 + $0x18] sm:$0xff]
  %v2648 = vld [vmem:[%s2643 + $0x20] sm:$0xff]
  %v2649 = vld [vmem:[%s2643 + $0x28] sm:$0xff]
  %v2650 = vld [vmem:[%s2643 + $0x30] sm:$0xff]
  %v2651 = vld [vmem:[%s2643 + $0x38] sm:$0xff]
  %v2653 = vsel %vm508, %v2618, 0
  %v2656 = vsel %vm508, %v2619, 0
  %v2659 = vsel %vm508, %v2620, 0
  %v2662 = vsel %vm508, %v2621, 0
  %v2665 = vsel %vm508, %v2622, 0
  %v2668 = vsel %vm508, %v2623, 0
  %v2671 = vsel %vm508, %v2624, 0
  %v2674 = vsel %vm508, %v2625, 0
  %v2677 = vsel %vm508, %v2626, 0
  %v2680 = vsel %vm508, %v2627, 0
  %v2683 = vsel %vm508, %v2628, 0
  %v2686 = vsel %vm508, %v2629, 0
  %v2689 = vsel %vm508, %v2630, 0
  %v2692 = vsel %vm508, %v2631, 0
  %v2695 = vsel %vm508, %v2632, 0
  %v2698 = vsel %vm508, %v2633, 0
  %v2701 = vsel %vm508, %v2634, 0
  %v2704 = vsel %vm508, %v2635, 0
  %v2707 = vsel %vm508, %v2636, 0
  %v2710 = vsel %vm508, %v2637, 0
  %v2713 = vsel %vm508, %v2638, 0
  %v2716 = vsel %vm508, %v2639, 0
  %v2719 = vsel %vm508, %v2640, 0
  %v2722 = vsel %vm508, %v2641, 0
  %v2725 = vsel %vm508, %v2642, 0
  %2727 = vmatpush.msra.mxu0 0.0
  %2728 = vmatpush.msra.mxu0 0.0
  %2729 = vmatpush.msra.mxu0 0.0
  %2730 = vmatpush.msra.mxu0 0.0
  %2731 = vmatpush.msra.mxu0 0.0
  %2732 = vmatpush.msra.mxu0 0.0
  %2733 = vmatpush.msra.mxu0 0.0
  %2734 = vmatpush.msra.mxu0 0.0
  %2735 = vmatpush.msra.mxu0 %v2651
  %2736 = vmatpush.msra.mxu0 %v2650
  %2737 = vmatpush.msra.mxu0 %v2649
  %2738 = vmatpush.msra.mxu0 %v2648
  %2739 = vmatpush.msra.mxu0 %v2647
  %2740 = vmatpush.msra.mxu0 %v2646
  %2741 = vmatpush.msra.mxu0 %v2645
  %2742 = vmatpush.msra.mxu0 %v2644
  %2743 = vmatmul.f32.gmra.mxu0 %v2653
  %v2744 = vpop.f32.mrf.mxu0
  %v2745 = vadd.f32 0.0, %v2744
  %2746 = vmatmul.f32.gmra.mxu0 %v2656
  %v2747 = vpop.f32.mrf.mxu0
  %v2748 = vadd.f32 0.0, %v2747
  %2749 = vmatmul.f32.gmra.mxu0 %v2659
  %v2750 = vpop.f32.mrf.mxu0
  %v2751 = vadd.f32 0.0, %v2750
  %2752 = vmatmul.f32.gmra.mxu0 %v2662
  %v2753 = vpop.f32.mrf.mxu0
  %v2754 = vadd.f32 0.0, %v2753
  %2755 = vmatmul.f32.gmra.mxu0 %v2665
  %v2756 = vpop.f32.mrf.mxu0
  %v2757 = vadd.f32 0.0, %v2756
  %2758 = vmatmul.f32.gmra.mxu0 %v2668
  %v2759 = vpop.f32.mrf.mxu0
  %v2760 = vadd.f32 0.0, %v2759
  %2761 = vmatmul.f32.gmra.mxu0 %v2671
  %v2762 = vpop.f32.mrf.mxu0
  %v2763 = vadd.f32 0.0, %v2762
  %2764 = vmatmul.f32.gmra.mxu0 %v2674
  %v2765 = vpop.f32.mrf.mxu0
  %v2766 = vadd.f32 0.0, %v2765
  %2767 = vmatmul.f32.gmra.mxu0 %v2677
  %v2768 = vpop.f32.mrf.mxu0
  %v2769 = vadd.f32 0.0, %v2768
  %2770 = vmatmul.f32.gmra.mxu0 %v2680
  %v2771 = vpop.f32.mrf.mxu0
  %v2772 = vadd.f32 0.0, %v2771
  %2773 = vmatmul.f32.gmra.mxu0 %v2683
  %v2774 = vpop.f32.mrf.mxu0
  %2775 = vmatmul.f32.gmra.mxu0 %v2686
  %v2776 = vpop.f32.mrf.mxu0
  %2777 = vmatmul.f32.gmra.mxu0 %v2689
  %v2778 = vpop.f32.mrf.mxu0
  %v2779 = vadd.f32 0.0, %v2778
  %2780 = vmatmul.f32.gmra.mxu0 %v2692
  %v2781 = vpop.f32.mrf.mxu0
  %v2782 = vadd.f32 0.0, %v2781
  %2783 = vmatmul.f32.gmra.mxu0 %v2695
  %v2784 = vpop.f32.mrf.mxu0
  %v2785 = vadd.f32 0.0, %v2784
  %2786 = vmatmul.f32.gmra.mxu0 %v2698
  %v2787 = vpop.f32.mrf.mxu0
  %v2788 = vadd.f32 0.0, %v2787
  %2789 = vmatmul.f32.gmra.mxu0 %v2701
  %v2790 = vpop.f32.mrf.mxu0
  %v2791 = vadd.f32 0.0, %v2790
  %2792 = vmatmul.f32.gmra.mxu0 %v2704
  %v2793 = vpop.f32.mrf.mxu0
  %v2794 = vadd.f32 0.0, %v2793
  %2795 = vmatmul.f32.gmra.mxu0 %v2707
  %v2796 = vpop.f32.mrf.mxu0
  %v2797 = vadd.f32 0.0, %v2796
  %2798 = vmatmul.f32.gmra.mxu0 %v2710
  %v2799 = vpop.f32.mrf.mxu0
  %v2800 = vadd.f32 0.0, %v2799
  %2801 = vmatmul.f32.gmra.mxu0 %v2713
  %v2802 = vpop.f32.mrf.mxu0
  %v2803 = vadd.f32 0.0, %v2802
  %2804 = vmatmul.f32.gmra.mxu0 %v2716
  %v2805 = vpop.f32.mrf.mxu0
  %v2806 = vadd.f32 0.0, %v2805
  %2807 = vmatmul.f32.gmra.mxu0 %v2719
  %v2808 = vpop.f32.mrf.mxu0
  %v2809 = vadd.f32 0.0, %v2808
  %2810 = vmatmul.f32.gmra.mxu0 %v2722
  %v2811 = vpop.f32.mrf.mxu0
  %2812 = vmatmul.f32.gmra.mxu0 %v2725
  %v2813 = vpop.f32.mrf.mxu0
  %2814 = vdwg.mxu0
  %v2815 = vadd.f32 %v2597, %v2745
  %v2816 = vadd.f32 %v2598, %v2748
  %v2817 = vadd.f32 %v2599, %v2751
  %v2818 = vadd.f32 %v2600, %v2754
  %v2819 = vadd.f32 %v2601, %v2757
  %v2820 = vadd.f32 %v2602, %v2760
  %v2821 = vadd.f32 %v2603, %v2763
  %v2822 = vadd.f32 %v2604, %v2766
  %v2823 = vadd.f32 %v2605, %v2769
  %v2824 = vadd.f32 %v2606, %v2772
  %v2825 = vadd.f32 %v2607, %v2779
  %v2826 = vadd.f32 %v2608, %v2782
  %v2827 = vadd.f32 %v2609, %v2785
  %v2828 = vadd.f32 %v2610, %v2788
  %v2829 = vadd.f32 %v2611, %v2791
  %v2830 = vadd.f32 %v2612, %v2794
  %v2831 = vadd.f32 %v2613, %v2797
  %v2832 = vadd.f32 %v2614, %v2800
  %v2833 = vadd.f32 %v2615, %v2803
  %v2834 = vadd.f32 %v2616, %v2806
  %v2835 = vadd.f32 %v2617, %v2809
  %v2836 = vld [vmem:[#allocation2 + $0xc] sm:$0xff]
  %v2837 = vld [vmem:[#allocation2 + $0x14] sm:$0xff]
  %v2838 = vld [vmem:[#allocation2 + $0x1c] sm:$0xff]
  %v2839 = vld [vmem:[#allocation2 + $0x24] sm:$0xff]
  %v2840 = vld [vmem:[#allocation2 + $0x2c] sm:$0xff]
  %v2841 = vld [vmem:[#allocation2 + $0x34] sm:$0xff]
  %v2842 = vld [vmem:[#allocation2 + $0x3c] sm:$0xff]
  %v2843 = vld [vmem:[#allocation2 + $0x44] sm:$0xff]
  %v2844 = vld [vmem:[#allocation2 + $0x4c] sm:$0xff]
  %v2845 = vld [vmem:[#allocation2 + $0x54] sm:$0xff]
  %v2846 = vld [vmem:[#allocation2 + $0x5c] sm:$0xff]
  %v2847 = vld [vmem:[#allocation2 + $0x64] sm:$0xff]
  %v2848 = vld [vmem:[#allocation2 + $0x6c] sm:$0xff]
  %v2849 = vld [vmem:[#allocation2 + $0x74] sm:$0xff]
  %v2850 = vld [vmem:[#allocation2 + $0x7c] sm:$0xff]
  %v2851 = vld [vmem:[#allocation2 + $0x84] sm:$0xff]
  %v2852 = vld [vmem:[#allocation2 + $0x8c] sm:$0xff]
  %v2853 = vld [vmem:[#allocation2 + $0x94] sm:$0xff]
  %v2854 = vld [vmem:[#allocation2 + $0x9c] sm:$0xff]
  %v2855 = vld [vmem:[#allocation2 + $0xa4] sm:$0xff]
  %v2856 = vld [vmem:[#allocation2 + $0xac] sm:$0xff]
  %v2857 = vld [vmem:[#allocation2 + $0xb4] sm:$0xff]
  %v2858 = vld [vmem:[#allocation2 + $0xbc] sm:$0xff]
  %v2859 = vld [vmem:[#allocation2 + $0xc4] sm:$0xff]
  %v2860 = vld [vmem:[#allocation2 + $0xcc] sm:$0xff]
  %s2861 = scalar_lea.vmem [#allocation3], 320
  %v2862 = vld [vmem:[%s2861] sm:$0xff]
  %v2863 = vld [vmem:[%s2861 + $0x8] sm:$0xff]
  %v2864 = vld [vmem:[%s2861 + $0x10] sm:$0xff]
  %v2865 = vld [vmem:[%s2861 + $0x18] sm:$0xff]
  %v2866 = vld [vmem:[%s2861 + $0x20] sm:$0xff]
  %v2867 = vld [vmem:[%s2861 + $0x28] sm:$0xff]
  %v2868 = vld [vmem:[%s2861 + $0x30] sm:$0xff]
  %v2869 = vld [vmem:[%s2861 + $0x38] sm:$0xff]
  %v2871 = vsel %vm508, %v2836, 0
  %v2874 = vsel %vm508, %v2837, 0
  %v2877 = vsel %vm508, %v2838, 0
  %v2880 = vsel %vm508, %v2839, 0
  %v2883 = vsel %vm508, %v2840, 0
  %v2886 = vsel %vm508, %v2841, 0
  %v2889 = vsel %vm508, %v2842, 0
  %v2892 = vsel %vm508, %v2843, 0
  %v2895 = vsel %vm508, %v2844, 0
  %v2898 = vsel %vm508, %v2845, 0
  %v2901 = vsel %vm508, %v2846, 0
  %v2904 = vsel %vm508, %v2847, 0
  %v2907 = vsel %vm508, %v2848, 0
  %v2910 = vsel %vm508, %v2849, 0
  %v2913 = vsel %vm508, %v2850, 0
  %v2916 = vsel %vm508, %v2851, 0
  %v2919 = vsel %vm508, %v2852, 0
  %v2922 = vsel %vm508, %v2853, 0
  %v2925 = vsel %vm508, %v2854, 0
  %v2928 = vsel %vm508, %v2855, 0
  %v2931 = vsel %vm508, %v2856, 0
  %v2934 = vsel %vm508, %v2857, 0
  %v2937 = vsel %vm508, %v2858, 0
  %v2940 = vsel %vm508, %v2859, 0
  %v2943 = vsel %vm508, %v2860, 0
  %2945 = vmatpush.msra.mxu0 0.0
  %2946 = vmatpush.msra.mxu0 0.0
  %2947 = vmatpush.msra.mxu0 0.0
  %2948 = vmatpush.msra.mxu0 0.0
  %2949 = vmatpush.msra.mxu0 0.0
  %2950 = vmatpush.msra.mxu0 0.0
  %2951 = vmatpush.msra.mxu0 0.0
  %2952 = vmatpush.msra.mxu0 0.0
  %2953 = vmatpush.msra.mxu0 %v2869
  %2954 = vmatpush.msra.mxu0 %v2868
  %2955 = vmatpush.msra.mxu0 %v2867
  %2956 = vmatpush.msra.mxu0 %v2866
  %2957 = vmatpush.msra.mxu0 %v2865
  %2958 = vmatpush.msra.mxu0 %v2864
  %2959 = vmatpush.msra.mxu0 %v2863
  %2960 = vmatpush.msra.mxu0 %v2862
  %2961 = vmatmul.f32.gmra.mxu0 %v2871
  %v2962 = vpop.f32.mrf.mxu0
  %v2963 = vadd.f32 0.0, %v2962
  %2964 = vmatmul.f32.gmra.mxu0 %v2874
  %v2965 = vpop.f32.mrf.mxu0
  %v2966 = vadd.f32 0.0, %v2965
  %2967 = vmatmul.f32.gmra.mxu0 %v2877
  %v2968 = vpop.f32.mrf.mxu0
  %v2969 = vadd.f32 0.0, %v2968
  %2970 = vmatmul.f32.gmra.mxu0 %v2880
  %v2971 = vpop.f32.mrf.mxu0
  %v2972 = vadd.f32 0.0, %v2971
  %2973 = vmatmul.f32.gmra.mxu0 %v2883
  %v2974 = vpop.f32.mrf.mxu0
  %v2975 = vadd.f32 0.0, %v2974
  %2976 = vmatmul.f32.gmra.mxu0 %v2886
  %v2977 = vpop.f32.mrf.mxu0
  %v2978 = vadd.f32 0.0, %v2977
  %2979 = vmatmul.f32.gmra.mxu0 %v2889
  %v2980 = vpop.f32.mrf.mxu0
  %v2981 = vadd.f32 0.0, %v2980
  %2982 = vmatmul.f32.gmra.mxu0 %v2892
  %v2983 = vpop.f32.mrf.mxu0
  %v2984 = vadd.f32 0.0, %v2983
  %2985 = vmatmul.f32.gmra.mxu0 %v2895
  %v2986 = vpop.f32.mrf.mxu0
  %v2987 = vadd.f32 0.0, %v2986
  %2988 = vmatmul.f32.gmra.mxu0 %v2898
  %v2989 = vpop.f32.mrf.mxu0
  %v2990 = vadd.f32 0.0, %v2989
  %2991 = vmatmul.f32.gmra.mxu0 %v2901
  %v2992 = vpop.f32.mrf.mxu0
  %2993 = vmatmul.f32.gmra.mxu0 %v2904
  %v2994 = vpop.f32.mrf.mxu0
  %2995 = vmatmul.f32.gmra.mxu0 %v2907
  %v2996 = vpop.f32.mrf.mxu0
  %v2997 = vadd.f32 0.0, %v2996
  %2998 = vmatmul.f32.gmra.mxu0 %v2910
  %v2999 = vpop.f32.mrf.mxu0
  %v3000 = vadd.f32 0.0, %v2999
  %3001 = vmatmul.f32.gmra.mxu0 %v2913
  %v3002 = vpop.f32.mrf.mxu0
  %v3003 = vadd.f32 0.0, %v3002
  %3004 = vmatmul.f32.gmra.mxu0 %v2916
  %v3005 = vpop.f32.mrf.mxu0
  %v3006 = vadd.f32 0.0, %v3005
  %3007 = vmatmul.f32.gmra.mxu0 %v2919
  %v3008 = vpop.f32.mrf.mxu0
  %v3009 = vadd.f32 0.0, %v3008
  %3010 = vmatmul.f32.gmra.mxu0 %v2922
  %v3011 = vpop.f32.mrf.mxu0
  %v3012 = vadd.f32 0.0, %v3011
  %3013 = vmatmul.f32.gmra.mxu0 %v2925
  %v3014 = vpop.f32.mrf.mxu0
  %v3015 = vadd.f32 0.0, %v3014
  %3016 = vmatmul.f32.gmra.mxu0 %v2928
  %v3017 = vpop.f32.mrf.mxu0
  %v3018 = vadd.f32 0.0, %v3017
  %3019 = vmatmul.f32.gmra.mxu0 %v2931
  %v3020 = vpop.f32.mrf.mxu0
  %v3021 = vadd.f32 0.0, %v3020
  %3022 = vmatmul.f32.gmra.mxu0 %v2934
  %v3023 = vpop.f32.mrf.mxu0
  %v3024 = vadd.f32 0.0, %v3023
  %3025 = vmatmul.f32.gmra.mxu0 %v2937
  %v3026 = vpop.f32.mrf.mxu0
  %v3027 = vadd.f32 0.0, %v3026
  %3028 = vmatmul.f32.gmra.mxu0 %v2940
  %v3029 = vpop.f32.mrf.mxu0
  %3030 = vmatmul.f32.gmra.mxu0 %v2943
  %v3031 = vpop.f32.mrf.mxu0
  %3032 = vdwg.mxu0
  %v3033 = vadd.f32 %v2815, %v2963
  %v3034 = vadd.f32 %v2816, %v2966
  %v3035 = vadd.f32 %v2817, %v2969
  %v3036 = vadd.f32 %v2818, %v2972
  %v3037 = vadd.f32 %v2819, %v2975
  %v3038 = vadd.f32 %v2820, %v2978
  %v3039 = vadd.f32 %v2821, %v2981
  %v3040 = vadd.f32 %v2822, %v2984
  %v3041 = vadd.f32 %v2823, %v2987
  %v3042 = vadd.f32 %v2824, %v2990
  %v3043 = vadd.f32 %v2825, %v2997
  %v3044 = vadd.f32 %v2826, %v3000
  %v3045 = vadd.f32 %v2827, %v3003
  %v3046 = vadd.f32 %v2828, %v3006
  %v3047 = vadd.f32 %v2829, %v3009
  %v3048 = vadd.f32 %v2830, %v3012
  %v3049 = vadd.f32 %v2831, %v3015
  %v3050 = vadd.f32 %v2832, %v3018
  %v3051 = vadd.f32 %v2833, %v3021
  %v3052 = vadd.f32 %v2834, %v3024
  %v3053 = vadd.f32 %v2835, %v3027
  %v3054 = vld [vmem:[#allocation2 + $0x14] sm:$0xff]
  %v3055 = vld [vmem:[#allocation2 + $0x1c] sm:$0xff]
  %v3056 = vld [vmem:[#allocation2 + $0x24] sm:$0xff]
  %v3057 = vld [vmem:[#allocation2 + $0x2c] sm:$0xff]
  %v3058 = vld [vmem:[#allocation2 + $0x34] sm:$0xff]
  %v3059 = vld [vmem:[#allocation2 + $0x3c] sm:$0xff]
  %v3060 = vld [vmem:[#allocation2 + $0x44] sm:$0xff]
  %v3061 = vld [vmem:[#allocation2 + $0x4c] sm:$0xff]
  %v3062 = vld [vmem:[#allocation2 + $0x54] sm:$0xff]
  %v3063 = vld [vmem:[#allocation2 + $0x5c] sm:$0xff]
  %v3064 = vld [vmem:[#allocation2 + $0x64] sm:$0xff]
  %v3065 = vld [vmem:[#allocation2 + $0x6c] sm:$0xff]
  %v3066 = vld [vmem:[#allocation2 + $0x74] sm:$0xff]
  %v3067 = vld [vmem:[#allocation2 + $0x7c] sm:$0xff]
  %v3068 = vld [vmem:[#allocation2 + $0x84] sm:$0xff]
  %v3069 = vld [vmem:[#allocation2 + $0x8c] sm:$0xff]
  %v3070 = vld [vmem:[#allocation2 + $0x94] sm:$0xff]
  %v3071 = vld [vmem:[#allocation2 + $0x9c] sm:$0xff]
  %v3072 = vld [vmem:[#allocation2 + $0xa4] sm:$0xff]
  %v3073 = vld [vmem:[#allocation2 + $0xac] sm:$0xff]
  %v3074 = vld [vmem:[#allocation2 + $0xb4] sm:$0xff]
  %v3075 = vld [vmem:[#allocation2 + $0xbc] sm:$0xff]
  %v3076 = vld [vmem:[#allocation2 + $0xc4] sm:$0xff]
  %v3077 = vld [vmem:[#allocation2 + $0xcc] sm:$0xff]
  %v3078 = vld [vmem:[#allocation2 + $0xd4] sm:$0xff]
  %s3079 = scalar_lea.vmem [#allocation3], 384
  %v3080 = vld [vmem:[%s3079] sm:$0xff]
  %v3081 = vld [vmem:[%s3079 + $0x8] sm:$0xff]
  %v3082 = vld [vmem:[%s3079 + $0x10] sm:$0xff]
  %v3083 = vld [vmem:[%s3079 + $0x18] sm:$0xff]
  %v3084 = vld [vmem:[%s3079 + $0x20] sm:$0xff]
  %v3085 = vld [vmem:[%s3079 + $0x28] sm:$0xff]
  %v3086 = vld [vmem:[%s3079 + $0x30] sm:$0xff]
  %v3087 = vld [vmem:[%s3079 + $0x38] sm:$0xff]
  %v3089 = vsel %vm508, %v3054, 0
  %v3092 = vsel %vm508, %v3055, 0
  %v3095 = vsel %vm508, %v3056, 0
  %v3098 = vsel %vm508, %v3057, 0
  %v3101 = vsel %vm508, %v3058, 0
  %v3104 = vsel %vm508, %v3059, 0
  %v3107 = vsel %vm508, %v3060, 0
  %v3110 = vsel %vm508, %v3061, 0
  %v3113 = vsel %vm508, %v3062, 0
  %v3116 = vsel %vm508, %v3063, 0
  %v3119 = vsel %vm508, %v3064, 0
  %v3122 = vsel %vm508, %v3065, 0
  %v3125 = vsel %vm508, %v3066, 0
  %v3128 = vsel %vm508, %v3067, 0
  %v3131 = vsel %vm508, %v3068, 0
  %v3134 = vsel %vm508, %v3069, 0
  %v3137 = vsel %vm508, %v3070, 0
  %v3140 = vsel %vm508, %v3071, 0
  %v3143 = vsel %vm508, %v3072, 0
  %v3146 = vsel %vm508, %v3073, 0
  %v3149 = vsel %vm508, %v3074, 0
  %v3152 = vsel %vm508, %v3075, 0
  %v3155 = vsel %vm508, %v3076, 0
  %v3158 = vsel %vm508, %v3077, 0
  %v3161 = vsel %vm508, %v3078, 0
  %3163 = vmatpush.msra.mxu0 0.0
  %3164 = vmatpush.msra.mxu0 0.0
  %3165 = vmatpush.msra.mxu0 0.0
  %3166 = vmatpush.msra.mxu0 0.0
  %3167 = vmatpush.msra.mxu0 0.0
  %3168 = vmatpush.msra.mxu0 0.0
  %3169 = vmatpush.msra.mxu0 0.0
  %3170 = vmatpush.msra.mxu0 0.0
  %3171 = vmatpush.msra.mxu0 %v3087
  %3172 = vmatpush.msra.mxu0 %v3086
  %3173 = vmatpush.msra.mxu0 %v3085
  %3174 = vmatpush.msra.mxu0 %v3084
  %3175 = vmatpush.msra.mxu0 %v3083
  %3176 = vmatpush.msra.mxu0 %v3082
  %3177 = vmatpush.msra.mxu0 %v3081
  %3178 = vmatpush.msra.mxu0 %v3080
  %3179 = vmatmul.f32.gmra.mxu0 %v3089
  %v3180 = vpop.f32.mrf.mxu0
  %v3181 = vadd.f32 0.0, %v3180
  %3182 = vmatmul.f32.gmra.mxu0 %v3092
  %v3183 = vpop.f32.mrf.mxu0
  %v3184 = vadd.f32 0.0, %v3183
  %3185 = vmatmul.f32.gmra.mxu0 %v3095
  %v3186 = vpop.f32.mrf.mxu0
  %v3187 = vadd.f32 0.0, %v3186
  %3188 = vmatmul.f32.gmra.mxu0 %v3098
  %v3189 = vpop.f32.mrf.mxu0
  %v3190 = vadd.f32 0.0, %v3189
  %3191 = vmatmul.f32.gmra.mxu0 %v3101
  %v3192 = vpop.f32.mrf.mxu0
  %v3193 = vadd.f32 0.0, %v3192
  %3194 = vmatmul.f32.gmra.mxu0 %v3104
  %v3195 = vpop.f32.mrf.mxu0
  %v3196 = vadd.f32 0.0, %v3195
  %3197 = vmatmul.f32.gmra.mxu0 %v3107
  %v3198 = vpop.f32.mrf.mxu0
  %v3199 = vadd.f32 0.0, %v3198
  %3200 = vmatmul.f32.gmra.mxu0 %v3110
  %v3201 = vpop.f32.mrf.mxu0
  %v3202 = vadd.f32 0.0, %v3201
  %3203 = vmatmul.f32.gmra.mxu0 %v3113
  %v3204 = vpop.f32.mrf.mxu0
  %v3205 = vadd.f32 0.0, %v3204
  %3206 = vmatmul.f32.gmra.mxu0 %v3116
  %v3207 = vpop.f32.mrf.mxu0
  %v3208 = vadd.f32 0.0, %v3207
  %3209 = vmatmul.f32.gmra.mxu0 %v3119
  %v3210 = vpop.f32.mrf.mxu0
  %3211 = vmatmul.f32.gmra.mxu0 %v3122
  %v3212 = vpop.f32.mrf.mxu0
  %3213 = vmatmul.f32.gmra.mxu0 %v3125
  %v3214 = vpop.f32.mrf.mxu0
  %v3215 = vadd.f32 0.0, %v3214
  %3216 = vmatmul.f32.gmra.mxu0 %v3128
  %v3217 = vpop.f32.mrf.mxu0
  %v3218 = vadd.f32 0.0, %v3217
  %3219 = vmatmul.f32.gmra.mxu0 %v3131
  %v3220 = vpop.f32.mrf.mxu0
  %v3221 = vadd.f32 0.0, %v3220
  %3222 = vmatmul.f32.gmra.mxu0 %v3134
  %v3223 = vpop.f32.mrf.mxu0
  %v3224 = vadd.f32 0.0, %v3223
  %3225 = vmatmul.f32.gmra.mxu0 %v3137
  %v3226 = vpop.f32.mrf.mxu0
  %v3227 = vadd.f32 0.0, %v3226
  %3228 = vmatmul.f32.gmra.mxu0 %v3140
  %v3229 = vpop.f32.mrf.mxu0
  %v3230 = vadd.f32 0.0, %v3229
  %3231 = vmatmul.f32.gmra.mxu0 %v3143
  %v3232 = vpop.f32.mrf.mxu0
  %v3233 = vadd.f32 0.0, %v3232
  %3234 = vmatmul.f32.gmra.mxu0 %v3146
  %v3235 = vpop.f32.mrf.mxu0
  %v3236 = vadd.f32 0.0, %v3235
  %3237 = vmatmul.f32.gmra.mxu0 %v3149
  %v3238 = vpop.f32.mrf.mxu0
  %v3239 = vadd.f32 0.0, %v3238
  %3240 = vmatmul.f32.gmra.mxu0 %v3152
  %v3241 = vpop.f32.mrf.mxu0
  %v3242 = vadd.f32 0.0, %v3241
  %3243 = vmatmul.f32.gmra.mxu0 %v3155
  %v3244 = vpop.f32.mrf.mxu0
  %v3245 = vadd.f32 0.0, %v3244
  %3246 = vmatmul.f32.gmra.mxu0 %v3158
  %v3247 = vpop.f32.mrf.mxu0
  %3248 = vmatmul.f32.gmra.mxu0 %v3161
  %v3249 = vpop.f32.mrf.mxu0
  %3250 = vdwg.mxu0
  %v3251 = vadd.f32 %v3033, %v3181
  %v3252 = vadd.f32 %v3034, %v3184
  %v3253 = vadd.f32 %v3035, %v3187
  %v3254 = vadd.f32 %v3036, %v3190
  %v3255 = vadd.f32 %v3037, %v3193
  %v3256 = vadd.f32 %v3038, %v3196
  %v3257 = vadd.f32 %v3039, %v3199
  %v3258 = vadd.f32 %v3040, %v3202
  %v3259 = vadd.f32 %v3041, %v3205
  %v3260 = vadd.f32 %v3042, %v3208
  %v3261 = vadd.f32 %v3043, %v3215
  %v3262 = vadd.f32 %v3044, %v3218
  %v3263 = vadd.f32 %v3045, %v3221
  %v3264 = vadd.f32 %v3046, %v3224
  %v3265 = vadd.f32 %v3047, %v3227
  %v3266 = vadd.f32 %v3048, %v3230
  %v3267 = vadd.f32 %v3049, %v3233
  %v3268 = vadd.f32 %v3050, %v3236
  %v3269 = vadd.f32 %v3051, %v3239
  %v3270 = vadd.f32 %v3052, %v3242
  %v3271 = vadd.f32 %v3053, %v3245
  %v3272 = vld [vmem:[#allocation2 + $0x15] sm:$0xff]
  %v3273 = vld [vmem:[#allocation2 + $0x1d] sm:$0xff]
  %v3274 = vld [vmem:[#allocation2 + $0x25] sm:$0xff]
  %v3275 = vld [vmem:[#allocation2 + $0x2d] sm:$0xff]
  %v3276 = vld [vmem:[#allocation2 + $0x35] sm:$0xff]
  %v3277 = vld [vmem:[#allocation2 + $0x3d] sm:$0xff]
  %v3278 = vld [vmem:[#allocation2 + $0x45] sm:$0xff]
  %v3279 = vld [vmem:[#allocation2 + $0x4d] sm:$0xff]
  %v3280 = vld [vmem:[#allocation2 + $0x55] sm:$0xff]
  %v3281 = vld [vmem:[#allocation2 + $0x5d] sm:$0xff]
  %v3282 = vld [vmem:[#allocation2 + $0x65] sm:$0xff]
  %v3283 = vld [vmem:[#allocation2 + $0x6d] sm:$0xff]
  %v3284 = vld [vmem:[#allocation2 + $0x75] sm:$0xff]
  %v3285 = vld [vmem:[#allocation2 + $0x7d] sm:$0xff]
  %v3286 = vld [vmem:[#allocation2 + $0x85] sm:$0xff]
  %v3287 = vld [vmem:[#allocation2 + $0x8d] sm:$0xff]
  %v3288 = vld [vmem:[#allocation2 + $0x95] sm:$0xff]
  %v3289 = vld [vmem:[#allocation2 + $0x9d] sm:$0xff]
  %v3290 = vld [vmem:[#allocation2 + $0xa5] sm:$0xff]
  %v3291 = vld [vmem:[#allocation2 + $0xad] sm:$0xff]
  %v3292 = vld [vmem:[#allocation2 + $0xb5] sm:$0xff]
  %v3293 = vld [vmem:[#allocation2 + $0xbd] sm:$0xff]
  %v3294 = vld [vmem:[#allocation2 + $0xc5] sm:$0xff]
  %v3295 = vld [vmem:[#allocation2 + $0xcd] sm:$0xff]
  %v3296 = vld [vmem:[#allocation2 + $0xd5] sm:$0xff]
  %s3297 = scalar_lea.vmem [#allocation3], 448
  %v3298 = vld [vmem:[%s3297] sm:$0xff]
  %v3299 = vld [vmem:[%s3297 + $0x8] sm:$0xff]
  %v3300 = vld [vmem:[%s3297 + $0x10] sm:$0xff]
  %v3301 = vld [vmem:[%s3297 + $0x18] sm:$0xff]
  %v3302 = vld [vmem:[%s3297 + $0x20] sm:$0xff]
  %v3303 = vld [vmem:[%s3297 + $0x28] sm:$0xff]
  %v3304 = vld [vmem:[%s3297 + $0x30] sm:$0xff]
  %v3305 = vld [vmem:[%s3297 + $0x38] sm:$0xff]
  %v3307 = vsel %vm508, %v3272, 0
  %v3310 = vsel %vm508, %v3273, 0
  %v3313 = vsel %vm508, %v3274, 0
  %v3316 = vsel %vm508, %v3275, 0
  %v3319 = vsel %vm508, %v3276, 0
  %v3322 = vsel %vm508, %v3277, 0
  %v3325 = vsel %vm508, %v3278, 0
  %v3328 = vsel %vm508, %v3279, 0
  %v3331 = vsel %vm508, %v3280, 0
  %v3334 = vsel %vm508, %v3281, 0
  %v3337 = vsel %vm508, %v3282, 0
  %v3340 = vsel %vm508, %v3283, 0
  %v3343 = vsel %vm508, %v3284, 0
  %v3346 = vsel %vm508, %v3285, 0
  %v3349 = vsel %vm508, %v3286, 0
  %v3352 = vsel %vm508, %v3287, 0
  %v3355 = vsel %vm508, %v3288, 0
  %v3358 = vsel %vm508, %v3289, 0
  %v3361 = vsel %vm508, %v3290, 0
  %v3364 = vsel %vm508, %v3291, 0
  %v3367 = vsel %vm508, %v3292, 0
  %v3370 = vsel %vm508, %v3293, 0
  %v3373 = vsel %vm508, %v3294, 0
  %v3376 = vsel %vm508, %v3295, 0
  %v3379 = vsel %vm508, %v3296, 0
  %3381 = vmatpush.msra.mxu0 0.0
  %3382 = vmatpush.msra.mxu0 0.0
  %3383 = vmatpush.msra.mxu0 0.0
  %3384 = vmatpush.msra.mxu0 0.0
  %3385 = vmatpush.msra.mxu0 0.0
  %3386 = vmatpush.msra.mxu0 0.0
  %3387 = vmatpush.msra.mxu0 0.0
  %3388 = vmatpush.msra.mxu0 0.0
  %3389 = vmatpush.msra.mxu0 %v3305
  %3390 = vmatpush.msra.mxu0 %v3304
  %3391 = vmatpush.msra.mxu0 %v3303
  %3392 = vmatpush.msra.mxu0 %v3302
  %3393 = vmatpush.msra.mxu0 %v3301
  %3394 = vmatpush.msra.mxu0 %v3300
  %3395 = vmatpush.msra.mxu0 %v3299
  %3396 = vmatpush.msra.mxu0 %v3298
  %3397 = vmatmul.f32.gmra.mxu0 %v3307
  %v3398 = vpop.f32.mrf.mxu0
  %v3399 = vadd.f32 0.0, %v3398
  %3400 = vmatmul.f32.gmra.mxu0 %v3310
  %v3401 = vpop.f32.mrf.mxu0
  %v3402 = vadd.f32 0.0, %v3401
  %3403 = vmatmul.f32.gmra.mxu0 %v3313
  %v3404 = vpop.f32.mrf.mxu0
  %v3405 = vadd.f32 0.0, %v3404
  %3406 = vmatmul.f32.gmra.mxu0 %v3316
  %v3407 = vpop.f32.mrf.mxu0
  %v3408 = vadd.f32 0.0, %v3407
  %3409 = vmatmul.f32.gmra.mxu0 %v3319
  %v3410 = vpop.f32.mrf.mxu0
  %v3411 = vadd.f32 0.0, %v3410
  %3412 = vmatmul.f32.gmra.mxu0 %v3322
  %v3413 = vpop.f32.mrf.mxu0
  %v3414 = vadd.f32 0.0, %v3413
  %3415 = vmatmul.f32.gmra.mxu0 %v3325
  %v3416 = vpop.f32.mrf.mxu0
  %v3417 = vadd.f32 0.0, %v3416
  %3418 = vmatmul.f32.gmra.mxu0 %v3328
  %v3419 = vpop.f32.mrf.mxu0
  %v3420 = vadd.f32 0.0, %v3419
  %3421 = vmatmul.f32.gmra.mxu0 %v3331
  %v3422 = vpop.f32.mrf.mxu0
  %v3423 = vadd.f32 0.0, %v3422
  %3424 = vmatmul.f32.gmra.mxu0 %v3334
  %v3425 = vpop.f32.mrf.mxu0
  %v3426 = vadd.f32 0.0, %v3425
  %3427 = vmatmul.f32.gmra.mxu0 %v3337
  %v3428 = vpop.f32.mrf.mxu0
  %3429 = vmatmul.f32.gmra.mxu0 %v3340
  %v3430 = vpop.f32.mrf.mxu0
  %3431 = vmatmul.f32.gmra.mxu0 %v3343
  %v3432 = vpop.f32.mrf.mxu0
  %v3433 = vadd.f32 0.0, %v3432
  %3434 = vmatmul.f32.gmra.mxu0 %v3346
  %v3435 = vpop.f32.mrf.mxu0
  %v3436 = vadd.f32 0.0, %v3435
  %3437 = vmatmul.f32.gmra.mxu0 %v3349
  %v3438 = vpop.f32.mrf.mxu0
  %v3439 = vadd.f32 0.0, %v3438
  %3440 = vmatmul.f32.gmra.mxu0 %v3352
  %v3441 = vpop.f32.mrf.mxu0
  %v3442 = vadd.f32 0.0, %v3441
  %3443 = vmatmul.f32.gmra.mxu0 %v3355
  %v3444 = vpop.f32.mrf.mxu0
  %v3445 = vadd.f32 0.0, %v3444
  %3446 = vmatmul.f32.gmra.mxu0 %v3358
  %v3447 = vpop.f32.mrf.mxu0
  %v3448 = vadd.f32 0.0, %v3447
  %3449 = vmatmul.f32.gmra.mxu0 %v3361
  %v3450 = vpop.f32.mrf.mxu0
  %v3451 = vadd.f32 0.0, %v3450
  %3452 = vmatmul.f32.gmra.mxu0 %v3364
  %v3453 = vpop.f32.mrf.mxu0
  %v3454 = vadd.f32 0.0, %v3453
  %3455 = vmatmul.f32.gmra.mxu0 %v3367
  %v3456 = vpop.f32.mrf.mxu0
  %v3457 = vadd.f32 0.0, %v3456
  %3458 = vmatmul.f32.gmra.mxu0 %v3370
  %v3459 = vpop.f32.mrf.mxu0
  %v3460 = vadd.f32 0.0, %v3459
  %3461 = vmatmul.f32.gmra.mxu0 %v3373
  %v3462 = vpop.f32.mrf.mxu0
  %v3463 = vadd.f32 0.0, %v3462
  %3464 = vmatmul.f32.gmra.mxu0 %v3376
  %v3465 = vpop.f32.mrf.mxu0
  %3466 = vmatmul.f32.gmra.mxu0 %v3379
  %v3467 = vpop.f32.mrf.mxu0
  %3468 = vdwg.mxu0
  %v3469 = vadd.f32 %v3251, %v3399
  %v3470 = vadd.f32 %v3252, %v3402
  %v3471 = vadd.f32 %v3253, %v3405
  %v3472 = vadd.f32 %v3254, %v3408
  %v3473 = vadd.f32 %v3255, %v3411
  %v3474 = vadd.f32 %v3256, %v3414
  %v3475 = vadd.f32 %v3257, %v3417
  %v3476 = vadd.f32 %v3258, %v3420
  %v3477 = vadd.f32 %v3259, %v3423
  %v3478 = vadd.f32 %v3260, %v3426
  %v3479 = vadd.f32 %v3261, %v3433
  %v3480 = vadd.f32 %v3262, %v3436
  %v3481 = vadd.f32 %v3263, %v3439
  %v3482 = vadd.f32 %v3264, %v3442
  %v3483 = vadd.f32 %v3265, %v3445
  %v3484 = vadd.f32 %v3266, %v3448
  %v3485 = vadd.f32 %v3267, %v3451
  %v3486 = vadd.f32 %v3268, %v3454
  %v3487 = vadd.f32 %v3269, %v3457
  %v3488 = vadd.f32 %v3270, %v3460
  %v3489 = vadd.f32 %v3271, %v3463
  %v3490 = vld [vmem:[#allocation2 + $0x16] sm:$0xff]
  %v3491 = vld [vmem:[#allocation2 + $0x1e] sm:$0xff]
  %v3492 = vld [vmem:[#allocation2 + $0x26] sm:$0xff]
  %v3493 = vld [vmem:[#allocation2 + $0x2e] sm:$0xff]
  %v3494 = vld [vmem:[#allocation2 + $0x36] sm:$0xff]
  %v3495 = vld [vmem:[#allocation2 + $0x3e] sm:$0xff]
  %v3496 = vld [vmem:[#allocation2 + $0x46] sm:$0xff]
  %v3497 = vld [vmem:[#allocation2 + $0x4e] sm:$0xff]
  %v3498 = vld [vmem:[#allocation2 + $0x56] sm:$0xff]
  %v3499 = vld [vmem:[#allocation2 + $0x5e] sm:$0xff]
  %v3500 = vld [vmem:[#allocation2 + $0x66] sm:$0xff]
  %v3501 = vld [vmem:[#allocation2 + $0x6e] sm:$0xff]
  %v3502 = vld [vmem:[#allocation2 + $0x76] sm:$0xff]
  %v3503 = vld [vmem:[#allocation2 + $0x7e] sm:$0xff]
  %v3504 = vld [vmem:[#allocation2 + $0x86] sm:$0xff]
  %v3505 = vld [vmem:[#allocation2 + $0x8e] sm:$0xff]
  %v3506 = vld [vmem:[#allocation2 + $0x96] sm:$0xff]
  %v3507 = vld [vmem:[#allocation2 + $0x9e] sm:$0xff]
  %v3508 = vld [vmem:[#allocation2 + $0xa6] sm:$0xff]
  %v3509 = vld [vmem:[#allocation2 + $0xae] sm:$0xff]
  %v3510 = vld [vmem:[#allocation2 + $0xb6] sm:$0xff]
  %v3511 = vld [vmem:[#allocation2 + $0xbe] sm:$0xff]
  %v3512 = vld [vmem:[#allocation2 + $0xc6] sm:$0xff]
  %v3513 = vld [vmem:[#allocation2 + $0xce] sm:$0xff]
  %v3514 = vld [vmem:[#allocation2 + $0xd6] sm:$0xff]
  %s3515 = scalar_lea.vmem [#allocation3], 512
  %v3516 = vld [vmem:[%s3515] sm:$0xff]
  %v3517 = vld [vmem:[%s3515 + $0x8] sm:$0xff]
  %v3518 = vld [vmem:[%s3515 + $0x10] sm:$0xff]
  %v3519 = vld [vmem:[%s3515 + $0x18] sm:$0xff]
  %v3520 = vld [vmem:[%s3515 + $0x20] sm:$0xff]
  %v3521 = vld [vmem:[%s3515 + $0x28] sm:$0xff]
  %v3522 = vld [vmem:[%s3515 + $0x30] sm:$0xff]
  %v3523 = vld [vmem:[%s3515 + $0x38] sm:$0xff]
  %v3525 = vsel %vm508, %v3490, 0
  %v3528 = vsel %vm508, %v3491, 0
  %v3531 = vsel %vm508, %v3492, 0
  %v3534 = vsel %vm508, %v3493, 0
  %v3537 = vsel %vm508, %v3494, 0
  %v3540 = vsel %vm508, %v3495, 0
  %v3543 = vsel %vm508, %v3496, 0
  %v3546 = vsel %vm508, %v3497, 0
  %v3549 = vsel %vm508, %v3498, 0
  %v3552 = vsel %vm508, %v3499, 0
  %v3555 = vsel %vm508, %v3500, 0
  %v3558 = vsel %vm508, %v3501, 0
  %v3561 = vsel %vm508, %v3502, 0
  %v3564 = vsel %vm508, %v3503, 0
  %v3567 = vsel %vm508, %v3504, 0
  %v3570 = vsel %vm508, %v3505, 0
  %v3573 = vsel %vm508, %v3506, 0
  %v3576 = vsel %vm508, %v3507, 0
  %v3579 = vsel %vm508, %v3508, 0
  %v3582 = vsel %vm508, %v3509, 0
  %v3585 = vsel %vm508, %v3510, 0
  %v3588 = vsel %vm508, %v3511, 0
  %v3591 = vsel %vm508, %v3512, 0
  %v3594 = vsel %vm508, %v3513, 0
  %v3597 = vsel %vm508, %v3514, 0
  %3599 = vmatpush.msra.mxu0 0.0
  %3600 = vmatpush.msra.mxu0 0.0
  %3601 = vmatpush.msra.mxu0 0.0
  %3602 = vmatpush.msra.mxu0 0.0
  %3603 = vmatpush.msra.mxu0 0.0
  %3604 = vmatpush.msra.mxu0 0.0
  %3605 = vmatpush.msra.mxu0 0.0
  %3606 = vmatpush.msra.mxu0 0.0
  %3607 = vmatpush.msra.mxu0 %v3523
  %3608 = vmatpush.msra.mxu0 %v3522
  %3609 = vmatpush.msra.mxu0 %v3521
  %3610 = vmatpush.msra.mxu0 %v3520
  %3611 = vmatpush.msra.mxu0 %v3519
  %3612 = vmatpush.msra.mxu0 %v3518
  %3613 = vmatpush.msra.mxu0 %v3517
  %3614 = vmatpush.msra.mxu0 %v3516
  %3615 = vmatmul.f32.gmra.mxu0 %v3525
  %v3616 = vpop.f32.mrf.mxu0
  %v3617 = vadd.f32 0.0, %v3616
  %3618 = vmatmul.f32.gmra.mxu0 %v3528
  %v3619 = vpop.f32.mrf.mxu0
  %v3620 = vadd.f32 0.0, %v3619
  %3621 = vmatmul.f32.gmra.mxu0 %v3531
  %v3622 = vpop.f32.mrf.mxu0
  %v3623 = vadd.f32 0.0, %v3622
  %3624 = vmatmul.f32.gmra.mxu0 %v3534
  %v3625 = vpop.f32.mrf.mxu0
  %v3626 = vadd.f32 0.0, %v3625
  %3627 = vmatmul.f32.gmra.mxu0 %v3537
  %v3628 = vpop.f32.mrf.mxu0
  %v3629 = vadd.f32 0.0, %v3628
  %3630 = vmatmul.f32.gmra.mxu0 %v3540
  %v3631 = vpop.f32.mrf.mxu0
  %v3632 = vadd.f32 0.0, %v3631
  %3633 = vmatmul.f32.gmra.mxu0 %v3543
  %v3634 = vpop.f32.mrf.mxu0
  %v3635 = vadd.f32 0.0, %v3634
  %3636 = vmatmul.f32.gmra.mxu0 %v3546
  %v3637 = vpop.f32.mrf.mxu0
  %v3638 = vadd.f32 0.0, %v3637
  %3639 = vmatmul.f32.gmra.mxu0 %v3549
  %v3640 = vpop.f32.mrf.mxu0
  %v3641 = vadd.f32 0.0, %v3640
  %3642 = vmatmul.f32.gmra.mxu0 %v3552
  %v3643 = vpop.f32.mrf.mxu0
  %v3644 = vadd.f32 0.0, %v3643
  %3645 = vmatmul.f32.gmra.mxu0 %v3555
  %v3646 = vpop.f32.mrf.mxu0
  %3647 = vmatmul.f32.gmra.mxu0 %v3558
  %v3648 = vpop.f32.mrf.mxu0
  %3649 = vmatmul.f32.gmra.mxu0 %v3561
  %v3650 = vpop.f32.mrf.mxu0
  %v3651 = vadd.f32 0.0, %v3650
  %3652 = vmatmul.f32.gmra.mxu0 %v3564
  %v3653 = vpop.f32.mrf.mxu0
  %v3654 = vadd.f32 0.0, %v3653
  %3655 = vmatmul.f32.gmra.mxu0 %v3567
  %v3656 = vpop.f32.mrf.mxu0
  %v3657 = vadd.f32 0.0, %v3656
  %3658 = vmatmul.f32.gmra.mxu0 %v3570
  %v3659 = vpop.f32.mrf.mxu0
  %v3660 = vadd.f32 0.0, %v3659
  %3661 = vmatmul.f32.gmra.mxu0 %v3573
  %v3662 = vpop.f32.mrf.mxu0
  %v3663 = vadd.f32 0.0, %v3662
  %3664 = vmatmul.f32.gmra.mxu0 %v3576
  %v3665 = vpop.f32.mrf.mxu0
  %v3666 = vadd.f32 0.0, %v3665
  %3667 = vmatmul.f32.gmra.mxu0 %v3579
  %v3668 = vpop.f32.mrf.mxu0
  %v3669 = vadd.f32 0.0, %v3668
  %3670 = vmatmul.f32.gmra.mxu0 %v3582
  %v3671 = vpop.f32.mrf.mxu0
  %v3672 = vadd.f32 0.0, %v3671
  %3673 = vmatmul.f32.gmra.mxu0 %v3585
  %v3674 = vpop.f32.mrf.mxu0
  %v3675 = vadd.f32 0.0, %v3674
  %3676 = vmatmul.f32.gmra.mxu0 %v3588
  %v3677 = vpop.f32.mrf.mxu0
  %v3678 = vadd.f32 0.0, %v3677
  %3679 = vmatmul.f32.gmra.mxu0 %v3591
  %v3680 = vpop.f32.mrf.mxu0
  %v3681 = vadd.f32 0.0, %v3680
  %3682 = vmatmul.f32.gmra.mxu0 %v3594
  %v3683 = vpop.f32.mrf.mxu0
  %3684 = vmatmul.f32.gmra.mxu0 %v3597
  %v3685 = vpop.f32.mrf.mxu0
  %3686 = vdwg.mxu0
  %v3687 = vadd.f32 %v3469, %v3617
  %v3688 = vadd.f32 %v3470, %v3620
  %v3689 = vadd.f32 %v3471, %v3623
  %v3690 = vadd.f32 %v3472, %v3626
  %v3691 = vadd.f32 %v3473, %v3629
  %v3692 = vadd.f32 %v3474, %v3632
  %v3693 = vadd.f32 %v3475, %v3635
  %v3694 = vadd.f32 %v3476, %v3638
  %v3695 = vadd.f32 %v3477, %v3641
  %v3696 = vadd.f32 %v3478, %v3644
  %v3697 = vadd.f32 %v3479, %v3651
  %v3698 = vadd.f32 %v3480, %v3654
  %v3699 = vadd.f32 %v3481, %v3657
  %v3700 = vadd.f32 %v3482, %v3660
  %v3701 = vadd.f32 %v3483, %v3663
  %v3702 = vadd.f32 %v3484, %v3666
  %v3703 = vadd.f32 %v3485, %v3669
  %v3704 = vadd.f32 %v3486, %v3672
  %v3705 = vadd.f32 %v3487, %v3675
  %v3706 = vadd.f32 %v3488, %v3678
  %v3707 = vadd.f32 %v3489, %v3681
  %v3728 = vrot.slane %v3687, 2
  %v3729 = vrot.slane %v3687, 4
  %v3730 = vrot.slane %v3687, 6
  %v3731 = vrot.slane %v3688, 2
  %v3732 = vrot.slane %v3688, 4
  %v3733 = vrot.slane %v3688, 6
  %v3734 = vrot.slane %v3689, 4
  %v3735 = vrot.slane %v3689, 6
  %v3736 = vrot.slane %v3690, 2
  %v3737 = vrot.slane %v3690, 6
  %v3738 = vrot.slane %v3691, 2
  %v3739 = vrot.slane %v3691, 4
  %v3740 = vrot.slane %v3692, 2
  %v3741 = vrot.slane %v3692, 4
  %v3742 = vrot.slane %v3692, 6
  %v3743 = vrot.slane %v3693, 2
  %v3744 = vrot.slane %v3693, 4
  %v3745 = vrot.slane %v3693, 6
  %v3746 = vrot.slane %v3694, 4
  %v3747 = vrot.slane %v3694, 6
  %v3748 = vrot.slane %v3695, 2
  %v3749 = vrot.slane %v3695, 6
  %v3750 = vrot.slane %v3696, 2
  %v3751 = vrot.slane %v3696, 4
  %v3752 = vrot.slane %v3697, 4
  %v3753 = vrot.slane %v3697, 6
  %v3754 = vrot.slane %v3698, 2
  %v3755 = vrot.slane %v3698, 6
  %v3756 = vrot.slane %v3699, 2
  %v3757 = vrot.slane %v3699, 4
  %v3758 = vrot.slane %v3700, 2
  %v3759 = vrot.slane %v3700, 4
  %v3760 = vrot.slane %v3700, 6
  %v3761 = vrot.slane %v3701, 2
  %v3762 = vrot.slane %v3701, 4
  %v3763 = vrot.slane %v3701, 6
  %v3764 = vrot.slane %v3702, 4
  %v3765 = vrot.slane %v3702, 6
  %v3766 = vrot.slane %v3703, 2
  %v3767 = vrot.slane %v3703, 6
  %v3768 = vrot.slane %v3704, 2
  %v3769 = vrot.slane %v3704, 4
  %v3770 = vrot.slane %v3705, 2
  %v3771 = vrot.slane %v3705, 4
  %v3772 = vrot.slane %v3705, 6
  %v3773 = vrot.slane %v3706, 2
  %v3774 = vrot.slane %v3706, 4
  %v3775 = vrot.slane %v3706, 6
  %v3824 = vld [vmem:[%s4] sm:$0x1]
  %v3825 = vperm.slane %v3824, 0
  %v3827 = vrot.slane %v3825, 2
  %v3828 = vrot.slane %v3825, 4
  %v3829 = vrot.slane %v3825, 6
  %v3833 = vadd.f32 %v3687, %v3825
  %v3834 = vadd.f32 %v3728, %v3827
  %v3835 = vadd.f32 %v3729, %v3828
  %v3836 = vadd.f32 %v3730, %v3829
  %v3837 = vadd.f32 %v3731, %v3825
  %v3838 = vadd.f32 %v3732, %v3827
  %v3839 = vadd.f32 %v3733, %v3828
  %v3840 = vadd.f32 %v3689, %v3829
  %v3841 = vadd.f32 %v3734, %v3825
  %v3842 = vadd.f32 %v3735, %v3827
  %v3843 = vadd.f32 %v3690, %v3828
  %v3844 = vadd.f32 %v3736, %v3829
  %v3845 = vadd.f32 %v3737, %v3825
  %v3846 = vadd.f32 %v3691, %v3827
  %v3847 = vadd.f32 %v3738, %v3828
  %v3848 = vadd.f32 %v3739, %v3829
  %v3849 = vadd.f32 %v3692, %v3825
  %v3850 = vadd.f32 %v3740, %v3827
  %v3851 = vadd.f32 %v3741, %v3828
  %v3852 = vadd.f32 %v3742, %v3829
  %v3853 = vadd.f32 %v3743, %v3825
  %v3854 = vadd.f32 %v3744, %v3827
  %v3855 = vadd.f32 %v3745, %v3828
  %v3856 = vadd.f32 %v3694, %v3829
  %v3857 = vadd.f32 %v3746, %v3825
  %v3858 = vadd.f32 %v3747, %v3827
  %v3859 = vadd.f32 %v3695, %v3828
  %v3860 = vadd.f32 %v3748, %v3829
  %v3861 = vadd.f32 %v3749, %v3825
  %v3862 = vadd.f32 %v3696, %v3827
  %v3863 = vadd.f32 %v3750, %v3828
  %v3864 = vadd.f32 %v3751, %v3829
  %v3865 = vadd.f32 %v3752, %v3825
  %v3866 = vadd.f32 %v3753, %v3827
  %v3867 = vadd.f32 %v3698, %v3828
  %v3868 = vadd.f32 %v3754, %v3829
  %v3869 = vadd.f32 %v3755, %v3825
  %v3870 = vadd.f32 %v3699, %v3827
  %v3871 = vadd.f32 %v3756, %v3828
  %v3872 = vadd.f32 %v3757, %v3829
  %v3873 = vadd.f32 %v3700, %v3825
  %v3874 = vadd.f32 %v3758, %v3827
  %v3875 = vadd.f32 %v3759, %v3828
  %v3876 = vadd.f32 %v3760, %v3829
  %v3877 = vadd.f32 %v3761, %v3825
  %v3878 = vadd.f32 %v3762, %v3827
  %v3879 = vadd.f32 %v3763, %v3828
  %v3880 = vadd.f32 %v3702, %v3829
  %v3881 = vadd.f32 %v3764, %v3825
  %v3882 = vadd.f32 %v3765, %v3827
  %v3883 = vadd.f32 %v3703, %v3828
  %v3884 = vadd.f32 %v3766, %v3829
  %v3885 = vadd.f32 %v3767, %v3825
  %v3886 = vadd.f32 %v3704, %v3827
  %v3887 = vadd.f32 %v3768, %v3828
  %v3888 = vadd.f32 %v3769, %v3829
  %v3889 = vadd.f32 %v3705, %v3825
  %v3890 = vadd.f32 %v3770, %v3827
  %v3891 = vadd.f32 %v3771, %v3828
  %v3892 = vadd.f32 %v3772, %v3829
  %v3893 = vadd.f32 %v3773, %v3825
  %v3894 = vadd.f32 %v3774, %v3827
  %v3895 = vadd.f32 %v3775, %v3828
  %v3896 = vadd.f32 %v3707, %v3829
  %3961 = vst [vmem:[#allocation1] ss:$4 sm:$0xff] %v3833
  %s3962 = scalar_lea.vmem [#allocation1], 1
  %3963 = vst [vmem:[%s3962] ss:$4 sm:$0xff] %v3834
  %s3964 = scalar_lea.vmem [#allocation1], 2
  %3965 = vst [vmem:[%s3964] ss:$4 sm:$0xff] %v3835
  %s3966 = scalar_lea.vmem [#allocation1], 3
  %3967 = vst [vmem:[%s3966] ss:$4 sm:$0xff] %v3836
  %s3968 = scalar_lea.vmem [#allocation1], 32
  %3969 = vst [vmem:[%s3968] ss:$4 sm:$0xff] %v3837
  %s3970 = scalar_lea.vmem [#allocation1], 33
  %3971 = vst [vmem:[%s3970] ss:$4 sm:$0xff] %v3838
  %s3972 = scalar_lea.vmem [#allocation1], 34
  %3973 = vst [vmem:[%s3972] ss:$4 sm:$0xff] %v3839
  %s3974 = scalar_lea.vmem [#allocation1], 35
  %3975 = vst [vmem:[%s3974] ss:$4 sm:$0xff] %v3840
  %v3976 = vld.sshfl [vmem:[#allocation1] sm:$0xff pattern:$0x73625140]
  %v3977 = vld.sshfl [vmem:[#allocation1 + $0x20] sm:$0xff pattern:$0x73625140]
  %3978 = vst [vmem:[#allocation1] ss:$4 sm:$0xff] %v3841
  %3979 = vst [vmem:[%s3962] ss:$4 sm:$0xff] %v3842
  %3980 = vst [vmem:[%s3964] ss:$4 sm:$0xff] %v3843
  %3981 = vst [vmem:[%s3966] ss:$4 sm:$0xff] %v3844
  %3982 = vst [vmem:[%s3968] ss:$4 sm:$0xff] %v3845
  %3983 = vst [vmem:[%s3970] ss:$4 sm:$0xff] %v3846
  %3984 = vst [vmem:[%s3972] ss:$4 sm:$0xff] %v3847
  %3985 = vst [vmem:[%s3974] ss:$4 sm:$0xff] %v3848
  %v3986 = vld.sshfl [vmem:[#allocation1] sm:$0xff pattern:$0x73625140]
  %v3987 = vld.sshfl [vmem:[#allocation1 + $0x20] sm:$0xff pattern:$0x73625140]
  %3988 = vst [vmem:[#allocation1] ss:$4 sm:$0xff] %v3849
  %3989 = vst [vmem:[%s3962] ss:$4 sm:$0xff] %v3850
  %3990 = vst [vmem:[%s3964] ss:$4 sm:$0xff] %v3851
  %3991 = vst [vmem:[%s3966] ss:$4 sm:$0xff] %v3852
  %3992 = vst [vmem:[%s3968] ss:$4 sm:$0xff] %v3853
  %3993 = vst [vmem:[%s3970] ss:$4 sm:$0xff] %v3854
  %3994 = vst [vmem:[%s3972] ss:$4 sm:$0xff] %v3855
  %3995 = vst [vmem:[%s3974] ss:$4 sm:$0xff] %v3856
  %v3996 = vld.sshfl [vmem:[#allocation1] sm:$0xff pattern:$0x73625140]
  %v3997 = vld.sshfl [vmem:[#allocation1 + $0x20] sm:$0xff pattern:$0x73625140]
  %3998 = vst [vmem:[#allocation1] ss:$4 sm:$0xff] %v3857
  %3999 = vst [vmem:[%s3962] ss:$4 sm:$0xff] %v3858
  %4000 = vst [vmem:[%s3964] ss:$4 sm:$0xff] %v3859
  %4001 = vst [vmem:[%s3966] ss:$4 sm:$0xff] %v3860
  %4002 = vst [vmem:[%s3968] ss:$4 sm:$0xff] %v3861
  %4003 = vst [vmem:[%s3970] ss:$4 sm:$0xff] %v3862
  %4004 = vst [vmem:[%s3972] ss:$4 sm:$0xff] %v3863
  %4005 = vst [vmem:[%s3974] ss:$4 sm:$0xff] %v3864
  %v4006 = vld.sshfl [vmem:[#allocation1] sm:$0xff pattern:$0x73625140]
  %v4007 = vld.sshfl [vmem:[#allocation1 + $0x20] sm:$0xff pattern:$0x73625140]
  %4008 = vst [vmem:[#allocation1] ss:$4 sm:$0xff] %v3865
  %4009 = vst [vmem:[%s3962] ss:$4 sm:$0xff] %v3866
  %4010 = vst [vmem:[%s3964] ss:$4 sm:$0xff] %v3867
  %4011 = vst [vmem:[%s3966] ss:$4 sm:$0xff] %v3868
  %4012 = vst [vmem:[%s3968] ss:$4 sm:$0xff] %v3869
  %4013 = vst [vmem:[%s3970] ss:$4 sm:$0xff] %v3870
  %4014 = vst [vmem:[%s3972] ss:$4 sm:$0xff] %v3871
  %4015 = vst [vmem:[%s3974] ss:$4 sm:$0xff] %v3872
  %v4016 = vld.sshfl [vmem:[#allocation1] sm:$0xff pattern:$0x73625140]
  %v4017 = vld.sshfl [vmem:[#allocation1 + $0x20] sm:$0xff pattern:$0x73625140]
  %4018 = vst [vmem:[#allocation1] ss:$4 sm:$0xff] %v3873
  %4019 = vst [vmem:[%s3962] ss:$4 sm:$0xff] %v3874
  %4020 = vst [vmem:[%s3964] ss:$4 sm:$0xff] %v3875
  %4021 = vst [vmem:[%s3966] ss:$4 sm:$0xff] %v3876
  %4022 = vst [vmem:[%s3968] ss:$4 sm:$0xff] %v3877
  %4023 = vst [vmem:[%s3970] ss:$4 sm:$0xff] %v3878
  %4024 = vst [vmem:[%s3972] ss:$4 sm:$0xff] %v3879
  %4025 = vst [vmem:[%s3974] ss:$4 sm:$0xff] %v3880
  %v4026 = vld.sshfl [vmem:[#allocation1] sm:$0xff pattern:$0x73625140]
  %v4027 = vld.sshfl [vmem:[#allocation1 + $0x20] sm:$0xff pattern:$0x73625140]
  %4028 = vst [vmem:[#allocation1] ss:$4 sm:$0xff] %v3881
  %4029 = vst [vmem:[%s3962] ss:$4 sm:$0xff] %v3882
  %4030 = vst [vmem:[%s3964] ss:$4 sm:$0xff] %v3883
  %4031 = vst [vmem:[%s3966] ss:$4 sm:$0xff] %v3884
  %4032 = vst [vmem:[%s3968] ss:$4 sm:$0xff] %v3885
  %4033 = vst [vmem:[%s3970] ss:$4 sm:$0xff] %v3886
  %4034 = vst [vmem:[%s3972] ss:$4 sm:$0xff] %v3887
  %4035 = vst [vmem:[%s3974] ss:$4 sm:$0xff] %v3888
  %v4036 = vld.sshfl [vmem:[#allocation1] sm:$0xff pattern:$0x73625140]
  %v4037 = vld.sshfl [vmem:[#allocation1 + $0x20] sm:$0xff pattern:$0x73625140]
  %4038 = vst [vmem:[#allocation1] ss:$4 sm:$0xff] %v3889
  %4039 = vst [vmem:[%s3962] ss:$4 sm:$0xff] %v3890
  %4040 = vst [vmem:[%s3964] ss:$4 sm:$0xff] %v3891
  %4041 = vst [vmem:[%s3966] ss:$4 sm:$0xff] %v3892
  %4042 = vst [vmem:[%s3968] ss:$4 sm:$0xff] %v3893
  %4043 = vst [vmem:[%s3970] ss:$4 sm:$0xff] %v3894
  %4044 = vst [vmem:[%s3972] ss:$4 sm:$0xff] %v3895
  %4045 = vst [vmem:[%s3974] ss:$4 sm:$0xff] %v3896
  %v4046 = vld.sshfl [vmem:[#allocation1] sm:$0xff pattern:$0x73625140]
  %v4047 = vld.sshfl [vmem:[#allocation1 + $0x20] sm:$0xff pattern:$0x73625140]
  %v4064 = vsel %vm508, %v3976, 0.0
  %v4065 = vsel %vm508, %v3977, 0.0
  %v4066 = vadd.f32 %v4064, %v4065
  %v4067 = vsel %vm508, %v3986, 0.0
  %v4068 = vadd.f32 %v4066, %v4067
  %v4069 = vsel %vm508, %v3987, 0.0
  %v4070 = vadd.f32 %v4068, %v4069
  %v4071 = vsel %vm508, %v3996, 0.0
  %v4072 = vadd.f32 %v4070, %v4071
  %v4073 = vsel %vm508, %v3997, 0.0
  %v4074 = vadd.f32 %v4072, %v4073
  %v4075 = vsel %vm508, %v4006, 0.0
  %v4076 = vadd.f32 %v4074, %v4075
  %v4077 = vsel %vm508, %v4007, 0.0
  %v4078 = vadd.f32 %v4076, %v4077
  %v4079 = vsel %vm508, %v4016, 0.0
  %v4080 = vadd.f32 %v4078, %v4079
  %v4081 = vsel %vm508, %v4017, 0.0
  %v4082 = vadd.f32 %v4080, %v4081
  %v4083 = vsel %vm508, %v4026, 0.0
  %v4084 = vadd.f32 %v4082, %v4083
  %v4085 = vsel %vm508, %v4027, 0.0
  %v4086 = vadd.f32 %v4084, %v4085
  %v4087 = vsel %vm508, %v4036, 0.0
  %v4088 = vadd.f32 %v4086, %v4087
  %v4089 = vsel %vm508, %v4037, 0.0
  %v4090 = vadd.f32 %v4088, %v4089
  %v4091 = vsel %vm508, %v4046, 0.0
  %v4092 = vadd.f32 %v4090, %v4091
  %v4093 = vsel %vm508, %v4047, 0.0
  %v4094 = vadd.f32 %v4092, %v4093
  %v4095 = vrot.slane %v4094, 4
  %v4096 = vadd.f32 %v4094, %v4095
  %v4097 = vrot.slane %v4096, 2
  %v4098 = vadd.f32 %v4096, %v4097
  %v4099 = vrot.slane %v4098, 1
  %v4100 = vadd.f32 %v4098, %v4099
  %v4101 = vmul.f32 %v3833, %v3833
  %v4102 = vmul.f32 %v3834, %v3834
  %v4103 = vmul.f32 %v3835, %v3835
  %v4104 = vmul.f32 %v3836, %v3836
  %v4105 = vmul.f32 %v3837, %v3837
  %v4106 = vmul.f32 %v3838, %v3838
  %v4107 = vmul.f32 %v3839, %v3839
  %v4108 = vmul.f32 %v3840, %v3840
  %v4109 = vmul.f32 %v3841, %v3841
  %v4110 = vmul.f32 %v3842, %v3842
  %v4111 = vmul.f32 %v3843, %v3843
  %v4112 = vmul.f32 %v3844, %v3844
  %v4113 = vmul.f32 %v3845, %v3845
  %v4114 = vmul.f32 %v3846, %v3846
  %v4115 = vmul.f32 %v3847, %v3847
  %v4116 = vmul.f32 %v3848, %v3848
  %v4117 = vmul.f32 %v3849, %v3849
  %v4118 = vmul.f32 %v3850, %v3850
  %v4119 = vmul.f32 %v3851, %v3851
  %v4120 = vmul.f32 %v3852, %v3852
  %v4121 = vmul.f32 %v3853, %v3853
  %v4122 = vmul.f32 %v3854, %v3854
  %v4123 = vmul.f32 %v3855, %v3855
  %v4124 = vmul.f32 %v3856, %v3856
  %v4125 = vmul.f32 %v3857, %v3857
  %v4126 = vmul.f32 %v3858, %v3858
  %v4127 = vmul.f32 %v3859, %v3859
  %v4128 = vmul.f32 %v3860, %v3860
  %v4129 = vmul.f32 %v3861, %v3861
  %v4130 = vmul.f32 %v3862, %v3862
  %v4131 = vmul.f32 %v3863, %v3863
  %v4132 = vmul.f32 %v3864, %v3864
  %v4133 = vmul.f32 %v3865, %v3865
  %v4134 = vmul.f32 %v3866, %v3866
  %v4135 = vmul.f32 %v3867, %v3867
  %v4136 = vmul.f32 %v3868, %v3868
  %v4137 = vmul.f32 %v3869, %v3869
  %v4138 = vmul.f32 %v3870, %v3870
  %v4139 = vmul.f32 %v3871, %v3871
  %v4140 = vmul.f32 %v3872, %v3872
  %v4141 = vmul.f32 %v3873, %v3873
  %v4142 = vmul.f32 %v3874, %v3874
  %v4143 = vmul.f32 %v3875, %v3875
  %v4144 = vmul.f32 %v3876, %v3876
  %v4145 = vmul.f32 %v3877, %v3877
  %v4146 = vmul.f32 %v3878, %v3878
  %v4147 = vmul.f32 %v3879, %v3879
  %v4148 = vmul.f32 %v3880, %v3880
  %v4149 = vmul.f32 %v3881, %v3881
  %v4150 = vmul.f32 %v3882, %v3882
  %v4151 = vmul.f32 %v3883, %v3883
  %v4152 = vmul.f32 %v3884, %v3884
  %v4153 = vmul.f32 %v3885, %v3885
  %v4154 = vmul.f32 %v3886, %v3886
  %v4155 = vmul.f32 %v3887, %v3887
  %v4156 = vmul.f32 %v3888, %v3888
  %v4157 = vmul.f32 %v3889, %v3889
  %v4158 = vmul.f32 %v3890, %v3890
  %v4159 = vmul.f32 %v3891, %v3891
  %v4160 = vmul.f32 %v3892, %v3892
  %v4161 = vmul.f32 %v3893, %v3893
  %v4162 = vmul.f32 %v3894, %v3894
  %v4163 = vmul.f32 %v3895, %v3895
  %v4164 = vmul.f32 %v3896, %v3896
  %4229 = vst [vmem:[#allocation1] ss:$4 sm:$0xff] %v4101
  %s4230 = scalar_lea.vmem [#allocation1], 1
  %4231 = vst [vmem:[%s4230] ss:$4 sm:$0xff] %v4102
  %s4232 = scalar_lea.vmem [#allocation1], 2
  %4233 = vst [vmem:[%s4232] ss:$4 sm:$0xff] %v4103
  %s4234 = scalar_lea.vmem [#allocation1], 3
  %4235 = vst [vmem:[%s4234] ss:$4 sm:$0xff] %v4104
  %s4236 = scalar_lea.vmem [#allocation1], 32
  %4237 = vst [vmem:[%s4236] ss:$4 sm:$0xff] %v4105
  %s4238 = scalar_lea.vmem [#allocation1], 33
  %4239 = vst [vmem:[%s4238] ss:$4 sm:$0xff] %v4106
  %s4240 = scalar_lea.vmem [#allocation1], 34
  %4241 = vst [vmem:[%s4240] ss:$4 sm:$0xff] %v4107
  %s4242 = scalar_lea.vmem [#allocation1], 35
  %4243 = vst [vmem:[%s4242] ss:$4 sm:$0xff] %v4108
  %v4244 = vld.sshfl [vmem:[#allocation1] sm:$0xff pattern:$0x73625140]
  %v4245 = vld.sshfl [vmem:[#allocation1 + $0x20] sm:$0xff pattern:$0x73625140]
  %4246 = vst [vmem:[#allocation1] ss:$4 sm:$0xff] %v4109
  %4247 = vst [vmem:[%s4230] ss:$4 sm:$0xff] %v4110
  %4248 = vst [vmem:[%s4232] ss:$4 sm:$0xff] %v4111
  %4249 = vst [vmem:[%s4234] ss:$4 sm:$0xff] %v4112
  %4250 = vst [vmem:[%s4236] ss:$4 sm:$0xff] %v4113
  %4251 = vst [vmem:[%s4238] ss:$4 sm:$0xff] %v4114
  %4252 = vst [vmem:[%s4240] ss:$4 sm:$0xff] %v4115
  %4253 = vst [vmem:[%s4242] ss:$4 sm:$0xff] %v4116
  %v4254 = vld.sshfl [vmem:[#allocation1] sm:$0xff pattern:$0x73625140]
  %v4255 = vld.sshfl [vmem:[#allocation1 + $0x20] sm:$0xff pattern:$0x73625140]
  %4256 = vst [vmem:[#allocation1] ss:$4 sm:$0xff] %v4117
  %4257 = vst [vmem:[%s4230] ss:$4 sm:$0xff] %v4118
  %4258 = vst [vmem:[%s4232] ss:$4 sm:$0xff] %v4119
  %4259 = vst [vmem:[%s4234] ss:$4 sm:$0xff] %v4120
  %4260 = vst [vmem:[%s4236] ss:$4 sm:$0xff] %v4121
  %4261 = vst [vmem:[%s4238] ss:$4 sm:$0xff] %v4122
  %4262 = vst [vmem:[%s4240] ss:$4 sm:$0xff] %v4123
  %4263 = vst [vmem:[%s4242] ss:$4 sm:$0xff] %v4124
  %v4264 = vld.sshfl [vmem:[#allocation1] sm:$0xff pattern:$0x73625140]
  %v4265 = vld.sshfl [vmem:[#allocation1 + $0x20] sm:$0xff pattern:$0x73625140]
  %4266 = vst [vmem:[#allocation1] ss:$4 sm:$0xff] %v4125
  %4267 = vst [vmem:[%s4230] ss:$4 sm:$0xff] %v4126
  %4268 = vst [vmem:[%s4232] ss:$4 sm:$0xff] %v4127
  %4269 = vst [vmem:[%s4234] ss:$4 sm:$0xff] %v4128
  %4270 = vst [vmem:[%s4236] ss:$4 sm:$0xff] %v4129
  %4271 = vst [vmem:[%s4238] ss:$4 sm:$0xff] %v4130
  %4272 = vst [vmem:[%s4240] ss:$4 sm:$0xff] %v4131
  %4273 = vst [vmem:[%s4242] ss:$4 sm:$0xff] %v4132
  %v4274 = vld.sshfl [vmem:[#allocation1] sm:$0xff pattern:$0x73625140]
  %v4275 = vld.sshfl [vmem:[#allocation1 + $0x20] sm:$0xff pattern:$0x73625140]
  %4276 = vst [vmem:[#allocation1] ss:$4 sm:$0xff] %v4133
  %4277 = vst [vmem:[%s4230] ss:$4 sm:$0xff] %v4134
  %4278 = vst [vmem:[%s4232] ss:$4 sm:$0xff] %v4135
  %4279 = vst [vmem:[%s4234] ss:$4 sm:$0xff] %v4136
  %4280 = vst [vmem:[%s4236] ss:$4 sm:$0xff] %v4137
  %4281 = vst [vmem:[%s4238] ss:$4 sm:$0xff] %v4138
  %4282 = vst [vmem:[%s4240] ss:$4 sm:$0xff] %v4139
  %4283 = vst [vmem:[%s4242] ss:$4 sm:$0xff] %v4140
  %v4284 = vld.sshfl [vmem:[#allocation1] sm:$0xff pattern:$0x73625140]
  %v4285 = vld.sshfl [vmem:[#allocation1 + $0x20] sm:$0xff pattern:$0x73625140]
  %4286 = vst [vmem:[#allocation1] ss:$4 sm:$0xff] %v4141
  %4287 = vst [vmem:[%s4230] ss:$4 sm:$0xff] %v4142
  %4288 = vst [vmem:[%s4232] ss:$4 sm:$0xff] %v4143
  %4289 = vst [vmem:[%s4234] ss:$4 sm:$0xff] %v4144
  %4290 = vst [vmem:[%s4236] ss:$4 sm:$0xff] %v4145
  %4291 = vst [vmem:[%s4238] ss:$4 sm:$0xff] %v4146
  %4292 = vst [vmem:[%s4240] ss:$4 sm:$0xff] %v4147
  %4293 = vst [vmem:[%s4242] ss:$4 sm:$0xff] %v4148
  %v4294 = vld.sshfl [vmem:[#allocation1] sm:$0xff pattern:$0x73625140]
  %v4295 = vld.sshfl [vmem:[#allocation1 + $0x20] sm:$0xff pattern:$0x73625140]
  %4296 = vst [vmem:[#allocation1] ss:$4 sm:$0xff] %v4149
  %4297 = vst [vmem:[%s4230] ss:$4 sm:$0xff] %v4150
  %4298 = vst [vmem:[%s4232] ss:$4 sm:$0xff] %v4151
  %4299 = vst [vmem:[%s4234] ss:$4 sm:$0xff] %v4152
  %4300 = vst [vmem:[%s4236] ss:$4 sm:$0xff] %v4153
  %4301 = vst [vmem:[%s4238] ss:$4 sm:$0xff] %v4154
  %4302 = vst [vmem:[%s4240] ss:$4 sm:$0xff] %v4155
  %4303 = vst [vmem:[%s4242] ss:$4 sm:$0xff] %v4156
  %v4304 = vld.sshfl [vmem:[#allocation1] sm:$0xff pattern:$0x73625140]
  %v4305 = vld.sshfl [vmem:[#allocation1 + $0x20] sm:$0xff pattern:$0x73625140]
  %4306 = vst [vmem:[#allocation1] ss:$4 sm:$0xff] %v4157
  %4307 = vst [vmem:[%s4230] ss:$4 sm:$0xff] %v4158
  %4308 = vst [vmem:[%s4232] ss:$4 sm:$0xff] %v4159
  %4309 = vst [vmem:[%s4234] ss:$4 sm:$0xff] %v4160
  %4310 = vst [vmem:[%s4236] ss:$4 sm:$0xff] %v4161
  %4311 = vst [vmem:[%s4238] ss:$4 sm:$0xff] %v4162
  %4312 = vst [vmem:[%s4240] ss:$4 sm:$0xff] %v4163
  %4313 = vst [vmem:[%s4242] ss:$4 sm:$0xff] %v4164
  %v4314 = vld.sshfl [vmem:[#allocation1] sm:$0xff pattern:$0x73625140]
  %v4315 = vld.sshfl [vmem:[#allocation1 + $0x20] sm:$0xff pattern:$0x73625140]
  %v4332 = vsel %vm508, %v4244, 0.0
  %v4333 = vsel %vm508, %v4245, 0.0
  %v4334 = vadd.f32 %v4332, %v4333
  %v4335 = vsel %vm508, %v4254, 0.0
  %v4336 = vadd.f32 %v4334, %v4335
  %v4337 = vsel %vm508, %v4255, 0.0
  %v4338 = vadd.f32 %v4336, %v4337
  %v4339 = vsel %vm508, %v4264, 0.0
  %v4340 = vadd.f32 %v4338, %v4339
  %v4341 = vsel %vm508, %v4265, 0.0
  %v4342 = vadd.f32 %v4340, %v4341
  %v4343 = vsel %vm508, %v4274, 0.0
  %v4344 = vadd.f32 %v4342, %v4343
  %v4345 = vsel %vm508, %v4275, 0.0
  %v4346 = vadd.f32 %v4344, %v4345
  %v4347 = vsel %vm508, %v4284, 0.0
  %v4348 = vadd.f32 %v4346, %v4347
  %v4349 = vsel %vm508, %v4285, 0.0
  %v4350 = vadd.f32 %v4348, %v4349
  %v4351 = vsel %vm508, %v4294, 0.0
  %v4352 = vadd.f32 %v4350, %v4351
  %v4353 = vsel %vm508, %v4295, 0.0
  %v4354 = vadd.f32 %v4352, %v4353
  %v4355 = vsel %vm508, %v4304, 0.0
  %v4356 = vadd.f32 %v4354, %v4355
  %v4357 = vsel %vm508, %v4305, 0.0
  %v4358 = vadd.f32 %v4356, %v4357
  %v4359 = vsel %vm508, %v4314, 0.0
  %v4360 = vadd.f32 %v4358, %v4359
  %v4361 = vsel %vm508, %v4315, 0.0
  %v4362 = vadd.f32 %v4360, %v4361
  %v4363 = vrot.slane %v4362, 4
  %v4364 = vadd.f32 %v4362, %v4363
  %v4365 = vrot.slane %v4364, 2
  %v4366 = vadd.f32 %v4364, %v4365
  %v4367 = vrot.slane %v4366, 1
  %v4368 = vadd.f32 %v4366, %v4367
  %v4369 = vsel %vm599, %v4100, %v4368
  %4371 = vrot.lane.b32.xlu0 %v4369, 120
  %v4372 = vpop.permute.xlu0 %4371
  %v4374 = vadd.f32 %v4369, %v4372
  %4375 = vrot.lane.b32.xlu0 %v4369, 112
  %v4376 = vpop.permute.xlu0 %4375
  %v4378 = vadd.f32 %v4374, %v4376
  %4379 = vrot.lane.b32.xlu0 %v4369, 104
  %v4380 = vpop.permute.xlu0 %4379
  %v4382 = vadd.f32 %v4378, %v4380
  %4383 = vrot.lane.b32.xlu0 %v4369, 96
  %v4384 = vpop.permute.xlu0 %4383
  %v4386 = vadd.f32 %v4382, %v4384
  %4387 = vrot.lane.b32.xlu0 %v4369, 88
  %v4388 = vpop.permute.xlu0 %4387
  %v4390 = vadd.f32 %v4386, %v4388
  %4391 = vrot.lane.b32.xlu0 %v4369, 80
  %v4392 = vpop.permute.xlu0 %4391
  %v4394 = vadd.f32 %v4390, %v4392
  %4395 = vrot.lane.b32.xlu0 %v4369, 72
  %v4396 = vpop.permute.xlu0 %4395
  %v4398 = vadd.f32 %v4394, %v4396
  %v4399 = vmul.f32 %v4398, %v636
  %v4400 = vmul.f32 %v4399, %v4399
  %v4402 = vrot.slane %v4400, 7
  %v4404 = vsub.f32 %v4399, %v4402
  %v4405 = vadd.f32 %v4404, 1e-05
  %v4406 = vrsqrt.pop %v4405
  %v4407 = vmul.f32 %v4406, %v4405
  %v4408 = vmul.f32 %v4407, %v4406
  %v4409 = vmul.f32 0.5, %v4408
  %v4410 = vsub.f32 1.5, %v4409
  %v4411 = vmul.f32 %v4406, %v4410
  %vm4412 = vweird.f32 %v4405
  %vm4413 = vweird.f32 %v4406
  %vm4414 = vmor %vm4412, %vm4413
  %v4415 = vsel %vm4414, %v4406, %v4411
  %v4416 = vsel %vm599, %v4399, %v4415
  %4418 = vrot.lane.b32.xlu0 %v4416, 8
  %v4419 = vpop.permute.xlu0 %4418
  %4421 = vrot.lane.b32.xlu0 %v4416, 16
  %v4422 = vpop.permute.xlu0 %4421
  %4424 = vrot.lane.b32.xlu0 %v4416, 24
  %v4425 = vpop.permute.xlu0 %4424
  %4427 = vrot.lane.b32.xlu0 %v4416, 32
  %v4428 = vpop.permute.xlu0 %4427
  %4430 = vrot.lane.b32.xlu0 %v4416, 40
  %v4431 = vpop.permute.xlu0 %4430
  %4433 = vrot.lane.b32.xlu0 %v4416, 48
  %v4434 = vpop.permute.xlu0 %4433
  %4436 = vrot.lane.b32.xlu0 %v4416, 56
  %v4437 = vpop.permute.xlu0 %4436
  %v4439 = vsel %vm677, %v4416, %v4419
  %v4440 = vsel %vm679, %v4439, %v4422
  %v4441 = vsel %vm681, %v4440, %v4425
  %v4442 = vsel %vm264, %v4441, %v4428
  %v4443 = vsel %vm684, %v4442, %v4431
  %v4444 = vsel %vm686, %v4443, %v4434
  %v4445 = vsel %vm688, %v4444, %v4437
  %v4446 = vld [vmem:[%s4 + $0x1] sm:$0x1]
  %v4448 = vrot.slane %v4445, 1
  %v4450 = vmul.f32 %v4446, %v4448
  %v4451 = vld [vmem:[%s4 + $0x2] sm:$0x1]
  %v4452 = vmul.f32 %v4445, %v4450
  %v4453 = vsub.f32 %v4451, %v4452
  %v4454 = vperm.slane %v4450, 0
  %v4456 = vrot.slane %v4454, 2
  %v4457 = vrot.slane %v4454, 4
  %v4458 = vrot.slane %v4454, 6
  %v4462 = vmul.f32 %v3833, %v4454
  %v4463 = vmul.f32 %v3834, %v4456
  %v4464 = vmul.f32 %v3835, %v4457
  %v4465 = vmul.f32 %v3836, %v4458
  %v4466 = vmul.f32 %v3837, %v4454
  %v4467 = vmul.f32 %v3838, %v4456
  %v4468 = vmul.f32 %v3839, %v4457
  %v4469 = vmul.f32 %v3840, %v4458
  %v4470 = vmul.f32 %v3841, %v4454
  %v4471 = vmul.f32 %v3842, %v4456
  %v4472 = vmul.f32 %v3843, %v4457
  %v4473 = vmul.f32 %v3844, %v4458
  %v4474 = vmul.f32 %v3845, %v4454
  %v4475 = vmul.f32 %v3846, %v4456
  %v4476 = vmul.f32 %v3847, %v4457
  %v4477 = vmul.f32 %v3848, %v4458
  %v4478 = vmul.f32 %v3849, %v4454
  %v4479 = vmul.f32 %v3850, %v4456
  %v4480 = vmul.f32 %v3851, %v4457
  %v4481 = vmul.f32 %v3852, %v4458
  %v4482 = vmul.f32 %v3853, %v4454
  %v4483 = vmul.f32 %v3854, %v4456
  %v4484 = vmul.f32 %v3855, %v4457
  %v4485 = vmul.f32 %v3856, %v4458
  %v4486 = vmul.f32 %v3857, %v4454
  %v4487 = vmul.f32 %v3858, %v4456
  %v4488 = vmul.f32 %v3859, %v4457
  %v4489 = vmul.f32 %v3860, %v4458
  %v4490 = vmul.f32 %v3861, %v4454
  %v4491 = vmul.f32 %v3862, %v4456
  %v4492 = vmul.f32 %v3863, %v4457
  %v4493 = vmul.f32 %v3864, %v4458
  %v4494 = vmul.f32 %v3865, %v4454
  %v4495 = vmul.f32 %v3866, %v4456
  %v4496 = vmul.f32 %v3867, %v4457
  %v4497 = vmul.f32 %v3868, %v4458
  %v4498 = vmul.f32 %v3869, %v4454
  %v4499 = vmul.f32 %v3870, %v4456
  %v4500 = vmul.f32 %v3871, %v4457
  %v4501 = vmul.f32 %v3872, %v4458
  %v4502 = vmul.f32 %v3873, %v4454
  %v4503 = vmul.f32 %v3874, %v4456
  %v4504 = vmul.f32 %v3875, %v4457
  %v4505 = vmul.f32 %v3876, %v4458
  %v4506 = vmul.f32 %v3877, %v4454
  %v4507 = vmul.f32 %v3878, %v4456
  %v4508 = vmul.f32 %v3879, %v4457
  %v4509 = vmul.f32 %v3880, %v4458
  %v4510 = vmul.f32 %v3881, %v4454
  %v4511 = vmul.f32 %v3882, %v4456
  %v4512 = vmul.f32 %v3883, %v4457
  %v4513 = vmul.f32 %v3884, %v4458
  %v4514 = vmul.f32 %v3885, %v4454
  %v4515 = vmul.f32 %v3886, %v4456
  %v4516 = vmul.f32 %v3887, %v4457
  %v4517 = vmul.f32 %v3888, %v4458
  %v4518 = vmul.f32 %v3889, %v4454
  %v4519 = vmul.f32 %v3890, %v4456
  %v4520 = vmul.f32 %v3891, %v4457
  %v4521 = vmul.f32 %v3892, %v4458
  %v4522 = vmul.f32 %v3893, %v4454
  %v4523 = vmul.f32 %v3894, %v4456
  %v4524 = vmul.f32 %v3895, %v4457
  %v4525 = vmul.f32 %v3896, %v4458
  %v4526 = vperm.slane %v4453, 0
  %v4528 = vrot.slane %v4526, 2
  %v4529 = vrot.slane %v4526, 4
  %v4530 = vrot.slane %v4526, 6
  %v4534 = vadd.f32 %v4462, %v4526
  %v4535 = vadd.f32 %v4463, %v4528
  %v4536 = vadd.f32 %v4464, %v4529
  %v4537 = vadd.f32 %v4465, %v4530
  %v4538 = vadd.f32 %v4466, %v4526
  %v4539 = vadd.f32 %v4467, %v4528
  %v4540 = vadd.f32 %v4468, %v4529
  %v4541 = vadd.f32 %v4469, %v4530
  %v4542 = vadd.f32 %v4470, %v4526
  %v4543 = vadd.f32 %v4471, %v4528
  %v4544 = vadd.f32 %v4472, %v4529
  %v4545 = vadd.f32 %v4473, %v4530
  %v4546 = vadd.f32 %v4474, %v4526
  %v4547 = vadd.f32 %v4475, %v4528
  %v4548 = vadd.f32 %v4476, %v4529
  %v4549 = vadd.f32 %v4477, %v4530
  %v4550 = vadd.f32 %v4478, %v4526
  %v4551 = vadd.f32 %v4479, %v4528
  %v4552 = vadd.f32 %v4480, %v4529
  %v4553 = vadd.f32 %v4481, %v4530
  %v4554 = vadd.f32 %v4482, %v4526
  %v4555 = vadd.f32 %v4483, %v4528
  %v4556 = vadd.f32 %v4484, %v4529
  %v4557 = vadd.f32 %v4485, %v4530
  %v4558 = vadd.f32 %v4486, %v4526
  %v4559 = vadd.f32 %v4487, %v4528
  %v4560 = vadd.f32 %v4488, %v4529
  %v4561 = vadd.f32 %v4489, %v4530
  %v4562 = vadd.f32 %v4490, %v4526
  %v4563 = vadd.f32 %v4491, %v4528
  %v4564 = vadd.f32 %v4492, %v4529
  %v4565 = vadd.f32 %v4493, %v4530
  %v4566 = vadd.f32 %v4494, %v4526
  %v4567 = vadd.f32 %v4495, %v4528
  %v4568 = vadd.f32 %v4496, %v4529
  %v4569 = vadd.f32 %v4497, %v4530
  %v4570 = vadd.f32 %v4498, %v4526
  %v4571 = vadd.f32 %v4499, %v4528
  %v4572 = vadd.f32 %v4500, %v4529
  %v4573 = vadd.f32 %v4501, %v4530
  %v4574 = vadd.f32 %v4502, %v4526
  %v4575 = vadd.f32 %v4503, %v4528
  %v4576 = vadd.f32 %v4504, %v4529
  %v4577 = vadd.f32 %v4505, %v4530
  %v4578 = vadd.f32 %v4506, %v4526
  %v4579 = vadd.f32 %v4507, %v4528
  %v4580 = vadd.f32 %v4508, %v4529
  %v4581 = vadd.f32 %v4509, %v4530
  %v4582 = vadd.f32 %v4510, %v4526
  %v4583 = vadd.f32 %v4511, %v4528
  %v4584 = vadd.f32 %v4512, %v4529
  %v4585 = vadd.f32 %v4513, %v4530
  %v4586 = vadd.f32 %v4514, %v4526
  %v4587 = vadd.f32 %v4515, %v4528
  %v4588 = vadd.f32 %v4516, %v4529
  %v4589 = vadd.f32 %v4517, %v4530
  %v4590 = vadd.f32 %v4518, %v4526
  %v4591 = vadd.f32 %v4519, %v4528
  %v4592 = vadd.f32 %v4520, %v4529
  %v4593 = vadd.f32 %v4521, %v4530
  %v4594 = vadd.f32 %v4522, %v4526
  %v4595 = vadd.f32 %v4523, %v4528
  %v4596 = vadd.f32 %v4524, %v4529
  %v4597 = vadd.f32 %v4525, %v4530
  %v4598 = vmul.f32 %v4534, 0.5
  %v4599 = vmul.f32 %v4535, 0.5
  %v4600 = vmul.f32 %v4536, 0.5
  %v4601 = vmul.f32 %v4537, 0.5
  %v4602 = vmul.f32 %v4538, 0.5
  %v4603 = vmul.f32 %v4539, 0.5
  %v4604 = vmul.f32 %v4540, 0.5
  %v4605 = vmul.f32 %v4541, 0.5
  %v4606 = vmul.f32 %v4542, 0.5
  %v4607 = vmul.f32 %v4543, 0.5
  %v4608 = vmul.f32 %v4544, 0.5
  %v4609 = vmul.f32 %v4545, 0.5
  %v4610 = vmul.f32 %v4546, 0.5
  %v4611 = vmul.f32 %v4547, 0.5
  %v4612 = vmul.f32 %v4548, 0.5
  %v4613 = vmul.f32 %v4549, 0.5
  %v4614 = vmul.f32 %v4550, 0.5
  %v4615 = vmul.f32 %v4551, 0.5
  %v4616 = vmul.f32 %v4552, 0.5
  %v4617 = vmul.f32 %v4553, 0.5
  %v4618 = vmul.f32 %v4554, 0.5
  %v4619 = vmul.f32 %v4555, 0.5
  %v4620 = vmul.f32 %v4556, 0.5
  %v4621 = vmul.f32 %v4557, 0.5
  %v4622 = vmul.f32 %v4558, 0.5
  %v4623 = vmul.f32 %v4559, 0.5
  %v4624 = vmul.f32 %v4560, 0.5
  %v4625 = vmul.f32 %v4561, 0.5
  %v4626 = vmul.f32 %v4562, 0.5
  %v4627 = vmul.f32 %v4563, 0.5
  %v4628 = vmul.f32 %v4564, 0.5
  %v4629 = vmul.f32 %v4565, 0.5
  %v4630 = vmul.f32 %v4566, 0.5
  %v4631 = vmul.f32 %v4567, 0.5
  %v4632 = vmul.f32 %v4568, 0.5
  %v4633 = vmul.f32 %v4569, 0.5
  %v4634 = vmul.f32 %v4570, 0.5
  %v4635 = vmul.f32 %v4571, 0.5
  %v4636 = vmul.f32 %v4572, 0.5
  %v4637 = vmul.f32 %v4573, 0.5
  %v4638 = vmul.f32 %v4574, 0.5
  %v4639 = vmul.f32 %v4575, 0.5
  %v4640 = vmul.f32 %v4576, 0.5
  %v4641 = vmul.f32 %v4577, 0.5
  %v4642 = vmul.f32 %v4578, 0.5
  %v4643 = vmul.f32 %v4579, 0.5
  %v4644 = vmul.f32 %v4580, 0.5
  %v4645 = vmul.f32 %v4581, 0.5
  %v4646 = vmul.f32 %v4582, 0.5
  %v4647 = vmul.f32 %v4583, 0.5
  %v4648 = vmul.f32 %v4584, 0.5
  %v4649 = vmul.f32 %v4585, 0.5
  %v4650 = vmul.f32 %v4586, 0.5
  %v4651 = vmul.f32 %v4587, 0.5
  %v4652 = vmul.f32 %v4588, 0.5
  %v4653 = vmul.f32 %v4589, 0.5
  %v4654 = vmul.f32 %v4590, 0.5
  %v4655 = vmul.f32 %v4591, 0.5
  %v4656 = vmul.f32 %v4592, 0.5
  %v4657 = vmul.f32 %v4593, 0.5
  %v4658 = vmul.f32 %v4594, 0.5
  %v4659 = vmul.f32 %v4595, 0.5
  %v4660 = vmul.f32 %v4596, 0.5
  %v4661 = vmul.f32 %v4597, 0.5
  %v4662 = vmul.f32 %v4534, 0.70710677
  %v4663 = vmul.f32 %v4535, 0.70710677
  %v4664 = vmul.f32 %v4536, 0.70710677
  %v4665 = vmul.f32 %v4537, 0.70710677
  %v4666 = vmul.f32 %v4538, 0.70710677
  %v4667 = vmul.f32 %v4539, 0.70710677
  %v4668 = vmul.f32 %v4540, 0.70710677
  %v4669 = vmul.f32 %v4541, 0.70710677
  %v4670 = vmul.f32 %v4542, 0.70710677
  %v4671 = vmul.f32 %v4543, 0.70710677
  %v4672 = vmul.f32 %v4544, 0.70710677
  %v4673 = vmul.f32 %v4545, 0.70710677
  %v4674 = vmul.f32 %v4546, 0.70710677
  %v4675 = vmul.f32 %v4547, 0.70710677
  %v4676 = vmul.f32 %v4548, 0.70710677
  %v4677 = vmul.f32 %v4549, 0.70710677
  %v4678 = vmul.f32 %v4550, 0.70710677
  %v4679 = vmul.f32 %v4551, 0.70710677
  %v4680 = vmul.f32 %v4552, 0.70710677
  %v4681 = vmul.f32 %v4553, 0.70710677
  %v4682 = vmul.f32 %v4554, 0.70710677
  %v4683 = vmul.f32 %v4555, 0.70710677
  %v4684 = vmul.f32 %v4556, 0.70710677
  %v4685 = vmul.f32 %v4557, 0.70710677
  %v4686 = vmul.f32 %v4558, 0.70710677
  %v4687 = vmul.f32 %v4559, 0.70710677
  %v4688 = vmul.f32 %v4560, 0.70710677
  %v4689 = vmul.f32 %v4561, 0.70710677
  %v4690 = vmul.f32 %v4562, 0.70710677
  %v4691 = vmul.f32 %v4563, 0.70710677
  %v4692 = vmul.f32 %v4564, 0.70710677
  %v4693 = vmul.f32 %v4565, 0.70710677
  %v4694 = vmul.f32 %v4566, 0.70710677
  %v4695 = vmul.f32 %v4567, 0.70710677
  %v4696 = vmul.f32 %v4568, 0.70710677
  %v4697 = vmul.f32 %v4569, 0.70710677
  %v4698 = vmul.f32 %v4570, 0.70710677
  %v4699 = vmul.f32 %v4571, 0.70710677
  %v4700 = vmul.f32 %v4572, 0.70710677
  %v4701 = vmul.f32 %v4573, 0.70710677
  %v4702 = vmul.f32 %v4574, 0.70710677
  %v4703 = vmul.f32 %v4575, 0.70710677
  %v4704 = vmul.f32 %v4576, 0.70710677
  %v4705 = vmul.f32 %v4577, 0.70710677
  %v4706 = vmul.f32 %v4578, 0.70710677
  %v4707 = vmul.f32 %v4579, 0.70710677
  %v4708 = vmul.f32 %v4580, 0.70710677
  %v4709 = vmul.f32 %v4581, 0.70710677
  %v4710 = vmul.f32 %v4582, 0.70710677
  %v4711 = vmul.f32 %v4583, 0.70710677
  %v4712 = vmul.f32 %v4584, 0.70710677
  %v4713 = vmul.f32 %v4585, 0.70710677
  %v4714 = vmul.f32 %v4586, 0.70710677
  %v4715 = vmul.f32 %v4587, 0.70710677
  %v4716 = vmul.f32 %v4588, 0.70710677
  %v4717 = vmul.f32 %v4589, 0.70710677
  %v4718 = vmul.f32 %v4590, 0.70710677
  %v4719 = vmul.f32 %v4591, 0.70710677
  %v4720 = vmul.f32 %v4592, 0.70710677
  %v4721 = vmul.f32 %v4593, 0.70710677
  %v4722 = vmul.f32 %v4594, 0.70710677
  %v4723 = vmul.f32 %v4595, 0.70710677
  %v4724 = vmul.f32 %v4596, 0.70710677
  %v4725 = vmul.f32 %v4597, 0.70710677
  %v4726 = vmul.f32 %v4662, %v4662
  %v4727 = vmin.f32 16.0, %v4726
  %v4728 = vmul.f32 %v4727, 2.1237322e-06
  %v4729 = vadd.f32 %v4728, 0.00028619796
  %v4730 = vmul.f32 %v4727, %v4729
  %v4731 = vadd.f32 %v4730, 0.0036580483
  %v4732 = vmul.f32 %v4727, %v4731
  %v4733 = vadd.f32 %v4732, 0.05243302
  %v4734 = vmul.f32 %v4727, %v4733
  %v4735 = vadd.f32 %v4734, 0.18741608
  %v4736 = vmul.f32 %v4727, %v4735
  %v4737 = vadd.f32 %v4736, 1.1283791
  %v4738 = vmul.f32 %v4662, %v4737
  %v4739 = vmul.f32 %v4727, 3.8918573e-05
  %v4740 = vadd.f32 %v4739, 0.001143296
  %v4741 = vmul.f32 %v4727, %v4740
  %v4742 = vadd.f32 %v4741, 0.014752088
  %v4743 = vmul.f32 %v4727, %v4742
  %v4744 = vadd.f32 %v4743, 0.112945676
  %v4745 = vmul.f32 %v4727, %v4744
  %v4746 = vadd.f32 %v4745, 0.4994258
  %v4747 = vmul.f32 %v4727, %v4746
  %v4748 = vadd.f32 %v4747, 1.0
  %v4749 = vrcp.pop %v4748
  %v4750 = vmul.f32 %v4748, %v4749
  %v4751 = vsub.f32 1.0, %v4750
  %v4752 = vmul.f32 %v4749, %v4751
  %v4753 = vadd.f32 %v4749, %v4752
  %vm4754 = vweird.f32 %v4748
  %vm4755 = vweird.f32 %v4749
  %vm4756 = vmor %vm4754, %vm4755
  %v4757 = vsel %vm4756, %v4749, %v4753
  %v4758 = vand.u32 2147483647, %v4748
  %vm4759 = vcmp.eq.f32.partialorder %v4758, 8.507059e+37
  %v4760 = vand.u32 %v4748, 2147483648
  %v4761 = vor.u32 1.1754944e-38, %v4760
  %v4762 = vsel %vm4759, %v4761, %v4757
  %v4763 = vmul.f32 %v4738, %v4762
  %v4764 = vmin.f32 %v4763, 1.0
  %v4765 = vmax.f32 %v4764, -1.0
  %v4766 = vmul.f32 %v4663, %v4663
  %v4767 = vmin.f32 16.0, %v4766
  %v4768 = vmul.f32 %v4767, 2.1237322e-06
  %v4769 = vadd.f32 %v4768, 0.00028619796
  %v4770 = vmul.f32 %v4767, %v4769
  %v4771 = vadd.f32 %v4770, 0.0036580483
  %v4772 = vmul.f32 %v4767, %v4771
  %v4773 = vadd.f32 %v4772, 0.05243302
  %v4774 = vmul.f32 %v4767, %v4773
  %v4775 = vadd.f32 %v4774, 0.18741608
  %v4776 = vmul.f32 %v4767, %v4775
  %v4777 = vadd.f32 %v4776, 1.1283791
  %v4778 = vmul.f32 %v4663, %v4777
  %v4779 = vmul.f32 %v4767, 3.8918573e-05
  %v4780 = vadd.f32 %v4779, 0.001143296
  %v4781 = vmul.f32 %v4767, %v4780
  %v4782 = vadd.f32 %v4781, 0.014752088
  %v4783 = vmul.f32 %v4767, %v4782
  %v4784 = vadd.f32 %v4783, 0.112945676
  %v4785 = vmul.f32 %v4767, %v4784
  %v4786 = vadd.f32 %v4785, 0.4994258
  %v4787 = vmul.f32 %v4767, %v4786
  %v4788 = vadd.f32 %v4787, 1.0
  %v4789 = vrcp.pop %v4788
  %v4790 = vmul.f32 %v4788, %v4789
  %v4791 = vsub.f32 1.0, %v4790
  %v4792 = vmul.f32 %v4789, %v4791
  %v4793 = vadd.f32 %v4789, %v4792
  %vm4794 = vweird.f32 %v4788
  %vm4795 = vweird.f32 %v4789
  %vm4796 = vmor %vm4794, %vm4795
  %v4797 = vsel %vm4796, %v4789, %v4793
  %v4798 = vand.u32 2147483647, %v4788
  %vm4799 = vcmp.eq.f32.partialorder %v4798, 8.507059e+37
  %v4800 = vand.u32 %v4788, 2147483648
  %v4801 = vor.u32 1.1754944e-38, %v4800
  %v4802 = vsel %vm4799, %v4801, %v4797
  %v4803 = vmul.f32 %v4778, %v4802
  %v4804 = vmin.f32 %v4803, 1.0
  %v4805 = vmax.f32 %v4804, -1.0
  %v4806 = vmul.f32 %v4664, %v4664
  %v4807 = vmin.f32 16.0, %v4806
  %v4808 = vmul.f32 %v4807, 2.1237322e-06
  %v4809 = vadd.f32 %v4808, 0.00028619796
  %v4810 = vmul.f32 %v4807, %v4809
  %v4811 = vadd.f32 %v4810, 0.0036580483
  %v4812 = vmul.f32 %v4807, %v4811
  %v4813 = vadd.f32 %v4812, 0.05243302
  %v4814 = vmul.f32 %v4807, %v4813
  %v4815 = vadd.f32 %v4814, 0.18741608
  %v4816 = vmul.f32 %v4807, %v4815
  %v4817 = vadd.f32 %v4816, 1.1283791
  %v4818 = vmul.f32 %v4664, %v4817
  %v4819 = vmul.f32 %v4807, 3.8918573e-05
  %v4820 = vadd.f32 %v4819, 0.001143296
  %v4821 = vmul.f32 %v4807, %v4820
  %v4822 = vadd.f32 %v4821, 0.014752088
  %v4823 = vmul.f32 %v4807, %v4822
  %v4824 = vadd.f32 %v4823, 0.112945676
  %v4825 = vmul.f32 %v4807, %v4824
  %v4826 = vadd.f32 %v4825, 0.4994258
  %v4827 = vmul.f32 %v4807, %v4826
  %v4828 = vadd.f32 %v4827, 1.0
  %v4829 = vrcp.pop %v4828
  %v4830 = vmul.f32 %v4828, %v4829
  %v4831 = vsub.f32 1.0, %v4830
  %v4832 = vmul.f32 %v4829, %v4831
  %v4833 = vadd.f32 %v4829, %v4832
  %vm4834 = vweird.f32 %v4828
  %vm4835 = vweird.f32 %v4829
  %vm4836 = vmor %vm4834, %vm4835
  %v4837 = vsel %vm4836, %v4829, %v4833
  %v4838 = vand.u32 2147483647, %v4828
  %vm4839 = vcmp.eq.f32.partialorder %v4838, 8.507059e+37
  %v4840 = vand.u32 %v4828, 2147483648
  %v4841 = vor.u32 1.1754944e-38, %v4840
  %v4842 = vsel %vm4839, %v4841, %v4837
  %v4843 = vmul.f32 %v4818, %v4842
  %v4844 = vmin.f32 %v4843, 1.0
  %v4845 = vmax.f32 %v4844, -1.0
  %v4846 = vmul.f32 %v4665, %v4665
  %v4847 = vmin.f32 16.0, %v4846
  %v4848 = vmul.f32 %v4847, 2.1237322e-06
  %v4849 = vadd.f32 %v4848, 0.00028619796
  %v4850 = vmul.f32 %v4847, %v4849
  %v4851 = vadd.f32 %v4850, 0.0036580483
  %v4852 = vmul.f32 %v4847, %v4851
  %v4853 = vadd.f32 %v4852, 0.05243302
  %v4854 = vmul.f32 %v4847, %v4853
  %v4855 = vadd.f32 %v4854, 0.18741608
  %v4856 = vmul.f32 %v4847, %v4855
  %v4857 = vadd.f32 %v4856, 1.1283791
  %v4858 = vmul.f32 %v4665, %v4857
  %v4859 = vmul.f32 %v4847, 3.8918573e-05
  %v4860 = vadd.f32 %v4859, 0.001143296
  %v4861 = vmul.f32 %v4847, %v4860
  %v4862 = vadd.f32 %v4861, 0.014752088
  %v4863 = vmul.f32 %v4847, %v4862
  %v4864 = vadd.f32 %v4863, 0.112945676
  %v4865 = vmul.f32 %v4847, %v4864
  %v4866 = vadd.f32 %v4865, 0.4994258
  %v4867 = vmul.f32 %v4847, %v4866
  %v4868 = vadd.f32 %v4867, 1.0
  %v4869 = vrcp.pop %v4868
  %v4870 = vmul.f32 %v4868, %v4869
  %v4871 = vsub.f32 1.0, %v4870
  %v4872 = vmul.f32 %v4869, %v4871
  %v4873 = vadd.f32 %v4869, %v4872
  %vm4874 = vweird.f32 %v4868
  %vm4875 = vweird.f32 %v4869
  %vm4876 = vmor %vm4874, %vm4875
  %v4877 = vsel %vm4876, %v4869, %v4873
  %v4878 = vand.u32 2147483647, %v4868
  %vm4879 = vcmp.eq.f32.partialorder %v4878, 8.507059e+37
  %v4880 = vand.u32 %v4868, 2147483648
  %v4881 = vor.u32 1.1754944e-38, %v4880
  %v4882 = vsel %vm4879, %v4881, %v4877
  %v4883 = vmul.f32 %v4858, %v4882
  %v4884 = vmin.f32 %v4883, 1.0
  %v4885 = vmax.f32 %v4884, -1.0
  %v4886 = vmul.f32 %v4666, %v4666
  %v4887 = vmin.f32 16.0, %v4886
  %v4888 = vmul.f32 %v4887, 2.1237322e-06
  %v4889 = vadd.f32 %v4888, 0.00028619796
  %v4890 = vmul.f32 %v4887, %v4889
  %v4891 = vadd.f32 %v4890, 0.0036580483
  %v4892 = vmul.f32 %v4887, %v4891
  %v4893 = vadd.f32 %v4892, 0.05243302
  %v4894 = vmul.f32 %v4887, %v4893
  %v4895 = vadd.f32 %v4894, 0.18741608
  %v4896 = vmul.f32 %v4887, %v4895
  %v4897 = vadd.f32 %v4896, 1.1283791
  %v4898 = vmul.f32 %v4666, %v4897
  %v4899 = vmul.f32 %v4887, 3.8918573e-05
  %v4900 = vadd.f32 %v4899, 0.001143296
  %v4901 = vmul.f32 %v4887, %v4900
  %v4902 = vadd.f32 %v4901, 0.014752088
  %v4903 = vmul.f32 %v4887, %v4902
  %v4904 = vadd.f32 %v4903, 0.112945676
  %v4905 = vmul.f32 %v4887, %v4904
  %v4906 = vadd.f32 %v4905, 0.4994258
  %v4907 = vmul.f32 %v4887, %v4906
  %v4908 = vadd.f32 %v4907, 1.0
  %v4909 = vrcp.pop %v4908
  %v4910 = vmul.f32 %v4908, %v4909
  %v4911 = vsub.f32 1.0, %v4910
  %v4912 = vmul.f32 %v4909, %v4911
  %v4913 = vadd.f32 %v4909, %v4912
  %vm4914 = vweird.f32 %v4908
  %vm4915 = vweird.f32 %v4909
  %vm4916 = vmor %vm4914, %vm4915
  %v4917 = vsel %vm4916, %v4909, %v4913
  %v4918 = vand.u32 2147483647, %v4908
  %vm4919 = vcmp.eq.f32.partialorder %v4918, 8.507059e+37
  %v4920 = vand.u32 %v4908, 2147483648
  %v4921 = vor.u32 1.1754944e-38, %v4920
  %v4922 = vsel %vm4919, %v4921, %v4917
  %v4923 = vmul.f32 %v4898, %v4922
  %v4924 = vmin.f32 %v4923, 1.0
  %v4925 = vmax.f32 %v4924, -1.0
  %v4926 = vmul.f32 %v4667, %v4667
  %v4927 = vmin.f32 16.0, %v4926
  %v4928 = vmul.f32 %v4927, 2.1237322e-06
  %v4929 = vadd.f32 %v4928, 0.00028619796
  %v4930 = vmul.f32 %v4927, %v4929
  %v4931 = vadd.f32 %v4930, 0.0036580483
  %v4932 = vmul.f32 %v4927, %v4931
  %v4933 = vadd.f32 %v4932, 0.05243302
  %v4934 = vmul.f32 %v4927, %v4933
  %v4935 = vadd.f32 %v4934, 0.18741608
  %v4936 = vmul.f32 %v4927, %v4935
  %v4937 = vadd.f32 %v4936, 1.1283791
  %v4938 = vmul.f32 %v4667, %v4937
  %v4939 = vmul.f32 %v4927, 3.8918573e-05
  %v4940 = vadd.f32 %v4939, 0.001143296
  %v4941 = vmul.f32 %v4927, %v4940
  %v4942 = vadd.f32 %v4941, 0.014752088
  %v4943 = vmul.f32 %v4927, %v4942
  %v4944 = vadd.f32 %v4943, 0.112945676
  %v4945 = vmul.f32 %v4927, %v4944
  %v4946 = vadd.f32 %v4945, 0.4994258
  %v4947 = vmul.f32 %v4927, %v4946
  %v4948 = vadd.f32 %v4947, 1.0
  %v4949 = vrcp.pop %v4948
  %v4950 = vmul.f32 %v4948, %v4949
  %v4951 = vsub.f32 1.0, %v4950
  %v4952 = vmul.f32 %v4949, %v4951
  %v4953 = vadd.f32 %v4949, %v4952
  %vm4954 = vweird.f32 %v4948
  %vm4955 = vweird.f32 %v4949
  %vm4956 = vmor %vm4954, %vm4955
  %v4957 = vsel %vm4956, %v4949, %v4953
  %v4958 = vand.u32 2147483647, %v4948
  %vm4959 = vcmp.eq.f32.partialorder %v4958, 8.507059e+37
  %v4960 = vand.u32 %v4948, 2147483648
  %v4961 = vor.u32 1.1754944e-38, %v4960
  %v4962 = vsel %vm4959, %v4961, %v4957
  %v4963 = vmul.f32 %v4938, %v4962
  %v4964 = vmin.f32 %v4963, 1.0
  %v4965 = vmax.f32 %v4964, -1.0
  %v4966 = vmul.f32 %v4668, %v4668
  %v4967 = vmin.f32 16.0, %v4966
  %v4968 = vmul.f32 %v4967, 2.1237322e-06
  %v4969 = vadd.f32 %v4968, 0.00028619796
  %v4970 = vmul.f32 %v4967, %v4969
  %v4971 = vadd.f32 %v4970, 0.0036580483
  %v4972 = vmul.f32 %v4967, %v4971
  %v4973 = vadd.f32 %v4972, 0.05243302
  %v4974 = vmul.f32 %v4967, %v4973
  %v4975 = vadd.f32 %v4974, 0.18741608
  %v4976 = vmul.f32 %v4967, %v4975
  %v4977 = vadd.f32 %v4976, 1.1283791
  %v4978 = vmul.f32 %v4668, %v4977
  %v4979 = vmul.f32 %v4967, 3.8918573e-05
  %v4980 = vadd.f32 %v4979, 0.001143296
  %v4981 = vmul.f32 %v4967, %v4980
  %v4982 = vadd.f32 %v4981, 0.014752088
  %v4983 = vmul.f32 %v4967, %v4982
  %v4984 = vadd.f32 %v4983, 0.112945676
  %v4985 = vmul.f32 %v4967, %v4984
  %v4986 = vadd.f32 %v4985, 0.4994258
  %v4987 = vmul.f32 %v4967, %v4986
  %v4988 = vadd.f32 %v4987, 1.0
  %v4989 = vrcp.pop %v4988
  %v4990 = vmul.f32 %v4988, %v4989
  %v4991 = vsub.f32 1.0, %v4990
  %v4992 = vmul.f32 %v4989, %v4991
  %v4993 = vadd.f32 %v4989, %v4992
  %vm4994 = vweird.f32 %v4988
  %vm4995 = vweird.f32 %v4989
  %vm4996 = vmor %vm4994, %vm4995
  %v4997 = vsel %vm4996, %v4989, %v4993
  %v4998 = vand.u32 2147483647, %v4988
  %vm4999 = vcmp.eq.f32.partialorder %v4998, 8.507059e+37
  %v5000 = vand.u32 %v4988, 2147483648
  %v5001 = vor.u32 1.1754944e-38, %v5000
  %v5002 = vsel %vm4999, %v5001, %v4997
  %v5003 = vmul.f32 %v4978, %v5002
  %v5004 = vmin.f32 %v5003, 1.0
  %v5005 = vmax.f32 %v5004, -1.0
  %v5006 = vmul.f32 %v4669, %v4669
  %v5007 = vmin.f32 16.0, %v5006
  %v5008 = vmul.f32 %v5007, 2.1237322e-06
  %v5009 = vadd.f32 %v5008, 0.00028619796
  %v5010 = vmul.f32 %v5007, %v5009
  %v5011 = vadd.f32 %v5010, 0.0036580483
  %v5012 = vmul.f32 %v5007, %v5011
  %v5013 = vadd.f32 %v5012, 0.05243302
  %v5014 = vmul.f32 %v5007, %v5013
  %v5015 = vadd.f32 %v5014, 0.18741608
  %v5016 = vmul.f32 %v5007, %v5015
  %v5017 = vadd.f32 %v5016, 1.1283791
  %v5018 = vmul.f32 %v4669, %v5017
  %v5019 = vmul.f32 %v5007, 3.8918573e-05
  %v5020 = vadd.f32 %v5019, 0.001143296
  %v5021 = vmul.f32 %v5007, %v5020
  %v5022 = vadd.f32 %v5021, 0.014752088
  %v5023 = vmul.f32 %v5007, %v5022
  %v5024 = vadd.f32 %v5023, 0.112945676
  %v5025 = vmul.f32 %v5007, %v5024
  %v5026 = vadd.f32 %v5025, 0.4994258
  %v5027 = vmul.f32 %v5007, %v5026
  %v5028 = vadd.f32 %v5027, 1.0
  %v5029 = vrcp.pop %v5028
  %v5030 = vmul.f32 %v5028, %v5029
  %v5031 = vsub.f32 1.0, %v5030
  %v5032 = vmul.f32 %v5029, %v5031
  %v5033 = vadd.f32 %v5029, %v5032
  %vm5034 = vweird.f32 %v5028
  %vm5035 = vweird.f32 %v5029
  %vm5036 = vmor %vm5034, %vm5035
  %v5037 = vsel %vm5036, %v5029, %v5033
  %v5038 = vand.u32 2147483647, %v5028
  %vm5039 = vcmp.eq.f32.partialorder %v5038, 8.507059e+37
  %v5040 = vand.u32 %v5028, 2147483648
  %v5041 = vor.u32 1.1754944e-38, %v5040
  %v5042 = vsel %vm5039, %v5041, %v5037
  %v5043 = vmul.f32 %v5018, %v5042
  %v5044 = vmin.f32 %v5043, 1.0
  %v5045 = vmax.f32 %v5044, -1.0
  %v5046 = vmul.f32 %v4670, %v4670
  %v5047 = vmin.f32 16.0, %v5046
  %v5048 = vmul.f32 %v5047, 2.1237322e-06
  %v5049 = vadd.f32 %v5048, 0.00028619796
  %v5050 = vmul.f32 %v5047, %v5049
  %v5051 = vadd.f32 %v5050, 0.0036580483
  %v5052 = vmul.f32 %v5047, %v5051
  %v5053 = vadd.f32 %v5052, 0.05243302
  %v5054 = vmul.f32 %v5047, %v5053
  %v5055 = vadd.f32 %v5054, 0.18741608
  %v5056 = vmul.f32 %v5047, %v5055
  %v5057 = vadd.f32 %v5056, 1.1283791
  %v5058 = vmul.f32 %v4670, %v5057
  %v5059 = vmul.f32 %v5047, 3.8918573e-05
  %v5060 = vadd.f32 %v5059, 0.001143296
  %v5061 = vmul.f32 %v5047, %v5060
  %v5062 = vadd.f32 %v5061, 0.014752088
  %v5063 = vmul.f32 %v5047, %v5062
  %v5064 = vadd.f32 %v5063, 0.112945676
  %v5065 = vmul.f32 %v5047, %v5064
  %v5066 = vadd.f32 %v5065, 0.4994258
  %v5067 = vmul.f32 %v5047, %v5066
  %v5068 = vadd.f32 %v5067, 1.0
  %v5069 = vrcp.pop %v5068
  %v5070 = vmul.f32 %v5068, %v5069
  %v5071 = vsub.f32 1.0, %v5070
  %v5072 = vmul.f32 %v5069, %v5071
  %v5073 = vadd.f32 %v5069, %v5072
  %vm5074 = vweird.f32 %v5068
  %vm5075 = vweird.f32 %v5069
  %vm5076 = vmor %vm5074, %vm5075
  %v5077 = vsel %vm5076, %v5069, %v5073
  %v5078 = vand.u32 2147483647, %v5068
  %vm5079 = vcmp.eq.f32.partialorder %v5078, 8.507059e+37
  %v5080 = vand.u32 %v5068, 2147483648
  %v5081 = vor.u32 1.1754944e-38, %v5080
  %v5082 = vsel %vm5079, %v5081, %v5077
  %v5083 = vmul.f32 %v5058, %v5082
  %v5084 = vmin.f32 %v5083, 1.0
  %v5085 = vmax.f32 %v5084, -1.0
  %v5086 = vmul.f32 %v4671, %v4671
  %v5087 = vmin.f32 16.0, %v5086
  %v5088 = vmul.f32 %v5087, 2.1237322e-06
  %v5089 = vadd.f32 %v5088, 0.00028619796
  %v5090 = vmul.f32 %v5087, %v5089
  %v5091 = vadd.f32 %v5090, 0.0036580483
  %v5092 = vmul.f32 %v5087, %v5091
  %v5093 = vadd.f32 %v5092, 0.05243302
  %v5094 = vmul.f32 %v5087, %v5093
  %v5095 = vadd.f32 %v5094, 0.18741608
  %v5096 = vmul.f32 %v5087, %v5095
  %v5097 = vadd.f32 %v5096, 1.1283791
  %v5098 = vmul.f32 %v4671, %v5097
  %v5099 = vmul.f32 %v5087, 3.8918573e-05
  %v5100 = vadd.f32 %v5099, 0.001143296
  %v5101 = vmul.f32 %v5087, %v5100
  %v5102 = vadd.f32 %v5101, 0.014752088
  %v5103 = vmul.f32 %v5087, %v5102
  %v5104 = vadd.f32 %v5103, 0.112945676
  %v5105 = vmul.f32 %v5087, %v5104
  %v5106 = vadd.f32 %v5105, 0.4994258
  %v5107 = vmul.f32 %v5087, %v5106
  %v5108 = vadd.f32 %v5107, 1.0
  %v5109 = vrcp.pop %v5108
  %v5110 = vmul.f32 %v5108, %v5109
  %v5111 = vsub.f32 1.0, %v5110
  %v5112 = vmul.f32 %v5109, %v5111
  %v5113 = vadd.f32 %v5109, %v5112
  %vm5114 = vweird.f32 %v5108
  %vm5115 = vweird.f32 %v5109
  %vm5116 = vmor %vm5114, %vm5115
  %v5117 = vsel %vm5116, %v5109, %v5113
  %v5118 = vand.u32 2147483647, %v5108
  %vm5119 = vcmp.eq.f32.partialorder %v5118, 8.507059e+37
  %v5120 = vand.u32 %v5108, 2147483648
  %v5121 = vor.u32 1.1754944e-38, %v5120
  %v5122 = vsel %vm5119, %v5121, %v5117
  %v5123 = vmul.f32 %v5098, %v5122
  %v5124 = vmin.f32 %v5123, 1.0
  %v5125 = vmax.f32 %v5124, -1.0
  %v5126 = vmul.f32 %v4672, %v4672
  %v5127 = vmin.f32 16.0, %v5126
  %v5128 = vmul.f32 %v5127, 2.1237322e-06
  %v5129 = vadd.f32 %v5128, 0.00028619796
  %v5130 = vmul.f32 %v5127, %v5129
  %v5131 = vadd.f32 %v5130, 0.0036580483
  %v5132 = vmul.f32 %v5127, %v5131
  %v5133 = vadd.f32 %v5132, 0.05243302
  %v5134 = vmul.f32 %v5127, %v5133
  %v5135 = vadd.f32 %v5134, 0.18741608
  %v5136 = vmul.f32 %v5127, %v5135
  %v5137 = vadd.f32 %v5136, 1.1283791
  %v5138 = vmul.f32 %v4672, %v5137
  %v5139 = vmul.f32 %v5127, 3.8918573e-05
  %v5140 = vadd.f32 %v5139, 0.001143296
  %v5141 = vmul.f32 %v5127, %v5140
  %v5142 = vadd.f32 %v5141, 0.014752088
  %v5143 = vmul.f32 %v5127, %v5142
  %v5144 = vadd.f32 %v5143, 0.112945676
  %v5145 = vmul.f32 %v5127, %v5144
  %v5146 = vadd.f32 %v5145, 0.4994258
  %v5147 = vmul.f32 %v5127, %v5146
  %v5148 = vadd.f32 %v5147, 1.0
  %v5149 = vrcp.pop %v5148
  %v5150 = vmul.f32 %v5148, %v5149
  %v5151 = vsub.f32 1.0, %v5150
  %v5152 = vmul.f32 %v5149, %v5151
  %v5153 = vadd.f32 %v5149, %v5152
  %vm5154 = vweird.f32 %v5148
  %vm5155 = vweird.f32 %v5149
  %vm5156 = vmor %vm5154, %vm5155
  %v5157 = vsel %vm5156, %v5149, %v5153
  %v5158 = vand.u32 2147483647, %v5148
  %vm5159 = vcmp.eq.f32.partialorder %v5158, 8.507059e+37
  %v5160 = vand.u32 %v5148, 2147483648
  %v5161 = vor.u32 1.1754944e-38, %v5160
  %v5162 = vsel %vm5159, %v5161, %v5157
  %v5163 = vmul.f32 %v5138, %v5162
  %v5164 = vmin.f32 %v5163, 1.0
  %v5165 = vmax.f32 %v5164, -1.0
  %v5166 = vmul.f32 %v4673, %v4673
  %v5167 = vmin.f32 16.0, %v5166
  %v5168 = vmul.f32 %v5167, 2.1237322e-06
  %v5169 = vadd.f32 %v5168, 0.00028619796
  %v5170 = vmul.f32 %v5167, %v5169
  %v5171 = vadd.f32 %v5170, 0.0036580483
  %v5172 = vmul.f32 %v5167, %v5171
  %v5173 = vadd.f32 %v5172, 0.05243302
  %v5174 = vmul.f32 %v5167, %v5173
  %v5175 = vadd.f32 %v5174, 0.18741608
  %v5176 = vmul.f32 %v5167, %v5175
  %v5177 = vadd.f32 %v5176, 1.1283791
  %v5178 = vmul.f32 %v4673, %v5177
  %v5179 = vmul.f32 %v5167, 3.8918573e-05
  %v5180 = vadd.f32 %v5179, 0.001143296
  %v5181 = vmul.f32 %v5167, %v5180
  %v5182 = vadd.f32 %v5181, 0.014752088
  %v5183 = vmul.f32 %v5167, %v5182
  %v5184 = vadd.f32 %v5183, 0.112945676
  %v5185 = vmul.f32 %v5167, %v5184
  %v5186 = vadd.f32 %v5185, 0.4994258
  %v5187 = vmul.f32 %v5167, %v5186
  %v5188 = vadd.f32 %v5187, 1.0
  %v5189 = vrcp.pop %v5188
  %v5190 = vmul.f32 %v5188, %v5189
  %v5191 = vsub.f32 1.0, %v5190
  %v5192 = vmul.f32 %v5189, %v5191
  %v5193 = vadd.f32 %v5189, %v5192
  %vm5194 = vweird.f32 %v5188
  %vm5195 = vweird.f32 %v5189
  %vm5196 = vmor %vm5194, %vm5195
  %v5197 = vsel %vm5196, %v5189, %v5193
  %v5198 = vand.u32 2147483647, %v5188
  %vm5199 = vcmp.eq.f32.partialorder %v5198, 8.507059e+37
  %v5200 = vand.u32 %v5188, 2147483648
  %v5201 = vor.u32 1.1754944e-38, %v5200
  %v5202 = vsel %vm5199, %v5201, %v5197
  %v5203 = vmul.f32 %v5178, %v5202
  %v5204 = vmin.f32 %v5203, 1.0
  %v5205 = vmax.f32 %v5204, -1.0
  %v5206 = vmul.f32 %v4674, %v4674
  %v5207 = vmin.f32 16.0, %v5206
  %v5208 = vmul.f32 %v5207, 2.1237322e-06
  %v5209 = vadd.f32 %v5208, 0.00028619796
  %v5210 = vmul.f32 %v5207, %v5209
  %v5211 = vadd.f32 %v5210, 0.0036580483
  %v5212 = vmul.f32 %v5207, %v5211
  %v5213 = vadd.f32 %v5212, 0.05243302
  %v5214 = vmul.f32 %v5207, %v5213
  %v5215 = vadd.f32 %v5214, 0.18741608
  %v5216 = vmul.f32 %v5207, %v5215
  %v5217 = vadd.f32 %v5216, 1.1283791
  %v5218 = vmul.f32 %v4674, %v5217
  %v5219 = vmul.f32 %v5207, 3.8918573e-05
  %v5220 = vadd.f32 %v5219, 0.001143296
  %v5221 = vmul.f32 %v5207, %v5220
  %v5222 = vadd.f32 %v5221, 0.014752088
  %v5223 = vmul.f32 %v5207, %v5222
  %v5224 = vadd.f32 %v5223, 0.112945676
  %v5225 = vmul.f32 %v5207, %v5224
  %v5226 = vadd.f32 %v5225, 0.4994258
  %v5227 = vmul.f32 %v5207, %v5226
  %v5228 = vadd.f32 %v5227, 1.0
  %v5229 = vrcp.pop %v5228
  %v5230 = vmul.f32 %v5228, %v5229
  %v5231 = vsub.f32 1.0, %v5230
  %v5232 = vmul.f32 %v5229, %v5231
  %v5233 = vadd.f32 %v5229, %v5232
  %vm5234 = vweird.f32 %v5228
  %vm5235 = vweird.f32 %v5229
  %vm5236 = vmor %vm5234, %vm5235
  %v5237 = vsel %vm5236, %v5229, %v5233
  %v5238 = vand.u32 2147483647, %v5228
  %vm5239 = vcmp.eq.f32.partialorder %v5238, 8.507059e+37
  %v5240 = vand.u32 %v5228, 2147483648
  %v5241 = vor.u32 1.1754944e-38, %v5240
  %v5242 = vsel %vm5239, %v5241, %v5237
  %v5243 = vmul.f32 %v5218, %v5242
  %v5244 = vmin.f32 %v5243, 1.0
  %v5245 = vmax.f32 %v5244, -1.0
  %v5246 = vmul.f32 %v4675, %v4675
  %v5247 = vmin.f32 16.0, %v5246
  %v5248 = vmul.f32 %v5247, 2.1237322e-06
  %v5249 = vadd.f32 %v5248, 0.00028619796
  %v5250 = vmul.f32 %v5247, %v5249
  %v5251 = vadd.f32 %v5250, 0.0036580483
  %v5252 = vmul.f32 %v5247, %v5251
  %v5253 = vadd.f32 %v5252, 0.05243302
  %v5254 = vmul.f32 %v5247, %v5253
  %v5255 = vadd.f32 %v5254, 0.18741608
  %v5256 = vmul.f32 %v5247, %v5255
  %v5257 = vadd.f32 %v5256, 1.1283791
  %v5258 = vmul.f32 %v4675, %v5257
  %v5259 = vmul.f32 %v5247, 3.8918573e-05
  %v5260 = vadd.f32 %v5259, 0.001143296
  %v5261 = vmul.f32 %v5247, %v5260
  %v5262 = vadd.f32 %v5261, 0.014752088
  %v5263 = vmul.f32 %v5247, %v5262
  %v5264 = vadd.f32 %v5263, 0.112945676
  %v5265 = vmul.f32 %v5247, %v5264
  %v5266 = vadd.f32 %v5265, 0.4994258
  %v5267 = vmul.f32 %v5247, %v5266
  %v5268 = vadd.f32 %v5267, 1.0
  %v5269 = vrcp.pop %v5268
  %v5270 = vmul.f32 %v5268, %v5269
  %v5271 = vsub.f32 1.0, %v5270
  %v5272 = vmul.f32 %v5269, %v5271
  %v5273 = vadd.f32 %v5269, %v5272
  %vm5274 = vweird.f32 %v5268
  %vm5275 = vweird.f32 %v5269
  %vm5276 = vmor %vm5274, %vm5275
  %v5277 = vsel %vm5276, %v5269, %v5273
  %v5278 = vand.u32 2147483647, %v5268
  %vm5279 = vcmp.eq.f32.partialorder %v5278, 8.507059e+37
  %v5280 = vand.u32 %v5268, 2147483648
  %v5281 = vor.u32 1.1754944e-38, %v5280
  %v5282 = vsel %vm5279, %v5281, %v5277
  %v5283 = vmul.f32 %v5258, %v5282
  %v5284 = vmin.f32 %v5283, 1.0
  %v5285 = vmax.f32 %v5284, -1.0
  %v5286 = vmul.f32 %v4676, %v4676
  %v5287 = vmin.f32 16.0, %v5286
  %v5288 = vmul.f32 %v5287, 2.1237322e-06
  %v5289 = vadd.f32 %v5288, 0.00028619796
  %v5290 = vmul.f32 %v5287, %v5289
  %v5291 = vadd.f32 %v5290, 0.0036580483
  %v5292 = vmul.f32 %v5287, %v5291
  %v5293 = vadd.f32 %v5292, 0.05243302
  %v5294 = vmul.f32 %v5287, %v5293
  %v5295 = vadd.f32 %v5294, 0.18741608
  %v5296 = vmul.f32 %v5287, %v5295
  %v5297 = vadd.f32 %v5296, 1.1283791
  %v5298 = vmul.f32 %v4676, %v5297
  %v5299 = vmul.f32 %v5287, 3.8918573e-05
  %v5300 = vadd.f32 %v5299, 0.001143296
  %v5301 = vmul.f32 %v5287, %v5300
  %v5302 = vadd.f32 %v5301, 0.014752088
  %v5303 = vmul.f32 %v5287, %v5302
  %v5304 = vadd.f32 %v5303, 0.112945676
  %v5305 = vmul.f32 %v5287, %v5304
  %v5306 = vadd.f32 %v5305, 0.4994258
  %v5307 = vmul.f32 %v5287, %v5306
  %v5308 = vadd.f32 %v5307, 1.0
  %v5309 = vrcp.pop %v5308
  %v5310 = vmul.f32 %v5308, %v5309
  %v5311 = vsub.f32 1.0, %v5310
  %v5312 = vmul.f32 %v5309, %v5311
  %v5313 = vadd.f32 %v5309, %v5312
  %vm5314 = vweird.f32 %v5308
  %vm5315 = vweird.f32 %v5309
  %vm5316 = vmor %vm5314, %vm5315
  %v5317 = vsel %vm5316, %v5309, %v5313
  %v5318 = vand.u32 2147483647, %v5308
  %vm5319 = vcmp.eq.f32.partialorder %v5318, 8.507059e+37
  %v5320 = vand.u32 %v5308, 2147483648
  %v5321 = vor.u32 1.1754944e-38, %v5320
  %v5322 = vsel %vm5319, %v5321, %v5317
  %v5323 = vmul.f32 %v5298, %v5322
  %v5324 = vmin.f32 %v5323, 1.0
  %v5325 = vmax.f32 %v5324, -1.0
  %v5326 = vmul.f32 %v4677, %v4677
  %v5327 = vmin.f32 16.0, %v5326
  %v5328 = vmul.f32 %v5327, 2.1237322e-06
  %v5329 = vadd.f32 %v5328, 0.00028619796
  %v5330 = vmul.f32 %v5327, %v5329
  %v5331 = vadd.f32 %v5330, 0.0036580483
  %v5332 = vmul.f32 %v5327, %v5331
  %v5333 = vadd.f32 %v5332, 0.05243302
  %v5334 = vmul.f32 %v5327, %v5333
  %v5335 = vadd.f32 %v5334, 0.18741608
  %v5336 = vmul.f32 %v5327, %v5335
  %v5337 = vadd.f32 %v5336, 1.1283791
  %v5338 = vmul.f32 %v4677, %v5337
  %v5339 = vmul.f32 %v5327, 3.8918573e-05
  %v5340 = vadd.f32 %v5339, 0.001143296
  %v5341 = vmul.f32 %v5327, %v5340
  %v5342 = vadd.f32 %v5341, 0.014752088
  %v5343 = vmul.f32 %v5327, %v5342
  %v5344 = vadd.f32 %v5343, 0.112945676
  %v5345 = vmul.f32 %v5327, %v5344
  %v5346 = vadd.f32 %v5345, 0.4994258
  %v5347 = vmul.f32 %v5327, %v5346
  %v5348 = vadd.f32 %v5347, 1.0
  %v5349 = vrcp.pop %v5348
  %v5350 = vmul.f32 %v5348, %v5349
  %v5351 = vsub.f32 1.0, %v5350
  %v5352 = vmul.f32 %v5349, %v5351
  %v5353 = vadd.f32 %v5349, %v5352
  %vm5354 = vweird.f32 %v5348
  %vm5355 = vweird.f32 %v5349
  %vm5356 = vmor %vm5354, %vm5355
  %v5357 = vsel %vm5356, %v5349, %v5353
  %v5358 = vand.u32 2147483647, %v5348
  %vm5359 = vcmp.eq.f32.partialorder %v5358, 8.507059e+37
  %v5360 = vand.u32 %v5348, 2147483648
  %v5361 = vor.u32 1.1754944e-38, %v5360
  %v5362 = vsel %vm5359, %v5361, %v5357
  %v5363 = vmul.f32 %v5338, %v5362
  %v5364 = vmin.f32 %v5363, 1.0
  %v5365 = vmax.f32 %v5364, -1.0
  %v5366 = vmul.f32 %v4678, %v4678
  %v5367 = vmin.f32 16.0, %v5366
  %v5368 = vmul.f32 %v5367, 2.1237322e-06
  %v5369 = vadd.f32 %v5368, 0.00028619796
  %v5370 = vmul.f32 %v5367, %v5369
  %v5371 = vadd.f32 %v5370, 0.0036580483
  %v5372 = vmul.f32 %v5367, %v5371
  %v5373 = vadd.f32 %v5372, 0.05243302
  %v5374 = vmul.f32 %v5367, %v5373
  %v5375 = vadd.f32 %v5374, 0.18741608
  %v5376 = vmul.f32 %v5367, %v5375
  %v5377 = vadd.f32 %v5376, 1.1283791
  %v5378 = vmul.f32 %v4678, %v5377
  %v5379 = vmul.f32 %v5367, 3.8918573e-05
  %v5380 = vadd.f32 %v5379, 0.001143296
  %v5381 = vmul.f32 %v5367, %v5380
  %v5382 = vadd.f32 %v5381, 0.014752088
  %v5383 = vmul.f32 %v5367, %v5382
  %v5384 = vadd.f32 %v5383, 0.112945676
  %v5385 = vmul.f32 %v5367, %v5384
  %v5386 = vadd.f32 %v5385, 0.4994258
  %v5387 = vmul.f32 %v5367, %v5386
  %v5388 = vadd.f32 %v5387, 1.0
  %v5389 = vrcp.pop %v5388
  %v5390 = vmul.f32 %v5388, %v5389
  %v5391 = vsub.f32 1.0, %v5390
  %v5392 = vmul.f32 %v5389, %v5391
  %v5393 = vadd.f32 %v5389, %v5392
  %vm5394 = vweird.f32 %v5388
  %vm5395 = vweird.f32 %v5389
  %vm5396 = vmor %vm5394, %vm5395
  %v5397 = vsel %vm5396, %v5389, %v5393
  %v5398 = vand.u32 2147483647, %v5388
  %vm5399 = vcmp.eq.f32.partialorder %v5398, 8.507059e+37
  %v5400 = vand.u32 %v5388, 2147483648
  %v5401 = vor.u32 1.1754944e-38, %v5400
  %v5402 = vsel %vm5399, %v5401, %v5397
  %v5403 = vmul.f32 %v5378, %v5402
  %v5404 = vmin.f32 %v5403, 1.0
  %v5405 = vmax.f32 %v5404, -1.0
  %v5406 = vmul.f32 %v4679, %v4679
  %v5407 = vmin.f32 16.0, %v5406
  %v5408 = vmul.f32 %v5407, 2.1237322e-06
  %v5409 = vadd.f32 %v5408, 0.00028619796
  %v5410 = vmul.f32 %v5407, %v5409
  %v5411 = vadd.f32 %v5410, 0.0036580483
  %v5412 = vmul.f32 %v5407, %v5411
  %v5413 = vadd.f32 %v5412, 0.05243302
  %v5414 = vmul.f32 %v5407, %v5413
  %v5415 = vadd.f32 %v5414, 0.18741608
  %v5416 = vmul.f32 %v5407, %v5415
  %v5417 = vadd.f32 %v5416, 1.1283791
  %v5418 = vmul.f32 %v4679, %v5417
  %v5419 = vmul.f32 %v5407, 3.8918573e-05
  %v5420 = vadd.f32 %v5419, 0.001143296
  %v5421 = vmul.f32 %v5407, %v5420
  %v5422 = vadd.f32 %v5421, 0.014752088
  %v5423 = vmul.f32 %v5407, %v5422
  %v5424 = vadd.f32 %v5423, 0.112945676
  %v5425 = vmul.f32 %v5407, %v5424
  %v5426 = vadd.f32 %v5425, 0.4994258
  %v5427 = vmul.f32 %v5407, %v5426
  %v5428 = vadd.f32 %v5427, 1.0
  %v5429 = vrcp.pop %v5428
  %v5430 = vmul.f32 %v5428, %v5429
  %v5431 = vsub.f32 1.0, %v5430
  %v5432 = vmul.f32 %v5429, %v5431
  %v5433 = vadd.f32 %v5429, %v5432
  %vm5434 = vweird.f32 %v5428
  %vm5435 = vweird.f32 %v5429
  %vm5436 = vmor %vm5434, %vm5435
  %v5437 = vsel %vm5436, %v5429, %v5433
  %v5438 = vand.u32 2147483647, %v5428
  %vm5439 = vcmp.eq.f32.partialorder %v5438, 8.507059e+37
  %v5440 = vand.u32 %v5428, 2147483648
  %v5441 = vor.u32 1.1754944e-38, %v5440
  %v5442 = vsel %vm5439, %v5441, %v5437
  %v5443 = vmul.f32 %v5418, %v5442
  %v5444 = vmin.f32 %v5443, 1.0
  %v5445 = vmax.f32 %v5444, -1.0
  %v5446 = vmul.f32 %v4680, %v4680
  %v5447 = vmin.f32 16.0, %v5446
  %v5448 = vmul.f32 %v5447, 2.1237322e-06
  %v5449 = vadd.f32 %v5448, 0.00028619796
  %v5450 = vmul.f32 %v5447, %v5449
  %v5451 = vadd.f32 %v5450, 0.0036580483
  %v5452 = vmul.f32 %v5447, %v5451
  %v5453 = vadd.f32 %v5452, 0.05243302
  %v5454 = vmul.f32 %v5447, %v5453
  %v5455 = vadd.f32 %v5454, 0.18741608
  %v5456 = vmul.f32 %v5447, %v5455
  %v5457 = vadd.f32 %v5456, 1.1283791
  %v5458 = vmul.f32 %v4680, %v5457
  %v5459 = vmul.f32 %v5447, 3.8918573e-05
  %v5460 = vadd.f32 %v5459, 0.001143296
  %v5461 = vmul.f32 %v5447, %v5460
  %v5462 = vadd.f32 %v5461, 0.014752088
  %v5463 = vmul.f32 %v5447, %v5462
  %v5464 = vadd.f32 %v5463, 0.112945676
  %v5465 = vmul.f32 %v5447, %v5464
  %v5466 = vadd.f32 %v5465, 0.4994258
  %v5467 = vmul.f32 %v5447, %v5466
  %v5468 = vadd.f32 %v5467, 1.0
  %v5469 = vrcp.pop %v5468
  %v5470 = vmul.f32 %v5468, %v5469
  %v5471 = vsub.f32 1.0, %v5470
  %v5472 = vmul.f32 %v5469, %v5471
  %v5473 = vadd.f32 %v5469, %v5472
  %vm5474 = vweird.f32 %v5468
  %vm5475 = vweird.f32 %v5469
  %vm5476 = vmor %vm5474, %vm5475
  %v5477 = vsel %vm5476, %v5469, %v5473
  %v5478 = vand.u32 2147483647, %v5468
  %vm5479 = vcmp.eq.f32.partialorder %v5478, 8.507059e+37
  %v5480 = vand.u32 %v5468, 2147483648
  %v5481 = vor.u32 1.1754944e-38, %v5480
  %v5482 = vsel %vm5479, %v5481, %v5477
  %v5483 = vmul.f32 %v5458, %v5482
  %v5484 = vmin.f32 %v5483, 1.0
  %v5485 = vmax.f32 %v5484, -1.0
  %v5486 = vmul.f32 %v4681, %v4681
  %v5487 = vmin.f32 16.0, %v5486
  %v5488 = vmul.f32 %v5487, 2.1237322e-06
  %v5489 = vadd.f32 %v5488, 0.00028619796
  %v5490 = vmul.f32 %v5487, %v5489
  %v5491 = vadd.f32 %v5490, 0.0036580483
  %v5492 = vmul.f32 %v5487, %v5491
  %v5493 = vadd.f32 %v5492, 0.05243302
  %v5494 = vmul.f32 %v5487, %v5493
  %v5495 = vadd.f32 %v5494, 0.18741608
  %v5496 = vmul.f32 %v5487, %v5495
  %v5497 = vadd.f32 %v5496, 1.1283791
  %v5498 = vmul.f32 %v4681, %v5497
  %v5499 = vmul.f32 %v5487, 3.8918573e-05
  %v5500 = vadd.f32 %v5499, 0.001143296
  %v5501 = vmul.f32 %v5487, %v5500
  %v5502 = vadd.f32 %v5501, 0.014752088
  %v5503 = vmul.f32 %v5487, %v5502
  %v5504 = vadd.f32 %v5503, 0.112945676
  %v5505 = vmul.f32 %v5487, %v5504
  %v5506 = vadd.f32 %v5505, 0.4994258
  %v5507 = vmul.f32 %v5487, %v5506
  %v5508 = vadd.f32 %v5507, 1.0
  %v5509 = vrcp.pop %v5508
  %v5510 = vmul.f32 %v5508, %v5509
  %v5511 = vsub.f32 1.0, %v5510
  %v5512 = vmul.f32 %v5509, %v5511
  %v5513 = vadd.f32 %v5509, %v5512
  %vm5514 = vweird.f32 %v5508
  %vm5515 = vweird.f32 %v5509
  %vm5516 = vmor %vm5514, %vm5515
  %v5517 = vsel %vm5516, %v5509, %v5513
  %v5518 = vand.u32 2147483647, %v5508
  %vm5519 = vcmp.eq.f32.partialorder %v5518, 8.507059e+37
  %v5520 = vand.u32 %v5508, 2147483648
  %v5521 = vor.u32 1.1754944e-38, %v5520
  %v5522 = vsel %vm5519, %v5521, %v5517
  %v5523 = vmul.f32 %v5498, %v5522
  %v5524 = vmin.f32 %v5523, 1.0
  %v5525 = vmax.f32 %v5524, -1.0
  %v5526 = vmul.f32 %v4682, %v4682
  %v5527 = vmin.f32 16.0, %v5526
  %v5528 = vmul.f32 %v5527, 2.1237322e-06
  %v5529 = vadd.f32 %v5528, 0.00028619796
  %v5530 = vmul.f32 %v5527, %v5529
  %v5531 = vadd.f32 %v5530, 0.0036580483
  %v5532 = vmul.f32 %v5527, %v5531
  %v5533 = vadd.f32 %v5532, 0.05243302
  %v5534 = vmul.f32 %v5527, %v5533
  %v5535 = vadd.f32 %v5534, 0.18741608
  %v5536 = vmul.f32 %v5527, %v5535
  %v5537 = vadd.f32 %v5536, 1.1283791
  %v5538 = vmul.f32 %v4682, %v5537
  %v5539 = vmul.f32 %v5527, 3.8918573e-05
  %v5540 = vadd.f32 %v5539, 0.001143296
  %v5541 = vmul.f32 %v5527, %v5540
  %v5542 = vadd.f32 %v5541, 0.014752088
  %v5543 = vmul.f32 %v5527, %v5542
  %v5544 = vadd.f32 %v5543, 0.112945676
  %v5545 = vmul.f32 %v5527, %v5544
  %v5546 = vadd.f32 %v5545, 0.4994258
  %v5547 = vmul.f32 %v5527, %v5546
  %v5548 = vadd.f32 %v5547, 1.0
  %v5549 = vrcp.pop %v5548
  %v5550 = vmul.f32 %v5548, %v5549
  %v5551 = vsub.f32 1.0, %v5550
  %v5552 = vmul.f32 %v5549, %v5551
  %v5553 = vadd.f32 %v5549, %v5552
  %vm5554 = vweird.f32 %v5548
  %vm5555 = vweird.f32 %v5549
  %vm5556 = vmor %vm5554, %vm5555
  %v5557 = vsel %vm5556, %v5549, %v5553
  %v5558 = vand.u32 2147483647, %v5548
  %vm5559 = vcmp.eq.f32.partialorder %v5558, 8.507059e+37
  %v5560 = vand.u32 %v5548, 2147483648
  %v5561 = vor.u32 1.1754944e-38, %v5560
  %v5562 = vsel %vm5559, %v5561, %v5557
  %v5563 = vmul.f32 %v5538, %v5562
  %v5564 = vmin.f32 %v5563, 1.0
  %v5565 = vmax.f32 %v5564, -1.0
  %v5566 = vmul.f32 %v4683, %v4683
  %v5567 = vmin.f32 16.0, %v5566
  %v5568 = vmul.f32 %v5567, 2.1237322e-06
  %v5569 = vadd.f32 %v5568, 0.00028619796
  %v5570 = vmul.f32 %v5567, %v5569
  %v5571 = vadd.f32 %v5570, 0.0036580483
  %v5572 = vmul.f32 %v5567, %v5571
  %v5573 = vadd.f32 %v5572, 0.05243302
  %v5574 = vmul.f32 %v5567, %v5573
  %v5575 = vadd.f32 %v5574, 0.18741608
  %v5576 = vmul.f32 %v5567, %v5575
  %v5577 = vadd.f32 %v5576, 1.1283791
  %v5578 = vmul.f32 %v4683, %v5577
  %v5579 = vmul.f32 %v5567, 3.8918573e-05
  %v5580 = vadd.f32 %v5579, 0.001143296
  %v5581 = vmul.f32 %v5567, %v5580
  %v5582 = vadd.f32 %v5581, 0.014752088
  %v5583 = vmul.f32 %v5567, %v5582
  %v5584 = vadd.f32 %v5583, 0.112945676
  %v5585 = vmul.f32 %v5567, %v5584
  %v5586 = vadd.f32 %v5585, 0.4994258
  %v5587 = vmul.f32 %v5567, %v5586
  %v5588 = vadd.f32 %v5587, 1.0
  %v5589 = vrcp.pop %v5588
  %v5590 = vmul.f32 %v5588, %v5589
  %v5591 = vsub.f32 1.0, %v5590
  %v5592 = vmul.f32 %v5589, %v5591
  %v5593 = vadd.f32 %v5589, %v5592
  %vm5594 = vweird.f32 %v5588
  %vm5595 = vweird.f32 %v5589
  %vm5596 = vmor %vm5594, %vm5595
  %v5597 = vsel %vm5596, %v5589, %v5593
  %v5598 = vand.u32 2147483647, %v5588
  %vm5599 = vcmp.eq.f32.partialorder %v5598, 8.507059e+37
  %v5600 = vand.u32 %v5588, 2147483648
  %v5601 = vor.u32 1.1754944e-38, %v5600
  %v5602 = vsel %vm5599, %v5601, %v5597
  %v5603 = vmul.f32 %v5578, %v5602
  %v5604 = vmin.f32 %v5603, 1.0
  %v5605 = vmax.f32 %v5604, -1.0
  %v5606 = vmul.f32 %v4684, %v4684
  %v5607 = vmin.f32 16.0, %v5606
  %v5608 = vmul.f32 %v5607, 2.1237322e-06
  %v5609 = vadd.f32 %v5608, 0.00028619796
  %v5610 = vmul.f32 %v5607, %v5609
  %v5611 = vadd.f32 %v5610, 0.0036580483
  %v5612 = vmul.f32 %v5607, %v5611
  %v5613 = vadd.f32 %v5612, 0.05243302
  %v5614 = vmul.f32 %v5607, %v5613
  %v5615 = vadd.f32 %v5614, 0.18741608
  %v5616 = vmul.f32 %v5607, %v5615
  %v5617 = vadd.f32 %v5616, 1.1283791
  %v5618 = vmul.f32 %v4684, %v5617
  %v5619 = vmul.f32 %v5607, 3.8918573e-05
  %v5620 = vadd.f32 %v5619, 0.001143296
  %v5621 = vmul.f32 %v5607, %v5620
  %v5622 = vadd.f32 %v5621, 0.014752088
  %v5623 = vmul.f32 %v5607, %v5622
  %v5624 = vadd.f32 %v5623, 0.112945676
  %v5625 = vmul.f32 %v5607, %v5624
  %v5626 = vadd.f32 %v5625, 0.4994258
  %v5627 = vmul.f32 %v5607, %v5626
  %v5628 = vadd.f32 %v5627, 1.0
  %v5629 = vrcp.pop %v5628
  %v5630 = vmul.f32 %v5628, %v5629
  %v5631 = vsub.f32 1.0, %v5630
  %v5632 = vmul.f32 %v5629, %v5631
  %v5633 = vadd.f32 %v5629, %v5632
  %vm5634 = vweird.f32 %v5628
  %vm5635 = vweird.f32 %v5629
  %vm5636 = vmor %vm5634, %vm5635
  %v5637 = vsel %vm5636, %v5629, %v5633
  %v5638 = vand.u32 2147483647, %v5628
  %vm5639 = vcmp.eq.f32.partialorder %v5638, 8.507059e+37
  %v5640 = vand.u32 %v5628, 2147483648
  %v5641 = vor.u32 1.1754944e-38, %v5640
  %v5642 = vsel %vm5639, %v5641, %v5637
  %v5643 = vmul.f32 %v5618, %v5642
  %v5644 = vmin.f32 %v5643, 1.0
  %v5645 = vmax.f32 %v5644, -1.0
  %v5646 = vmul.f32 %v4685, %v4685
  %v5647 = vmin.f32 16.0, %v5646
  %v5648 = vmul.f32 %v5647, 2.1237322e-06
  %v5649 = vadd.f32 %v5648, 0.00028619796
  %v5650 = vmul.f32 %v5647, %v5649
  %v5651 = vadd.f32 %v5650, 0.0036580483
  %v5652 = vmul.f32 %v5647, %v5651
  %v5653 = vadd.f32 %v5652, 0.05243302
  %v5654 = vmul.f32 %v5647, %v5653
  %v5655 = vadd.f32 %v5654, 0.18741608
  %v5656 = vmul.f32 %v5647, %v5655
  %v5657 = vadd.f32 %v5656, 1.1283791
  %v5658 = vmul.f32 %v4685, %v5657
  %v5659 = vmul.f32 %v5647, 3.8918573e-05
  %v5660 = vadd.f32 %v5659, 0.001143296
  %v5661 = vmul.f32 %v5647, %v5660
  %v5662 = vadd.f32 %v5661, 0.014752088
  %v5663 = vmul.f32 %v5647, %v5662
  %v5664 = vadd.f32 %v5663, 0.112945676
  %v5665 = vmul.f32 %v5647, %v5664
  %v5666 = vadd.f32 %v5665, 0.4994258
  %v5667 = vmul.f32 %v5647, %v5666
  %v5668 = vadd.f32 %v5667, 1.0
  %v5669 = vrcp.pop %v5668
  %v5670 = vmul.f32 %v5668, %v5669
  %v5671 = vsub.f32 1.0, %v5670
  %v5672 = vmul.f32 %v5669, %v5671
  %v5673 = vadd.f32 %v5669, %v5672
  %vm5674 = vweird.f32 %v5668
  %vm5675 = vweird.f32 %v5669
  %vm5676 = vmor %vm5674, %vm5675
  %v5677 = vsel %vm5676, %v5669, %v5673
  %v5678 = vand.u32 2147483647, %v5668
  %vm5679 = vcmp.eq.f32.partialorder %v5678, 8.507059e+37
  %v5680 = vand.u32 %v5668, 2147483648
  %v5681 = vor.u32 1.1754944e-38, %v5680
  %v5682 = vsel %vm5679, %v5681, %v5677
  %v5683 = vmul.f32 %v5658, %v5682
  %v5684 = vmin.f32 %v5683, 1.0
  %v5685 = vmax.f32 %v5684, -1.0
  %v5686 = vmul.f32 %v4686, %v4686
  %v5687 = vmin.f32 16.0, %v5686
  %v5688 = vmul.f32 %v5687, 2.1237322e-06
  %v5689 = vadd.f32 %v5688, 0.00028619796
  %v5690 = vmul.f32 %v5687, %v5689
  %v5691 = vadd.f32 %v5690, 0.0036580483
  %v5692 = vmul.f32 %v5687, %v5691
  %v5693 = vadd.f32 %v5692, 0.05243302
  %v5694 = vmul.f32 %v5687, %v5693
  %v5695 = vadd.f32 %v5694, 0.18741608
  %v5696 = vmul.f32 %v5687, %v5695
  %v5697 = vadd.f32 %v5696, 1.1283791
  %v5698 = vmul.f32 %v4686, %v5697
  %v5699 = vmul.f32 %v5687, 3.8918573e-05
  %v5700 = vadd.f32 %v5699, 0.001143296
  %v5701 = vmul.f32 %v5687, %v5700
  %v5702 = vadd.f32 %v5701, 0.014752088
  %v5703 = vmul.f32 %v5687, %v5702
  %v5704 = vadd.f32 %v5703, 0.112945676
  %v5705 = vmul.f32 %v5687, %v5704
  %v5706 = vadd.f32 %v5705, 0.4994258
  %v5707 = vmul.f32 %v5687, %v5706
  %v5708 = vadd.f32 %v5707, 1.0
  %v5709 = vrcp.pop %v5708
  %v5710 = vmul.f32 %v5708, %v5709
  %v5711 = vsub.f32 1.0, %v5710
  %v5712 = vmul.f32 %v5709, %v5711
  %v5713 = vadd.f32 %v5709, %v5712
  %vm5714 = vweird.f32 %v5708
  %vm5715 = vweird.f32 %v5709
  %vm5716 = vmor %vm5714, %vm5715
  %v5717 = vsel %vm5716, %v5709, %v5713
  %v5718 = vand.u32 2147483647, %v5708
  %vm5719 = vcmp.eq.f32.partialorder %v5718, 8.507059e+37
  %v5720 = vand.u32 %v5708, 2147483648
  %v5721 = vor.u32 1.1754944e-38, %v5720
  %v5722 = vsel %vm5719, %v5721, %v5717
  %v5723 = vmul.f32 %v5698, %v5722
  %v5724 = vmin.f32 %v5723, 1.0
  %v5725 = vmax.f32 %v5724, -1.0
  %v5726 = vmul.f32 %v4687, %v4687
  %v5727 = vmin.f32 16.0, %v5726
  %v5728 = vmul.f32 %v5727, 2.1237322e-06
  %v5729 = vadd.f32 %v5728, 0.00028619796
  %v5730 = vmul.f32 %v5727, %v5729
  %v5731 = vadd.f32 %v5730, 0.0036580483
  %v5732 = vmul.f32 %v5727, %v5731
  %v5733 = vadd.f32 %v5732, 0.05243302
  %v5734 = vmul.f32 %v5727, %v5733
  %v5735 = vadd.f32 %v5734, 0.18741608
  %v5736 = vmul.f32 %v5727, %v5735
  %v5737 = vadd.f32 %v5736, 1.1283791
  %v5738 = vmul.f32 %v4687, %v5737
  %v5739 = vmul.f32 %v5727, 3.8918573e-05
  %v5740 = vadd.f32 %v5739, 0.001143296
  %v5741 = vmul.f32 %v5727, %v5740
  %v5742 = vadd.f32 %v5741, 0.014752088
  %v5743 = vmul.f32 %v5727, %v5742
  %v5744 = vadd.f32 %v5743, 0.112945676
  %v5745 = vmul.f32 %v5727, %v5744
  %v5746 = vadd.f32 %v5745, 0.4994258
  %v5747 = vmul.f32 %v5727, %v5746
  %v5748 = vadd.f32 %v5747, 1.0
  %v5749 = vrcp.pop %v5748
  %v5750 = vmul.f32 %v5748, %v5749
  %v5751 = vsub.f32 1.0, %v5750
  %v5752 = vmul.f32 %v5749, %v5751
  %v5753 = vadd.f32 %v5749, %v5752
  %vm5754 = vweird.f32 %v5748
  %vm5755 = vweird.f32 %v5749
  %vm5756 = vmor %vm5754, %vm5755
  %v5757 = vsel %vm5756, %v5749, %v5753
  %v5758 = vand.u32 2147483647, %v5748
  %vm5759 = vcmp.eq.f32.partialorder %v5758, 8.507059e+37
  %v5760 = vand.u32 %v5748, 2147483648
  %v5761 = vor.u32 1.1754944e-38, %v5760
  %v5762 = vsel %vm5759, %v5761, %v5757
  %v5763 = vmul.f32 %v5738, %v5762
  %v5764 = vmin.f32 %v5763, 1.0
  %v5765 = vmax.f32 %v5764, -1.0
  %v5766 = vmul.f32 %v4688, %v4688
  %v5767 = vmin.f32 16.0, %v5766
  %v5768 = vmul.f32 %v5767, 2.1237322e-06
  %v5769 = vadd.f32 %v5768, 0.00028619796
  %v5770 = vmul.f32 %v5767, %v5769
  %v5771 = vadd.f32 %v5770, 0.0036580483
  %v5772 = vmul.f32 %v5767, %v5771
  %v5773 = vadd.f32 %v5772, 0.05243302
  %v5774 = vmul.f32 %v5767, %v5773
  %v5775 = vadd.f32 %v5774, 0.18741608
  %v5776 = vmul.f32 %v5767, %v5775
  %v5777 = vadd.f32 %v5776, 1.1283791
  %v5778 = vmul.f32 %v4688, %v5777
  %v5779 = vmul.f32 %v5767, 3.8918573e-05
  %v5780 = vadd.f32 %v5779, 0.001143296
  %v5781 = vmul.f32 %v5767, %v5780
  %v5782 = vadd.f32 %v5781, 0.014752088
  %v5783 = vmul.f32 %v5767, %v5782
  %v5784 = vadd.f32 %v5783, 0.112945676
  %v5785 = vmul.f32 %v5767, %v5784
  %v5786 = vadd.f32 %v5785, 0.4994258
  %v5787 = vmul.f32 %v5767, %v5786
  %v5788 = vadd.f32 %v5787, 1.0
  %v5789 = vrcp.pop %v5788
  %v5790 = vmul.f32 %v5788, %v5789
  %v5791 = vsub.f32 1.0, %v5790
  %v5792 = vmul.f32 %v5789, %v5791
  %v5793 = vadd.f32 %v5789, %v5792
  %vm5794 = vweird.f32 %v5788
  %vm5795 = vweird.f32 %v5789
  %vm5796 = vmor %vm5794, %vm5795
  %v5797 = vsel %vm5796, %v5789, %v5793
  %v5798 = vand.u32 2147483647, %v5788
  %vm5799 = vcmp.eq.f32.partialorder %v5798, 8.507059e+37
  %v5800 = vand.u32 %v5788, 2147483648
  %v5801 = vor.u32 1.1754944e-38, %v5800
  %v5802 = vsel %vm5799, %v5801, %v5797
  %v5803 = vmul.f32 %v5778, %v5802
  %v5804 = vmin.f32 %v5803, 1.0
  %v5805 = vmax.f32 %v5804, -1.0
  %v5806 = vmul.f32 %v4689, %v4689
  %v5807 = vmin.f32 16.0, %v5806
  %v5808 = vmul.f32 %v5807, 2.1237322e-06
  %v5809 = vadd.f32 %v5808, 0.00028619796
  %v5810 = vmul.f32 %v5807, %v5809
  %v5811 = vadd.f32 %v5810, 0.0036580483
  %v5812 = vmul.f32 %v5807, %v5811
  %v5813 = vadd.f32 %v5812, 0.05243302
  %v5814 = vmul.f32 %v5807, %v5813
  %v5815 = vadd.f32 %v5814, 0.18741608
  %v5816 = vmul.f32 %v5807, %v5815
  %v5817 = vadd.f32 %v5816, 1.1283791
  %v5818 = vmul.f32 %v4689, %v5817
  %v5819 = vmul.f32 %v5807, 3.8918573e-05
  %v5820 = vadd.f32 %v5819, 0.001143296
  %v5821 = vmul.f32 %v5807, %v5820
  %v5822 = vadd.f32 %v5821, 0.014752088
  %v5823 = vmul.f32 %v5807, %v5822
  %v5824 = vadd.f32 %v5823, 0.112945676
  %v5825 = vmul.f32 %v5807, %v5824
  %v5826 = vadd.f32 %v5825, 0.4994258
  %v5827 = vmul.f32 %v5807, %v5826
  %v5828 = vadd.f32 %v5827, 1.0
  %v5829 = vrcp.pop %v5828
  %v5830 = vmul.f32 %v5828, %v5829
  %v5831 = vsub.f32 1.0, %v5830
  %v5832 = vmul.f32 %v5829, %v5831
  %v5833 = vadd.f32 %v5829, %v5832
  %vm5834 = vweird.f32 %v5828
  %vm5835 = vweird.f32 %v5829
  %vm5836 = vmor %vm5834, %vm5835
  %v5837 = vsel %vm5836, %v5829, %v5833
  %v5838 = vand.u32 2147483647, %v5828
  %vm5839 = vcmp.eq.f32.partialorder %v5838, 8.507059e+37
  %v5840 = vand.u32 %v5828, 2147483648
  %v5841 = vor.u32 1.1754944e-38, %v5840
  %v5842 = vsel %vm5839, %v5841, %v5837
  %v5843 = vmul.f32 %v5818, %v5842
  %v5844 = vmin.f32 %v5843, 1.0
  %v5845 = vmax.f32 %v5844, -1.0
  %v5846 = vmul.f32 %v4690, %v4690
  %v5847 = vmin.f32 16.0, %v5846
  %v5848 = vmul.f32 %v5847, 2.1237322e-06
  %v5849 = vadd.f32 %v5848, 0.00028619796
  %v5850 = vmul.f32 %v5847, %v5849
  %v5851 = vadd.f32 %v5850, 0.0036580483
  %v5852 = vmul.f32 %v5847, %v5851
  %v5853 = vadd.f32 %v5852, 0.05243302
  %v5854 = vmul.f32 %v5847, %v5853
  %v5855 = vadd.f32 %v5854, 0.18741608
  %v5856 = vmul.f32 %v5847, %v5855
  %v5857 = vadd.f32 %v5856, 1.1283791
  %v5858 = vmul.f32 %v4690, %v5857
  %v5859 = vmul.f32 %v5847, 3.8918573e-05
  %v5860 = vadd.f32 %v5859, 0.001143296
  %v5861 = vmul.f32 %v5847, %v5860
  %v5862 = vadd.f32 %v5861, 0.014752088
  %v5863 = vmul.f32 %v5847, %v5862
  %v5864 = vadd.f32 %v5863, 0.112945676
  %v5865 = vmul.f32 %v5847, %v5864
  %v5866 = vadd.f32 %v5865, 0.4994258
  %v5867 = vmul.f32 %v5847, %v5866
  %v5868 = vadd.f32 %v5867, 1.0
  %v5869 = vrcp.pop %v5868
  %v5870 = vmul.f32 %v5868, %v5869
  %v5871 = vsub.f32 1.0, %v5870
  %v5872 = vmul.f32 %v5869, %v5871
  %v5873 = vadd.f32 %v5869, %v5872
  %vm5874 = vweird.f32 %v5868
  %vm5875 = vweird.f32 %v5869
  %vm5876 = vmor %vm5874, %vm5875
  %v5877 = vsel %vm5876, %v5869, %v5873
  %v5878 = vand.u32 2147483647, %v5868
  %vm5879 = vcmp.eq.f32.partialorder %v5878, 8.507059e+37
  %v5880 = vand.u32 %v5868, 2147483648
  %v5881 = vor.u32 1.1754944e-38, %v5880
  %v5882 = vsel %vm5879, %v5881, %v5877
  %v5883 = vmul.f32 %v5858, %v5882
  %v5884 = vmin.f32 %v5883, 1.0
  %v5885 = vmax.f32 %v5884, -1.0
  %v5886 = vmul.f32 %v4691, %v4691
  %v5887 = vmin.f32 16.0, %v5886
  %v5888 = vmul.f32 %v5887, 2.1237322e-06
  %v5889 = vadd.f32 %v5888, 0.00028619796
  %v5890 = vmul.f32 %v5887, %v5889
  %v5891 = vadd.f32 %v5890, 0.0036580483
  %v5892 = vmul.f32 %v5887, %v5891
  %v5893 = vadd.f32 %v5892, 0.05243302
  %v5894 = vmul.f32 %v5887, %v5893
  %v5895 = vadd.f32 %v5894, 0.18741608
  %v5896 = vmul.f32 %v5887, %v5895
  %v5897 = vadd.f32 %v5896, 1.1283791
  %v5898 = vmul.f32 %v4691, %v5897
  %v5899 = vmul.f32 %v5887, 3.8918573e-05
  %v5900 = vadd.f32 %v5899, 0.001143296
  %v5901 = vmul.f32 %v5887, %v5900
  %v5902 = vadd.f32 %v5901, 0.014752088
  %v5903 = vmul.f32 %v5887, %v5902
  %v5904 = vadd.f32 %v5903, 0.112945676
  %v5905 = vmul.f32 %v5887, %v5904
  %v5906 = vadd.f32 %v5905, 0.4994258
  %v5907 = vmul.f32 %v5887, %v5906
  %v5908 = vadd.f32 %v5907, 1.0
  %v5909 = vrcp.pop %v5908
  %v5910 = vmul.f32 %v5908, %v5909
  %v5911 = vsub.f32 1.0, %v5910
  %v5912 = vmul.f32 %v5909, %v5911
  %v5913 = vadd.f32 %v5909, %v5912
  %vm5914 = vweird.f32 %v5908
  %vm5915 = vweird.f32 %v5909
  %vm5916 = vmor %vm5914, %vm5915
  %v5917 = vsel %vm5916, %v5909, %v5913
  %v5918 = vand.u32 2147483647, %v5908
  %vm5919 = vcmp.eq.f32.partialorder %v5918, 8.507059e+37
  %v5920 = vand.u32 %v5908, 2147483648
  %v5921 = vor.u32 1.1754944e-38, %v5920
  %v5922 = vsel %vm5919, %v5921, %v5917
  %v5923 = vmul.f32 %v5898, %v5922
  %v5924 = vmin.f32 %v5923, 1.0
  %v5925 = vmax.f32 %v5924, -1.0
  %v5926 = vmul.f32 %v4692, %v4692
  %v5927 = vmin.f32 16.0, %v5926
  %v5928 = vmul.f32 %v5927, 2.1237322e-06
  %v5929 = vadd.f32 %v5928, 0.00028619796
  %v5930 = vmul.f32 %v5927, %v5929
  %v5931 = vadd.f32 %v5930, 0.0036580483
  %v5932 = vmul.f32 %v5927, %v5931
  %v5933 = vadd.f32 %v5932, 0.05243302
  %v5934 = vmul.f32 %v5927, %v5933
  %v5935 = vadd.f32 %v5934, 0.18741608
  %v5936 = vmul.f32 %v5927, %v5935
  %v5937 = vadd.f32 %v5936, 1.1283791
  %v5938 = vmul.f32 %v4692, %v5937
  %v5939 = vmul.f32 %v5927, 3.8918573e-05
  %v5940 = vadd.f32 %v5939, 0.001143296
  %v5941 = vmul.f32 %v5927, %v5940
  %v5942 = vadd.f32 %v5941, 0.014752088
  %v5943 = vmul.f32 %v5927, %v5942
  %v5944 = vadd.f32 %v5943, 0.112945676
  %v5945 = vmul.f32 %v5927, %v5944
  %v5946 = vadd.f32 %v5945, 0.4994258
  %v5947 = vmul.f32 %v5927, %v5946
  %v5948 = vadd.f32 %v5947, 1.0
  %v5949 = vrcp.pop %v5948
  %v5950 = vmul.f32 %v5948, %v5949
  %v5951 = vsub.f32 1.0, %v5950
  %v5952 = vmul.f32 %v5949, %v5951
  %v5953 = vadd.f32 %v5949, %v5952
  %vm5954 = vweird.f32 %v5948
  %vm5955 = vweird.f32 %v5949
  %vm5956 = vmor %vm5954, %vm5955
  %v5957 = vsel %vm5956, %v5949, %v5953
  %v5958 = vand.u32 2147483647, %v5948
  %vm5959 = vcmp.eq.f32.partialorder %v5958, 8.507059e+37
  %v5960 = vand.u32 %v5948, 2147483648
  %v5961 = vor.u32 1.1754944e-38, %v5960
  %v5962 = vsel %vm5959, %v5961, %v5957
  %v5963 = vmul.f32 %v5938, %v5962
  %v5964 = vmin.f32 %v5963, 1.0
  %v5965 = vmax.f32 %v5964, -1.0
  %v5966 = vmul.f32 %v4693, %v4693
  %v5967 = vmin.f32 16.0, %v5966
  %v5968 = vmul.f32 %v5967, 2.1237322e-06
  %v5969 = vadd.f32 %v5968, 0.00028619796
  %v5970 = vmul.f32 %v5967, %v5969
  %v5971 = vadd.f32 %v5970, 0.0036580483
  %v5972 = vmul.f32 %v5967, %v5971
  %v5973 = vadd.f32 %v5972, 0.05243302
  %v5974 = vmul.f32 %v5967, %v5973
  %v5975 = vadd.f32 %v5974, 0.18741608
  %v5976 = vmul.f32 %v5967, %v5975
  %v5977 = vadd.f32 %v5976, 1.1283791
  %v5978 = vmul.f32 %v4693, %v5977
  %v5979 = vmul.f32 %v5967, 3.8918573e-05
  %v5980 = vadd.f32 %v5979, 0.001143296
  %v5981 = vmul.f32 %v5967, %v5980
  %v5982 = vadd.f32 %v5981, 0.014752088
  %v5983 = vmul.f32 %v5967, %v5982
  %v5984 = vadd.f32 %v5983, 0.112945676
  %v5985 = vmul.f32 %v5967, %v5984
  %v5986 = vadd.f32 %v5985, 0.4994258
  %v5987 = vmul.f32 %v5967, %v5986
  %v5988 = vadd.f32 %v5987, 1.0
  %v5989 = vrcp.pop %v5988
  %v5990 = vmul.f32 %v5988, %v5989
  %v5991 = vsub.f32 1.0, %v5990
  %v5992 = vmul.f32 %v5989, %v5991
  %v5993 = vadd.f32 %v5989, %v5992
  %vm5994 = vweird.f32 %v5988
  %vm5995 = vweird.f32 %v5989
  %vm5996 = vmor %vm5994, %vm5995
  %v5997 = vsel %vm5996, %v5989, %v5993
  %v5998 = vand.u32 2147483647, %v5988
  %vm5999 = vcmp.eq.f32.partialorder %v5998, 8.507059e+37
  %v6000 = vand.u32 %v5988, 2147483648
  %v6001 = vor.u32 1.1754944e-38, %v6000
  %v6002 = vsel %vm5999, %v6001, %v5997
  %v6003 = vmul.f32 %v5978, %v6002
  %v6004 = vmin.f32 %v6003, 1.0
  %v6005 = vmax.f32 %v6004, -1.0
  %v6006 = vmul.f32 %v4694, %v4694
  %v6007 = vmin.f32 16.0, %v6006
  %v6008 = vmul.f32 %v6007, 2.1237322e-06
  %v6009 = vadd.f32 %v6008, 0.00028619796
  %v6010 = vmul.f32 %v6007, %v6009
  %v6011 = vadd.f32 %v6010, 0.0036580483
  %v6012 = vmul.f32 %v6007, %v6011
  %v6013 = vadd.f32 %v6012, 0.05243302
  %v6014 = vmul.f32 %v6007, %v6013
  %v6015 = vadd.f32 %v6014, 0.18741608
  %v6016 = vmul.f32 %v6007, %v6015
  %v6017 = vadd.f32 %v6016, 1.1283791
  %v6018 = vmul.f32 %v4694, %v6017
  %v6019 = vmul.f32 %v6007, 3.8918573e-05
  %v6020 = vadd.f32 %v6019, 0.001143296
  %v6021 = vmul.f32 %v6007, %v6020
  %v6022 = vadd.f32 %v6021, 0.014752088
  %v6023 = vmul.f32 %v6007, %v6022
  %v6024 = vadd.f32 %v6023, 0.112945676
  %v6025 = vmul.f32 %v6007, %v6024
  %v6026 = vadd.f32 %v6025, 0.4994258
  %v6027 = vmul.f32 %v6007, %v6026
  %v6028 = vadd.f32 %v6027, 1.0
  %v6029 = vrcp.pop %v6028
  %v6030 = vmul.f32 %v6028, %v6029
  %v6031 = vsub.f32 1.0, %v6030
  %v6032 = vmul.f32 %v6029, %v6031
  %v6033 = vadd.f32 %v6029, %v6032
  %vm6034 = vweird.f32 %v6028
  %vm6035 = vweird.f32 %v6029
  %vm6036 = vmor %vm6034, %vm6035
  %v6037 = vsel %vm6036, %v6029, %v6033
  %v6038 = vand.u32 2147483647, %v6028
  %vm6039 = vcmp.eq.f32.partialorder %v6038, 8.507059e+37
  %v6040 = vand.u32 %v6028, 2147483648
  %v6041 = vor.u32 1.1754944e-38, %v6040
  %v6042 = vsel %vm6039, %v6041, %v6037
  %v6043 = vmul.f32 %v6018, %v6042
  %v6044 = vmin.f32 %v6043, 1.0
  %v6045 = vmax.f32 %v6044, -1.0
  %v6046 = vmul.f32 %v4695, %v4695
  %v6047 = vmin.f32 16.0, %v6046
  %v6048 = vmul.f32 %v6047, 2.1237322e-06
  %v6049 = vadd.f32 %v6048, 0.00028619796
  %v6050 = vmul.f32 %v6047, %v6049
  %v6051 = vadd.f32 %v6050, 0.0036580483
  %v6052 = vmul.f32 %v6047, %v6051
  %v6053 = vadd.f32 %v6052, 0.05243302
  %v6054 = vmul.f32 %v6047, %v6053
  %v6055 = vadd.f32 %v6054, 0.18741608
  %v6056 = vmul.f32 %v6047, %v6055
  %v6057 = vadd.f32 %v6056, 1.1283791
  %v6058 = vmul.f32 %v4695, %v6057
  %v6059 = vmul.f32 %v6047, 3.8918573e-05
  %v6060 = vadd.f32 %v6059, 0.001143296
  %v6061 = vmul.f32 %v6047, %v6060
  %v6062 = vadd.f32 %v6061, 0.014752088
  %v6063 = vmul.f32 %v6047, %v6062
  %v6064 = vadd.f32 %v6063, 0.112945676
  %v6065 = vmul.f32 %v6047, %v6064
  %v6066 = vadd.f32 %v6065, 0.4994258
  %v6067 = vmul.f32 %v6047, %v6066
  %v6068 = vadd.f32 %v6067, 1.0
  %v6069 = vrcp.pop %v6068
  %v6070 = vmul.f32 %v6068, %v6069
  %v6071 = vsub.f32 1.0, %v6070
  %v6072 = vmul.f32 %v6069, %v6071
  %v6073 = vadd.f32 %v6069, %v6072
  %vm6074 = vweird.f32 %v6068
  %vm6075 = vweird.f32 %v6069
  %vm6076 = vmor %vm6074, %vm6075
  %v6077 = vsel %vm6076, %v6069, %v6073
  %v6078 = vand.u32 2147483647, %v6068
  %vm6079 = vcmp.eq.f32.partialorder %v6078, 8.507059e+37
  %v6080 = vand.u32 %v6068, 2147483648
  %v6081 = vor.u32 1.1754944e-38, %v6080
  %v6082 = vsel %vm6079, %v6081, %v6077
  %v6083 = vmul.f32 %v6058, %v6082
  %v6084 = vmin.f32 %v6083, 1.0
  %v6085 = vmax.f32 %v6084, -1.0
  %v6086 = vmul.f32 %v4696, %v4696
  %v6087 = vmin.f32 16.0, %v6086
  %v6088 = vmul.f32 %v6087, 2.1237322e-06
  %v6089 = vadd.f32 %v6088, 0.00028619796
  %v6090 = vmul.f32 %v6087, %v6089
  %v6091 = vadd.f32 %v6090, 0.0036580483
  %v6092 = vmul.f32 %v6087, %v6091
  %v6093 = vadd.f32 %v6092, 0.05243302
  %v6094 = vmul.f32 %v6087, %v6093
  %v6095 = vadd.f32 %v6094, 0.18741608
  %v6096 = vmul.f32 %v6087, %v6095
  %v6097 = vadd.f32 %v6096, 1.1283791
  %v6098 = vmul.f32 %v4696, %v6097
  %v6099 = vmul.f32 %v6087, 3.8918573e-05
  %v6100 = vadd.f32 %v6099, 0.001143296
  %v6101 = vmul.f32 %v6087, %v6100
  %v6102 = vadd.f32 %v6101, 0.014752088
  %v6103 = vmul.f32 %v6087, %v6102
  %v6104 = vadd.f32 %v6103, 0.112945676
  %v6105 = vmul.f32 %v6087, %v6104
  %v6106 = vadd.f32 %v6105, 0.4994258
  %v6107 = vmul.f32 %v6087, %v6106
  %v6108 = vadd.f32 %v6107, 1.0
  %v6109 = vrcp.pop %v6108
  %v6110 = vmul.f32 %v6108, %v6109
  %v6111 = vsub.f32 1.0, %v6110
  %v6112 = vmul.f32 %v6109, %v6111
  %v6113 = vadd.f32 %v6109, %v6112
  %vm6114 = vweird.f32 %v6108
  %vm6115 = vweird.f32 %v6109
  %vm6116 = vmor %vm6114, %vm6115
  %v6117 = vsel %vm6116, %v6109, %v6113
  %v6118 = vand.u32 2147483647, %v6108
  %vm6119 = vcmp.eq.f32.partialorder %v6118, 8.507059e+37
  %v6120 = vand.u32 %v6108, 2147483648
  %v6121 = vor.u32 1.1754944e-38, %v6120
  %v6122 = vsel %vm6119, %v6121, %v6117
  %v6123 = vmul.f32 %v6098, %v6122
  %v6124 = vmin.f32 %v6123, 1.0
  %v6125 = vmax.f32 %v6124, -1.0
  %v6126 = vmul.f32 %v4697, %v4697
  %v6127 = vmin.f32 16.0, %v6126
  %v6128 = vmul.f32 %v6127, 2.1237322e-06
  %v6129 = vadd.f32 %v6128, 0.00028619796
  %v6130 = vmul.f32 %v6127, %v6129
  %v6131 = vadd.f32 %v6130, 0.0036580483
  %v6132 = vmul.f32 %v6127, %v6131
  %v6133 = vadd.f32 %v6132, 0.05243302
  %v6134 = vmul.f32 %v6127, %v6133
  %v6135 = vadd.f32 %v6134, 0.18741608
  %v6136 = vmul.f32 %v6127, %v6135
  %v6137 = vadd.f32 %v6136, 1.1283791
  %v6138 = vmul.f32 %v4697, %v6137
  %v6139 = vmul.f32 %v6127, 3.8918573e-05
  %v6140 = vadd.f32 %v6139, 0.001143296
  %v6141 = vmul.f32 %v6127, %v6140
  %v6142 = vadd.f32 %v6141, 0.014752088
  %v6143 = vmul.f32 %v6127, %v6142
  %v6144 = vadd.f32 %v6143, 0.112945676
  %v6145 = vmul.f32 %v6127, %v6144
  %v6146 = vadd.f32 %v6145, 0.4994258
  %v6147 = vmul.f32 %v6127, %v6146
  %v6148 = vadd.f32 %v6147, 1.0
  %v6149 = vrcp.pop %v6148
  %v6150 = vmul.f32 %v6148, %v6149
  %v6151 = vsub.f32 1.0, %v6150
  %v6152 = vmul.f32 %v6149, %v6151
  %v6153 = vadd.f32 %v6149, %v6152
  %vm6154 = vweird.f32 %v6148
  %vm6155 = vweird.f32 %v6149
  %vm6156 = vmor %vm6154, %vm6155
  %v6157 = vsel %vm6156, %v6149, %v6153
  %v6158 = vand.u32 2147483647, %v6148
  %vm6159 = vcmp.eq.f32.partialorder %v6158, 8.507059e+37
  %v6160 = vand.u32 %v6148, 2147483648
  %v6161 = vor.u32 1.1754944e-38, %v6160
  %v6162 = vsel %vm6159, %v6161, %v6157
  %v6163 = vmul.f32 %v6138, %v6162
  %v6164 = vmin.f32 %v6163, 1.0
  %v6165 = vmax.f32 %v6164, -1.0
  %v6166 = vmul.f32 %v4698, %v4698
  %v6167 = vmin.f32 16.0, %v6166
  %v6168 = vmul.f32 %v6167, 2.1237322e-06
  %v6169 = vadd.f32 %v6168, 0.00028619796
  %v6170 = vmul.f32 %v6167, %v6169
  %v6171 = vadd.f32 %v6170, 0.0036580483
  %v6172 = vmul.f32 %v6167, %v6171
  %v6173 = vadd.f32 %v6172, 0.05243302
  %v6174 = vmul.f32 %v6167, %v6173
  %v6175 = vadd.f32 %v6174, 0.18741608
  %v6176 = vmul.f32 %v6167, %v6175
  %v6177 = vadd.f32 %v6176, 1.1283791
  %v6178 = vmul.f32 %v4698, %v6177
  %v6179 = vmul.f32 %v6167, 3.8918573e-05
  %v6180 = vadd.f32 %v6179, 0.001143296
  %v6181 = vmul.f32 %v6167, %v6180
  %v6182 = vadd.f32 %v6181, 0.014752088
  %v6183 = vmul.f32 %v6167, %v6182
  %v6184 = vadd.f32 %v6183, 0.112945676
  %v6185 = vmul.f32 %v6167, %v6184
  %v6186 = vadd.f32 %v6185, 0.4994258
  %v6187 = vmul.f32 %v6167, %v6186
  %v6188 = vadd.f32 %v6187, 1.0
  %v6189 = vrcp.pop %v6188
  %v6190 = vmul.f32 %v6188, %v6189
  %v6191 = vsub.f32 1.0, %v6190
  %v6192 = vmul.f32 %v6189, %v6191
  %v6193 = vadd.f32 %v6189, %v6192
  %vm6194 = vweird.f32 %v6188
  %vm6195 = vweird.f32 %v6189
  %vm6196 = vmor %vm6194, %vm6195
  %v6197 = vsel %vm6196, %v6189, %v6193
  %v6198 = vand.u32 2147483647, %v6188
  %vm6199 = vcmp.eq.f32.partialorder %v6198, 8.507059e+37
  %v6200 = vand.u32 %v6188, 2147483648
  %v6201 = vor.u32 1.1754944e-38, %v6200
  %v6202 = vsel %vm6199, %v6201, %v6197
  %v6203 = vmul.f32 %v6178, %v6202
  %v6204 = vmin.f32 %v6203, 1.0
  %v6205 = vmax.f32 %v6204, -1.0
  %v6206 = vmul.f32 %v4699, %v4699
  %v6207 = vmin.f32 16.0, %v6206
  %v6208 = vmul.f32 %v6207, 2.1237322e-06
  %v6209 = vadd.f32 %v6208, 0.00028619796
  %v6210 = vmul.f32 %v6207, %v6209
  %v6211 = vadd.f32 %v6210, 0.0036580483
  %v6212 = vmul.f32 %v6207, %v6211
  %v6213 = vadd.f32 %v6212, 0.05243302
  %v6214 = vmul.f32 %v6207, %v6213
  %v6215 = vadd.f32 %v6214, 0.18741608
  %v6216 = vmul.f32 %v6207, %v6215
  %v6217 = vadd.f32 %v6216, 1.1283791
  %v6218 = vmul.f32 %v4699, %v6217
  %v6219 = vmul.f32 %v6207, 3.8918573e-05
  %v6220 = vadd.f32 %v6219, 0.001143296
  %v6221 = vmul.f32 %v6207, %v6220
  %v6222 = vadd.f32 %v6221, 0.014752088
  %v6223 = vmul.f32 %v6207, %v6222
  %v6224 = vadd.f32 %v6223, 0.112945676
  %v6225 = vmul.f32 %v6207, %v6224
  %v6226 = vadd.f32 %v6225, 0.4994258
  %v6227 = vmul.f32 %v6207, %v6226
  %v6228 = vadd.f32 %v6227, 1.0
  %v6229 = vrcp.pop %v6228
  %v6230 = vmul.f32 %v6228, %v6229
  %v6231 = vsub.f32 1.0, %v6230
  %v6232 = vmul.f32 %v6229, %v6231
  %v6233 = vadd.f32 %v6229, %v6232
  %vm6234 = vweird.f32 %v6228
  %vm6235 = vweird.f32 %v6229
  %vm6236 = vmor %vm6234, %vm6235
  %v6237 = vsel %vm6236, %v6229, %v6233
  %v6238 = vand.u32 2147483647, %v6228
  %vm6239 = vcmp.eq.f32.partialorder %v6238, 8.507059e+37
  %v6240 = vand.u32 %v6228, 2147483648
  %v6241 = vor.u32 1.1754944e-38, %v6240
  %v6242 = vsel %vm6239, %v6241, %v6237
  %v6243 = vmul.f32 %v6218, %v6242
  %v6244 = vmin.f32 %v6243, 1.0
  %v6245 = vmax.f32 %v6244, -1.0
  %v6246 = vmul.f32 %v4700, %v4700
  %v6247 = vmin.f32 16.0, %v6246
  %v6248 = vmul.f32 %v6247, 2.1237322e-06
  %v6249 = vadd.f32 %v6248, 0.00028619796
  %v6250 = vmul.f32 %v6247, %v6249
  %v6251 = vadd.f32 %v6250, 0.0036580483
  %v6252 = vmul.f32 %v6247, %v6251
  %v6253 = vadd.f32 %v6252, 0.05243302
  %v6254 = vmul.f32 %v6247, %v6253
  %v6255 = vadd.f32 %v6254, 0.18741608
  %v6256 = vmul.f32 %v6247, %v6255
  %v6257 = vadd.f32 %v6256, 1.1283791
  %v6258 = vmul.f32 %v4700, %v6257
  %v6259 = vmul.f32 %v6247, 3.8918573e-05
  %v6260 = vadd.f32 %v6259, 0.001143296
  %v6261 = vmul.f32 %v6247, %v6260
  %v6262 = vadd.f32 %v6261, 0.014752088
  %v6263 = vmul.f32 %v6247, %v6262
  %v6264 = vadd.f32 %v6263, 0.112945676
  %v6265 = vmul.f32 %v6247, %v6264
  %v6266 = vadd.f32 %v6265, 0.4994258
  %v6267 = vmul.f32 %v6247, %v6266
  %v6268 = vadd.f32 %v6267, 1.0
  %v6269 = vrcp.pop %v6268
  %v6270 = vmul.f32 %v6268, %v6269
  %v6271 = vsub.f32 1.0, %v6270
  %v6272 = vmul.f32 %v6269, %v6271
  %v6273 = vadd.f32 %v6269, %v6272
  %vm6274 = vweird.f32 %v6268
  %vm6275 = vweird.f32 %v6269
  %vm6276 = vmor %vm6274, %vm6275
  %v6277 = vsel %vm6276, %v6269, %v6273
  %v6278 = vand.u32 2147483647, %v6268
  %vm6279 = vcmp.eq.f32.partialorder %v6278, 8.507059e+37
  %v6280 = vand.u32 %v6268, 2147483648
  %v6281 = vor.u32 1.1754944e-38, %v6280
  %v6282 = vsel %vm6279, %v6281, %v6277
  %v6283 = vmul.f32 %v6258, %v6282
  %v6284 = vmin.f32 %v6283, 1.0
  %v6285 = vmax.f32 %v6284, -1.0
  %v6286 = vmul.f32 %v4701, %v4701
  %v6287 = vmin.f32 16.0, %v6286
  %v6288 = vmul.f32 %v6287, 2.1237322e-06
  %v6289 = vadd.f32 %v6288, 0.00028619796
  %v6290 = vmul.f32 %v6287, %v6289
  %v6291 = vadd.f32 %v6290, 0.0036580483
  %v6292 = vmul.f32 %v6287, %v6291
  %v6293 = vadd.f32 %v6292, 0.05243302
  %v6294 = vmul.f32 %v6287, %v6293
  %v6295 = vadd.f32 %v6294, 0.18741608
  %v6296 = vmul.f32 %v6287, %v6295
  %v6297 = vadd.f32 %v6296, 1.1283791
  %v6298 = vmul.f32 %v4701, %v6297
  %v6299 = vmul.f32 %v6287, 3.8918573e-05
  %v6300 = vadd.f32 %v6299, 0.001143296
  %v6301 = vmul.f32 %v6287, %v6300
  %v6302 = vadd.f32 %v6301, 0.014752088
  %v6303 = vmul.f32 %v6287, %v6302
  %v6304 = vadd.f32 %v6303, 0.112945676
  %v6305 = vmul.f32 %v6287, %v6304
  %v6306 = vadd.f32 %v6305, 0.4994258
  %v6307 = vmul.f32 %v6287, %v6306
  %v6308 = vadd.f32 %v6307, 1.0
  %v6309 = vrcp.pop %v6308
  %v6310 = vmul.f32 %v6308, %v6309
  %v6311 = vsub.f32 1.0, %v6310
  %v6312 = vmul.f32 %v6309, %v6311
  %v6313 = vadd.f32 %v6309, %v6312
  %vm6314 = vweird.f32 %v6308
  %vm6315 = vweird.f32 %v6309
  %vm6316 = vmor %vm6314, %vm6315
  %v6317 = vsel %vm6316, %v6309, %v6313
  %v6318 = vand.u32 2147483647, %v6308
  %vm6319 = vcmp.eq.f32.partialorder %v6318, 8.507059e+37
  %v6320 = vand.u32 %v6308, 2147483648
  %v6321 = vor.u32 1.1754944e-38, %v6320
  %v6322 = vsel %vm6319, %v6321, %v6317
  %v6323 = vmul.f32 %v6298, %v6322
  %v6324 = vmin.f32 %v6323, 1.0
  %v6325 = vmax.f32 %v6324, -1.0
  %v6326 = vmul.f32 %v4702, %v4702
  %v6327 = vmin.f32 16.0, %v6326
  %v6328 = vmul.f32 %v6327, 2.1237322e-06
  %v6329 = vadd.f32 %v6328, 0.00028619796
  %v6330 = vmul.f32 %v6327, %v6329
  %v6331 = vadd.f32 %v6330, 0.0036580483
  %v6332 = vmul.f32 %v6327, %v6331
  %v6333 = vadd.f32 %v6332, 0.05243302
  %v6334 = vmul.f32 %v6327, %v6333
  %v6335 = vadd.f32 %v6334, 0.18741608
  %v6336 = vmul.f32 %v6327, %v6335
  %v6337 = vadd.f32 %v6336, 1.1283791
  %v6338 = vmul.f32 %v4702, %v6337
  %v6339 = vmul.f32 %v6327, 3.8918573e-05
  %v6340 = vadd.f32 %v6339, 0.001143296
  %v6341 = vmul.f32 %v6327, %v6340
  %v6342 = vadd.f32 %v6341, 0.014752088
  %v6343 = vmul.f32 %v6327, %v6342
  %v6344 = vadd.f32 %v6343, 0.112945676
  %v6345 = vmul.f32 %v6327, %v6344
  %v6346 = vadd.f32 %v6345, 0.4994258
  %v6347 = vmul.f32 %v6327, %v6346
  %v6348 = vadd.f32 %v6347, 1.0
  %v6349 = vrcp.pop %v6348
  %v6350 = vmul.f32 %v6348, %v6349
  %v6351 = vsub.f32 1.0, %v6350
  %v6352 = vmul.f32 %v6349, %v6351
  %v6353 = vadd.f32 %v6349, %v6352
  %vm6354 = vweird.f32 %v6348
  %vm6355 = vweird.f32 %v6349
  %vm6356 = vmor %vm6354, %vm6355
  %v6357 = vsel %vm6356, %v6349, %v6353
  %v6358 = vand.u32 2147483647, %v6348
  %vm6359 = vcmp.eq.f32.partialorder %v6358, 8.507059e+37
  %v6360 = vand.u32 %v6348, 2147483648
  %v6361 = vor.u32 1.1754944e-38, %v6360
  %v6362 = vsel %vm6359, %v6361, %v6357
  %v6363 = vmul.f32 %v6338, %v6362
  %v6364 = vmin.f32 %v6363, 1.0
  %v6365 = vmax.f32 %v6364, -1.0
  %v6366 = vmul.f32 %v4703, %v4703
  %v6367 = vmin.f32 16.0, %v6366
  %v6368 = vmul.f32 %v6367, 2.1237322e-06
  %v6369 = vadd.f32 %v6368, 0.00028619796
  %v6370 = vmul.f32 %v6367, %v6369
  %v6371 = vadd.f32 %v6370, 0.0036580483
  %v6372 = vmul.f32 %v6367, %v6371
  %v6373 = vadd.f32 %v6372, 0.05243302
  %v6374 = vmul.f32 %v6367, %v6373
  %v6375 = vadd.f32 %v6374, 0.18741608
  %v6376 = vmul.f32 %v6367, %v6375
  %v6377 = vadd.f32 %v6376, 1.1283791
  %v6378 = vmul.f32 %v4703, %v6377
  %v6379 = vmul.f32 %v6367, 3.8918573e-05
  %v6380 = vadd.f32 %v6379, 0.001143296
  %v6381 = vmul.f32 %v6367, %v6380
  %v6382 = vadd.f32 %v6381, 0.014752088
  %v6383 = vmul.f32 %v6367, %v6382
  %v6384 = vadd.f32 %v6383, 0.112945676
  %v6385 = vmul.f32 %v6367, %v6384
  %v6386 = vadd.f32 %v6385, 0.4994258
  %v6387 = vmul.f32 %v6367, %v6386
  %v6388 = vadd.f32 %v6387, 1.0
  %v6389 = vrcp.pop %v6388
  %v6390 = vmul.f32 %v6388, %v6389
  %v6391 = vsub.f32 1.0, %v6390
  %v6392 = vmul.f32 %v6389, %v6391
  %v6393 = vadd.f32 %v6389, %v6392
  %vm6394 = vweird.f32 %v6388
  %vm6395 = vweird.f32 %v6389
  %vm6396 = vmor %vm6394, %vm6395
  %v6397 = vsel %vm6396, %v6389, %v6393
  %v6398 = vand.u32 2147483647, %v6388
  %vm6399 = vcmp.eq.f32.partialorder %v6398, 8.507059e+37
  %v6400 = vand.u32 %v6388, 2147483648
  %v6401 = vor.u32 1.1754944e-38, %v6400
  %v6402 = vsel %vm6399, %v6401, %v6397
  %v6403 = vmul.f32 %v6378, %v6402
  %v6404 = vmin.f32 %v6403, 1.0
  %v6405 = vmax.f32 %v6404, -1.0
  %v6406 = vmul.f32 %v4704, %v4704
  %v6407 = vmin.f32 16.0, %v6406
  %v6408 = vmul.f32 %v6407, 2.1237322e-06
  %v6409 = vadd.f32 %v6408, 0.00028619796
  %v6410 = vmul.f32 %v6407, %v6409
  %v6411 = vadd.f32 %v6410, 0.0036580483
  %v6412 = vmul.f32 %v6407, %v6411
  %v6413 = vadd.f32 %v6412, 0.05243302
  %v6414 = vmul.f32 %v6407, %v6413
  %v6415 = vadd.f32 %v6414, 0.18741608
  %v6416 = vmul.f32 %v6407, %v6415
  %v6417 = vadd.f32 %v6416, 1.1283791
  %v6418 = vmul.f32 %v4704, %v6417
  %v6419 = vmul.f32 %v6407, 3.8918573e-05
  %v6420 = vadd.f32 %v6419, 0.001143296
  %v6421 = vmul.f32 %v6407, %v6420
  %v6422 = vadd.f32 %v6421, 0.014752088
  %v6423 = vmul.f32 %v6407, %v6422
  %v6424 = vadd.f32 %v6423, 0.112945676
  %v6425 = vmul.f32 %v6407, %v6424
  %v6426 = vadd.f32 %v6425, 0.4994258
  %v6427 = vmul.f32 %v6407, %v6426
  %v6428 = vadd.f32 %v6427, 1.0
  %v6429 = vrcp.pop %v6428
  %v6430 = vmul.f32 %v6428, %v6429
  %v6431 = vsub.f32 1.0, %v6430
  %v6432 = vmul.f32 %v6429, %v6431
  %v6433 = vadd.f32 %v6429, %v6432
  %vm6434 = vweird.f32 %v6428
  %vm6435 = vweird.f32 %v6429
  %vm6436 = vmor %vm6434, %vm6435
  %v6437 = vsel %vm6436, %v6429, %v6433
  %v6438 = vand.u32 2147483647, %v6428
  %vm6439 = vcmp.eq.f32.partialorder %v6438, 8.507059e+37
  %v6440 = vand.u32 %v6428, 2147483648
  %v6441 = vor.u32 1.1754944e-38, %v6440
  %v6442 = vsel %vm6439, %v6441, %v6437
  %v6443 = vmul.f32 %v6418, %v6442
  %v6444 = vmin.f32 %v6443, 1.0
  %v6445 = vmax.f32 %v6444, -1.0
  %v6446 = vmul.f32 %v4705, %v4705
  %v6447 = vmin.f32 16.0, %v6446
  %v6448 = vmul.f32 %v6447, 2.1237322e-06
  %v6449 = vadd.f32 %v6448, 0.00028619796
  %v6450 = vmul.f32 %v6447, %v6449
  %v6451 = vadd.f32 %v6450, 0.0036580483
  %v6452 = vmul.f32 %v6447, %v6451
  %v6453 = vadd.f32 %v6452, 0.05243302
  %v6454 = vmul.f32 %v6447, %v6453
  %v6455 = vadd.f32 %v6454, 0.18741608
  %v6456 = vmul.f32 %v6447, %v6455
  %v6457 = vadd.f32 %v6456, 1.1283791
  %v6458 = vmul.f32 %v4705, %v6457
  %v6459 = vmul.f32 %v6447, 3.8918573e-05
  %v6460 = vadd.f32 %v6459, 0.001143296
  %v6461 = vmul.f32 %v6447, %v6460
  %v6462 = vadd.f32 %v6461, 0.014752088
  %v6463 = vmul.f32 %v6447, %v6462
  %v6464 = vadd.f32 %v6463, 0.112945676
  %v6465 = vmul.f32 %v6447, %v6464
  %v6466 = vadd.f32 %v6465, 0.4994258
  %v6467 = vmul.f32 %v6447, %v6466
  %v6468 = vadd.f32 %v6467, 1.0
  %v6469 = vrcp.pop %v6468
  %v6470 = vmul.f32 %v6468, %v6469
  %v6471 = vsub.f32 1.0, %v6470
  %v6472 = vmul.f32 %v6469, %v6471
  %v6473 = vadd.f32 %v6469, %v6472
  %vm6474 = vweird.f32 %v6468
  %vm6475 = vweird.f32 %v6469
  %vm6476 = vmor %vm6474, %vm6475
  %v6477 = vsel %vm6476, %v6469, %v6473
  %v6478 = vand.u32 2147483647, %v6468
  %vm6479 = vcmp.eq.f32.partialorder %v6478, 8.507059e+37
  %v6480 = vand.u32 %v6468, 2147483648
  %v6481 = vor.u32 1.1754944e-38, %v6480
  %v6482 = vsel %vm6479, %v6481, %v6477
  %v6483 = vmul.f32 %v6458, %v6482
  %v6484 = vmin.f32 %v6483, 1.0
  %v6485 = vmax.f32 %v6484, -1.0
  %v6486 = vmul.f32 %v4706, %v4706
  %v6487 = vmin.f32 16.0, %v6486
  %v6488 = vmul.f32 %v6487, 2.1237322e-06
  %v6489 = vadd.f32 %v6488, 0.00028619796
  %v6490 = vmul.f32 %v6487, %v6489
  %v6491 = vadd.f32 %v6490, 0.0036580483
  %v6492 = vmul.f32 %v6487, %v6491
  %v6493 = vadd.f32 %v6492, 0.05243302
  %v6494 = vmul.f32 %v6487, %v6493
  %v6495 = vadd.f32 %v6494, 0.18741608
  %v6496 = vmul.f32 %v6487, %v6495
  %v6497 = vadd.f32 %v6496, 1.1283791
  %v6498 = vmul.f32 %v4706, %v6497
  %v6499 = vmul.f32 %v6487, 3.8918573e-05
  %v6500 = vadd.f32 %v6499, 0.001143296
  %v6501 = vmul.f32 %v6487, %v6500
  %v6502 = vadd.f32 %v6501, 0.014752088
  %v6503 = vmul.f32 %v6487, %v6502
  %v6504 = vadd.f32 %v6503, 0.112945676
  %v6505 = vmul.f32 %v6487, %v6504
  %v6506 = vadd.f32 %v6505, 0.4994258
  %v6507 = vmul.f32 %v6487, %v6506
  %v6508 = vadd.f32 %v6507, 1.0
  %v6509 = vrcp.pop %v6508
  %v6510 = vmul.f32 %v6508, %v6509
  %v6511 = vsub.f32 1.0, %v6510
  %v6512 = vmul.f32 %v6509, %v6511
  %v6513 = vadd.f32 %v6509, %v6512
  %vm6514 = vweird.f32 %v6508
  %vm6515 = vweird.f32 %v6509
  %vm6516 = vmor %vm6514, %vm6515
  %v6517 = vsel %vm6516, %v6509, %v6513
  %v6518 = vand.u32 2147483647, %v6508
  %vm6519 = vcmp.eq.f32.partialorder %v6518, 8.507059e+37
  %v6520 = vand.u32 %v6508, 2147483648
  %v6521 = vor.u32 1.1754944e-38, %v6520
  %v6522 = vsel %vm6519, %v6521, %v6517
  %v6523 = vmul.f32 %v6498, %v6522
  %v6524 = vmin.f32 %v6523, 1.0
  %v6525 = vmax.f32 %v6524, -1.0
  %v6526 = vmul.f32 %v4707, %v4707
  %v6527 = vmin.f32 16.0, %v6526
  %v6528 = vmul.f32 %v6527, 2.1237322e-06
  %v6529 = vadd.f32 %v6528, 0.00028619796
  %v6530 = vmul.f32 %v6527, %v6529
  %v6531 = vadd.f32 %v6530, 0.0036580483
  %v6532 = vmul.f32 %v6527, %v6531
  %v6533 = vadd.f32 %v6532, 0.05243302
  %v6534 = vmul.f32 %v6527, %v6533
  %v6535 = vadd.f32 %v6534, 0.18741608
  %v6536 = vmul.f32 %v6527, %v6535
  %v6537 = vadd.f32 %v6536, 1.1283791
  %v6538 = vmul.f32 %v4707, %v6537
  %v6539 = vmul.f32 %v6527, 3.8918573e-05
  %v6540 = vadd.f32 %v6539, 0.001143296
  %v6541 = vmul.f32 %v6527, %v6540
  %v6542 = vadd.f32 %v6541, 0.014752088
  %v6543 = vmul.f32 %v6527, %v6542
  %v6544 = vadd.f32 %v6543, 0.112945676
  %v6545 = vmul.f32 %v6527, %v6544
  %v6546 = vadd.f32 %v6545, 0.4994258
  %v6547 = vmul.f32 %v6527, %v6546
  %v6548 = vadd.f32 %v6547, 1.0
  %v6549 = vrcp.pop %v6548
  %v6550 = vmul.f32 %v6548, %v6549
  %v6551 = vsub.f32 1.0, %v6550
  %v6552 = vmul.f32 %v6549, %v6551
  %v6553 = vadd.f32 %v6549, %v6552
  %vm6554 = vweird.f32 %v6548
  %vm6555 = vweird.f32 %v6549
  %vm6556 = vmor %vm6554, %vm6555
  %v6557 = vsel %vm6556, %v6549, %v6553
  %v6558 = vand.u32 2147483647, %v6548
  %vm6559 = vcmp.eq.f32.partialorder %v6558, 8.507059e+37
  %v6560 = vand.u32 %v6548, 2147483648
  %v6561 = vor.u32 1.1754944e-38, %v6560
  %v6562 = vsel %vm6559, %v6561, %v6557
  %v6563 = vmul.f32 %v6538, %v6562
  %v6564 = vmin.f32 %v6563, 1.0
  %v6565 = vmax.f32 %v6564, -1.0
  %v6566 = vmul.f32 %v4708, %v4708
  %v6567 = vmin.f32 16.0, %v6566
  %v6568 = vmul.f32 %v6567, 2.1237322e-06
  %v6569 = vadd.f32 %v6568, 0.00028619796
  %v6570 = vmul.f32 %v6567, %v6569
  %v6571 = vadd.f32 %v6570, 0.0036580483
  %v6572 = vmul.f32 %v6567, %v6571
  %v6573 = vadd.f32 %v6572, 0.05243302
  %v6574 = vmul.f32 %v6567, %v6573
  %v6575 = vadd.f32 %v6574, 0.18741608
  %v6576 = vmul.f32 %v6567, %v6575
  %v6577 = vadd.f32 %v6576, 1.1283791
  %v6578 = vmul.f32 %v4708, %v6577
  %v6579 = vmul.f32 %v6567, 3.8918573e-05
  %v6580 = vadd.f32 %v6579, 0.001143296
  %v6581 = vmul.f32 %v6567, %v6580
  %v6582 = vadd.f32 %v6581, 0.014752088
  %v6583 = vmul.f32 %v6567, %v6582
  %v6584 = vadd.f32 %v6583, 0.112945676
  %v6585 = vmul.f32 %v6567, %v6584
  %v6586 = vadd.f32 %v6585, 0.4994258
  %v6587 = vmul.f32 %v6567, %v6586
  %v6588 = vadd.f32 %v6587, 1.0
  %v6589 = vrcp.pop %v6588
  %v6590 = vmul.f32 %v6588, %v6589
  %v6591 = vsub.f32 1.0, %v6590
  %v6592 = vmul.f32 %v6589, %v6591
  %v6593 = vadd.f32 %v6589, %v6592
  %vm6594 = vweird.f32 %v6588
  %vm6595 = vweird.f32 %v6589
  %vm6596 = vmor %vm6594, %vm6595
  %v6597 = vsel %vm6596, %v6589, %v6593
  %v6598 = vand.u32 2147483647, %v6588
  %vm6599 = vcmp.eq.f32.partialorder %v6598, 8.507059e+37
  %v6600 = vand.u32 %v6588, 2147483648
  %v6601 = vor.u32 1.1754944e-38, %v6600
  %v6602 = vsel %vm6599, %v6601, %v6597
  %v6603 = vmul.f32 %v6578, %v6602
  %v6604 = vmin.f32 %v6603, 1.0
  %v6605 = vmax.f32 %v6604, -1.0
  %v6606 = vmul.f32 %v4709, %v4709
  %v6607 = vmin.f32 16.0, %v6606
  %v6608 = vmul.f32 %v6607, 2.1237322e-06
  %v6609 = vadd.f32 %v6608, 0.00028619796
  %v6610 = vmul.f32 %v6607, %v6609
  %v6611 = vadd.f32 %v6610, 0.0036580483
  %v6612 = vmul.f32 %v6607, %v6611
  %v6613 = vadd.f32 %v6612, 0.05243302
  %v6614 = vmul.f32 %v6607, %v6613
  %v6615 = vadd.f32 %v6614, 0.18741608
  %v6616 = vmul.f32 %v6607, %v6615
  %v6617 = vadd.f32 %v6616, 1.1283791
  %v6618 = vmul.f32 %v4709, %v6617
  %v6619 = vmul.f32 %v6607, 3.8918573e-05
  %v6620 = vadd.f32 %v6619, 0.001143296
  %v6621 = vmul.f32 %v6607, %v6620
  %v6622 = vadd.f32 %v6621, 0.014752088
  %v6623 = vmul.f32 %v6607, %v6622
  %v6624 = vadd.f32 %v6623, 0.112945676
  %v6625 = vmul.f32 %v6607, %v6624
  %v6626 = vadd.f32 %v6625, 0.4994258
  %v6627 = vmul.f32 %v6607, %v6626
  %v6628 = vadd.f32 %v6627, 1.0
  %v6629 = vrcp.pop %v6628
  %v6630 = vmul.f32 %v6628, %v6629
  %v6631 = vsub.f32 1.0, %v6630
  %v6632 = vmul.f32 %v6629, %v6631
  %v6633 = vadd.f32 %v6629, %v6632
  %vm6634 = vweird.f32 %v6628
  %vm6635 = vweird.f32 %v6629
  %vm6636 = vmor %vm6634, %vm6635
  %v6637 = vsel %vm6636, %v6629, %v6633
  %v6638 = vand.u32 2147483647, %v6628
  %vm6639 = vcmp.eq.f32.partialorder %v6638, 8.507059e+37
  %v6640 = vand.u32 %v6628, 2147483648
  %v6641 = vor.u32 1.1754944e-38, %v6640
  %v6642 = vsel %vm6639, %v6641, %v6637
  %v6643 = vmul.f32 %v6618, %v6642
  %v6644 = vmin.f32 %v6643, 1.0
  %v6645 = vmax.f32 %v6644, -1.0
  %v6646 = vmul.f32 %v4710, %v4710
  %v6647 = vmin.f32 16.0, %v6646
  %v6648 = vmul.f32 %v6647, 2.1237322e-06
  %v6649 = vadd.f32 %v6648, 0.00028619796
  %v6650 = vmul.f32 %v6647, %v6649
  %v6651 = vadd.f32 %v6650, 0.0036580483
  %v6652 = vmul.f32 %v6647, %v6651
  %v6653 = vadd.f32 %v6652, 0.05243302
  %v6654 = vmul.f32 %v6647, %v6653
  %v6655 = vadd.f32 %v6654, 0.18741608
  %v6656 = vmul.f32 %v6647, %v6655
  %v6657 = vadd.f32 %v6656, 1.1283791
  %v6658 = vmul.f32 %v4710, %v6657
  %v6659 = vmul.f32 %v6647, 3.8918573e-05
  %v6660 = vadd.f32 %v6659, 0.001143296
  %v6661 = vmul.f32 %v6647, %v6660
  %v6662 = vadd.f32 %v6661, 0.014752088
  %v6663 = vmul.f32 %v6647, %v6662
  %v6664 = vadd.f32 %v6663, 0.112945676
  %v6665 = vmul.f32 %v6647, %v6664
  %v6666 = vadd.f32 %v6665, 0.4994258
  %v6667 = vmul.f32 %v6647, %v6666
  %v6668 = vadd.f32 %v6667, 1.0
  %v6669 = vrcp.pop %v6668
  %v6670 = vmul.f32 %v6668, %v6669
  %v6671 = vsub.f32 1.0, %v6670
  %v6672 = vmul.f32 %v6669, %v6671
  %v6673 = vadd.f32 %v6669, %v6672
  %vm6674 = vweird.f32 %v6668
  %vm6675 = vweird.f32 %v6669
  %vm6676 = vmor %vm6674, %vm6675
  %v6677 = vsel %vm6676, %v6669, %v6673
  %v6678 = vand.u32 2147483647, %v6668
  %vm6679 = vcmp.eq.f32.partialorder %v6678, 8.507059e+37
  %v6680 = vand.u32 %v6668, 2147483648
  %v6681 = vor.u32 1.1754944e-38, %v6680
  %v6682 = vsel %vm6679, %v6681, %v6677
  %v6683 = vmul.f32 %v6658, %v6682
  %v6684 = vmin.f32 %v6683, 1.0
  %v6685 = vmax.f32 %v6684, -1.0
  %v6686 = vmul.f32 %v4711, %v4711
  %v6687 = vmin.f32 16.0, %v6686
  %v6688 = vmul.f32 %v6687, 2.1237322e-06
  %v6689 = vadd.f32 %v6688, 0.00028619796
  %v6690 = vmul.f32 %v6687, %v6689
  %v6691 = vadd.f32 %v6690, 0.0036580483
  %v6692 = vmul.f32 %v6687, %v6691
  %v6693 = vadd.f32 %v6692, 0.05243302
  %v6694 = vmul.f32 %v6687, %v6693
  %v6695 = vadd.f32 %v6694, 0.18741608
  %v6696 = vmul.f32 %v6687, %v6695
  %v6697 = vadd.f32 %v6696, 1.1283791
  %v6698 = vmul.f32 %v4711, %v6697
  %v6699 = vmul.f32 %v6687, 3.8918573e-05
  %v6700 = vadd.f32 %v6699, 0.001143296
  %v6701 = vmul.f32 %v6687, %v6700
  %v6702 = vadd.f32 %v6701, 0.014752088
  %v6703 = vmul.f32 %v6687, %v6702
  %v6704 = vadd.f32 %v6703, 0.112945676
  %v6705 = vmul.f32 %v6687, %v6704
  %v6706 = vadd.f32 %v6705, 0.4994258
  %v6707 = vmul.f32 %v6687, %v6706
  %v6708 = vadd.f32 %v6707, 1.0
  %v6709 = vrcp.pop %v6708
  %v6710 = vmul.f32 %v6708, %v6709
  %v6711 = vsub.f32 1.0, %v6710
  %v6712 = vmul.f32 %v6709, %v6711
  %v6713 = vadd.f32 %v6709, %v6712
  %vm6714 = vweird.f32 %v6708
  %vm6715 = vweird.f32 %v6709
  %vm6716 = vmor %vm6714, %vm6715
  %v6717 = vsel %vm6716, %v6709, %v6713
  %v6718 = vand.u32 2147483647, %v6708
  %vm6719 = vcmp.eq.f32.partialorder %v6718, 8.507059e+37
  %v6720 = vand.u32 %v6708, 2147483648
  %v6721 = vor.u32 1.1754944e-38, %v6720
  %v6722 = vsel %vm6719, %v6721, %v6717
  %v6723 = vmul.f32 %v6698, %v6722
  %v6724 = vmin.f32 %v6723, 1.0
  %v6725 = vmax.f32 %v6724, -1.0
  %v6726 = vmul.f32 %v4712, %v4712
  %v6727 = vmin.f32 16.0, %v6726
  %v6728 = vmul.f32 %v6727, 2.1237322e-06
  %v6729 = vadd.f32 %v6728, 0.00028619796
  %v6730 = vmul.f32 %v6727, %v6729
  %v6731 = vadd.f32 %v6730, 0.0036580483
  %v6732 = vmul.f32 %v6727, %v6731
  %v6733 = vadd.f32 %v6732, 0.05243302
  %v6734 = vmul.f32 %v6727, %v6733
  %v6735 = vadd.f32 %v6734, 0.18741608
  %v6736 = vmul.f32 %v6727, %v6735
  %v6737 = vadd.f32 %v6736, 1.1283791
  %v6738 = vmul.f32 %v4712, %v6737
  %v6739 = vmul.f32 %v6727, 3.8918573e-05
  %v6740 = vadd.f32 %v6739, 0.001143296
  %v6741 = vmul.f32 %v6727, %v6740
  %v6742 = vadd.f32 %v6741, 0.014752088
  %v6743 = vmul.f32 %v6727, %v6742
  %v6744 = vadd.f32 %v6743, 0.112945676
  %v6745 = vmul.f32 %v6727, %v6744
  %v6746 = vadd.f32 %v6745, 0.4994258
  %v6747 = vmul.f32 %v6727, %v6746
  %v6748 = vadd.f32 %v6747, 1.0
  %v6749 = vrcp.pop %v6748
  %v6750 = vmul.f32 %v6748, %v6749
  %v6751 = vsub.f32 1.0, %v6750
  %v6752 = vmul.f32 %v6749, %v6751
  %v6753 = vadd.f32 %v6749, %v6752
  %vm6754 = vweird.f32 %v6748
  %vm6755 = vweird.f32 %v6749
  %vm6756 = vmor %vm6754, %vm6755
  %v6757 = vsel %vm6756, %v6749, %v6753
  %v6758 = vand.u32 2147483647, %v6748
  %vm6759 = vcmp.eq.f32.partialorder %v6758, 8.507059e+37
  %v6760 = vand.u32 %v6748, 2147483648
  %v6761 = vor.u32 1.1754944e-38, %v6760
  %v6762 = vsel %vm6759, %v6761, %v6757
  %v6763 = vmul.f32 %v6738, %v6762
  %v6764 = vmin.f32 %v6763, 1.0
  %v6765 = vmax.f32 %v6764, -1.0
  %v6766 = vmul.f32 %v4713, %v4713
  %v6767 = vmin.f32 16.0, %v6766
  %v6768 = vmul.f32 %v6767, 2.1237322e-06
  %v6769 = vadd.f32 %v6768, 0.00028619796
  %v6770 = vmul.f32 %v6767, %v6769
  %v6771 = vadd.f32 %v6770, 0.0036580483
  %v6772 = vmul.f32 %v6767, %v6771
  %v6773 = vadd.f32 %v6772, 0.05243302
  %v6774 = vmul.f32 %v6767, %v6773
  %v6775 = vadd.f32 %v6774, 0.18741608
  %v6776 = vmul.f32 %v6767, %v6775
  %v6777 = vadd.f32 %v6776, 1.1283791
  %v6778 = vmul.f32 %v4713, %v6777
  %v6779 = vmul.f32 %v6767, 3.8918573e-05
  %v6780 = vadd.f32 %v6779, 0.001143296
  %v6781 = vmul.f32 %v6767, %v6780
  %v6782 = vadd.f32 %v6781, 0.014752088
  %v6783 = vmul.f32 %v6767, %v6782
  %v6784 = vadd.f32 %v6783, 0.112945676
  %v6785 = vmul.f32 %v6767, %v6784
  %v6786 = vadd.f32 %v6785, 0.4994258
  %v6787 = vmul.f32 %v6767, %v6786
  %v6788 = vadd.f32 %v6787, 1.0
  %v6789 = vrcp.pop %v6788
  %v6790 = vmul.f32 %v6788, %v6789
  %v6791 = vsub.f32 1.0, %v6790
  %v6792 = vmul.f32 %v6789, %v6791
  %v6793 = vadd.f32 %v6789, %v6792
  %vm6794 = vweird.f32 %v6788
  %vm6795 = vweird.f32 %v6789
  %vm6796 = vmor %vm6794, %vm6795
  %v6797 = vsel %vm6796, %v6789, %v6793
  %v6798 = vand.u32 2147483647, %v6788
  %vm6799 = vcmp.eq.f32.partialorder %v6798, 8.507059e+37
  %v6800 = vand.u32 %v6788, 2147483648
  %v6801 = vor.u32 1.1754944e-38, %v6800
  %v6802 = vsel %vm6799, %v6801, %v6797
  %v6803 = vmul.f32 %v6778, %v6802
  %v6804 = vmin.f32 %v6803, 1.0
  %v6805 = vmax.f32 %v6804, -1.0
  %v6806 = vmul.f32 %v4714, %v4714
  %v6807 = vmin.f32 16.0, %v6806
  %v6808 = vmul.f32 %v6807, 2.1237322e-06
  %v6809 = vadd.f32 %v6808, 0.00028619796
  %v6810 = vmul.f32 %v6807, %v6809
  %v6811 = vadd.f32 %v6810, 0.0036580483
  %v6812 = vmul.f32 %v6807, %v6811
  %v6813 = vadd.f32 %v6812, 0.05243302
  %v6814 = vmul.f32 %v6807, %v6813
  %v6815 = vadd.f32 %v6814, 0.18741608
  %v6816 = vmul.f32 %v6807, %v6815
  %v6817 = vadd.f32 %v6816, 1.1283791
  %v6818 = vmul.f32 %v4714, %v6817
  %v6819 = vmul.f32 %v6807, 3.8918573e-05
  %v6820 = vadd.f32 %v6819, 0.001143296
  %v6821 = vmul.f32 %v6807, %v6820
  %v6822 = vadd.f32 %v6821, 0.014752088
  %v6823 = vmul.f32 %v6807, %v6822
  %v6824 = vadd.f32 %v6823, 0.112945676
  %v6825 = vmul.f32 %v6807, %v6824
  %v6826 = vadd.f32 %v6825, 0.4994258
  %v6827 = vmul.f32 %v6807, %v6826
  %v6828 = vadd.f32 %v6827, 1.0
  %v6829 = vrcp.pop %v6828
  %v6830 = vmul.f32 %v6828, %v6829
  %v6831 = vsub.f32 1.0, %v6830
  %v6832 = vmul.f32 %v6829, %v6831
  %v6833 = vadd.f32 %v6829, %v6832
  %vm6834 = vweird.f32 %v6828
  %vm6835 = vweird.f32 %v6829
  %vm6836 = vmor %vm6834, %vm6835
  %v6837 = vsel %vm6836, %v6829, %v6833
  %v6838 = vand.u32 2147483647, %v6828
  %vm6839 = vcmp.eq.f32.partialorder %v6838, 8.507059e+37
  %v6840 = vand.u32 %v6828, 2147483648
  %v6841 = vor.u32 1.1754944e-38, %v6840
  %v6842 = vsel %vm6839, %v6841, %v6837
  %v6843 = vmul.f32 %v6818, %v6842
  %v6844 = vmin.f32 %v6843, 1.0
  %v6845 = vmax.f32 %v6844, -1.0
  %v6846 = vmul.f32 %v4715, %v4715
  %v6847 = vmin.f32 16.0, %v6846
  %v6848 = vmul.f32 %v6847, 2.1237322e-06
  %v6849 = vadd.f32 %v6848, 0.00028619796
  %v6850 = vmul.f32 %v6847, %v6849
  %v6851 = vadd.f32 %v6850, 0.0036580483
  %v6852 = vmul.f32 %v6847, %v6851
  %v6853 = vadd.f32 %v6852, 0.05243302
  %v6854 = vmul.f32 %v6847, %v6853
  %v6855 = vadd.f32 %v6854, 0.18741608
  %v6856 = vmul.f32 %v6847, %v6855
  %v6857 = vadd.f32 %v6856, 1.1283791
  %v6858 = vmul.f32 %v4715, %v6857
  %v6859 = vmul.f32 %v6847, 3.8918573e-05
  %v6860 = vadd.f32 %v6859, 0.001143296
  %v6861 = vmul.f32 %v6847, %v6860
  %v6862 = vadd.f32 %v6861, 0.014752088
  %v6863 = vmul.f32 %v6847, %v6862
  %v6864 = vadd.f32 %v6863, 0.112945676
  %v6865 = vmul.f32 %v6847, %v6864
  %v6866 = vadd.f32 %v6865, 0.4994258
  %v6867 = vmul.f32 %v6847, %v6866
  %v6868 = vadd.f32 %v6867, 1.0
  %v6869 = vrcp.pop %v6868
  %v6870 = vmul.f32 %v6868, %v6869
  %v6871 = vsub.f32 1.0, %v6870
  %v6872 = vmul.f32 %v6869, %v6871
  %v6873 = vadd.f32 %v6869, %v6872
  %vm6874 = vweird.f32 %v6868
  %vm6875 = vweird.f32 %v6869
  %vm6876 = vmor %vm6874, %vm6875
  %v6877 = vsel %vm6876, %v6869, %v6873
  %v6878 = vand.u32 2147483647, %v6868
  %vm6879 = vcmp.eq.f32.partialorder %v6878, 8.507059e+37
  %v6880 = vand.u32 %v6868, 2147483648
  %v6881 = vor.u32 1.1754944e-38, %v6880
  %v6882 = vsel %vm6879, %v6881, %v6877
  %v6883 = vmul.f32 %v6858, %v6882
  %v6884 = vmin.f32 %v6883, 1.0
  %v6885 = vmax.f32 %v6884, -1.0
  %v6886 = vmul.f32 %v4716, %v4716
  %v6887 = vmin.f32 16.0, %v6886
  %v6888 = vmul.f32 %v6887, 2.1237322e-06
  %v6889 = vadd.f32 %v6888, 0.00028619796
  %v6890 = vmul.f32 %v6887, %v6889
  %v6891 = vadd.f32 %v6890, 0.0036580483
  %v6892 = vmul.f32 %v6887, %v6891
  %v6893 = vadd.f32 %v6892, 0.05243302
  %v6894 = vmul.f32 %v6887, %v6893
  %v6895 = vadd.f32 %v6894, 0.18741608
  %v6896 = vmul.f32 %v6887, %v6895
  %v6897 = vadd.f32 %v6896, 1.1283791
  %v6898 = vmul.f32 %v4716, %v6897
  %v6899 = vmul.f32 %v6887, 3.8918573e-05
  %v6900 = vadd.f32 %v6899, 0.001143296
  %v6901 = vmul.f32 %v6887, %v6900
  %v6902 = vadd.f32 %v6901, 0.014752088
  %v6903 = vmul.f32 %v6887, %v6902
  %v6904 = vadd.f32 %v6903, 0.112945676
  %v6905 = vmul.f32 %v6887, %v6904
  %v6906 = vadd.f32 %v6905, 0.4994258
  %v6907 = vmul.f32 %v6887, %v6906
  %v6908 = vadd.f32 %v6907, 1.0
  %v6909 = vrcp.pop %v6908
  %v6910 = vmul.f32 %v6908, %v6909
  %v6911 = vsub.f32 1.0, %v6910
  %v6912 = vmul.f32 %v6909, %v6911
  %v6913 = vadd.f32 %v6909, %v6912
  %vm6914 = vweird.f32 %v6908
  %vm6915 = vweird.f32 %v6909
  %vm6916 = vmor %vm6914, %vm6915
  %v6917 = vsel %vm6916, %v6909, %v6913
  %v6918 = vand.u32 2147483647, %v6908
  %vm6919 = vcmp.eq.f32.partialorder %v6918, 8.507059e+37
  %v6920 = vand.u32 %v6908, 2147483648
  %v6921 = vor.u32 1.1754944e-38, %v6920
  %v6922 = vsel %vm6919, %v6921, %v6917
  %v6923 = vmul.f32 %v6898, %v6922
  %v6924 = vmin.f32 %v6923, 1.0
  %v6925 = vmax.f32 %v6924, -1.0
  %v6926 = vmul.f32 %v4717, %v4717
  %v6927 = vmin.f32 16.0, %v6926
  %v6928 = vmul.f32 %v6927, 2.1237322e-06
  %v6929 = vadd.f32 %v6928, 0.00028619796
  %v6930 = vmul.f32 %v6927, %v6929
  %v6931 = vadd.f32 %v6930, 0.0036580483
  %v6932 = vmul.f32 %v6927, %v6931
  %v6933 = vadd.f32 %v6932, 0.05243302
  %v6934 = vmul.f32 %v6927, %v6933
  %v6935 = vadd.f32 %v6934, 0.18741608
  %v6936 = vmul.f32 %v6927, %v6935
  %v6937 = vadd.f32 %v6936, 1.1283791
  %v6938 = vmul.f32 %v4717, %v6937
  %v6939 = vmul.f32 %v6927, 3.8918573e-05
  %v6940 = vadd.f32 %v6939, 0.001143296
  %v6941 = vmul.f32 %v6927, %v6940
  %v6942 = vadd.f32 %v6941, 0.014752088
  %v6943 = vmul.f32 %v6927, %v6942
  %v6944 = vadd.f32 %v6943, 0.112945676
  %v6945 = vmul.f32 %v6927, %v6944
  %v6946 = vadd.f32 %v6945, 0.4994258
  %v6947 = vmul.f32 %v6927, %v6946
  %v6948 = vadd.f32 %v6947, 1.0
  %v6949 = vrcp.pop %v6948
  %v6950 = vmul.f32 %v6948, %v6949
  %v6951 = vsub.f32 1.0, %v6950
  %v6952 = vmul.f32 %v6949, %v6951
  %v6953 = vadd.f32 %v6949, %v6952
  %vm6954 = vweird.f32 %v6948
  %vm6955 = vweird.f32 %v6949
  %vm6956 = vmor %vm6954, %vm6955
  %v6957 = vsel %vm6956, %v6949, %v6953
  %v6958 = vand.u32 2147483647, %v6948
  %vm6959 = vcmp.eq.f32.partialorder %v6958, 8.507059e+37
  %v6960 = vand.u32 %v6948, 2147483648
  %v6961 = vor.u32 1.1754944e-38, %v6960
  %v6962 = vsel %vm6959, %v6961, %v6957
  %v6963 = vmul.f32 %v6938, %v6962
  %v6964 = vmin.f32 %v6963, 1.0
  %v6965 = vmax.f32 %v6964, -1.0
  %v6966 = vmul.f32 %v4718, %v4718
  %v6967 = vmin.f32 16.0, %v6966
  %v6968 = vmul.f32 %v6967, 2.1237322e-06
  %v6969 = vadd.f32 %v6968, 0.00028619796
  %v6970 = vmul.f32 %v6967, %v6969
  %v6971 = vadd.f32 %v6970, 0.0036580483
  %v6972 = vmul.f32 %v6967, %v6971
  %v6973 = vadd.f32 %v6972, 0.05243302
  %v6974 = vmul.f32 %v6967, %v6973
  %v6975 = vadd.f32 %v6974, 0.18741608
  %v6976 = vmul.f32 %v6967, %v6975
  %v6977 = vadd.f32 %v6976, 1.1283791
  %v6978 = vmul.f32 %v4718, %v6977
  %v6979 = vmul.f32 %v6967, 3.8918573e-05
  %v6980 = vadd.f32 %v6979, 0.001143296
  %v6981 = vmul.f32 %v6967, %v6980
  %v6982 = vadd.f32 %v6981, 0.014752088
  %v6983 = vmul.f32 %v6967, %v6982
  %v6984 = vadd.f32 %v6983, 0.112945676
  %v6985 = vmul.f32 %v6967, %v6984
  %v6986 = vadd.f32 %v6985, 0.4994258
  %v6987 = vmul.f32 %v6967, %v6986
  %v6988 = vadd.f32 %v6987, 1.0
  %v6989 = vrcp.pop %v6988
  %v6990 = vmul.f32 %v6988, %v6989
  %v6991 = vsub.f32 1.0, %v6990
  %v6992 = vmul.f32 %v6989, %v6991
  %v6993 = vadd.f32 %v6989, %v6992
  %vm6994 = vweird.f32 %v6988
  %vm6995 = vweird.f32 %v6989
  %vm6996 = vmor %vm6994, %vm6995
  %v6997 = vsel %vm6996, %v6989, %v6993
  %v6998 = vand.u32 2147483647, %v6988
  %vm6999 = vcmp.eq.f32.partialorder %v6998, 8.507059e+37
  %v7000 = vand.u32 %v6988, 2147483648
  %v7001 = vor.u32 1.1754944e-38, %v7000
  %v7002 = vsel %vm6999, %v7001, %v6997
  %v7003 = vmul.f32 %v6978, %v7002
  %v7004 = vmin.f32 %v7003, 1.0
  %v7005 = vmax.f32 %v7004, -1.0
  %v7006 = vmul.f32 %v4719, %v4719
  %v7007 = vmin.f32 16.0, %v7006
  %v7008 = vmul.f32 %v7007, 2.1237322e-06
  %v7009 = vadd.f32 %v7008, 0.00028619796
  %v7010 = vmul.f32 %v7007, %v7009
  %v7011 = vadd.f32 %v7010, 0.0036580483
  %v7012 = vmul.f32 %v7007, %v7011
  %v7013 = vadd.f32 %v7012, 0.05243302
  %v7014 = vmul.f32 %v7007, %v7013
  %v7015 = vadd.f32 %v7014, 0.18741608
  %v7016 = vmul.f32 %v7007, %v7015
  %v7017 = vadd.f32 %v7016, 1.1283791
  %v7018 = vmul.f32 %v4719, %v7017
  %v7019 = vmul.f32 %v7007, 3.8918573e-05
  %v7020 = vadd.f32 %v7019, 0.001143296
  %v7021 = vmul.f32 %v7007, %v7020
  %v7022 = vadd.f32 %v7021, 0.014752088
  %v7023 = vmul.f32 %v7007, %v7022
  %v7024 = vadd.f32 %v7023, 0.112945676
  %v7025 = vmul.f32 %v7007, %v7024
  %v7026 = vadd.f32 %v7025, 0.4994258
  %v7027 = vmul.f32 %v7007, %v7026
  %v7028 = vadd.f32 %v7027, 1.0
  %v7029 = vrcp.pop %v7028
  %v7030 = vmul.f32 %v7028, %v7029
  %v7031 = vsub.f32 1.0, %v7030
  %v7032 = vmul.f32 %v7029, %v7031
  %v7033 = vadd.f32 %v7029, %v7032
  %vm7034 = vweird.f32 %v7028
  %vm7035 = vweird.f32 %v7029
  %vm7036 = vmor %vm7034, %vm7035
  %v7037 = vsel %vm7036, %v7029, %v7033
  %v7038 = vand.u32 2147483647, %v7028
  %vm7039 = vcmp.eq.f32.partialorder %v7038, 8.507059e+37
  %v7040 = vand.u32 %v7028, 2147483648
  %v7041 = vor.u32 1.1754944e-38, %v7040
  %v7042 = vsel %vm7039, %v7041, %v7037
  %v7043 = vmul.f32 %v7018, %v7042
  %v7044 = vmin.f32 %v7043, 1.0
  %v7045 = vmax.f32 %v7044, -1.0
  %v7046 = vmul.f32 %v4720, %v4720
  %v7047 = vmin.f32 16.0, %v7046
  %v7048 = vmul.f32 %v7047, 2.1237322e-06
  %v7049 = vadd.f32 %v7048, 0.00028619796
  %v7050 = vmul.f32 %v7047, %v7049
  %v7051 = vadd.f32 %v7050, 0.0036580483
  %v7052 = vmul.f32 %v7047, %v7051
  %v7053 = vadd.f32 %v7052, 0.05243302
  %v7054 = vmul.f32 %v7047, %v7053
  %v7055 = vadd.f32 %v7054, 0.18741608
  %v7056 = vmul.f32 %v7047, %v7055
  %v7057 = vadd.f32 %v7056, 1.1283791
  %v7058 = vmul.f32 %v4720, %v7057
  %v7059 = vmul.f32 %v7047, 3.8918573e-05
  %v7060 = vadd.f32 %v7059, 0.001143296
  %v7061 = vmul.f32 %v7047, %v7060
  %v7062 = vadd.f32 %v7061, 0.014752088
  %v7063 = vmul.f32 %v7047, %v7062
  %v7064 = vadd.f32 %v7063, 0.112945676
  %v7065 = vmul.f32 %v7047, %v7064
  %v7066 = vadd.f32 %v7065, 0.4994258
  %v7067 = vmul.f32 %v7047, %v7066
  %v7068 = vadd.f32 %v7067, 1.0
  %v7069 = vrcp.pop %v7068
  %v7070 = vmul.f32 %v7068, %v7069
  %v7071 = vsub.f32 1.0, %v7070
  %v7072 = vmul.f32 %v7069, %v7071
  %v7073 = vadd.f32 %v7069, %v7072
  %vm7074 = vweird.f32 %v7068
  %vm7075 = vweird.f32 %v7069
  %vm7076 = vmor %vm7074, %vm7075
  %v7077 = vsel %vm7076, %v7069, %v7073
  %v7078 = vand.u32 2147483647, %v7068
  %vm7079 = vcmp.eq.f32.partialorder %v7078, 8.507059e+37
  %v7080 = vand.u32 %v7068, 2147483648
  %v7081 = vor.u32 1.1754944e-38, %v7080
  %v7082 = vsel %vm7079, %v7081, %v7077
  %v7083 = vmul.f32 %v7058, %v7082
  %v7084 = vmin.f32 %v7083, 1.0
  %v7085 = vmax.f32 %v7084, -1.0
  %v7086 = vmul.f32 %v4721, %v4721
  %v7087 = vmin.f32 16.0, %v7086
  %v7088 = vmul.f32 %v7087, 2.1237322e-06
  %v7089 = vadd.f32 %v7088, 0.00028619796
  %v7090 = vmul.f32 %v7087, %v7089
  %v7091 = vadd.f32 %v7090, 0.0036580483
  %v7092 = vmul.f32 %v7087, %v7091
  %v7093 = vadd.f32 %v7092, 0.05243302
  %v7094 = vmul.f32 %v7087, %v7093
  %v7095 = vadd.f32 %v7094, 0.18741608
  %v7096 = vmul.f32 %v7087, %v7095
  %v7097 = vadd.f32 %v7096, 1.1283791
  %v7098 = vmul.f32 %v4721, %v7097
  %v7099 = vmul.f32 %v7087, 3.8918573e-05
  %v7100 = vadd.f32 %v7099, 0.001143296
  %v7101 = vmul.f32 %v7087, %v7100
  %v7102 = vadd.f32 %v7101, 0.014752088
  %v7103 = vmul.f32 %v7087, %v7102
  %v7104 = vadd.f32 %v7103, 0.112945676
  %v7105 = vmul.f32 %v7087, %v7104
  %v7106 = vadd.f32 %v7105, 0.4994258
  %v7107 = vmul.f32 %v7087, %v7106
  %v7108 = vadd.f32 %v7107, 1.0
  %v7109 = vrcp.pop %v7108
  %v7110 = vmul.f32 %v7108, %v7109
  %v7111 = vsub.f32 1.0, %v7110
  %v7112 = vmul.f32 %v7109, %v7111
  %v7113 = vadd.f32 %v7109, %v7112
  %vm7114 = vweird.f32 %v7108
  %vm7115 = vweird.f32 %v7109
  %vm7116 = vmor %vm7114, %vm7115
  %v7117 = vsel %vm7116, %v7109, %v7113
  %v7118 = vand.u32 2147483647, %v7108
  %vm7119 = vcmp.eq.f32.partialorder %v7118, 8.507059e+37
  %v7120 = vand.u32 %v7108, 2147483648
  %v7121 = vor.u32 1.1754944e-38, %v7120
  %v7122 = vsel %vm7119, %v7121, %v7117
  %v7123 = vmul.f32 %v7098, %v7122
  %v7124 = vmin.f32 %v7123, 1.0
  %v7125 = vmax.f32 %v7124, -1.0
  %v7126 = vmul.f32 %v4722, %v4722
  %v7127 = vmin.f32 16.0, %v7126
  %v7128 = vmul.f32 %v7127, 2.1237322e-06
  %v7129 = vadd.f32 %v7128, 0.00028619796
  %v7130 = vmul.f32 %v7127, %v7129
  %v7131 = vadd.f32 %v7130, 0.0036580483
  %v7132 = vmul.f32 %v7127, %v7131
  %v7133 = vadd.f32 %v7132, 0.05243302
  %v7134 = vmul.f32 %v7127, %v7133
  %v7135 = vadd.f32 %v7134, 0.18741608
  %v7136 = vmul.f32 %v7127, %v7135
  %v7137 = vadd.f32 %v7136, 1.1283791
  %v7138 = vmul.f32 %v4722, %v7137
  %v7139 = vmul.f32 %v7127, 3.8918573e-05
  %v7140 = vadd.f32 %v7139, 0.001143296
  %v7141 = vmul.f32 %v7127, %v7140
  %v7142 = vadd.f32 %v7141, 0.014752088
  %v7143 = vmul.f32 %v7127, %v7142
  %v7144 = vadd.f32 %v7143, 0.112945676
  %v7145 = vmul.f32 %v7127, %v7144
  %v7146 = vadd.f32 %v7145, 0.4994258
  %v7147 = vmul.f32 %v7127, %v7146
  %v7148 = vadd.f32 %v7147, 1.0
  %v7149 = vrcp.pop %v7148
  %v7150 = vmul.f32 %v7148, %v7149
  %v7151 = vsub.f32 1.0, %v7150
  %v7152 = vmul.f32 %v7149, %v7151
  %v7153 = vadd.f32 %v7149, %v7152
  %vm7154 = vweird.f32 %v7148
  %vm7155 = vweird.f32 %v7149
  %vm7156 = vmor %vm7154, %vm7155
  %v7157 = vsel %vm7156, %v7149, %v7153
  %v7158 = vand.u32 2147483647, %v7148
  %vm7159 = vcmp.eq.f32.partialorder %v7158, 8.507059e+37
  %v7160 = vand.u32 %v7148, 2147483648
  %v7161 = vor.u32 1.1754944e-38, %v7160
  %v7162 = vsel %vm7159, %v7161, %v7157
  %v7163 = vmul.f32 %v7138, %v7162
  %v7164 = vmin.f32 %v7163, 1.0
  %v7165 = vmax.f32 %v7164, -1.0
  %v7166 = vmul.f32 %v4723, %v4723
  %v7167 = vmin.f32 16.0, %v7166
  %v7168 = vmul.f32 %v7167, 2.1237322e-06
  %v7169 = vadd.f32 %v7168, 0.00028619796
  %v7170 = vmul.f32 %v7167, %v7169
  %v7171 = vadd.f32 %v7170, 0.0036580483
  %v7172 = vmul.f32 %v7167, %v7171
  %v7173 = vadd.f32 %v7172, 0.05243302
  %v7174 = vmul.f32 %v7167, %v7173
  %v7175 = vadd.f32 %v7174, 0.18741608
  %v7176 = vmul.f32 %v7167, %v7175
  %v7177 = vadd.f32 %v7176, 1.1283791
  %v7178 = vmul.f32 %v4723, %v7177
  %v7179 = vmul.f32 %v7167, 3.8918573e-05
  %v7180 = vadd.f32 %v7179, 0.001143296
  %v7181 = vmul.f32 %v7167, %v7180
  %v7182 = vadd.f32 %v7181, 0.014752088
  %v7183 = vmul.f32 %v7167, %v7182
  %v7184 = vadd.f32 %v7183, 0.112945676
  %v7185 = vmul.f32 %v7167, %v7184
  %v7186 = vadd.f32 %v7185, 0.4994258
  %v7187 = vmul.f32 %v7167, %v7186
  %v7188 = vadd.f32 %v7187, 1.0
  %v7189 = vrcp.pop %v7188
  %v7190 = vmul.f32 %v7188, %v7189
  %v7191 = vsub.f32 1.0, %v7190
  %v7192 = vmul.f32 %v7189, %v7191
  %v7193 = vadd.f32 %v7189, %v7192
  %vm7194 = vweird.f32 %v7188
  %vm7195 = vweird.f32 %v7189
  %vm7196 = vmor %vm7194, %vm7195
  %v7197 = vsel %vm7196, %v7189, %v7193
  %v7198 = vand.u32 2147483647, %v7188
  %vm7199 = vcmp.eq.f32.partialorder %v7198, 8.507059e+37
  %v7200 = vand.u32 %v7188, 2147483648
  %v7201 = vor.u32 1.1754944e-38, %v7200
  %v7202 = vsel %vm7199, %v7201, %v7197
  %v7203 = vmul.f32 %v7178, %v7202
  %v7204 = vmin.f32 %v7203, 1.0
  %v7205 = vmax.f32 %v7204, -1.0
  %v7206 = vmul.f32 %v4724, %v4724
  %v7207 = vmin.f32 16.0, %v7206
  %v7208 = vmul.f32 %v7207, 2.1237322e-06
  %v7209 = vadd.f32 %v7208, 0.00028619796
  %v7210 = vmul.f32 %v7207, %v7209
  %v7211 = vadd.f32 %v7210, 0.0036580483
  %v7212 = vmul.f32 %v7207, %v7211
  %v7213 = vadd.f32 %v7212, 0.05243302
  %v7214 = vmul.f32 %v7207, %v7213
  %v7215 = vadd.f32 %v7214, 0.18741608
  %v7216 = vmul.f32 %v7207, %v7215
  %v7217 = vadd.f32 %v7216, 1.1283791
  %v7218 = vmul.f32 %v4724, %v7217
  %v7219 = vmul.f32 %v7207, 3.8918573e-05
  %v7220 = vadd.f32 %v7219, 0.001143296
  %v7221 = vmul.f32 %v7207, %v7220
  %v7222 = vadd.f32 %v7221, 0.014752088
  %v7223 = vmul.f32 %v7207, %v7222
  %v7224 = vadd.f32 %v7223, 0.112945676
  %v7225 = vmul.f32 %v7207, %v7224
  %v7226 = vadd.f32 %v7225, 0.4994258
  %v7227 = vmul.f32 %v7207, %v7226
  %v7228 = vadd.f32 %v7227, 1.0
  %v7229 = vrcp.pop %v7228
  %v7230 = vmul.f32 %v7228, %v7229
  %v7231 = vsub.f32 1.0, %v7230
  %v7232 = vmul.f32 %v7229, %v7231
  %v7233 = vadd.f32 %v7229, %v7232
  %vm7234 = vweird.f32 %v7228
  %vm7235 = vweird.f32 %v7229
  %vm7236 = vmor %vm7234, %vm7235
  %v7237 = vsel %vm7236, %v7229, %v7233
  %v7238 = vand.u32 2147483647, %v7228
  %vm7239 = vcmp.eq.f32.partialorder %v7238, 8.507059e+37
  %v7240 = vand.u32 %v7228, 2147483648
  %v7241 = vor.u32 1.1754944e-38, %v7240
  %v7242 = vsel %vm7239, %v7241, %v7237
  %v7243 = vmul.f32 %v7218, %v7242
  %v7244 = vmin.f32 %v7243, 1.0
  %v7245 = vmax.f32 %v7244, -1.0
  %v7246 = vmul.f32 %v4725, %v4725
  %v7247 = vmin.f32 16.0, %v7246
  %v7248 = vmul.f32 %v7247, 2.1237322e-06
  %v7249 = vadd.f32 %v7248, 0.00028619796
  %v7250 = vmul.f32 %v7247, %v7249
  %v7251 = vadd.f32 %v7250, 0.0036580483
  %v7252 = vmul.f32 %v7247, %v7251
  %v7253 = vadd.f32 %v7252, 0.05243302
  %v7254 = vmul.f32 %v7247, %v7253
  %v7255 = vadd.f32 %v7254, 0.18741608
  %v7256 = vmul.f32 %v7247, %v7255
  %v7257 = vadd.f32 %v7256, 1.1283791
  %v7258 = vmul.f32 %v4725, %v7257
  %v7259 = vmul.f32 %v7247, 3.8918573e-05
  %v7260 = vadd.f32 %v7259, 0.001143296
  %v7261 = vmul.f32 %v7247, %v7260
  %v7262 = vadd.f32 %v7261, 0.014752088
  %v7263 = vmul.f32 %v7247, %v7262
  %v7264 = vadd.f32 %v7263, 0.112945676
  %v7265 = vmul.f32 %v7247, %v7264
  %v7266 = vadd.f32 %v7265, 0.4994258
  %v7267 = vmul.f32 %v7247, %v7266
  %v7268 = vadd.f32 %v7267, 1.0
  %v7269 = vrcp.pop %v7268
  %v7270 = vmul.f32 %v7268, %v7269
  %v7271 = vsub.f32 1.0, %v7270
  %v7272 = vmul.f32 %v7269, %v7271
  %v7273 = vadd.f32 %v7269, %v7272
  %vm7274 = vweird.f32 %v7268
  %vm7275 = vweird.f32 %v7269
  %vm7276 = vmor %vm7274, %vm7275
  %v7277 = vsel %vm7276, %v7269, %v7273
  %v7278 = vand.u32 2147483647, %v7268
  %vm7279 = vcmp.eq.f32.partialorder %v7278, 8.507059e+37
  %v7280 = vand.u32 %v7268, 2147483648
  %v7281 = vor.u32 1.1754944e-38, %v7280
  %v7282 = vsel %vm7279, %v7281, %v7277
  %v7283 = vmul.f32 %v7258, %v7282
  %v7284 = vmin.f32 %v7283, 1.0
  %v7285 = vmax.f32 %v7284, -1.0
  %v7286 = vadd.f32 %v4765, 1.0
  %v7287 = vadd.f32 %v4805, 1.0
  %v7288 = vadd.f32 %v4845, 1.0
  %v7289 = vadd.f32 %v4885, 1.0
  %v7290 = vadd.f32 %v4925, 1.0
  %v7291 = vadd.f32 %v4965, 1.0
  %v7292 = vadd.f32 %v5005, 1.0
  %v7293 = vadd.f32 %v5045, 1.0
  %v7294 = vadd.f32 %v5085, 1.0
  %v7295 = vadd.f32 %v5125, 1.0
  %v7296 = vadd.f32 %v5165, 1.0
  %v7297 = vadd.f32 %v5205, 1.0
  %v7298 = vadd.f32 %v5245, 1.0
  %v7299 = vadd.f32 %v5285, 1.0
  %v7300 = vadd.f32 %v5325, 1.0
  %v7301 = vadd.f32 %v5365, 1.0
  %v7302 = vadd.f32 %v5405, 1.0
  %v7303 = vadd.f32 %v5445, 1.0
  %v7304 = vadd.f32 %v5485, 1.0
  %v7305 = vadd.f32 %v5525, 1.0
  %v7306 = vadd.f32 %v5565, 1.0
  %v7307 = vadd.f32 %v5605, 1.0
  %v7308 = vadd.f32 %v5645, 1.0
  %v7309 = vadd.f32 %v5685, 1.0
  %v7310 = vadd.f32 %v5725, 1.0
  %v7311 = vadd.f32 %v5765, 1.0
  %v7312 = vadd.f32 %v5805, 1.0
  %v7313 = vadd.f32 %v5845, 1.0
  %v7314 = vadd.f32 %v5885, 1.0
  %v7315 = vadd.f32 %v5925, 1.0
  %v7316 = vadd.f32 %v5965, 1.0
  %v7317 = vadd.f32 %v6005, 1.0
  %v7318 = vadd.f32 %v6045, 1.0
  %v7319 = vadd.f32 %v6085, 1.0
  %v7320 = vadd.f32 %v6125, 1.0
  %v7321 = vadd.f32 %v6165, 1.0
  %v7322 = vadd.f32 %v6205, 1.0
  %v7323 = vadd.f32 %v6245, 1.0
  %v7324 = vadd.f32 %v6285, 1.0
  %v7325 = vadd.f32 %v6325, 1.0
  %v7326 = vadd.f32 %v6365, 1.0
  %v7327 = vadd.f32 %v6405, 1.0
  %v7328 = vadd.f32 %v6445, 1.0
  %v7329 = vadd.f32 %v6485, 1.0
  %v7330 = vadd.f32 %v6525, 1.0
  %v7331 = vadd.f32 %v6565, 1.0
  %v7332 = vadd.f32 %v6605, 1.0
  %v7333 = vadd.f32 %v6645, 1.0
  %v7334 = vadd.f32 %v6685, 1.0
  %v7335 = vadd.f32 %v6725, 1.0
  %v7336 = vadd.f32 %v6765, 1.0
  %v7337 = vadd.f32 %v6805, 1.0
  %v7338 = vadd.f32 %v6845, 1.0
  %v7339 = vadd.f32 %v6885, 1.0
  %v7340 = vadd.f32 %v6925, 1.0
  %v7341 = vadd.f32 %v6965, 1.0
  %v7342 = vadd.f32 %v7005, 1.0
  %v7343 = vadd.f32 %v7045, 1.0
  %v7344 = vadd.f32 %v7085, 1.0
  %v7345 = vadd.f32 %v7125, 1.0
  %v7346 = vadd.f32 %v7165, 1.0
  %v7347 = vadd.f32 %v7205, 1.0
  %v7348 = vadd.f32 %v7245, 1.0
  %v7349 = vadd.f32 %v7285, 1.0
  %v7350 = vmul.f32 %v4598, %v7286
  %v7351 = vmul.f32 %v4599, %v7287
  %v7352 = vmul.f32 %v4600, %v7288
  %v7353 = vmul.f32 %v4601, %v7289
  %v7354 = vmul.f32 %v4602, %v7290
  %v7355 = vmul.f32 %v4603, %v7291
  %v7356 = vmul.f32 %v4604, %v7292
  %v7357 = vmul.f32 %v4605, %v7293
  %v7358 = vmul.f32 %v4606, %v7294
  %v7359 = vmul.f32 %v4607, %v7295
  %v7360 = vmul.f32 %v4608, %v7296
  %v7361 = vmul.f32 %v4609, %v7297
  %v7362 = vmul.f32 %v4610, %v7298
  %v7363 = vmul.f32 %v4611, %v7299
  %v7364 = vmul.f32 %v4612, %v7300
  %v7365 = vmul.f32 %v4613, %v7301
  %v7366 = vmul.f32 %v4614, %v7302
  %v7367 = vmul.f32 %v4615, %v7303
  %v7368 = vmul.f32 %v4616, %v7304
  %v7369 = vmul.f32 %v4617, %v7305
  %v7370 = vmul.f32 %v4618, %v7306
  %v7371 = vmul.f32 %v4619, %v7307
  %v7372 = vmul.f32 %v4620, %v7308
  %v7373 = vmul.f32 %v4621, %v7309
  %v7374 = vmul.f32 %v4622, %v7310
  %v7375 = vmul.f32 %v4623, %v7311
  %v7376 = vmul.f32 %v4624, %v7312
  %v7377 = vmul.f32 %v4625, %v7313
  %v7378 = vmul.f32 %v4626, %v7314
  %v7379 = vmul.f32 %v4627, %v7315
  %v7380 = vmul.f32 %v4628, %v7316
  %v7381 = vmul.f32 %v4629, %v7317
  %v7382 = vmul.f32 %v4630, %v7318
  %v7383 = vmul.f32 %v4631, %v7319
  %v7384 = vmul.f32 %v4632, %v7320
  %v7385 = vmul.f32 %v4633, %v7321
  %v7386 = vmul.f32 %v4634, %v7322
  %v7387 = vmul.f32 %v4635, %v7323
  %v7388 = vmul.f32 %v4636, %v7324
  %v7389 = vmul.f32 %v4637, %v7325
  %v7390 = vmul.f32 %v4638, %v7326
  %v7391 = vmul.f32 %v4639, %v7327
  %v7392 = vmul.f32 %v4640, %v7328
  %v7393 = vmul.f32 %v4641, %v7329
  %v7394 = vmul.f32 %v4642, %v7330
  %v7395 = vmul.f32 %v4643, %v7331
  %v7396 = vmul.f32 %v4644, %v7332
  %v7397 = vmul.f32 %v4645, %v7333
  %v7398 = vmul.f32 %v4646, %v7334
  %v7399 = vmul.f32 %v4647, %v7335
  %v7400 = vmul.f32 %v4648, %v7336
  %v7401 = vmul.f32 %v4649, %v7337
  %v7402 = vmul.f32 %v4650, %v7338
  %v7403 = vmul.f32 %v4651, %v7339
  %v7404 = vmul.f32 %v4652, %v7340
  %v7405 = vmul.f32 %v4653, %v7341
  %v7406 = vmul.f32 %v4654, %v7342
  %v7407 = vmul.f32 %v4655, %v7343
  %v7408 = vmul.f32 %v4656, %v7344
  %v7409 = vmul.f32 %v4657, %v7345
  %v7410 = vmul.f32 %v4658, %v7346
  %v7411 = vmul.f32 %v4659, %v7347
  %v7412 = vmul.f32 %v4660, %v7348
  %v7413 = vmul.f32 %v4661, %v7349
  %7478 = vst [vmem:[#allocation1] ss:$4 sm:$0xff] %v7350
  %s7479 = scalar_lea.vmem [#allocation1], 1
  %7480 = vst [vmem:[%s7479] ss:$4 sm:$0xff] %v7351
  %s7481 = scalar_lea.vmem [#allocation1], 2
  %7482 = vst [vmem:[%s7481] ss:$4 sm:$0xff] %v7352
  %s7483 = scalar_lea.vmem [#allocation1], 3
  %7484 = vst [vmem:[%s7483] ss:$4 sm:$0xff] %v7353
  %s7485 = scalar_lea.vmem [#allocation1], 32
  %7486 = vst [vmem:[%s7485] ss:$4 sm:$0xff] %v7354
  %s7487 = scalar_lea.vmem [#allocation1], 33
  %7488 = vst [vmem:[%s7487] ss:$4 sm:$0xff] %v7355
  %s7489 = scalar_lea.vmem [#allocation1], 34
  %7490 = vst [vmem:[%s7489] ss:$4 sm:$0xff] %v7356
  %s7491 = scalar_lea.vmem [#allocation1], 35
  %7492 = vst [vmem:[%s7491] ss:$4 sm:$0xff] %v7357
  %v7493 = vld.sshfl [vmem:[#allocation1] sm:$0xff pattern:$0x73625140]
  %v7494 = vld.sshfl [vmem:[#allocation1 + $0x20] sm:$0xff pattern:$0x73625140]
  %7495 = vst [vmem:[#allocation1] ss:$4 sm:$0xff] %v7358
  %7496 = vst [vmem:[%s7479] ss:$4 sm:$0xff] %v7359
  %7497 = vst [vmem:[%s7481] ss:$4 sm:$0xff] %v7360
  %7498 = vst [vmem:[%s7483] ss:$4 sm:$0xff] %v7361
  %7499 = vst [vmem:[%s7485] ss:$4 sm:$0xff] %v7362
  %7500 = vst [vmem:[%s7487] ss:$4 sm:$0xff] %v7363
  %7501 = vst [vmem:[%s7489] ss:$4 sm:$0xff] %v7364
  %7502 = vst [vmem:[%s7491] ss:$4 sm:$0xff] %v7365
  %v7503 = vld.sshfl [vmem:[#allocation1] sm:$0xff pattern:$0x73625140]
  %v7504 = vld.sshfl [vmem:[#allocation1 + $0x20] sm:$0xff pattern:$0x73625140]
  %7505 = vst [vmem:[#allocation1] ss:$4 sm:$0xff] %v7366
  %7506 = vst [vmem:[%s7479] ss:$4 sm:$0xff] %v7367
  %7507 = vst [vmem:[%s7481] ss:$4 sm:$0xff] %v7368
  %7508 = vst [vmem:[%s7483] ss:$4 sm:$0xff] %v7369
  %7509 = vst [vmem:[%s7485] ss:$4 sm:$0xff] %v7370
  %7510 = vst [vmem:[%s7487] ss:$4 sm:$0xff] %v7371
  %7511 = vst [vmem:[%s7489] ss:$4 sm:$0xff] %v7372
  %7512 = vst [vmem:[%s7491] ss:$4 sm:$0xff] %v7373
  %v7513 = vld.sshfl [vmem:[#allocation1] sm:$0xff pattern:$0x73625140]
  %v7514 = vld.sshfl [vmem:[#allocation1 + $0x20] sm:$0xff pattern:$0x73625140]
  %7515 = vst [vmem:[#allocation1] ss:$4 sm:$0xff] %v7374
  %7516 = vst [vmem:[%s7479] ss:$4 sm:$0xff] %v7375
  %7517 = vst [vmem:[%s7481] ss:$4 sm:$0xff] %v7376
  %7518 = vst [vmem:[%s7483] ss:$4 sm:$0xff] %v7377
  %7519 = vst [vmem:[%s7485] ss:$4 sm:$0xff] %v7378
  %7520 = vst [vmem:[%s7487] ss:$4 sm:$0xff] %v7379
  %7521 = vst [vmem:[%s7489] ss:$4 sm:$0xff] %v7380
  %7522 = vst [vmem:[%s7491] ss:$4 sm:$0xff] %v7381
  %v7523 = vld.sshfl [vmem:[#allocation1] sm:$0xff pattern:$0x73625140]
  %v7524 = vld.sshfl [vmem:[#allocation1 + $0x20] sm:$0xff pattern:$0x73625140]
  %7525 = vst [vmem:[#allocation1] ss:$4 sm:$0xff] %v7382
  %7526 = vst [vmem:[%s7479] ss:$4 sm:$0xff] %v7383
  %7527 = vst [vmem:[%s7481] ss:$4 sm:$0xff] %v7384
  %7528 = vst [vmem:[%s7483] ss:$4 sm:$0xff] %v7385
  %7529 = vst [vmem:[%s7485] ss:$4 sm:$0xff] %v7386
  %7530 = vst [vmem:[%s7487] ss:$4 sm:$0xff] %v7387
  %7531 = vst [vmem:[%s7489] ss:$4 sm:$0xff] %v7388
  %7532 = vst [vmem:[%s7491] ss:$4 sm:$0xff] %v7389
  %v7533 = vld.sshfl [vmem:[#allocation1] sm:$0xff pattern:$0x73625140]
  %v7534 = vld.sshfl [vmem:[#allocation1 + $0x20] sm:$0xff pattern:$0x73625140]
  %7535 = vst [vmem:[#allocation1] ss:$4 sm:$0xff] %v7390
  %7536 = vst [vmem:[%s7479] ss:$4 sm:$0xff] %v7391
  %7537 = vst [vmem:[%s7481] ss:$4 sm:$0xff] %v7392
  %7538 = vst [vmem:[%s7483] ss:$4 sm:$0xff] %v7393
  %7539 = vst [vmem:[%s7485] ss:$4 sm:$0xff] %v7394
  %7540 = vst [vmem:[%s7487] ss:$4 sm:$0xff] %v7395
  %7541 = vst [vmem:[%s7489] ss:$4 sm:$0xff] %v7396
  %7542 = vst [vmem:[%s7491] ss:$4 sm:$0xff] %v7397
  %v7543 = vld.sshfl [vmem:[#allocation1] sm:$0xff pattern:$0x73625140]
  %v7544 = vld.sshfl [vmem:[#allocation1 + $0x20] sm:$0xff pattern:$0x73625140]
  %7545 = vst [vmem:[#allocation1] ss:$4 sm:$0xff] %v7398
  %7546 = vst [vmem:[%s7479] ss:$4 sm:$0xff] %v7399
  %7547 = vst [vmem:[%s7481] ss:$4 sm:$0xff] %v7400
  %7548 = vst [vmem:[%s7483] ss:$4 sm:$0xff] %v7401
  %7549 = vst [vmem:[%s7485] ss:$4 sm:$0xff] %v7402
  %7550 = vst [vmem:[%s7487] ss:$4 sm:$0xff] %v7403
  %7551 = vst [vmem:[%s7489] ss:$4 sm:$0xff] %v7404
  %7552 = vst [vmem:[%s7491] ss:$4 sm:$0xff] %v7405
  %v7553 = vld.sshfl [vmem:[#allocation1] sm:$0xff pattern:$0x73625140]
  %v7554 = vld.sshfl [vmem:[#allocation1 + $0x20] sm:$0xff pattern:$0x73625140]
  %7555 = vst [vmem:[#allocation1] ss:$4 sm:$0xff] %v7406
  %7556 = vst [vmem:[%s7479] ss:$4 sm:$0xff] %v7407
  %7557 = vst [vmem:[%s7481] ss:$4 sm:$0xff] %v7408
  %7558 = vst [vmem:[%s7483] ss:$4 sm:$0xff] %v7409
  %7559 = vst [vmem:[%s7485] ss:$4 sm:$0xff] %v7410
  %7560 = vst [vmem:[%s7487] ss:$4 sm:$0xff] %v7411
  %7561 = vst [vmem:[%s7489] ss:$4 sm:$0xff] %v7412
  %7562 = vst [vmem:[%s7491] ss:$4 sm:$0xff] %v7413
  %v7563 = vld.sshfl [vmem:[#allocation1] sm:$0xff pattern:$0x73625140]
  %v7564 = vld.sshfl [vmem:[#allocation1 + $0x20] sm:$0xff pattern:$0x73625140]
  %7581 = vst.msk [vmem:[%s5] sm:$0xff] %vm508, %v7493
  %7582 = vst.msk [vmem:[%s5 + $0x8] sm:$0xff] %vm508, %v7494
  %7583 = vst.msk [vmem:[%s5 + $0x10] sm:$0xff] %vm508, %v7503
  %7584 = vst.msk [vmem:[%s5 + $0x18] sm:$0xff] %vm508, %v7504
  %7585 = vst.msk [vmem:[%s5 + $0x20] sm:$0xff] %vm508, %v7513
  %7586 = vst.msk [vmem:[%s5 + $0x28] sm:$0xff] %vm508, %v7514
  %7587 = vst.msk [vmem:[%s5 + $0x30] sm:$0xff] %vm508, %v7523
  %7588 = vst.msk [vmem:[%s5 + $0x38] sm:$0xff] %vm508, %v7524
  %7589 = vst.msk [vmem:[%s5 + $0x40] sm:$0xff] %vm508, %v7533
  %7590 = vst.msk [vmem:[%s5 + $0x48] sm:$0xff] %vm508, %v7534
  %7591 = vst.msk [vmem:[%s5 + $0x50] sm:$0xff] %vm508, %v7543
  %7592 = vst.msk [vmem:[%s5 + $0x58] sm:$0xff] %vm508, %v7544
  %7593 = vst.msk [vmem:[%s5 + $0x60] sm:$0xff] %vm508, %v7553
  %7594 = vst.msk [vmem:[%s5 + $0x68] sm:$0xff] %vm508, %v7554
  %7595 = vst.msk [vmem:[%s5 + $0x70] sm:$0xff] %vm508, %v7563
  %7596 = vst.msk [vmem:[%s5 + $0x78] sm:$0xff] %vm508, %v7564
  // Predicated region
  $region37: #{double_conv_pallas.1} parent=0 // pred_check
    _
  $region38: #{double_conv_pallas.1} parent=0 // pred_check_branch
    %7598 = sbr.rel (0) target = $region40
  $region39: #{double_conv_pallas.1} parent=0 // pred_region
    _
  $region40: #{double_conv_pallas.1} parent=0 // pred_fallthru
    _
  // Predicated region
  $region41: #{double_conv_pallas.1} parent=0 // pred_check
    _
  $region42: #{double_conv_pallas.1} parent=0 // pred_check_branch
    %7600 = sbr.rel (0) target = $region44
  $region43: #{double_conv_pallas.1} parent=0 // pred_region
    _
  $region44: #{double_conv_pallas.1} parent=0 // pred_fallthru
    _
  %7601 = vsyncmov [#allocation4]
  %s7602 = vpop.sfrf %7601
  %p7603 = scmp.eq.s32.totalorder %s7602, 0
  %p7604 = pneg %p7603
  %7606 = shalt.err (%p7604)

</llo_original>
